<compile_context>
chip_gen: v6e
topology: v6e:2x2x1
jax: 0.10.0
libtpu: 0.0.40
codegen_flags: <defaults>
</compile_context>

<pallas_src>
import jax
import jax.numpy as jnp
from jax.experimental import pallas as pl
from jax.experimental.pallas import tpu as pltpu

EPS = 1e-5
NEG_SLOPE = 0.2
# bf16 MXU inputs with f32 accumulation on all of v5e/v6e/v7x (v5e's MXU bf16
# path is its full-rate path; elementwise math stays in f32 for its VPU).
MXU_INPUT_DTYPE = jnp.bfloat16


def _leaky(x):
    return jnp.where(x >= 0, x, NEG_SLOPE * x)


def _conv3x3_patches(a):
    """im2col for a 3x3 'same' conv: (NB, H, W, C) -> (NB*H*W, 9*C).

    Row shifts (dy) are leading-dim concats (pure vreg moves); column shifts
    (dx) use pltpu.roll on the W (sublane) axis -- XLU work on an otherwise
    idle slot -- followed by a border mask.  No padded scratch buffer.
    """
    NB, H, W, C = a.shape
    zrow = jnp.zeros((NB, 1, W, C), a.dtype)
    wcol = jax.lax.broadcasted_iota(jnp.int32, (NB, H, W, C), 2)
    taps = []
    for oy in (-1, 0, 1):
        if oy == -1:
            ay = jnp.concatenate([zrow, a[:, : H - 1]], axis=1)
        elif oy == 1:
            ay = jnp.concatenate([a[:, 1:], zrow], axis=1)
        else:
            ay = a
        for ox in (-1, 0, 1):
            if ox == 0:
                t = ay
            elif ox == -1:
                # t[..., w, :] = ay[..., w - 1, :], zero at the left edge.
                t = jnp.where(wcol == 0, 0.0, pltpu.roll(ay, 1, axis=2))
            else:
                # t[..., w, :] = ay[..., w + 1, :], zero at the right edge.
                t = jnp.where(wcol == W - 1, 0.0, pltpu.roll(ay, W - 1, axis=2))
            taps.append(t)
    # (NB, H, W, 9*C) -> (NB*H*W, 9*C); pure row-regrouping (W % 8 == 0).
    return jnp.concatenate(taps, axis=-1).reshape(NB * H * W, 9 * C)


# ---------------------------------------------------------------------------
# Pass A: fused BN1 + LeakyReLU + Conv3x3 (in->in) as one K=9*Cin MXU matmul;
#         emits bf16 h1 and per-block BN2 partial statistics (f32).
# ---------------------------------------------------------------------------
def conv1_kernel(x_ref, sb1_ref, w1_ref, h1_ref, stat_ref):
    NB, H, W, C = x_ref.shape
    sb = sb1_ref[...]
    s1, t1, b1 = sb[0:1], sb[1:2], sb[2:3]                    # each (1, C)

    a = _leaky(x_ref[...] * s1 + t1)                          # fused BN1 scale/bias
    patches = _conv3x3_patches(a).astype(w1_ref.dtype)        # (NB*H*W, 9C) bf16
    h = jnp.dot(patches, w1_ref[...],
                preferred_element_type=jnp.float32) + b1      # (NB*H*W, C) f32

    # One-pass BN2 statistics in f32, before the bf16 narrowing store.
    stat_ref[0] = jnp.concatenate(
        [jnp.sum(h, axis=0, keepdims=True),
         jnp.sum(h * h, axis=0, keepdims=True)], axis=0)      # (2, C)
    h1_ref[...] = h.reshape(NB, H, W, C).astype(h1_ref.dtype)


# ---------------------------------------------------------------------------
# Pass B: fused BN2 + LeakyReLU + Conv3x3 (in->out) + AvgPool2x2
#         + 1x1 shortcut conv on the pre-pooled raw input.
# ---------------------------------------------------------------------------
def conv2_kernel(h1_ref, xp_ref, sb2_ref, w2_ref, ws_ref, bo_ref, y_ref, pool_ref):
    NB, H, W, C = h1_ref.shape
    Cout = w2_ref.shape[-1]
    HP, WP = H // 2, W // 2

    sb = sb2_ref[...]
    s2, t2 = sb[0:1], sb[1:2]                                 # (1, C)
    bo = bo_ref[...]
    b2, bs = bo[0:1], bo[1:2]                                 # (1, Cout)

    a2 = _leaky(h1_ref[...].astype(jnp.float32) * s2 + t2)    # fused BN2 scale/bias
    patches = _conv3x3_patches(a2).astype(w2_ref.dtype)
    c2 = jnp.dot(patches, w2_ref[...],
                 preferred_element_type=jnp.float32) + b2     # (NB*H*W, Cout)

    # Fused 2x2 average pool: pair rows with a leading-dim split, pair + select
    # even columns with one strided sublane read from VMEM scratch (no W//2-way
    # slice/concat chain).
    cr = c2.reshape(NB, HP, 2, W, Cout)
    pool_ref[...] = cr[:, :, 0] + cr[:, :, 1]                 # (NB, HP, W, Cout)
    cp = 0.25 * (pool_ref[:, :, pl.ds(0, WP, stride=2), :]
                 + pool_ref[:, :, pl.ds(1, WP, stride=2), :])  # (NB, HP, WP, Cout)

    # 1x1 shortcut conv on the pre-pooled raw input (AvgPool and Conv1x1 commute).
    xp = xp_ref[...].reshape(NB * HP * WP, C).astype(ws_ref.dtype)
    sc = jnp.dot(xp, ws_ref[...],
                 preferred_element_type=jnp.float32) + bs     # (NB*HP*WP, Cout)

    y_ref[...] = cp + sc.reshape(NB, HP, WP, Cout)


def _batch_block(N, per_image_bytes, target_bytes=1 << 20):
    """Largest divisor of N whose x block stays under `target_bytes`; for larger
    batches keep >= 4 grid steps (>= 2 per TensorCore on v7x megacore)."""
    nb = 1
    for d in range(1, N + 1):
        if N % d:
            continue
        if d * per_image_bytes > target_bytes:
            continue
        if N >= 8 and N // d < 4:
            continue
        nb = d
    return nb


def res_block1(x_nchw, params):
    """ResBlock1 forward (PyTorch training-mode BatchNorm semantics).

    Accepts/returns NCHW; internally NHWC (channels on the lane axis).
    Requires even H and W (same condition for AvgPool2d(2,2) to be lossless).
    """
    N, Cin, H, W = x_nchw.shape
    Cout = params["w2"].shape[-1]
    assert H % 2 == 0 and W % 2 == 0, "even spatial dims required"
    HP, WP = H // 2, W // 2

    x = jnp.transpose(x_nchw, (0, 2, 3, 1)).astype(jnp.float32)        # NHWC

    # --- host/XLA prologue (fused with the transpose): BN1 stats + pooled x ---
    mean1 = jnp.mean(x, axis=(0, 1, 2))                                 # (Cin,)
    var1 = jnp.var(x, axis=(0, 1, 2))                                   # biased
    s1 = params["g1"] * jax.lax.rsqrt(var1 + EPS)
    t1 = params["be1"] - mean1 * s1
    sb1 = jnp.stack([s1, t1, params["b1"]], axis=0)                     # (3, Cin)
    xp = x.reshape(N, HP, 2, WP, 2, Cin).mean(axis=(2, 4))              # AvgPool2d(2)
    xp = xp.reshape(N, HP * WP, Cin)

    NB = _batch_block(N, H * W * Cin * 4)
    G = N // NB
    cparams = pltpu.CompilerParams(
        dimension_semantics=("parallel",),
        vmem_limit_bytes=48 * 1024 * 1024)

    # --- pass A: BN1 + LeakyReLU + conv1 (bf16 h1, BN2 partial stats) ---
    w1b = params["w1"].astype(MXU_INPUT_DTYPE)
    h1, stats2 = pl.pallas_call(
        conv1_kernel,
        grid=(G,),
        in_specs=[pl.BlockSpec((NB, H, W, Cin), lambda g: (g, 0, 0, 0)),
                  pl.BlockSpec((3, Cin), lambda g: (0, 0)),
                  pl.BlockSpec((9 * Cin, Cin), lambda g: (0, 0))],
        out_specs=(pl.BlockSpec((NB, H, W, Cin), lambda g: (g, 0, 0, 0)),
                   pl.BlockSpec((1, 2, Cin), lambda g: (g, 0, 0))),
        out_shape=(jax.ShapeDtypeStruct((N, H, W, Cin), jnp.bfloat16),
                   jax.ShapeDtypeStruct((G, 2, Cin), jnp.float32)),
        compiler_params=cparams,
    )(x, sb1, w1b)

    # --- BN2 fused scale/bias from the one-pass statistics ---
    cnt = jnp.float32(N * H * W)
    mean2 = jnp.sum(stats2[:, 0, :], axis=0) / cnt
    var2 = jnp.maximum(jnp.sum(stats2[:, 1, :], axis=0) / cnt - mean2 * mean2, 0.0)
    s2 = params["g2"] * jax.lax.rsqrt(var2 + EPS)
    t2 = params["be2"] - mean2 * s2
    sb2 = jnp.stack([s2, t2], axis=0)                                   # (2, Cin)
    bo = jnp.stack([params["b2"], params["bs"]], axis=0)                # (2, Cout)

    # --- pass B: BN2 + LeakyReLU + conv2 + fused 2x2 avg-pool + 1x1 shortcut ---
    w2b = params["w2"].astype(MXU_INPUT_DTYPE)
    wsb = params["ws"].astype(MXU_INPUT_DTYPE)
    y = pl.pallas_call(
        conv2_kernel,
        grid=(G,),
        in_specs=[pl.BlockSpec((NB, H, W, Cin), lambda g: (g, 0, 0, 0)),
                  pl.BlockSpec((NB, HP * WP, Cin), lambda g: (g, 0, 0)),
                  pl.BlockSpec((2, Cin), lambda g: (0, 0)),
                  pl.BlockSpec((9 * Cin, Cout), lambda g: (0, 0)),
                  pl.BlockSpec((Cin, Cout), lambda g: (0, 0)),
                  pl.BlockSpec((2, Cout), lambda g: (0, 0))],
        out_specs=pl.BlockSpec((NB, HP, WP, Cout), lambda g: (g, 0, 0, 0)),
        out_shape=jax.ShapeDtypeStruct((N, HP, WP, Cout), jnp.float32),
        scratch_shapes=[pltpu.VMEM((NB, HP, W, Cout), jnp.float32)],
        compiler_params=cparams,
    )(h1, xp, sb2, w2b, wsb, bo)

    return jnp.transpose(y, (0, 3, 1, 2))                               # NCHW


def init_params(key, in_dim, out_dim):
    ks = jax.random.split(key, 6)

    def u(k, shape, fan_in):
        bound = 1.0 / jnp.sqrt(jnp.float32(fan_in))
        return jax.random.uniform(k, shape, jnp.float32, -bound, bound)

    # 3x3 conv weights stored pre-flattened as (kh*kw*Cin, Cout) so the kernels
    # run a single K = 9*Cin matmul; the 1x1 shortcut is stored as (Cin, Cout).
    w1 = u(ks[0], (3, 3, in_dim, in_dim), in_dim * 9).reshape(9 * in_dim, in_dim)
    b1 = u(ks[1], (in_dim,), in_dim * 9)
    w2 = u(ks[2], (3, 3, in_dim, out_dim), in_dim * 9).reshape(9 * in_dim, out_dim)
    b2 = u(ks[3], (out_dim,), in_dim * 9)
    ws = u(ks[4], (in_dim, out_dim), in_dim)
    bs = u(ks[5], (out_dim,), in_dim)
    return dict(
        g1=jnp.ones((in_dim,), jnp.float32),
        be1=jnp.zeros((in_dim,), jnp.float32),
        w1=w1, b1=b1,
        g2=jnp.ones((in_dim,), jnp.float32),
        be2=jnp.zeros((in_dim,), jnp.float32),
        w2=w2, b2=b2, ws=ws, bs=bs,
    )


if __name__ == "__main__":
    key = jax.random.PRNGKey(0)
    kx, kp = jax.random.split(key)
    in_dim, out_dim = 4, 8
    x = jax.random.normal(kx, (2, in_dim, 16, 16), jnp.float32)          # NCHW input
    params = init_params(kp, in_dim, out_dim)

    out = jax.jit(res_block1)(x, params)
    jax.block_until_ready(out)
    assert out.shape == (2, out_dim, 8, 8), out.shape
    assert bool(jnp.all(jnp.isfinite(out)))
    print("KERNEL_OK")
</pallas_src>

<mosaic_0001>
module attributes {stable_mosaic.version = 11 : i64} {
  func.func @conv1_kernel(%arg0: i32, %arg1: memref<2x16x16x4xf32, #tpu.memory_space<vmem>>, %arg2: memref<3x4xf32, #tpu.memory_space<vmem>>, %arg3: memref<36x4xbf16, #tpu.memory_space<vmem>>, %arg4: memref<2x16x16x4xbf16, #tpu.memory_space<vmem>>, %arg5: memref<1x2x4xf32, #tpu.memory_space<vmem>>) attributes {dimension_semantics = [#tpu.dimension_semantics<parallel>], iteration_bounds = array<i64: 1>, scalar_prefetch = 0 : i64, scratch_operands = 0 : i64, tpu.core_type = #tpu.core_type<tc>, window_params = [{transform_indices = @transform_0, window_bounds = array<i64: 2, 16, 16, 4>}, {pipeline_mode = #tpu.pipeline_mode<synchronous>, transform_indices = @transform_1, window_bounds = array<i64: 3, 4>}, {pipeline_mode = #tpu.pipeline_mode<synchronous>, transform_indices = @transform_2, window_bounds = array<i64: 36, 4>}, {transform_indices = @transform_3, window_bounds = array<i64: 2, 16, 16, 4>}, {transform_indices = @transform_4, window_bounds = array<i64: 1, 2, 4>}]} {
    %c0 = arith.constant 0 : index
    %c0_0 = arith.constant 0 : index
    %0 = vector.load %arg2[%c0, %c0_0] : memref<3x4xf32, #tpu.memory_space<vmem>>, vector<3x4xf32>
    %1 = vector.extract_strided_slice %0 {offsets = [0, 0], sizes = [1, 4], strides = [1, 1]} : vector<3x4xf32> to vector<1x4xf32>
    %2 = vector.extract_strided_slice %0 {offsets = [1, 0], sizes = [1, 4], strides = [1, 1]} : vector<3x4xf32> to vector<1x4xf32>
    %3 = vector.extract_strided_slice %0 {offsets = [2, 0], sizes = [1, 4], strides = [1, 1]} : vector<3x4xf32> to vector<1x4xf32>
    %c0_1 = arith.constant 0 : index
    %c0_2 = arith.constant 0 : index
    %c0_3 = arith.constant 0 : index
    %c0_4 = arith.constant 0 : index
    %4 = vector.load %arg1[%c0_1, %c0_2, %c0_3, %c0_4] : memref<2x16x16x4xf32, #tpu.memory_space<vmem>>, vector<2x16x16x4xf32>
    %5 = vector.shape_cast %1 : vector<1x4xf32> to vector<1x1x1x4xf32>
    %6 = vector.broadcast %5 : vector<1x1x1x4xf32> to vector<2x16x16x4xf32>
    %7 = arith.mulf %4, %6 : vector<2x16x16x4xf32>
    %8 = vector.shape_cast %2 : vector<1x4xf32> to vector<1x1x1x4xf32>
    %9 = vector.broadcast %8 : vector<1x1x1x4xf32> to vector<2x16x16x4xf32>
    %10 = arith.addf %7, %9 : vector<2x16x16x4xf32>
    %cst = arith.constant 0.000000e+00 : f32
    %11 = vector.broadcast %cst : f32 to vector<2x16x16x4xf32>
    %12 = arith.cmpf oge, %10, %11 : vector<2x16x16x4xf32>
    %cst_5 = arith.constant 2.000000e-01 : f32
    %13 = vector.broadcast %cst_5 : f32 to vector<2x16x16x4xf32>
    %14 = arith.mulf %13, %10 : vector<2x16x16x4xf32>
    %15 = arith.select %12, %10, %14 : vector<2x16x16x4xi1>, vector<2x16x16x4xf32>
    %cst_6 = arith.constant 0.000000e+00 : f32
    %16 = vector.broadcast %cst_6 : f32 to vector<2x1x16x4xf32>
    %17 = tpu.iota {dimensions = array<i32: 2>} : vector<2x16x16x4xi32>
    %18 = vector.extract_strided_slice %15 {offsets = [0, 0, 0, 0], sizes = [2, 15, 16, 4], strides = [1, 1, 1, 1]} : vector<2x16x16x4xf32> to vector<2x15x16x4xf32>
    %19 = tpu.concatenate %16, %18 in 1 : vector<2x1x16x4xf32>, vector<2x15x16x4xf32> -> vector<2x16x16x4xf32>
    %c0_i32 = arith.constant 0 : i32
    %20 = vector.broadcast %c0_i32 : i32 to vector<2x16x16x4xi32>
    %21 = arith.cmpi eq, %17, %20 : vector<2x16x16x4xi32>
    %c1_i32 = arith.constant 1 : i32
    %22 = tpu.dynamic_rotate %19 by %c1_i32 dim 2 : vector<2x16x16x4xf32>, i32 -> vector<2x16x16x4xf32>
    %cst_7 = arith.constant 0.000000e+00 : f32
    %23 = vector.broadcast %cst_7 : f32 to vector<2x16x16x4xf32>
    %24 = arith.select %21, %23, %22 : vector<2x16x16x4xi1>, vector<2x16x16x4xf32>
    %c15_i32 = arith.constant 15 : i32
    %25 = vector.broadcast %c15_i32 : i32 to vector<2x16x16x4xi32>
    %26 = arith.cmpi eq, %17, %25 : vector<2x16x16x4xi32>
    %c15_i32_8 = arith.constant 15 : i32
    %27 = tpu.dynamic_rotate %19 by %c15_i32_8 dim 2 : vector<2x16x16x4xf32>, i32 -> vector<2x16x16x4xf32>
    %cst_9 = arith.constant 0.000000e+00 : f32
    %28 = vector.broadcast %cst_9 : f32 to vector<2x16x16x4xf32>
    %29 = arith.select %26, %28, %27 : vector<2x16x16x4xi1>, vector<2x16x16x4xf32>
    %c0_i32_10 = arith.constant 0 : i32
    %30 = vector.broadcast %c0_i32_10 : i32 to vector<2x16x16x4xi32>
    %31 = arith.cmpi eq, %17, %30 : vector<2x16x16x4xi32>
    %c1_i32_11 = arith.constant 1 : i32
    %32 = tpu.dynamic_rotate %15 by %c1_i32_11 dim 2 : vector<2x16x16x4xf32>, i32 -> vector<2x16x16x4xf32>
    %cst_12 = arith.constant 0.000000e+00 : f32
    %33 = vector.broadcast %cst_12 : f32 to vector<2x16x16x4xf32>
    %34 = arith.select %31, %33, %32 : vector<2x16x16x4xi1>, vector<2x16x16x4xf32>
    %c15_i32_13 = arith.constant 15 : i32
    %35 = vector.broadcast %c15_i32_13 : i32 to vector<2x16x16x4xi32>
    %36 = arith.cmpi eq, %17, %35 : vector<2x16x16x4xi32>
    %c15_i32_14 = arith.constant 15 : i32
    %37 = tpu.dynamic_rotate %15 by %c15_i32_14 dim 2 : vector<2x16x16x4xf32>, i32 -> vector<2x16x16x4xf32>
    %cst_15 = arith.constant 0.000000e+00 : f32
    %38 = vector.broadcast %cst_15 : f32 to vector<2x16x16x4xf32>
    %39 = arith.select %36, %38, %37 : vector<2x16x16x4xi1>, vector<2x16x16x4xf32>
    %40 = vector.extract_strided_slice %15 {offsets = [0, 1, 0, 0], sizes = [2, 15, 16, 4], strides = [1, 1, 1, 1]} : vector<2x16x16x4xf32> to vector<2x15x16x4xf32>
    %41 = tpu.concatenate %40, %16 in 1 : vector<2x15x16x4xf32>, vector<2x1x16x4xf32> -> vector<2x16x16x4xf32>
    %c0_i32_16 = arith.constant 0 : i32
    %42 = vector.broadcast %c0_i32_16 : i32 to vector<2x16x16x4xi32>
    %43 = arith.cmpi eq, %17, %42 : vector<2x16x16x4xi32>
    %c1_i32_17 = arith.constant 1 : i32
    %44 = tpu.dynamic_rotate %41 by %c1_i32_17 dim 2 : vector<2x16x16x4xf32>, i32 -> vector<2x16x16x4xf32>
    %cst_18 = arith.constant 0.000000e+00 : f32
    %45 = vector.broadcast %cst_18 : f32 to vector<2x16x16x4xf32>
    %46 = arith.select %43, %45, %44 : vector<2x16x16x4xi1>, vector<2x16x16x4xf32>
    %c15_i32_19 = arith.constant 15 : i32
    %47 = vector.broadcast %c15_i32_19 : i32 to vector<2x16x16x4xi32>
    %48 = arith.cmpi eq, %17, %47 : vector<2x16x16x4xi32>
    %c15_i32_20 = arith.constant 15 : i32
    %49 = tpu.dynamic_rotate %41 by %c15_i32_20 dim 2 : vector<2x16x16x4xf32>, i32 -> vector<2x16x16x4xf32>
    %cst_21 = arith.constant 0.000000e+00 : f32
    %50 = vector.broadcast %cst_21 : f32 to vector<2x16x16x4xf32>
    %51 = arith.select %48, %50, %49 : vector<2x16x16x4xi1>, vector<2x16x16x4xf32>
    %52 = tpu.concatenate %24, %19, %29, %34, %15, %39, %46, %41, %51 in 3 : vector<2x16x16x4xf32>, vector<2x16x16x4xf32>, vector<2x16x16x4xf32>, vector<2x16x16x4xf32>, vector<2x16x16x4xf32>, vector<2x16x16x4xf32>, vector<2x16x16x4xf32>, vector<2x16x16x4xf32>, vector<2x16x16x4xf32> -> vector<2x16x16x36xf32>
    %53 = vector.shape_cast %52 : vector<2x16x16x36xf32> to vector<512x36xf32>
    %54 = arith.truncf %53 : vector<512x36xf32> to vector<512x36xbf16>
    %c0_22 = arith.constant 0 : index
    %c0_23 = arith.constant 0 : index
    %55 = vector.load %arg3[%c0_22, %c0_23] : memref<36x4xbf16, #tpu.memory_space<vmem>>, vector<36x4xbf16>
    %cst_24 = arith.constant dense<0.000000e+00> : vector<512x4xf32>
    %56 = tpu.matmul %54, %55, %cst_24 {dimension_numbers = #tpu.dot_dimension_numbers<[1], [0], [0], [1], [0, 0, 1, 1], [], []>} : vector<512x36xbf16>, vector<36x4xbf16>, vector<512x4xf32> -> vector<512x4xf32>
    %57 = vector.broadcast %3 : vector<1x4xf32> to vector<512x4xf32>
    %58 = arith.addf %56, %57 : vector<512x4xf32>
    %cst_25 = arith.constant dense<0.000000e+00> : vector<4xf32>
    %59 = vector.multi_reduction <add>, %58, %cst_25 [0] : vector<512x4xf32> to vector<4xf32>
    %60 = vector.shape_cast %59 : vector<4xf32> to vector<1x4xf32>
    %61 = arith.mulf %58, %58 : vector<512x4xf32>
    %cst_26 = arith.constant dense<0.000000e+00> : vector<4xf32>
    %62 = vector.multi_reduction <add>, %61, %cst_26 [0] : vector<512x4xf32> to vector<4xf32>
    %63 = vector.shape_cast %62 : vector<4xf32> to vector<1x4xf32>
    %64 = tpu.concatenate %60, %63 in 0 : vector<1x4xf32>, vector<1x4xf32> -> vector<2x4xf32>
    %c0_27 = arith.constant 0 : index
    %c0_28 = arith.constant 0 : index
    %c0_29 = arith.constant 0 : index
    %65 = vector.load %arg5[%c0_27, %c0_28, %c0_29] : memref<1x2x4xf32, #tpu.memory_space<vmem>>, vector<1x2x4xf32>
    %66 = vector.shape_cast %65 : vector<1x2x4xf32> to vector<2x4xf32>
    %67 = vector.shape_cast %64 : vector<2x4xf32> to vector<1x2x4xf32>
    tpu.vector_store %arg5[%c0_27, %c0_28, %c0_29], %67 {strides = array<i32>} : memref<1x2x4xf32, #tpu.memory_space<vmem>>, vector<1x2x4xf32>,
    %68 = vector.shape_cast %58 : vector<512x4xf32> to vector<2x16x16x4xf32>
    %69 = arith.truncf %68 : vector<2x16x16x4xf32> to vector<2x16x16x4xbf16>
    %c0_30 = arith.constant 0 : index
    %c0_31 = arith.constant 0 : index
    %c0_32 = arith.constant 0 : index
    %c0_33 = arith.constant 0 : index
    %70 = vector.load %arg4[%c0_30, %c0_31, %c0_32, %c0_33] : memref<2x16x16x4xbf16, #tpu.memory_space<vmem>>, vector<2x16x16x4xbf16>
    tpu.vector_store %arg4[%c0_30, %c0_31, %c0_32, %c0_33], %69 {strides = array<i32>} : memref<2x16x16x4xbf16, #tpu.memory_space<vmem>>, vector<2x16x16x4xbf16>,
    return
  }
  func.func @transform_0(%arg0: i32) -> (i32, i32, i32, i32) {
    %c0_i32 = arith.constant 0 : i32
    %c0_i32_0 = arith.constant 0 : i32
    %c0_i32_1 = arith.constant 0 : i32
    %c0_i32_2 = arith.constant 0 : i32
    return %arg0, %c0_i32, %c0_i32_0, %c0_i32_1 : i32, i32, i32, i32
  }
  func.func @transform_1(%arg0: i32) -> (i32, i32) {
    %c0_i32 = arith.constant 0 : i32
    %c0_i32_0 = arith.constant 0 : i32
    %c0_i32_1 = arith.constant 0 : i32
    return %c0_i32, %c0_i32_0 : i32, i32
  }
  func.func @transform_2(%arg0: i32) -> (i32, i32) {
    %c0_i32 = arith.constant 0 : i32
    %c0_i32_0 = arith.constant 0 : i32
    %c0_i32_1 = arith.constant 0 : i32
    return %c0_i32, %c0_i32_0 : i32, i32
  }
  func.func @transform_3(%arg0: i32) -> (i32, i32, i32, i32) {
    %c0_i32 = arith.constant 0 : i32
    %c0_i32_0 = arith.constant 0 : i32
    %c0_i32_1 = arith.constant 0 : i32
    %c0_i32_2 = arith.constant 0 : i32
    return %arg0, %c0_i32, %c0_i32_0, %c0_i32_1 : i32, i32, i32, i32
  }
  func.func @transform_4(%arg0: i32) -> (i32, i32, i32) {
    %c0_i32 = arith.constant 0 : i32
    %c0_i32_0 = arith.constant 0 : i32
    %c0_i32_1 = arith.constant 0 : i32
    return %arg0, %c0_i32, %c0_i32_0 : i32, i32, i32
  }
}

module attributes {stable_mosaic.version = 11 : i64} {
  func.func @conv2_kernel(%arg0: i32, %arg1: memref<2x16x16x4xbf16, #tpu.memory_space<vmem>>, %arg2: memref<2x64x4xf32, #tpu.memory_space<vmem>>, %arg3: memref<2x4xf32, #tpu.memory_space<vmem>>, %arg4: memref<36x8xbf16, #tpu.memory_space<vmem>>, %arg5: memref<4x8xbf16, #tpu.memory_space<vmem>>, %arg6: memref<2x8xf32, #tpu.memory_space<vmem>>, %arg7: memref<2x8x8x8xf32, #tpu.memory_space<vmem>>, %arg8: memref<2x8x16x8xf32, #tpu.memory_space<vmem>>) attributes {dimension_semantics = [#tpu.dimension_semantics<parallel>], iteration_bounds = array<i64: 1>, scalar_prefetch = 0 : i64, scratch_operands = 1 : i64, tpu.core_type = #tpu.core_type<tc>, window_params = [{transform_indices = @transform_0, window_bounds = array<i64: 2, 16, 16, 4>}, {transform_indices = @transform_1, window_bounds = array<i64: 2, 64, 4>}, {pipeline_mode = #tpu.pipeline_mode<synchronous>, transform_indices = @transform_2, window_bounds = array<i64: 2, 4>}, {pipeline_mode = #tpu.pipeline_mode<synchronous>, transform_indices = @transform_3, window_bounds = array<i64: 36, 8>}, {pipeline_mode = #tpu.pipeline_mode<synchronous>, transform_indices = @transform_4, window_bounds = array<i64: 4, 8>}, {pipeline_mode = #tpu.pipeline_mode<synchronous>, transform_indices = @transform_5, window_bounds = array<i64: 2, 8>}, {transform_indices = @transform_6, window_bounds = array<i64: 2, 8, 8, 8>}]} {
    %c0 = arith.constant 0 : index
    %c0_0 = arith.constant 0 : index
    %0 = vector.load %arg3[%c0, %c0_0] : memref<2x4xf32, #tpu.memory_space<vmem>>, vector<2x4xf32>
    %1 = vector.extract_strided_slice %0 {offsets = [0, 0], sizes = [1, 4], strides = [1, 1]} : vector<2x4xf32> to vector<1x4xf32>
    %2 = vector.extract_strided_slice %0 {offsets = [1, 0], sizes = [1, 4], strides = [1, 1]} : vector<2x4xf32> to vector<1x4xf32>
    %c0_1 = arith.constant 0 : index
    %c0_2 = arith.constant 0 : index
    %3 = vector.load %arg6[%c0_1, %c0_2] : memref<2x8xf32, #tpu.memory_space<vmem>>, vector<2x8xf32>
    %4 = vector.extract_strided_slice %3 {offsets = [0, 0], sizes = [1, 8], strides = [1, 1]} : vector<2x8xf32> to vector<1x8xf32>
    %5 = vector.extract_strided_slice %3 {offsets = [1, 0], sizes = [1, 8], strides = [1, 1]} : vector<2x8xf32> to vector<1x8xf32>
    %c0_3 = arith.constant 0 : index
    %c0_4 = arith.constant 0 : index
    %c0_5 = arith.constant 0 : index
    %c0_6 = arith.constant 0 : index
    %6 = vector.load %arg1[%c0_3, %c0_4, %c0_5, %c0_6] : memref<2x16x16x4xbf16, #tpu.memory_space<vmem>>, vector<2x16x16x4xbf16>
    %7 = arith.extf %6 : vector<2x16x16x4xbf16> to vector<2x16x16x4xf32>
    %8 = vector.shape_cast %1 : vector<1x4xf32> to vector<1x1x1x4xf32>
    %9 = vector.broadcast %8 : vector<1x1x1x4xf32> to vector<2x16x16x4xf32>
    %10 = arith.mulf %7, %9 : vector<2x16x16x4xf32>
    %11 = vector.shape_cast %2 : vector<1x4xf32> to vector<1x1x1x4xf32>
    %12 = vector.broadcast %11 : vector<1x1x1x4xf32> to vector<2x16x16x4xf32>
    %13 = arith.addf %10, %12 : vector<2x16x16x4xf32>
    %cst = arith.constant 0.000000e+00 : f32
    %14 = vector.broadcast %cst : f32 to vector<2x16x16x4xf32>
    %15 = arith.cmpf oge, %13, %14 : vector<2x16x16x4xf32>
    %cst_7 = arith.constant 2.000000e-01 : f32
    %16 = vector.broadcast %cst_7 : f32 to vector<2x16x16x4xf32>
    %17 = arith.mulf %16, %13 : vector<2x16x16x4xf32>
    %18 = arith.select %15, %13, %17 : vector<2x16x16x4xi1>, vector<2x16x16x4xf32>
    %cst_8 = arith.constant 0.000000e+00 : f32
    %19 = vector.broadcast %cst_8 : f32 to vector<2x1x16x4xf32>
    %20 = tpu.iota {dimensions = array<i32: 2>} : vector<2x16x16x4xi32>
    %21 = vector.extract_strided_slice %18 {offsets = [0, 0, 0, 0], sizes = [2, 15, 16, 4], strides = [1, 1, 1, 1]} : vector<2x16x16x4xf32> to vector<2x15x16x4xf32>
    %22 = tpu.concatenate %19, %21 in 1 : vector<2x1x16x4xf32>, vector<2x15x16x4xf32> -> vector<2x16x16x4xf32>
    %c0_i32 = arith.constant 0 : i32
    %23 = vector.broadcast %c0_i32 : i32 to vector<2x16x16x4xi32>
    %24 = arith.cmpi eq, %20, %23 : vector<2x16x16x4xi32>
    %c1_i32 = arith.constant 1 : i32
    %25 = tpu.dynamic_rotate %22 by %c1_i32 dim 2 : vector<2x16x16x4xf32>, i32 -> vector<2x16x16x4xf32>
    %cst_9 = arith.constant 0.000000e+00 : f32
    %26 = vector.broadcast %cst_9 : f32 to vector<2x16x16x4xf32>
    %27 = arith.select %24, %26, %25 : vector<2x16x16x4xi1>, vector<2x16x16x4xf32>
    %c15_i32 = arith.constant 15 : i32
    %28 = vector.broadcast %c15_i32 : i32 to vector<2x16x16x4xi32>
    %29 = arith.cmpi eq, %20, %28 : vector<2x16x16x4xi32>
    %c15_i32_10 = arith.constant 15 : i32
    %30 = tpu.dynamic_rotate %22 by %c15_i32_10 dim 2 : vector<2x16x16x4xf32>, i32 -> vector<2x16x16x4xf32>
    %cst_11 = arith.constant 0.000000e+00 : f32
    %31 = vector.broadcast %cst_11 : f32 to vector<2x16x16x4xf32>
    %32 = arith.select %29, %31, %30 : vector<2x16x16x4xi1>, vector<2x16x16x4xf32>
    %c0_i32_12 = arith.constant 0 : i32
    %33 = vector.broadcast %c0_i32_12 : i32 to vector<2x16x16x4xi32>
    %34 = arith.cmpi eq, %20, %33 : vector<2x16x16x4xi32>
    %c1_i32_13 = arith.constant 1 : i32
    %35 = tpu.dynamic_rotate %18 by %c1_i32_13 dim 2 : vector<2x16x16x4xf32>, i32 -> vector<2x16x16x4xf32>
    %cst_14 = arith.constant 0.000000e+00 : f32
    %36 = vector.broadcast %cst_14 : f32 to vector<2x16x16x4xf32>
    %37 = arith.select %34, %36, %35 : vector<2x16x16x4xi1>, vector<2x16x16x4xf32>
    %c15_i32_15 = arith.constant 15 : i32
    %38 = vector.broadcast %c15_i32_15 : i32 to vector<2x16x16x4xi32>
    %39 = arith.cmpi eq, %20, %38 : vector<2x16x16x4xi32>
    %c15_i32_16 = arith.constant 15 : i32
    %40 = tpu.dynamic_rotate %18 by %c15_i32_16 dim 2 : vector<2x16x16x4xf32>, i32 -> vector<2x16x16x4xf32>
    %cst_17 = arith.constant 0.000000e+00 : f32
    %41 = vector.broadcast %cst_17 : f32 to vector<2x16x16x4xf32>
    %42 = arith.select %39, %41, %40 : vector<2x16x16x4xi1>, vector<2x16x16x4xf32>
    %43 = vector.extract_strided_slice %18 {offsets = [0, 1, 0, 0], sizes = [2, 15, 16, 4], strides = [1, 1, 1, 1]} : vector<2x16x16x4xf32> to vector<2x15x16x4xf32>
    %44 = tpu.concatenate %43, %19 in 1 : vector<2x15x16x4xf32>, vector<2x1x16x4xf32> -> vector<2x16x16x4xf32>
    %c0_i32_18 = arith.constant 0 : i32
    %45 = vector.broadcast %c0_i32_18 : i32 to vector<2x16x16x4xi32>
    %46 = arith.cmpi eq, %20, %45 : vector<2x16x16x4xi32>
    %c1_i32_19 = arith.constant 1 : i32
    %47 = tpu.dynamic_rotate %44 by %c1_i32_19 dim 2 : vector<2x16x16x4xf32>, i32 -> vector<2x16x16x4xf32>
    %cst_20 = arith.constant 0.000000e+00 : f32
    %48 = vector.broadcast %cst_20 : f32 to vector<2x16x16x4xf32>
    %49 = arith.select %46, %48, %47 : vector<2x16x16x4xi1>, vector<2x16x16x4xf32>
    %c15_i32_21 = arith.constant 15 : i32
    %50 = vector.broadcast %c15_i32_21 : i32 to vector<2x16x16x4xi32>
    %51 = arith.cmpi eq, %20, %50 : vector<2x16x16x4xi32>
    %c15_i32_22 = arith.constant 15 : i32
    %52 = tpu.dynamic_rotate %44 by %c15_i32_22 dim 2 : vector<2x16x16x4xf32>, i32 -> vector<2x16x16x4xf32>
    %cst_23 = arith.constant 0.000000e+00 : f32
    %53 = vector.broadcast %cst_23 : f32 to vector<2x16x16x4xf32>
    %54 = arith.select %51, %53, %52 : vector<2x16x16x4xi1>, vector<2x16x16x4xf32>
    %55 = tpu.concatenate %27, %22, %32, %37, %18, %42, %49, %44, %54 in 3 : vector<2x16x16x4xf32>, vector<2x16x16x4xf32>, vector<2x16x16x4xf32>, vector<2x16x16x4xf32>, vector<2x16x16x4xf32>, vector<2x16x16x4xf32>, vector<2x16x16x4xf32>, vector<2x16x16x4xf32>, vector<2x16x16x4xf32> -> vector<2x16x16x36xf32>
    %56 = vector.shape_cast %55 : vector<2x16x16x36xf32> to vector<512x36xf32>
    %57 = arith.truncf %56 : vector<512x36xf32> to vector<512x36xbf16>
    %c0_24 = arith.constant 0 : index
    %c0_25 = arith.constant 0 : index
    %58 = vector.load %arg4[%c0_24, %c0_25] : memref<36x8xbf16, #tpu.memory_space<vmem>>, vector<36x8xbf16>
    %cst_26 = arith.constant dense<0.000000e+00> : vector<512x8xf32>
    %59 = tpu.matmul %57, %58, %cst_26 {dimension_numbers = #tpu.dot_dimension_numbers<[1], [0], [0], [1], [0, 0, 1, 1], [], []>} : vector<512x36xbf16>, vector<36x8xbf16>, vector<512x8xf32> -> vector<512x8xf32>
    %60 = vector.broadcast %4 : vector<1x8xf32> to vector<512x8xf32>
    %61 = arith.addf %59, %60 : vector<512x8xf32>
    %62 = vector.shape_cast %61 : vector<512x8xf32> to vector<2x8x2x16x8xf32>
    %63 = vector.extract_strided_slice %62 {offsets = [0, 0, 0, 0, 0], sizes = [2, 8, 1, 16, 8], strides = [1, 1, 1, 1, 1]} : vector<2x8x2x16x8xf32> to vector<2x8x1x16x8xf32>
    %64 = vector.shape_cast %63 : vector<2x8x1x16x8xf32> to vector<2x8x16x8xf32>
    %65 = vector.extract_strided_slice %62 {offsets = [0, 0, 1, 0, 0], sizes = [2, 8, 1, 16, 8], strides = [1, 1, 1, 1, 1]} : vector<2x8x2x16x8xf32> to vector<2x8x1x16x8xf32>
    %66 = vector.shape_cast %65 : vector<2x8x1x16x8xf32> to vector<2x8x16x8xf32>
    %67 = arith.addf %64, %66 : vector<2x8x16x8xf32>
    %c0_27 = arith.constant 0 : index
    %c0_28 = arith.constant 0 : index
    %c0_29 = arith.constant 0 : index
    %c0_30 = arith.constant 0 : index
    %68 = vector.load %arg8[%c0_27, %c0_28, %c0_29, %c0_30] : memref<2x8x16x8xf32, #tpu.memory_space<vmem>>, vector<2x8x16x8xf32>
    tpu.vector_store %arg8[%c0_27, %c0_28, %c0_29, %c0_30], %67 {strides = array<i32>} : memref<2x8x16x8xf32, #tpu.memory_space<vmem>>, vector<2x8x16x8xf32>,
    %c0_31 = arith.constant 0 : index
    %c0_32 = arith.constant 0 : index
    %c0_33 = arith.constant 0 : index
    %c0_34 = arith.constant 0 : index
    %69 = tpu.strided_load %arg8[%c0_31, %c0_32, %c0_33, %c0_34] {strides = array<i32: 1, 1, 2, 1>} : memref<2x8x16x8xf32, #tpu.memory_space<vmem>>, vector<2x8x8x8xf32>
    %c0_35 = arith.constant 0 : index
    %c0_36 = arith.constant 0 : index
    %c1 = arith.constant 1 : index
    %c0_37 = arith.constant 0 : index
    %70 = tpu.strided_load %arg8[%c0_35, %c0_36, %c1, %c0_37] {strides = array<i32: 1, 1, 2, 1>} : memref<2x8x16x8xf32, #tpu.memory_space<vmem>>, vector<2x8x8x8xf32>
    %71 = arith.addf %69, %70 : vector<2x8x8x8xf32>
    %cst_38 = arith.constant 2.500000e-01 : f32
    %72 = vector.broadcast %cst_38 : f32 to vector<2x8x8x8xf32>
    %73 = arith.mulf %72, %71 : vector<2x8x8x8xf32>
    %c0_39 = arith.constant 0 : index
    %c0_40 = arith.constant 0 : index
    %c0_41 = arith.constant 0 : index
    %74 = vector.load %arg2[%c0_39, %c0_40, %c0_41] : memref<2x64x4xf32, #tpu.memory_space<vmem>>, vector<2x64x4xf32>
    %75 = vector.shape_cast %74 : vector<2x64x4xf32> to vector<128x4xf32>
    %76 = arith.truncf %75 : vector<128x4xf32> to vector<128x4xbf16>
    %c0_42 = arith.constant 0 : index
    %c0_43 = arith.constant 0 : index
    %77 = vector.load %arg5[%c0_42, %c0_43] : memref<4x8xbf16, #tpu.memory_space<vmem>>, vector<4x8xbf16>
    %cst_44 = arith.constant dense<0.000000e+00> : vector<128x8xf32>
    %78 = tpu.matmul %76, %77, %cst_44 {dimension_numbers = #tpu.dot_dimension_numbers<[1], [0], [0], [1], [0, 0, 1, 1], [], []>} : vector<128x4xbf16>, vector<4x8xbf16>, vector<128x8xf32> -> vector<128x8xf32>
    %79 = vector.broadcast %5 : vector<1x8xf32> to vector<128x8xf32>
    %80 = arith.addf %78, %79 : vector<128x8xf32>
    %81 = vector.shape_cast %80 : vector<128x8xf32> to vector<2x8x8x8xf32>
    %82 = arith.addf %73, %81 : vector<2x8x8x8xf32>
    %c0_45 = arith.constant 0 : index
    %c0_46 = arith.constant 0 : index
    %c0_47 = arith.constant 0 : index
    %c0_48 = arith.constant 0 : index
    %83 = vector.load %arg7[%c0_45, %c0_46, %c0_47, %c0_48] : memref<2x8x8x8xf32, #tpu.memory_space<vmem>>, vector<2x8x8x8xf32>
    tpu.vector_store %arg7[%c0_45, %c0_46, %c0_47, %c0_48], %82 {strides = array<i32>} : memref<2x8x8x8xf32, #tpu.memory_space<vmem>>, vector<2x8x8x8xf32>,
    return
  }
  func.func @transform_0(%arg0: i32) -> (i32, i32, i32, i32) {
    %c0_i32 = arith.constant 0 : i32
    %c0_i32_0 = arith.constant 0 : i32
    %c0_i32_1 = arith.constant 0 : i32
    %c0_i32_2 = arith.constant 0 : i32
    return %arg0, %c0_i32, %c0_i32_0, %c0_i32_1 : i32, i32, i32, i32
  }
  func.func @transform_1(%arg0: i32) -> (i32, i32, i32) {
    %c0_i32 = arith.constant 0 : i32
    %c0_i32_0 = arith.constant 0 : i32
    %c0_i32_1 = arith.constant 0 : i32
    return %arg0, %c0_i32, %c0_i32_0 : i32, i32, i32
  }
  func.func @transform_2(%arg0: i32) -> (i32, i32) {
    %c0_i32 = arith.constant 0 : i32
    %c0_i32_0 = arith.constant 0 : i32
    %c0_i32_1 = arith.constant 0 : i32
    return %c0_i32, %c0_i32_0 : i32, i32
  }
  func.func @transform_3(%arg0: i32) -> (i32, i32) {
    %c0_i32 = arith.constant 0 : i32
    %c0_i32_0 = arith.constant 0 : i32
    %c0_i32_1 = arith.constant 0 : i32
    return %c0_i32, %c0_i32_0 : i32, i32
  }
  func.func @transform_4(%arg0: i32) -> (i32, i32) {
    %c0_i32 = arith.constant 0 : i32
    %c0_i32_0 = arith.constant 0 : i32
    %c0_i32_1 = arith.constant 0 : i32
    return %c0_i32, %c0_i32_0 : i32, i32
  }
  func.func @transform_5(%arg0: i32) -> (i32, i32) {
    %c0_i32 = arith.constant 0 : i32
    %c0_i32_0 = arith.constant 0 : i32
    %c0_i32_1 = arith.constant 0 : i32
    return %c0_i32, %c0_i32_0 : i32, i32
  }
  func.func @transform_6(%arg0: i32) -> (i32, i32, i32, i32) {
    %c0_i32 = arith.constant 0 : i32
    %c0_i32_0 = arith.constant 0 : i32
    %c0_i32_1 = arith.constant 0 : i32
    %c0_i32_2 = arith.constant 0 : i32
    return %arg0, %c0_i32, %c0_i32_0, %c0_i32_1 : i32, i32, i32, i32
  }
}

</mosaic_0001>

<llo_original>
// kernel: res_block1.2
$region0: #{res_block1.2}
  #allocation0 [shape = 'u32[]', space=smem, size = 0x4, offset = 0x4, fixed_abs, tag = 'smem constant byte address 0x4 - core index']
  #allocation1 [shape = 'u32[144,128]{1,0:T(1,128)}', space=vmem, size = 0x12000, scoped, tag = 'internal scratch']
  %s0 = inlined_call_operand.vmem [shape: f32[2,16,16,4], index: 0, kind: input, shape index: {}]
  %s1 = inlined_call_operand.vmem [shape: f32[3,4], index: 1, kind: input, shape index: {}]
  %s2 = inlined_call_operand.vmem [shape: bf16[36,4], index: 2, kind: input, shape index: {}]
  %s3 = inlined_call_operand.vmem [shape: bf16[2,16,16,4], index: 3, kind: output, shape index: {0}]
  %s4 = inlined_call_operand.vmem [shape: f32[1,2,4], index: 4, kind: output, shape index: {1}]
  %5 = xla_tuple %s3, %s4
  %s6 = sld [smem:[#allocation0]]
  $region30: #{res_block1.2} parent=0
    _
  %s8 = ssub.s32 1, %s6
  %s9 = scalar_select 0, %s8, %s6
  // Predicated region
  $region2: #{res_block1.2} parent=0 // pred_check
    _
  $region3: #{res_block1.2} parent=0 // pred_check_branch
    %11 = sbr.rel (0) target = $region5
  $region4: #{res_block1.2} parent=0 // pred_region
    _
  $region5: #{res_block1.2} parent=0 // pred_fallthru
    _
  // Predicated region
  $region6: #{res_block1.2} parent=0 // pred_check
    _
  $region7: #{res_block1.2} parent=0 // pred_check_branch
    %13 = sbr.rel (0) target = $region9
  $region8: #{res_block1.2} parent=0 // pred_region
    _
  $region9: #{res_block1.2} parent=0 // pred_fallthru
    _
  // Predicated region
  $region10: #{res_block1.2} parent=0 // pred_check
    _
  $region11: #{res_block1.2} parent=0 // pred_check_branch
    %15 = sbr.rel (0) target = $region13
  $region12: #{res_block1.2} parent=0 // pred_region
    _
  $region13: #{res_block1.2} parent=0 // pred_fallthru
    _
  %v17 = vld [vmem:[%s1] sm:$0x7]
  %v18 = vld [vmem:[%s0] sm:$0xff]
  %v19 = vld [vmem:[%s0 + $0x8] sm:$0xff]
  %v20 = vld [vmem:[%s0 + $0x10] sm:$0xff]
  %v21 = vld [vmem:[%s0 + $0x18] sm:$0xff]
  %v22 = vld [vmem:[%s0 + $0x20] sm:$0xff]
  %v23 = vld [vmem:[%s0 + $0x28] sm:$0xff]
  %v24 = vld [vmem:[%s0 + $0x30] sm:$0xff]
  %v25 = vld [vmem:[%s0 + $0x38] sm:$0xff]
  %v26 = vld [vmem:[%s0 + $0x40] sm:$0xff]
  %v27 = vld [vmem:[%s0 + $0x48] sm:$0xff]
  %v28 = vld [vmem:[%s0 + $0x50] sm:$0xff]
  %v29 = vld [vmem:[%s0 + $0x58] sm:$0xff]
  %v30 = vld [vmem:[%s0 + $0x60] sm:$0xff]
  %v31 = vld [vmem:[%s0 + $0x68] sm:$0xff]
  %v32 = vld [vmem:[%s0 + $0x70] sm:$0xff]
  %v33 = vld [vmem:[%s0 + $0x78] sm:$0xff]
  %v34 = vld [vmem:[%s0 + $0x80] sm:$0xff]
  %v35 = vld [vmem:[%s0 + $0x88] sm:$0xff]
  %v36 = vld [vmem:[%s0 + $0x90] sm:$0xff]
  %v37 = vld [vmem:[%s0 + $0x98] sm:$0xff]
  %v38 = vld [vmem:[%s0 + $0xa0] sm:$0xff]
  %v39 = vld [vmem:[%s0 + $0xa8] sm:$0xff]
  %v40 = vld [vmem:[%s0 + $0xb0] sm:$0xff]
  %v41 = vld [vmem:[%s0 + $0xb8] sm:$0xff]
  %v42 = vld [vmem:[%s0 + $0xc0] sm:$0xff]
  %v43 = vld [vmem:[%s0 + $0xc8] sm:$0xff]
  %v44 = vld [vmem:[%s0 + $0xd0] sm:$0xff]
  %v45 = vld [vmem:[%s0 + $0xd8] sm:$0xff]
  %v46 = vld [vmem:[%s0 + $0xe0] sm:$0xff]
  %v47 = vld [vmem:[%s0 + $0xe8] sm:$0xff]
  %v48 = vld [vmem:[%s0 + $0xf0] sm:$0xff]
  %v49 = vld [vmem:[%s0 + $0xf8] sm:$0xff]
  %v50 = vld [vmem:[%s0 + $0x100] sm:$0xff]
  %v51 = vld [vmem:[%s0 + $0x108] sm:$0xff]
  %v52 = vld [vmem:[%s0 + $0x110] sm:$0xff]
  %v53 = vld [vmem:[%s0 + $0x118] sm:$0xff]
  %v54 = vld [vmem:[%s0 + $0x120] sm:$0xff]
  %v55 = vld [vmem:[%s0 + $0x128] sm:$0xff]
  %v56 = vld [vmem:[%s0 + $0x130] sm:$0xff]
  %v57 = vld [vmem:[%s0 + $0x138] sm:$0xff]
  %v58 = vld [vmem:[%s0 + $0x140] sm:$0xff]
  %v59 = vld [vmem:[%s0 + $0x148] sm:$0xff]
  %v60 = vld [vmem:[%s0 + $0x150] sm:$0xff]
  %v61 = vld [vmem:[%s0 + $0x158] sm:$0xff]
  %v62 = vld [vmem:[%s0 + $0x160] sm:$0xff]
  %v63 = vld [vmem:[%s0 + $0x168] sm:$0xff]
  %v64 = vld [vmem:[%s0 + $0x170] sm:$0xff]
  %v65 = vld [vmem:[%s0 + $0x178] sm:$0xff]
  %v66 = vld [vmem:[%s0 + $0x180] sm:$0xff]
  %v67 = vld [vmem:[%s0 + $0x188] sm:$0xff]
  %v68 = vld [vmem:[%s0 + $0x190] sm:$0xff]
  %v69 = vld [vmem:[%s0 + $0x198] sm:$0xff]
  %v70 = vld [vmem:[%s0 + $0x1a0] sm:$0xff]
  %v71 = vld [vmem:[%s0 + $0x1a8] sm:$0xff]
  %v72 = vld [vmem:[%s0 + $0x1b0] sm:$0xff]
  %v73 = vld [vmem:[%s0 + $0x1b8] sm:$0xff]
  %v74 = vld [vmem:[%s0 + $0x1c0] sm:$0xff]
  %v75 = vld [vmem:[%s0 + $0x1c8] sm:$0xff]
  %v76 = vld [vmem:[%s0 + $0x1d0] sm:$0xff]
  %v77 = vld [vmem:[%s0 + $0x1d8] sm:$0xff]
  %v78 = vld [vmem:[%s0 + $0x1e0] sm:$0xff]
  %v79 = vld [vmem:[%s0 + $0x1e8] sm:$0xff]
  %v80 = vld [vmem:[%s0 + $0x1f0] sm:$0xff]
  %v81 = vld [vmem:[%s0 + $0x1f8] sm:$0xff]
  %v82 = vlaneseq
  %v83 = vshrl.u32 %v82, 7
  %v84 = vsub.s32 0, %v83
  %v85 = vrot.slane %v17, %v84
  %v86 = vmul.f32 %v18, %v85
  %v87 = vmul.f32 %v19, %v85
  %v88 = vmul.f32 %v20, %v85
  %v89 = vmul.f32 %v21, %v85
  %v90 = vmul.f32 %v22, %v85
  %v91 = vmul.f32 %v23, %v85
  %v92 = vmul.f32 %v24, %v85
  %v93 = vmul.f32 %v25, %v85
  %v94 = vmul.f32 %v26, %v85
  %v95 = vmul.f32 %v27, %v85
  %v96 = vmul.f32 %v28, %v85
  %v97 = vmul.f32 %v29, %v85
  %v98 = vmul.f32 %v30, %v85
  %v99 = vmul.f32 %v31, %v85
  %v100 = vmul.f32 %v32, %v85
  %v101 = vmul.f32 %v33, %v85
  %v102 = vmul.f32 %v34, %v85
  %v103 = vmul.f32 %v35, %v85
  %v104 = vmul.f32 %v36, %v85
  %v105 = vmul.f32 %v37, %v85
  %v106 = vmul.f32 %v38, %v85
  %v107 = vmul.f32 %v39, %v85
  %v108 = vmul.f32 %v40, %v85
  %v109 = vmul.f32 %v41, %v85
  %v110 = vmul.f32 %v42, %v85
  %v111 = vmul.f32 %v43, %v85
  %v112 = vmul.f32 %v44, %v85
  %v113 = vmul.f32 %v45, %v85
  %v114 = vmul.f32 %v46, %v85
  %v115 = vmul.f32 %v47, %v85
  %v116 = vmul.f32 %v48, %v85
  %v117 = vmul.f32 %v49, %v85
  %v118 = vmul.f32 %v50, %v85
  %v119 = vmul.f32 %v51, %v85
  %v120 = vmul.f32 %v52, %v85
  %v121 = vmul.f32 %v53, %v85
  %v122 = vmul.f32 %v54, %v85
  %v123 = vmul.f32 %v55, %v85
  %v124 = vmul.f32 %v56, %v85
  %v125 = vmul.f32 %v57, %v85
  %v126 = vmul.f32 %v58, %v85
  %v127 = vmul.f32 %v59, %v85
  %v128 = vmul.f32 %v60, %v85
  %v129 = vmul.f32 %v61, %v85
  %v130 = vmul.f32 %v62, %v85
  %v131 = vmul.f32 %v63, %v85
  %v132 = vmul.f32 %v64, %v85
  %v133 = vmul.f32 %v65, %v85
  %v134 = vmul.f32 %v66, %v85
  %v135 = vmul.f32 %v67, %v85
  %v136 = vmul.f32 %v68, %v85
  %v137 = vmul.f32 %v69, %v85
  %v138 = vmul.f32 %v70, %v85
  %v139 = vmul.f32 %v71, %v85
  %v140 = vmul.f32 %v72, %v85
  %v141 = vmul.f32 %v73, %v85
  %v142 = vmul.f32 %v74, %v85
  %v143 = vmul.f32 %v75, %v85
  %v144 = vmul.f32 %v76, %v85
  %v145 = vmul.f32 %v77, %v85
  %v146 = vmul.f32 %v78, %v85
  %v147 = vmul.f32 %v79, %v85
  %v148 = vmul.f32 %v80, %v85
  %v149 = vmul.f32 %v81, %v85
  %v150 = vlaneseq
  %v151 = vshrl.u32 %v150, 7
  %v152 = vsub.s32 1, %v151
  %v153 = vrot.slane %v17, %v152
  %v154 = vadd.f32 %v86, %v153
  %v155 = vadd.f32 %v87, %v153
  %v156 = vadd.f32 %v88, %v153
  %v157 = vadd.f32 %v89, %v153
  %v158 = vadd.f32 %v90, %v153
  %v159 = vadd.f32 %v91, %v153
  %v160 = vadd.f32 %v92, %v153
  %v161 = vadd.f32 %v93, %v153
  %v162 = vadd.f32 %v94, %v153
  %v163 = vadd.f32 %v95, %v153
  %v164 = vadd.f32 %v96, %v153
  %v165 = vadd.f32 %v97, %v153
  %v166 = vadd.f32 %v98, %v153
  %v167 = vadd.f32 %v99, %v153
  %v168 = vadd.f32 %v100, %v153
  %v169 = vadd.f32 %v101, %v153
  %v170 = vadd.f32 %v102, %v153
  %v171 = vadd.f32 %v103, %v153
  %v172 = vadd.f32 %v104, %v153
  %v173 = vadd.f32 %v105, %v153
  %v174 = vadd.f32 %v106, %v153
  %v175 = vadd.f32 %v107, %v153
  %v176 = vadd.f32 %v108, %v153
  %v177 = vadd.f32 %v109, %v153
  %v178 = vadd.f32 %v110, %v153
  %v179 = vadd.f32 %v111, %v153
  %v180 = vadd.f32 %v112, %v153
  %v181 = vadd.f32 %v113, %v153
  %v182 = vadd.f32 %v114, %v153
  %v183 = vadd.f32 %v115, %v153
  %v184 = vadd.f32 %v116, %v153
  %v185 = vadd.f32 %v117, %v153
  %v186 = vadd.f32 %v118, %v153
  %v187 = vadd.f32 %v119, %v153
  %v188 = vadd.f32 %v120, %v153
  %v189 = vadd.f32 %v121, %v153
  %v190 = vadd.f32 %v122, %v153
  %v191 = vadd.f32 %v123, %v153
  %v192 = vadd.f32 %v124, %v153
  %v193 = vadd.f32 %v125, %v153
  %v194 = vadd.f32 %v126, %v153
  %v195 = vadd.f32 %v127, %v153
  %v196 = vadd.f32 %v128, %v153
  %v197 = vadd.f32 %v129, %v153
  %v198 = vadd.f32 %v130, %v153
  %v199 = vadd.f32 %v131, %v153
  %v200 = vadd.f32 %v132, %v153
  %v201 = vadd.f32 %v133, %v153
  %v202 = vadd.f32 %v134, %v153
  %v203 = vadd.f32 %v135, %v153
  %v204 = vadd.f32 %v136, %v153
  %v205 = vadd.f32 %v137, %v153
  %v206 = vadd.f32 %v138, %v153
  %v207 = vadd.f32 %v139, %v153
  %v208 = vadd.f32 %v140, %v153
  %v209 = vadd.f32 %v141, %v153
  %v210 = vadd.f32 %v142, %v153
  %v211 = vadd.f32 %v143, %v153
  %v212 = vadd.f32 %v144, %v153
  %v213 = vadd.f32 %v145, %v153
  %v214 = vadd.f32 %v146, %v153
  %v215 = vadd.f32 %v147, %v153
  %v216 = vadd.f32 %v148, %v153
  %v217 = vadd.f32 %v149, %v153
  %vm218 = vcmp.ge.f32.partialorder %v154, 0.0
  %vm219 = vcmp.ge.f32.partialorder %v155, 0.0
  %vm220 = vcmp.ge.f32.partialorder %v156, 0.0
  %vm221 = vcmp.ge.f32.partialorder %v157, 0.0
  %vm222 = vcmp.ge.f32.partialorder %v158, 0.0
  %vm223 = vcmp.ge.f32.partialorder %v159, 0.0
  %vm224 = vcmp.ge.f32.partialorder %v160, 0.0
  %vm225 = vcmp.ge.f32.partialorder %v161, 0.0
  %vm226 = vcmp.ge.f32.partialorder %v162, 0.0
  %vm227 = vcmp.ge.f32.partialorder %v163, 0.0
  %vm228 = vcmp.ge.f32.partialorder %v164, 0.0
  %vm229 = vcmp.ge.f32.partialorder %v165, 0.0
  %vm230 = vcmp.ge.f32.partialorder %v166, 0.0
  %vm231 = vcmp.ge.f32.partialorder %v167, 0.0
  %vm232 = vcmp.ge.f32.partialorder %v168, 0.0
  %vm233 = vcmp.ge.f32.partialorder %v169, 0.0
  %vm234 = vcmp.ge.f32.partialorder %v170, 0.0
  %vm235 = vcmp.ge.f32.partialorder %v171, 0.0
  %vm236 = vcmp.ge.f32.partialorder %v172, 0.0
  %vm237 = vcmp.ge.f32.partialorder %v173, 0.0
  %vm238 = vcmp.ge.f32.partialorder %v174, 0.0
  %vm239 = vcmp.ge.f32.partialorder %v175, 0.0
  %vm240 = vcmp.ge.f32.partialorder %v176, 0.0
  %vm241 = vcmp.ge.f32.partialorder %v177, 0.0
  %vm242 = vcmp.ge.f32.partialorder %v178, 0.0
  %vm243 = vcmp.ge.f32.partialorder %v179, 0.0
  %vm244 = vcmp.ge.f32.partialorder %v180, 0.0
  %vm245 = vcmp.ge.f32.partialorder %v181, 0.0
  %vm246 = vcmp.ge.f32.partialorder %v182, 0.0
  %vm247 = vcmp.ge.f32.partialorder %v183, 0.0
  %vm248 = vcmp.ge.f32.partialorder %v184, 0.0
  %vm249 = vcmp.ge.f32.partialorder %v185, 0.0
  %vm250 = vcmp.ge.f32.partialorder %v186, 0.0
  %vm251 = vcmp.ge.f32.partialorder %v187, 0.0
  %vm252 = vcmp.ge.f32.partialorder %v188, 0.0
  %vm253 = vcmp.ge.f32.partialorder %v189, 0.0
  %vm254 = vcmp.ge.f32.partialorder %v190, 0.0
  %vm255 = vcmp.ge.f32.partialorder %v191, 0.0
  %vm256 = vcmp.ge.f32.partialorder %v192, 0.0
  %vm257 = vcmp.ge.f32.partialorder %v193, 0.0
  %vm258 = vcmp.ge.f32.partialorder %v194, 0.0
  %vm259 = vcmp.ge.f32.partialorder %v195, 0.0
  %vm260 = vcmp.ge.f32.partialorder %v196, 0.0
  %vm261 = vcmp.ge.f32.partialorder %v197, 0.0
  %vm262 = vcmp.ge.f32.partialorder %v198, 0.0
  %vm263 = vcmp.ge.f32.partialorder %v199, 0.0
  %vm264 = vcmp.ge.f32.partialorder %v200, 0.0
  %vm265 = vcmp.ge.f32.partialorder %v201, 0.0
  %vm266 = vcmp.ge.f32.partialorder %v202, 0.0
  %vm267 = vcmp.ge.f32.partialorder %v203, 0.0
  %vm268 = vcmp.ge.f32.partialorder %v204, 0.0
  %vm269 = vcmp.ge.f32.partialorder %v205, 0.0
  %vm270 = vcmp.ge.f32.partialorder %v206, 0.0
  %vm271 = vcmp.ge.f32.partialorder %v207, 0.0
  %vm272 = vcmp.ge.f32.partialorder %v208, 0.0
  %vm273 = vcmp.ge.f32.partialorder %v209, 0.0
  %vm274 = vcmp.ge.f32.partialorder %v210, 0.0
  %vm275 = vcmp.ge.f32.partialorder %v211, 0.0
  %vm276 = vcmp.ge.f32.partialorder %v212, 0.0
  %vm277 = vcmp.ge.f32.partialorder %v213, 0.0
  %vm278 = vcmp.ge.f32.partialorder %v214, 0.0
  %vm279 = vcmp.ge.f32.partialorder %v215, 0.0
  %vm280 = vcmp.ge.f32.partialorder %v216, 0.0
  %vm281 = vcmp.ge.f32.partialorder %v217, 0.0
  %v282 = vmul.f32 %v154, 0.2
  %v283 = vmul.f32 %v155, 0.2
  %v284 = vmul.f32 %v156, 0.2
  %v285 = vmul.f32 %v157, 0.2
  %v286 = vmul.f32 %v158, 0.2
  %v287 = vmul.f32 %v159, 0.2
  %v288 = vmul.f32 %v160, 0.2
  %v289 = vmul.f32 %v161, 0.2
  %v290 = vmul.f32 %v162, 0.2
  %v291 = vmul.f32 %v163, 0.2
  %v292 = vmul.f32 %v164, 0.2
  %v293 = vmul.f32 %v165, 0.2
  %v294 = vmul.f32 %v166, 0.2
  %v295 = vmul.f32 %v167, 0.2
  %v296 = vmul.f32 %v168, 0.2
  %v297 = vmul.f32 %v169, 0.2
  %v298 = vmul.f32 %v170, 0.2
  %v299 = vmul.f32 %v171, 0.2
  %v300 = vmul.f32 %v172, 0.2
  %v301 = vmul.f32 %v173, 0.2
  %v302 = vmul.f32 %v174, 0.2
  %v303 = vmul.f32 %v175, 0.2
  %v304 = vmul.f32 %v176, 0.2
  %v305 = vmul.f32 %v177, 0.2
  %v306 = vmul.f32 %v178, 0.2
  %v307 = vmul.f32 %v179, 0.2
  %v308 = vmul.f32 %v180, 0.2
  %v309 = vmul.f32 %v181, 0.2
  %v310 = vmul.f32 %v182, 0.2
  %v311 = vmul.f32 %v183, 0.2
  %v312 = vmul.f32 %v184, 0.2
  %v313 = vmul.f32 %v185, 0.2
  %v314 = vmul.f32 %v186, 0.2
  %v315 = vmul.f32 %v187, 0.2
  %v316 = vmul.f32 %v188, 0.2
  %v317 = vmul.f32 %v189, 0.2
  %v318 = vmul.f32 %v190, 0.2
  %v319 = vmul.f32 %v191, 0.2
  %v320 = vmul.f32 %v192, 0.2
  %v321 = vmul.f32 %v193, 0.2
  %v322 = vmul.f32 %v194, 0.2
  %v323 = vmul.f32 %v195, 0.2
  %v324 = vmul.f32 %v196, 0.2
  %v325 = vmul.f32 %v197, 0.2
  %v326 = vmul.f32 %v198, 0.2
  %v327 = vmul.f32 %v199, 0.2
  %v328 = vmul.f32 %v200, 0.2
  %v329 = vmul.f32 %v201, 0.2
  %v330 = vmul.f32 %v202, 0.2
  %v331 = vmul.f32 %v203, 0.2
  %v332 = vmul.f32 %v204, 0.2
  %v333 = vmul.f32 %v205, 0.2
  %v334 = vmul.f32 %v206, 0.2
  %v335 = vmul.f32 %v207, 0.2
  %v336 = vmul.f32 %v208, 0.2
  %v337 = vmul.f32 %v209, 0.2
  %v338 = vmul.f32 %v210, 0.2
  %v339 = vmul.f32 %v211, 0.2
  %v340 = vmul.f32 %v212, 0.2
  %v341 = vmul.f32 %v213, 0.2
  %v342 = vmul.f32 %v214, 0.2
  %v343 = vmul.f32 %v215, 0.2
  %v344 = vmul.f32 %v216, 0.2
  %v345 = vmul.f32 %v217, 0.2
  %v346 = vsel %vm218, %v154, %v282
  %v347 = vsel %vm219, %v155, %v283
  %v348 = vsel %vm220, %v156, %v284
  %v349 = vsel %vm221, %v157, %v285
  %v350 = vsel %vm222, %v158, %v286
  %v351 = vsel %vm223, %v159, %v287
  %v352 = vsel %vm224, %v160, %v288
  %v353 = vsel %vm225, %v161, %v289
  %v354 = vsel %vm226, %v162, %v290
  %v355 = vsel %vm227, %v163, %v291
  %v356 = vsel %vm228, %v164, %v292
  %v357 = vsel %vm229, %v165, %v293
  %v358 = vsel %vm230, %v166, %v294
  %v359 = vsel %vm231, %v167, %v295
  %v360 = vsel %vm232, %v168, %v296
  %v361 = vsel %vm233, %v169, %v297
  %v362 = vsel %vm234, %v170, %v298
  %v363 = vsel %vm235, %v171, %v299
  %v364 = vsel %vm236, %v172, %v300
  %v365 = vsel %vm237, %v173, %v301
  %v366 = vsel %vm238, %v174, %v302
  %v367 = vsel %vm239, %v175, %v303
  %v368 = vsel %vm240, %v176, %v304
  %v369 = vsel %vm241, %v177, %v305
  %v370 = vsel %vm242, %v178, %v306
  %v371 = vsel %vm243, %v179, %v307
  %v372 = vsel %vm244, %v180, %v308
  %v373 = vsel %vm245, %v181, %v309
  %v374 = vsel %vm246, %v182, %v310
  %v375 = vsel %vm247, %v183, %v311
  %v376 = vsel %vm248, %v184, %v312
  %v377 = vsel %vm249, %v185, %v313
  %v378 = vsel %vm250, %v186, %v314
  %v379 = vsel %vm251, %v187, %v315
  %v380 = vsel %vm252, %v188, %v316
  %v381 = vsel %vm253, %v189, %v317
  %v382 = vsel %vm254, %v190, %v318
  %v383 = vsel %vm255, %v191, %v319
  %v384 = vsel %vm256, %v192, %v320
  %v385 = vsel %vm257, %v193, %v321
  %v386 = vsel %vm258, %v194, %v322
  %v387 = vsel %vm259, %v195, %v323
  %v388 = vsel %vm260, %v196, %v324
  %v389 = vsel %vm261, %v197, %v325
  %v390 = vsel %vm262, %v198, %v326
  %v391 = vsel %vm263, %v199, %v327
  %v392 = vsel %vm264, %v200, %v328
  %v393 = vsel %vm265, %v201, %v329
  %v394 = vsel %vm266, %v202, %v330
  %v395 = vsel %vm267, %v203, %v331
  %v396 = vsel %vm268, %v204, %v332
  %v397 = vsel %vm269, %v205, %v333
  %v398 = vsel %vm270, %v206, %v334
  %v399 = vsel %vm271, %v207, %v335
  %v400 = vsel %vm272, %v208, %v336
  %v401 = vsel %vm273, %v209, %v337
  %v402 = vsel %vm274, %v210, %v338
  %v403 = vsel %vm275, %v211, %v339
  %v404 = vsel %vm276, %v212, %v340
  %v405 = vsel %vm277, %v213, %v341
  %v406 = vsel %vm278, %v214, %v342
  %v407 = vsel %vm279, %v215, %v343
  %v408 = vsel %vm280, %v216, %v344
  %v409 = vsel %vm281, %v217, %v345
  %v410 = vlaneseq
  %v411 = vshrl.u32 %v410, 7
  %v412 = vadd.s32 %v411, 8
  %vm413 = vcmp.eq.s32.totalorder %v411, 0
  %vm414 = vcmp.eq.s32.totalorder %v412, 0
  %v415 = vrot.slane %v346, 7
  %v416 = vrot.slane %v348, 7
  %v417 = vrot.slane %v350, 7
  %v418 = vrot.slane %v352, 7
  %v419 = vrot.slane %v354, 7
  %v420 = vrot.slane %v356, 7
  %v421 = vrot.slane %v358, 7
  %v422 = vrot.slane %v360, 7
  %v423 = vrot.slane %v362, 7
  %v424 = vrot.slane %v364, 7
  %v425 = vrot.slane %v366, 7
  %v426 = vrot.slane %v368, 7
  %v427 = vrot.slane %v370, 7
  %v428 = vrot.slane %v372, 7
  %v429 = vrot.slane %v374, 7
  %v430 = vrot.slane %v378, 7
  %v431 = vrot.slane %v380, 7
  %v432 = vrot.slane %v382, 7
  %v433 = vrot.slane %v384, 7
  %v434 = vrot.slane %v386, 7
  %v435 = vrot.slane %v388, 7
  %v436 = vrot.slane %v390, 7
  %v437 = vrot.slane %v392, 7
  %v438 = vrot.slane %v394, 7
  %v439 = vrot.slane %v396, 7
  %v440 = vrot.slane %v398, 7
  %v441 = vrot.slane %v400, 7
  %v442 = vrot.slane %v402, 7
  %v443 = vrot.slane %v404, 7
  %v444 = vrot.slane %v406, 7
  %v445 = vrot.slane %v347, 7
  %v446 = vrot.slane %v349, 7
  %v447 = vrot.slane %v351, 7
  %v448 = vrot.slane %v353, 7
  %v449 = vrot.slane %v355, 7
  %v450 = vrot.slane %v357, 7
  %v451 = vrot.slane %v359, 7
  %v452 = vrot.slane %v361, 7
  %v453 = vrot.slane %v363, 7
  %v454 = vrot.slane %v365, 7
  %v455 = vrot.slane %v367, 7
  %v456 = vrot.slane %v369, 7
  %v457 = vrot.slane %v371, 7
  %v458 = vrot.slane %v373, 7
  %v459 = vrot.slane %v375, 7
  %v460 = vrot.slane %v379, 7
  %v461 = vrot.slane %v381, 7
  %v462 = vrot.slane %v383, 7
  %v463 = vrot.slane %v385, 7
  %v464 = vrot.slane %v387, 7
  %v465 = vrot.slane %v389, 7
  %v466 = vrot.slane %v391, 7
  %v467 = vrot.slane %v393, 7
  %v468 = vrot.slane %v395, 7
  %v469 = vrot.slane %v397, 7
  %v470 = vrot.slane %v399, 7
  %v471 = vrot.slane %v401, 7
  %v472 = vrot.slane %v403, 7
  %v473 = vrot.slane %v405, 7
  %v474 = vrot.slane %v407, 7
  %vm475 = vcmp.lt.s32.totalorder %v411, 1
  %v476 = vsel %vm475, %v415, %v445
  %v477 = vsel %vm475, %v416, %v446
  %v478 = vsel %vm475, %v417, %v447
  %v479 = vsel %vm475, %v418, %v448
  %v480 = vsel %vm475, %v419, %v449
  %v481 = vsel %vm475, %v420, %v450
  %v482 = vsel %vm475, %v421, %v451
  %v483 = vsel %vm475, %v422, %v452
  %v484 = vsel %vm475, %v423, %v453
  %v485 = vsel %vm475, %v424, %v454
  %v486 = vsel %vm475, %v425, %v455
  %v487 = vsel %vm475, %v426, %v456
  %v488 = vsel %vm475, %v427, %v457
  %v489 = vsel %vm475, %v428, %v458
  %v490 = vsel %vm475, %v429, %v459
  %v491 = vsel %vm475, %v430, %v460
  %v492 = vsel %vm475, %v431, %v461
  %v493 = vsel %vm475, %v432, %v462
  %v494 = vsel %vm475, %v433, %v463
  %v495 = vsel %vm475, %v434, %v464
  %v496 = vsel %vm475, %v435, %v465
  %v497 = vsel %vm475, %v436, %v466
  %v498 = vsel %vm475, %v437, %v467
  %v499 = vsel %vm475, %v438, %v468
  %v500 = vsel %vm475, %v439, %v469
  %v501 = vsel %vm475, %v440, %v470
  %v502 = vsel %vm475, %v441, %v471
  %v503 = vsel %vm475, %v442, %v472
  %v504 = vsel %vm475, %v443, %v473
  %v505 = vsel %vm475, %v444, %v474
  %v506 = vsel %vm475, %v445, %v415
  %v507 = vsel %vm475, %v446, %v416
  %v508 = vsel %vm475, %v447, %v417
  %v509 = vsel %vm475, %v448, %v418
  %v510 = vsel %vm475, %v449, %v419
  %v511 = vsel %vm475, %v450, %v420
  %v512 = vsel %vm475, %v451, %v421
  %v513 = vsel %vm475, %v452, %v422
  %v514 = vsel %vm475, %v453, %v423
  %v515 = vsel %vm475, %v454, %v424
  %v516 = vsel %vm475, %v455, %v425
  %v517 = vsel %vm475, %v456, %v426
  %v518 = vsel %vm475, %v457, %v427
  %v519 = vsel %vm475, %v458, %v428
  %v520 = vsel %vm475, %v459, %v429
  %v521 = vsel %vm475, %v460, %v430
  %v522 = vsel %vm475, %v461, %v431
  %v523 = vsel %vm475, %v462, %v432
  %v524 = vsel %vm475, %v463, %v433
  %v525 = vsel %vm475, %v464, %v434
  %v526 = vsel %vm475, %v465, %v435
  %v527 = vsel %vm475, %v466, %v436
  %v528 = vsel %vm475, %v467, %v437
  %v529 = vsel %vm475, %v468, %v438
  %v530 = vsel %vm475, %v469, %v439
  %v531 = vsel %vm475, %v470, %v440
  %v532 = vsel %vm475, %v471, %v441
  %v533 = vsel %vm475, %v472, %v442
  %v534 = vsel %vm475, %v473, %v443
  %v535 = vsel %vm475, %v474, %v444
  %v536 = vsel %vm413, 0.0, 0.0
  %v537 = vsel %vm414, 0.0, 0.0
  %v538 = vsel %vm413, 0.0, %v506
  %v539 = vsel %vm414, 0.0, %v476
  %v540 = vsel %vm413, 0.0, %v507
  %v541 = vsel %vm414, 0.0, %v477
  %v542 = vsel %vm413, 0.0, %v508
  %v543 = vsel %vm414, 0.0, %v478
  %v544 = vsel %vm413, 0.0, %v509
  %v545 = vsel %vm414, 0.0, %v479
  %v546 = vsel %vm413, 0.0, %v510
  %v547 = vsel %vm414, 0.0, %v480
  %v548 = vsel %vm413, 0.0, %v511
  %v549 = vsel %vm414, 0.0, %v481
  %v550 = vsel %vm413, 0.0, %v512
  %v551 = vsel %vm414, 0.0, %v482
  %v552 = vsel %vm413, 0.0, %v513
  %v553 = vsel %vm414, 0.0, %v483
  %v554 = vsel %vm413, 0.0, %v514
  %v555 = vsel %vm414, 0.0, %v484
  %v556 = vsel %vm413, 0.0, %v515
  %v557 = vsel %vm414, 0.0, %v485
  %v558 = vsel %vm413, 0.0, %v516
  %v559 = vsel %vm414, 0.0, %v486
  %v560 = vsel %vm413, 0.0, %v517
  %v561 = vsel %vm414, 0.0, %v487
  %v562 = vsel %vm413, 0.0, %v518
  %v563 = vsel %vm414, 0.0, %v488
  %v564 = vsel %vm413, 0.0, %v519
  %v565 = vsel %vm414, 0.0, %v489
  %v566 = vsel %vm413, 0.0, %v520
  %v567 = vsel %vm414, 0.0, %v490
  %v568 = vsel %vm413, 0.0, %v521
  %v569 = vsel %vm414, 0.0, %v491
  %v570 = vsel %vm413, 0.0, %v522
  %v571 = vsel %vm414, 0.0, %v492
  %v572 = vsel %vm413, 0.0, %v523
  %v573 = vsel %vm414, 0.0, %v493
  %v574 = vsel %vm413, 0.0, %v524
  %v575 = vsel %vm414, 0.0, %v494
  %v576 = vsel %vm413, 0.0, %v525
  %v577 = vsel %vm414, 0.0, %v495
  %v578 = vsel %vm413, 0.0, %v526
  %v579 = vsel %vm414, 0.0, %v496
  %v580 = vsel %vm413, 0.0, %v527
  %v581 = vsel %vm414, 0.0, %v497
  %v582 = vsel %vm413, 0.0, %v528
  %v583 = vsel %vm414, 0.0, %v498
  %v584 = vsel %vm413, 0.0, %v529
  %v585 = vsel %vm414, 0.0, %v499
  %v586 = vsel %vm413, 0.0, %v530
  %v587 = vsel %vm414, 0.0, %v500
  %v588 = vsel %vm413, 0.0, %v531
  %v589 = vsel %vm414, 0.0, %v501
  %v590 = vsel %vm413, 0.0, %v532
  %v591 = vsel %vm414, 0.0, %v502
  %v592 = vsel %vm413, 0.0, %v533
  %v593 = vsel %vm414, 0.0, %v503
  %v594 = vsel %vm413, 0.0, %v534
  %v595 = vsel %vm414, 0.0, %v504
  %v596 = vsel %vm413, 0.0, %v535
  %v597 = vsel %vm414, 0.0, %v505
  %vm598 = vcmp.eq.s32.totalorder %v411, 15
  %vm599 = vcmp.eq.s32.totalorder %v412, 15
  %v600 = vrot.slane %v346, 1
  %v601 = vrot.slane %v348, 1
  %v602 = vrot.slane %v350, 1
  %v603 = vrot.slane %v352, 1
  %v604 = vrot.slane %v354, 1
  %v605 = vrot.slane %v356, 1
  %v606 = vrot.slane %v358, 1
  %v607 = vrot.slane %v360, 1
  %v608 = vrot.slane %v362, 1
  %v609 = vrot.slane %v364, 1
  %v610 = vrot.slane %v366, 1
  %v611 = vrot.slane %v368, 1
  %v612 = vrot.slane %v370, 1
  %v613 = vrot.slane %v372, 1
  %v614 = vrot.slane %v374, 1
  %v615 = vrot.slane %v378, 1
  %v616 = vrot.slane %v380, 1
  %v617 = vrot.slane %v382, 1
  %v618 = vrot.slane %v384, 1
  %v619 = vrot.slane %v386, 1
  %v620 = vrot.slane %v388, 1
  %v621 = vrot.slane %v390, 1
  %v622 = vrot.slane %v392, 1
  %v623 = vrot.slane %v394, 1
  %v624 = vrot.slane %v396, 1
  %v625 = vrot.slane %v398, 1
  %v626 = vrot.slane %v400, 1
  %v627 = vrot.slane %v402, 1
  %v628 = vrot.slane %v404, 1
  %v629 = vrot.slane %v406, 1
  %v630 = vrot.slane %v347, 1
  %v631 = vrot.slane %v349, 1
  %v632 = vrot.slane %v351, 1
  %v633 = vrot.slane %v353, 1
  %v634 = vrot.slane %v355, 1
  %v635 = vrot.slane %v357, 1
  %v636 = vrot.slane %v359, 1
  %v637 = vrot.slane %v361, 1
  %v638 = vrot.slane %v363, 1
  %v639 = vrot.slane %v365, 1
  %v640 = vrot.slane %v367, 1
  %v641 = vrot.slane %v369, 1
  %v642 = vrot.slane %v371, 1
  %v643 = vrot.slane %v373, 1
  %v644 = vrot.slane %v375, 1
  %v645 = vrot.slane %v379, 1
  %v646 = vrot.slane %v381, 1
  %v647 = vrot.slane %v383, 1
  %v648 = vrot.slane %v385, 1
  %v649 = vrot.slane %v387, 1
  %v650 = vrot.slane %v389, 1
  %v651 = vrot.slane %v391, 1
  %v652 = vrot.slane %v393, 1
  %v653 = vrot.slane %v395, 1
  %v654 = vrot.slane %v397, 1
  %v655 = vrot.slane %v399, 1
  %v656 = vrot.slane %v401, 1
  %v657 = vrot.slane %v403, 1
  %v658 = vrot.slane %v405, 1
  %v659 = vrot.slane %v407, 1
  %vm660 = vcmp.lt.s32.totalorder %v411, 7
  %v661 = vsel %vm660, %v600, %v630
  %v662 = vsel %vm660, %v601, %v631
  %v663 = vsel %vm660, %v602, %v632
  %v664 = vsel %vm660, %v603, %v633
  %v665 = vsel %vm660, %v604, %v634
  %v666 = vsel %vm660, %v605, %v635
  %v667 = vsel %vm660, %v606, %v636
  %v668 = vsel %vm660, %v607, %v637
  %v669 = vsel %vm660, %v608, %v638
  %v670 = vsel %vm660, %v609, %v639
  %v671 = vsel %vm660, %v610, %v640
  %v672 = vsel %vm660, %v611, %v641
  %v673 = vsel %vm660, %v612, %v642
  %v674 = vsel %vm660, %v613, %v643
  %v675 = vsel %vm660, %v614, %v644
  %v676 = vsel %vm660, %v615, %v645
  %v677 = vsel %vm660, %v616, %v646
  %v678 = vsel %vm660, %v617, %v647
  %v679 = vsel %vm660, %v618, %v648
  %v680 = vsel %vm660, %v619, %v649
  %v681 = vsel %vm660, %v620, %v650
  %v682 = vsel %vm660, %v621, %v651
  %v683 = vsel %vm660, %v622, %v652
  %v684 = vsel %vm660, %v623, %v653
  %v685 = vsel %vm660, %v624, %v654
  %v686 = vsel %vm660, %v625, %v655
  %v687 = vsel %vm660, %v626, %v656
  %v688 = vsel %vm660, %v627, %v657
  %v689 = vsel %vm660, %v628, %v658
  %v690 = vsel %vm660, %v629, %v659
  %v691 = vsel %vm660, %v630, %v600
  %v692 = vsel %vm660, %v631, %v601
  %v693 = vsel %vm660, %v632, %v602
  %v694 = vsel %vm660, %v633, %v603
  %v695 = vsel %vm660, %v634, %v604
  %v696 = vsel %vm660, %v635, %v605
  %v697 = vsel %vm660, %v636, %v606
  %v698 = vsel %vm660, %v637, %v607
  %v699 = vsel %vm660, %v638, %v608
  %v700 = vsel %vm660, %v639, %v609
  %v701 = vsel %vm660, %v640, %v610
  %v702 = vsel %vm660, %v641, %v611
  %v703 = vsel %vm660, %v642, %v612
  %v704 = vsel %vm660, %v643, %v613
  %v705 = vsel %vm660, %v644, %v614
  %v706 = vsel %vm660, %v645, %v615
  %v707 = vsel %vm660, %v646, %v616
  %v708 = vsel %vm660, %v647, %v617
  %v709 = vsel %vm660, %v648, %v618
  %v710 = vsel %vm660, %v649, %v619
  %v711 = vsel %vm660, %v650, %v620
  %v712 = vsel %vm660, %v651, %v621
  %v713 = vsel %vm660, %v652, %v622
  %v714 = vsel %vm660, %v653, %v623
  %v715 = vsel %vm660, %v654, %v624
  %v716 = vsel %vm660, %v655, %v625
  %v717 = vsel %vm660, %v656, %v626
  %v718 = vsel %vm660, %v657, %v627
  %v719 = vsel %vm660, %v658, %v628
  %v720 = vsel %vm660, %v659, %v629
  %v721 = vsel %vm598, 0.0, 0.0
  %v722 = vsel %vm599, 0.0, 0.0
  %v723 = vsel %vm598, 0.0, %v661
  %v724 = vsel %vm599, 0.0, %v691
  %v725 = vsel %vm598, 0.0, %v662
  %v726 = vsel %vm599, 0.0, %v692
  %v727 = vsel %vm598, 0.0, %v663
  %v728 = vsel %vm599, 0.0, %v693
  %v729 = vsel %vm598, 0.0, %v664
  %v730 = vsel %vm599, 0.0, %v694
  %v731 = vsel %vm598, 0.0, %v665
  %v732 = vsel %vm599, 0.0, %v695
  %v733 = vsel %vm598, 0.0, %v666
  %v734 = vsel %vm599, 0.0, %v696
  %v735 = vsel %vm598, 0.0, %v667
  %v736 = vsel %vm599, 0.0, %v697
  %v737 = vsel %vm598, 0.0, %v668
  %v738 = vsel %vm599, 0.0, %v698
  %v739 = vsel %vm598, 0.0, %v669
  %v740 = vsel %vm599, 0.0, %v699
  %v741 = vsel %vm598, 0.0, %v670
  %v742 = vsel %vm599, 0.0, %v700
  %v743 = vsel %vm598, 0.0, %v671
  %v744 = vsel %vm599, 0.0, %v701
  %v745 = vsel %vm598, 0.0, %v672
  %v746 = vsel %vm599, 0.0, %v702
  %v747 = vsel %vm598, 0.0, %v673
  %v748 = vsel %vm599, 0.0, %v703
  %v749 = vsel %vm598, 0.0, %v674
  %v750 = vsel %vm599, 0.0, %v704
  %v751 = vsel %vm598, 0.0, %v675
  %v752 = vsel %vm599, 0.0, %v705
  %v753 = vsel %vm598, 0.0, %v676
  %v754 = vsel %vm599, 0.0, %v706
  %v755 = vsel %vm598, 0.0, %v677
  %v756 = vsel %vm599, 0.0, %v707
  %v757 = vsel %vm598, 0.0, %v678
  %v758 = vsel %vm599, 0.0, %v708
  %v759 = vsel %vm598, 0.0, %v679
  %v760 = vsel %vm599, 0.0, %v709
  %v761 = vsel %vm598, 0.0, %v680
  %v762 = vsel %vm599, 0.0, %v710
  %v763 = vsel %vm598, 0.0, %v681
  %v764 = vsel %vm599, 0.0, %v711
  %v765 = vsel %vm598, 0.0, %v682
  %v766 = vsel %vm599, 0.0, %v712
  %v767 = vsel %vm598, 0.0, %v683
  %v768 = vsel %vm599, 0.0, %v713
  %v769 = vsel %vm598, 0.0, %v684
  %v770 = vsel %vm599, 0.0, %v714
  %v771 = vsel %vm598, 0.0, %v685
  %v772 = vsel %vm599, 0.0, %v715
  %v773 = vsel %vm598, 0.0, %v686
  %v774 = vsel %vm599, 0.0, %v716
  %v775 = vsel %vm598, 0.0, %v687
  %v776 = vsel %vm599, 0.0, %v717
  %v777 = vsel %vm598, 0.0, %v688
  %v778 = vsel %vm599, 0.0, %v718
  %v779 = vsel %vm598, 0.0, %v689
  %v780 = vsel %vm599, 0.0, %v719
  %v781 = vsel %vm598, 0.0, %v690
  %v782 = vsel %vm599, 0.0, %v720
  %v783 = vrot.slane %v376, 7
  %v784 = vrot.slane %v408, 7
  %v785 = vrot.slane %v377, 7
  %v786 = vrot.slane %v409, 7
  %v787 = vsel %vm475, %v783, %v785
  %v788 = vsel %vm475, %v784, %v786
  %v789 = vsel %vm475, %v785, %v783
  %v790 = vsel %vm475, %v786, %v784
  %v791 = vsel %vm413, 0.0, %v789
  %v792 = vsel %vm414, 0.0, %v787
  %v793 = vsel %vm413, 0.0, %v790
  %v794 = vsel %vm414, 0.0, %v788
  %v795 = vrot.slane %v376, 1
  %v796 = vrot.slane %v408, 1
  %v797 = vrot.slane %v377, 1
  %v798 = vrot.slane %v409, 1
  %v799 = vsel %vm660, %v795, %v797
  %v800 = vsel %vm660, %v796, %v798
  %v801 = vsel %vm660, %v797, %v795
  %v802 = vsel %vm660, %v798, %v796
  %v803 = vsel %vm598, 0.0, %v799
  %v804 = vsel %vm599, 0.0, %v801
  %v805 = vsel %vm598, 0.0, %v800
  %v806 = vsel %vm599, 0.0, %v802
  %868 = vrot.lane.b32.xlu0 0.0, 4
  %v869 = vpop.permute.xlu0 %868
  %870 = vrot.lane.b32.xlu0 %v346, 4
  %v871 = vpop.permute.xlu0 %870
  %872 = vrot.lane.b32.xlu0 %v347, 4
  %v873 = vpop.permute.xlu0 %872
  %874 = vrot.lane.b32.xlu0 %v348, 4
  %v875 = vpop.permute.xlu0 %874
  %876 = vrot.lane.b32.xlu0 %v349, 4
  %v877 = vpop.permute.xlu0 %876
  %878 = vrot.lane.b32.xlu0 %v350, 4
  %v879 = vpop.permute.xlu0 %878
  %880 = vrot.lane.b32.xlu0 %v351, 4
  %v881 = vpop.permute.xlu0 %880
  %882 = vrot.lane.b32.xlu0 %v352, 4
  %v883 = vpop.permute.xlu0 %882
  %884 = vrot.lane.b32.xlu0 %v353, 4
  %v885 = vpop.permute.xlu0 %884
  %886 = vrot.lane.b32.xlu0 %v354, 4
  %v887 = vpop.permute.xlu0 %886
  %888 = vrot.lane.b32.xlu0 %v355, 4
  %v889 = vpop.permute.xlu0 %888
  %890 = vrot.lane.b32.xlu0 %v356, 4
  %v891 = vpop.permute.xlu0 %890
  %892 = vrot.lane.b32.xlu0 %v357, 4
  %v893 = vpop.permute.xlu0 %892
  %894 = vrot.lane.b32.xlu0 %v358, 4
  %v895 = vpop.permute.xlu0 %894
  %896 = vrot.lane.b32.xlu0 %v359, 4
  %v897 = vpop.permute.xlu0 %896
  %898 = vrot.lane.b32.xlu0 %v360, 4
  %v899 = vpop.permute.xlu0 %898
  %900 = vrot.lane.b32.xlu0 %v361, 4
  %v901 = vpop.permute.xlu0 %900
  %902 = vrot.lane.b32.xlu0 %v362, 4
  %v903 = vpop.permute.xlu0 %902
  %904 = vrot.lane.b32.xlu0 %v363, 4
  %v905 = vpop.permute.xlu0 %904
  %906 = vrot.lane.b32.xlu0 %v364, 4
  %v907 = vpop.permute.xlu0 %906
  %908 = vrot.lane.b32.xlu0 %v365, 4
  %v909 = vpop.permute.xlu0 %908
  %910 = vrot.lane.b32.xlu0 %v366, 4
  %v911 = vpop.permute.xlu0 %910
  %912 = vrot.lane.b32.xlu0 %v367, 4
  %v913 = vpop.permute.xlu0 %912
  %914 = vrot.lane.b32.xlu0 %v368, 4
  %v915 = vpop.permute.xlu0 %914
  %916 = vrot.lane.b32.xlu0 %v369, 4
  %v917 = vpop.permute.xlu0 %916
  %918 = vrot.lane.b32.xlu0 %v370, 4
  %v919 = vpop.permute.xlu0 %918
  %920 = vrot.lane.b32.xlu0 %v371, 4
  %v921 = vpop.permute.xlu0 %920
  %922 = vrot.lane.b32.xlu0 %v372, 4
  %v923 = vpop.permute.xlu0 %922
  %924 = vrot.lane.b32.xlu0 %v373, 4
  %v925 = vpop.permute.xlu0 %924
  %926 = vrot.lane.b32.xlu0 %v374, 4
  %v927 = vpop.permute.xlu0 %926
  %928 = vrot.lane.b32.xlu0 %v375, 4
  %v929 = vpop.permute.xlu0 %928
  %930 = vrot.lane.b32.xlu0 %v378, 4
  %v931 = vpop.permute.xlu0 %930
  %932 = vrot.lane.b32.xlu0 %v379, 4
  %v933 = vpop.permute.xlu0 %932
  %934 = vrot.lane.b32.xlu0 %v380, 4
  %v935 = vpop.permute.xlu0 %934
  %936 = vrot.lane.b32.xlu0 %v381, 4
  %v937 = vpop.permute.xlu0 %936
  %938 = vrot.lane.b32.xlu0 %v382, 4
  %v939 = vpop.permute.xlu0 %938
  %940 = vrot.lane.b32.xlu0 %v383, 4
  %v941 = vpop.permute.xlu0 %940
  %942 = vrot.lane.b32.xlu0 %v384, 4
  %v943 = vpop.permute.xlu0 %942
  %944 = vrot.lane.b32.xlu0 %v385, 4
  %v945 = vpop.permute.xlu0 %944
  %946 = vrot.lane.b32.xlu0 %v386, 4
  %v947 = vpop.permute.xlu0 %946
  %948 = vrot.lane.b32.xlu0 %v387, 4
  %v949 = vpop.permute.xlu0 %948
  %950 = vrot.lane.b32.xlu0 %v388, 4
  %v951 = vpop.permute.xlu0 %950
  %952 = vrot.lane.b32.xlu0 %v389, 4
  %v953 = vpop.permute.xlu0 %952
  %954 = vrot.lane.b32.xlu0 %v390, 4
  %v955 = vpop.permute.xlu0 %954
  %956 = vrot.lane.b32.xlu0 %v391, 4
  %v957 = vpop.permute.xlu0 %956
  %958 = vrot.lane.b32.xlu0 %v392, 4
  %v959 = vpop.permute.xlu0 %958
  %960 = vrot.lane.b32.xlu0 %v393, 4
  %v961 = vpop.permute.xlu0 %960
  %962 = vrot.lane.b32.xlu0 %v394, 4
  %v963 = vpop.permute.xlu0 %962
  %964 = vrot.lane.b32.xlu0 %v395, 4
  %v965 = vpop.permute.xlu0 %964
  %966 = vrot.lane.b32.xlu0 %v396, 4
  %v967 = vpop.permute.xlu0 %966
  %968 = vrot.lane.b32.xlu0 %v397, 4
  %v969 = vpop.permute.xlu0 %968
  %970 = vrot.lane.b32.xlu0 %v398, 4
  %v971 = vpop.permute.xlu0 %970
  %972 = vrot.lane.b32.xlu0 %v399, 4
  %v973 = vpop.permute.xlu0 %972
  %974 = vrot.lane.b32.xlu0 %v400, 4
  %v975 = vpop.permute.xlu0 %974
  %976 = vrot.lane.b32.xlu0 %v401, 4
  %v977 = vpop.permute.xlu0 %976
  %978 = vrot.lane.b32.xlu0 %v402, 4
  %v979 = vpop.permute.xlu0 %978
  %980 = vrot.lane.b32.xlu0 %v403, 4
  %v981 = vpop.permute.xlu0 %980
  %982 = vrot.lane.b32.xlu0 %v404, 4
  %v983 = vpop.permute.xlu0 %982
  %984 = vrot.lane.b32.xlu0 %v405, 4
  %v985 = vpop.permute.xlu0 %984
  %986 = vrot.lane.b32.xlu0 %v406, 4
  %v987 = vpop.permute.xlu0 %986
  %988 = vrot.lane.b32.xlu0 %v407, 4
  %v989 = vpop.permute.xlu0 %988
  %1113 = vrot.lane.b32.xlu0 %v721, 8
  %v1114 = vpop.permute.xlu0 %1113
  %1115 = vrot.lane.b32.xlu0 %v722, 8
  %v1116 = vpop.permute.xlu0 %1115
  %1117 = vrot.lane.b32.xlu0 %v723, 8
  %v1118 = vpop.permute.xlu0 %1117
  %1119 = vrot.lane.b32.xlu0 %v724, 8
  %v1120 = vpop.permute.xlu0 %1119
  %1121 = vrot.lane.b32.xlu0 %v725, 8
  %v1122 = vpop.permute.xlu0 %1121
  %1123 = vrot.lane.b32.xlu0 %v726, 8
  %v1124 = vpop.permute.xlu0 %1123
  %1125 = vrot.lane.b32.xlu0 %v727, 8
  %v1126 = vpop.permute.xlu0 %1125
  %1127 = vrot.lane.b32.xlu0 %v728, 8
  %v1128 = vpop.permute.xlu0 %1127
  %1129 = vrot.lane.b32.xlu0 %v729, 8
  %v1130 = vpop.permute.xlu0 %1129
  %1131 = vrot.lane.b32.xlu0 %v730, 8
  %v1132 = vpop.permute.xlu0 %1131
  %1133 = vrot.lane.b32.xlu0 %v731, 8
  %v1134 = vpop.permute.xlu0 %1133
  %1135 = vrot.lane.b32.xlu0 %v732, 8
  %v1136 = vpop.permute.xlu0 %1135
  %1137 = vrot.lane.b32.xlu0 %v733, 8
  %v1138 = vpop.permute.xlu0 %1137
  %1139 = vrot.lane.b32.xlu0 %v734, 8
  %v1140 = vpop.permute.xlu0 %1139
  %1141 = vrot.lane.b32.xlu0 %v735, 8
  %v1142 = vpop.permute.xlu0 %1141
  %1143 = vrot.lane.b32.xlu0 %v736, 8
  %v1144 = vpop.permute.xlu0 %1143
  %1145 = vrot.lane.b32.xlu0 %v737, 8
  %v1146 = vpop.permute.xlu0 %1145
  %1147 = vrot.lane.b32.xlu0 %v738, 8
  %v1148 = vpop.permute.xlu0 %1147
  %1149 = vrot.lane.b32.xlu0 %v739, 8
  %v1150 = vpop.permute.xlu0 %1149
  %1151 = vrot.lane.b32.xlu0 %v740, 8
  %v1152 = vpop.permute.xlu0 %1151
  %1153 = vrot.lane.b32.xlu0 %v741, 8
  %v1154 = vpop.permute.xlu0 %1153
  %1155 = vrot.lane.b32.xlu0 %v742, 8
  %v1156 = vpop.permute.xlu0 %1155
  %1157 = vrot.lane.b32.xlu0 %v743, 8
  %v1158 = vpop.permute.xlu0 %1157
  %1159 = vrot.lane.b32.xlu0 %v744, 8
  %v1160 = vpop.permute.xlu0 %1159
  %1161 = vrot.lane.b32.xlu0 %v745, 8
  %v1162 = vpop.permute.xlu0 %1161
  %1163 = vrot.lane.b32.xlu0 %v746, 8
  %v1164 = vpop.permute.xlu0 %1163
  %1165 = vrot.lane.b32.xlu0 %v747, 8
  %v1166 = vpop.permute.xlu0 %1165
  %1167 = vrot.lane.b32.xlu0 %v748, 8
  %v1168 = vpop.permute.xlu0 %1167
  %1169 = vrot.lane.b32.xlu0 %v749, 8
  %v1170 = vpop.permute.xlu0 %1169
  %1171 = vrot.lane.b32.xlu0 %v750, 8
  %v1172 = vpop.permute.xlu0 %1171
  %1173 = vrot.lane.b32.xlu0 %v751, 8
  %v1174 = vpop.permute.xlu0 %1173
  %1175 = vrot.lane.b32.xlu0 %v752, 8
  %v1176 = vpop.permute.xlu0 %1175
  %1177 = vrot.lane.b32.xlu0 %v753, 8
  %v1178 = vpop.permute.xlu0 %1177
  %1179 = vrot.lane.b32.xlu0 %v754, 8
  %v1180 = vpop.permute.xlu0 %1179
  %1181 = vrot.lane.b32.xlu0 %v755, 8
  %v1182 = vpop.permute.xlu0 %1181
  %1183 = vrot.lane.b32.xlu0 %v756, 8
  %v1184 = vpop.permute.xlu0 %1183
  %1185 = vrot.lane.b32.xlu0 %v757, 8
  %v1186 = vpop.permute.xlu0 %1185
  %1187 = vrot.lane.b32.xlu0 %v758, 8
  %v1188 = vpop.permute.xlu0 %1187
  %1189 = vrot.lane.b32.xlu0 %v759, 8
  %v1190 = vpop.permute.xlu0 %1189
  %1191 = vrot.lane.b32.xlu0 %v760, 8
  %v1192 = vpop.permute.xlu0 %1191
  %1193 = vrot.lane.b32.xlu0 %v761, 8
  %v1194 = vpop.permute.xlu0 %1193
  %1195 = vrot.lane.b32.xlu0 %v762, 8
  %v1196 = vpop.permute.xlu0 %1195
  %1197 = vrot.lane.b32.xlu0 %v763, 8
  %v1198 = vpop.permute.xlu0 %1197
  %1199 = vrot.lane.b32.xlu0 %v764, 8
  %v1200 = vpop.permute.xlu0 %1199
  %1201 = vrot.lane.b32.xlu0 %v765, 8
  %v1202 = vpop.permute.xlu0 %1201
  %1203 = vrot.lane.b32.xlu0 %v766, 8
  %v1204 = vpop.permute.xlu0 %1203
  %1205 = vrot.lane.b32.xlu0 %v767, 8
  %v1206 = vpop.permute.xlu0 %1205
  %1207 = vrot.lane.b32.xlu0 %v768, 8
  %v1208 = vpop.permute.xlu0 %1207
  %1209 = vrot.lane.b32.xlu0 %v769, 8
  %v1210 = vpop.permute.xlu0 %1209
  %1211 = vrot.lane.b32.xlu0 %v770, 8
  %v1212 = vpop.permute.xlu0 %1211
  %1213 = vrot.lane.b32.xlu0 %v771, 8
  %v1214 = vpop.permute.xlu0 %1213
  %1215 = vrot.lane.b32.xlu0 %v772, 8
  %v1216 = vpop.permute.xlu0 %1215
  %1217 = vrot.lane.b32.xlu0 %v773, 8
  %v1218 = vpop.permute.xlu0 %1217
  %1219 = vrot.lane.b32.xlu0 %v774, 8
  %v1220 = vpop.permute.xlu0 %1219
  %1221 = vrot.lane.b32.xlu0 %v775, 8
  %v1222 = vpop.permute.xlu0 %1221
  %1223 = vrot.lane.b32.xlu0 %v776, 8
  %v1224 = vpop.permute.xlu0 %1223
  %1225 = vrot.lane.b32.xlu0 %v777, 8
  %v1226 = vpop.permute.xlu0 %1225
  %1227 = vrot.lane.b32.xlu0 %v778, 8
  %v1228 = vpop.permute.xlu0 %1227
  %1229 = vrot.lane.b32.xlu0 %v779, 8
  %v1230 = vpop.permute.xlu0 %1229
  %1231 = vrot.lane.b32.xlu0 %v780, 8
  %v1232 = vpop.permute.xlu0 %1231
  %1233 = vrot.lane.b32.xlu0 %v781, 8
  %v1234 = vpop.permute.xlu0 %1233
  %1235 = vrot.lane.b32.xlu0 %v782, 8
  %v1236 = vpop.permute.xlu0 %1235
  %1363 = vrot.lane.b32.xlu0 %v538, 12
  %v1364 = vpop.permute.xlu0 %1363
  %1365 = vrot.lane.b32.xlu0 %v539, 12
  %v1366 = vpop.permute.xlu0 %1365
  %1367 = vrot.lane.b32.xlu0 %v540, 12
  %v1368 = vpop.permute.xlu0 %1367
  %1369 = vrot.lane.b32.xlu0 %v541, 12
  %v1370 = vpop.permute.xlu0 %1369
  %1371 = vrot.lane.b32.xlu0 %v542, 12
  %v1372 = vpop.permute.xlu0 %1371
  %1373 = vrot.lane.b32.xlu0 %v543, 12
  %v1374 = vpop.permute.xlu0 %1373
  %1375 = vrot.lane.b32.xlu0 %v544, 12
  %v1376 = vpop.permute.xlu0 %1375
  %1377 = vrot.lane.b32.xlu0 %v545, 12
  %v1378 = vpop.permute.xlu0 %1377
  %1379 = vrot.lane.b32.xlu0 %v546, 12
  %v1380 = vpop.permute.xlu0 %1379
  %1381 = vrot.lane.b32.xlu0 %v547, 12
  %v1382 = vpop.permute.xlu0 %1381
  %1383 = vrot.lane.b32.xlu0 %v548, 12
  %v1384 = vpop.permute.xlu0 %1383
  %1385 = vrot.lane.b32.xlu0 %v549, 12
  %v1386 = vpop.permute.xlu0 %1385
  %1387 = vrot.lane.b32.xlu0 %v550, 12
  %v1388 = vpop.permute.xlu0 %1387
  %1389 = vrot.lane.b32.xlu0 %v551, 12
  %v1390 = vpop.permute.xlu0 %1389
  %1391 = vrot.lane.b32.xlu0 %v552, 12
  %v1392 = vpop.permute.xlu0 %1391
  %1393 = vrot.lane.b32.xlu0 %v553, 12
  %v1394 = vpop.permute.xlu0 %1393
  %1395 = vrot.lane.b32.xlu0 %v554, 12
  %v1396 = vpop.permute.xlu0 %1395
  %1397 = vrot.lane.b32.xlu0 %v555, 12
  %v1398 = vpop.permute.xlu0 %1397
  %1399 = vrot.lane.b32.xlu0 %v556, 12
  %v1400 = vpop.permute.xlu0 %1399
  %1401 = vrot.lane.b32.xlu0 %v557, 12
  %v1402 = vpop.permute.xlu0 %1401
  %1403 = vrot.lane.b32.xlu0 %v558, 12
  %v1404 = vpop.permute.xlu0 %1403
  %1405 = vrot.lane.b32.xlu0 %v559, 12
  %v1406 = vpop.permute.xlu0 %1405
  %1407 = vrot.lane.b32.xlu0 %v560, 12
  %v1408 = vpop.permute.xlu0 %1407
  %1409 = vrot.lane.b32.xlu0 %v561, 12
  %v1410 = vpop.permute.xlu0 %1409
  %1411 = vrot.lane.b32.xlu0 %v562, 12
  %v1412 = vpop.permute.xlu0 %1411
  %1413 = vrot.lane.b32.xlu0 %v563, 12
  %v1414 = vpop.permute.xlu0 %1413
  %1415 = vrot.lane.b32.xlu0 %v564, 12
  %v1416 = vpop.permute.xlu0 %1415
  %1417 = vrot.lane.b32.xlu0 %v565, 12
  %v1418 = vpop.permute.xlu0 %1417
  %1419 = vrot.lane.b32.xlu0 %v566, 12
  %v1420 = vpop.permute.xlu0 %1419
  %1421 = vrot.lane.b32.xlu0 %v567, 12
  %v1422 = vpop.permute.xlu0 %1421
  %1423 = vrot.lane.b32.xlu0 %v791, 12
  %v1424 = vpop.permute.xlu0 %1423
  %1425 = vrot.lane.b32.xlu0 %v792, 12
  %v1426 = vpop.permute.xlu0 %1425
  %1427 = vrot.lane.b32.xlu0 %v568, 12
  %v1428 = vpop.permute.xlu0 %1427
  %1429 = vrot.lane.b32.xlu0 %v569, 12
  %v1430 = vpop.permute.xlu0 %1429
  %1431 = vrot.lane.b32.xlu0 %v570, 12
  %v1432 = vpop.permute.xlu0 %1431
  %1433 = vrot.lane.b32.xlu0 %v571, 12
  %v1434 = vpop.permute.xlu0 %1433
  %1435 = vrot.lane.b32.xlu0 %v572, 12
  %v1436 = vpop.permute.xlu0 %1435
  %1437 = vrot.lane.b32.xlu0 %v573, 12
  %v1438 = vpop.permute.xlu0 %1437
  %1439 = vrot.lane.b32.xlu0 %v574, 12
  %v1440 = vpop.permute.xlu0 %1439
  %1441 = vrot.lane.b32.xlu0 %v575, 12
  %v1442 = vpop.permute.xlu0 %1441
  %1443 = vrot.lane.b32.xlu0 %v576, 12
  %v1444 = vpop.permute.xlu0 %1443
  %1445 = vrot.lane.b32.xlu0 %v577, 12
  %v1446 = vpop.permute.xlu0 %1445
  %1447 = vrot.lane.b32.xlu0 %v578, 12
  %v1448 = vpop.permute.xlu0 %1447
  %1449 = vrot.lane.b32.xlu0 %v579, 12
  %v1450 = vpop.permute.xlu0 %1449
  %1451 = vrot.lane.b32.xlu0 %v580, 12
  %v1452 = vpop.permute.xlu0 %1451
  %1453 = vrot.lane.b32.xlu0 %v581, 12
  %v1454 = vpop.permute.xlu0 %1453
  %1455 = vrot.lane.b32.xlu0 %v582, 12
  %v1456 = vpop.permute.xlu0 %1455
  %1457 = vrot.lane.b32.xlu0 %v583, 12
  %v1458 = vpop.permute.xlu0 %1457
  %1459 = vrot.lane.b32.xlu0 %v584, 12
  %v1460 = vpop.permute.xlu0 %1459
  %1461 = vrot.lane.b32.xlu0 %v585, 12
  %v1462 = vpop.permute.xlu0 %1461
  %1463 = vrot.lane.b32.xlu0 %v586, 12
  %v1464 = vpop.permute.xlu0 %1463
  %1465 = vrot.lane.b32.xlu0 %v587, 12
  %v1466 = vpop.permute.xlu0 %1465
  %1467 = vrot.lane.b32.xlu0 %v588, 12
  %v1468 = vpop.permute.xlu0 %1467
  %1469 = vrot.lane.b32.xlu0 %v589, 12
  %v1470 = vpop.permute.xlu0 %1469
  %1471 = vrot.lane.b32.xlu0 %v590, 12
  %v1472 = vpop.permute.xlu0 %1471
  %1473 = vrot.lane.b32.xlu0 %v591, 12
  %v1474 = vpop.permute.xlu0 %1473
  %1475 = vrot.lane.b32.xlu0 %v592, 12
  %v1476 = vpop.permute.xlu0 %1475
  %1477 = vrot.lane.b32.xlu0 %v593, 12
  %v1478 = vpop.permute.xlu0 %1477
  %1479 = vrot.lane.b32.xlu0 %v594, 12
  %v1480 = vpop.permute.xlu0 %1479
  %1481 = vrot.lane.b32.xlu0 %v595, 12
  %v1482 = vpop.permute.xlu0 %1481
  %1483 = vrot.lane.b32.xlu0 %v596, 12
  %v1484 = vpop.permute.xlu0 %1483
  %1485 = vrot.lane.b32.xlu0 %v597, 12
  %v1486 = vpop.permute.xlu0 %1485
  %1487 = vrot.lane.b32.xlu0 %v793, 12
  %v1488 = vpop.permute.xlu0 %1487
  %1489 = vrot.lane.b32.xlu0 %v794, 12
  %v1490 = vpop.permute.xlu0 %1489
  %1559 = vrot.lane.b32.xlu0 %v346, 16
  %v1560 = vpop.permute.xlu0 %1559
  %1561 = vrot.lane.b32.xlu0 %v347, 16
  %v1562 = vpop.permute.xlu0 %1561
  %1563 = vrot.lane.b32.xlu0 %v348, 16
  %v1564 = vpop.permute.xlu0 %1563
  %1565 = vrot.lane.b32.xlu0 %v349, 16
  %v1566 = vpop.permute.xlu0 %1565
  %1567 = vrot.lane.b32.xlu0 %v350, 16
  %v1568 = vpop.permute.xlu0 %1567
  %1569 = vrot.lane.b32.xlu0 %v351, 16
  %v1570 = vpop.permute.xlu0 %1569
  %1571 = vrot.lane.b32.xlu0 %v352, 16
  %v1572 = vpop.permute.xlu0 %1571
  %1573 = vrot.lane.b32.xlu0 %v353, 16
  %v1574 = vpop.permute.xlu0 %1573
  %1575 = vrot.lane.b32.xlu0 %v354, 16
  %v1576 = vpop.permute.xlu0 %1575
  %1577 = vrot.lane.b32.xlu0 %v355, 16
  %v1578 = vpop.permute.xlu0 %1577
  %1579 = vrot.lane.b32.xlu0 %v356, 16
  %v1580 = vpop.permute.xlu0 %1579
  %1581 = vrot.lane.b32.xlu0 %v357, 16
  %v1582 = vpop.permute.xlu0 %1581
  %1583 = vrot.lane.b32.xlu0 %v358, 16
  %v1584 = vpop.permute.xlu0 %1583
  %1585 = vrot.lane.b32.xlu0 %v359, 16
  %v1586 = vpop.permute.xlu0 %1585
  %1587 = vrot.lane.b32.xlu0 %v360, 16
  %v1588 = vpop.permute.xlu0 %1587
  %1589 = vrot.lane.b32.xlu0 %v361, 16
  %v1590 = vpop.permute.xlu0 %1589
  %1591 = vrot.lane.b32.xlu0 %v362, 16
  %v1592 = vpop.permute.xlu0 %1591
  %1593 = vrot.lane.b32.xlu0 %v363, 16
  %v1594 = vpop.permute.xlu0 %1593
  %1595 = vrot.lane.b32.xlu0 %v364, 16
  %v1596 = vpop.permute.xlu0 %1595
  %1597 = vrot.lane.b32.xlu0 %v365, 16
  %v1598 = vpop.permute.xlu0 %1597
  %1599 = vrot.lane.b32.xlu0 %v366, 16
  %v1600 = vpop.permute.xlu0 %1599
  %1601 = vrot.lane.b32.xlu0 %v367, 16
  %v1602 = vpop.permute.xlu0 %1601
  %1603 = vrot.lane.b32.xlu0 %v368, 16
  %v1604 = vpop.permute.xlu0 %1603
  %1605 = vrot.lane.b32.xlu0 %v369, 16
  %v1606 = vpop.permute.xlu0 %1605
  %1607 = vrot.lane.b32.xlu0 %v370, 16
  %v1608 = vpop.permute.xlu0 %1607
  %1609 = vrot.lane.b32.xlu0 %v371, 16
  %v1610 = vpop.permute.xlu0 %1609
  %1611 = vrot.lane.b32.xlu0 %v372, 16
  %v1612 = vpop.permute.xlu0 %1611
  %1613 = vrot.lane.b32.xlu0 %v373, 16
  %v1614 = vpop.permute.xlu0 %1613
  %1615 = vrot.lane.b32.xlu0 %v374, 16
  %v1616 = vpop.permute.xlu0 %1615
  %1617 = vrot.lane.b32.xlu0 %v375, 16
  %v1618 = vpop.permute.xlu0 %1617
  %1619 = vrot.lane.b32.xlu0 %v376, 16
  %v1620 = vpop.permute.xlu0 %1619
  %1621 = vrot.lane.b32.xlu0 %v377, 16
  %v1622 = vpop.permute.xlu0 %1621
  %1623 = vrot.lane.b32.xlu0 %v378, 16
  %v1624 = vpop.permute.xlu0 %1623
  %1625 = vrot.lane.b32.xlu0 %v379, 16
  %v1626 = vpop.permute.xlu0 %1625
  %1627 = vrot.lane.b32.xlu0 %v380, 16
  %v1628 = vpop.permute.xlu0 %1627
  %1629 = vrot.lane.b32.xlu0 %v381, 16
  %v1630 = vpop.permute.xlu0 %1629
  %1631 = vrot.lane.b32.xlu0 %v382, 16
  %v1632 = vpop.permute.xlu0 %1631
  %1633 = vrot.lane.b32.xlu0 %v383, 16
  %v1634 = vpop.permute.xlu0 %1633
  %1635 = vrot.lane.b32.xlu0 %v384, 16
  %v1636 = vpop.permute.xlu0 %1635
  %1637 = vrot.lane.b32.xlu0 %v385, 16
  %v1638 = vpop.permute.xlu0 %1637
  %1639 = vrot.lane.b32.xlu0 %v386, 16
  %v1640 = vpop.permute.xlu0 %1639
  %1641 = vrot.lane.b32.xlu0 %v387, 16
  %v1642 = vpop.permute.xlu0 %1641
  %1643 = vrot.lane.b32.xlu0 %v388, 16
  %v1644 = vpop.permute.xlu0 %1643
  %1645 = vrot.lane.b32.xlu0 %v389, 16
  %v1646 = vpop.permute.xlu0 %1645
  %1647 = vrot.lane.b32.xlu0 %v390, 16
  %v1648 = vpop.permute.xlu0 %1647
  %1649 = vrot.lane.b32.xlu0 %v391, 16
  %v1650 = vpop.permute.xlu0 %1649
  %1651 = vrot.lane.b32.xlu0 %v392, 16
  %v1652 = vpop.permute.xlu0 %1651
  %1653 = vrot.lane.b32.xlu0 %v393, 16
  %v1654 = vpop.permute.xlu0 %1653
  %1655 = vrot.lane.b32.xlu0 %v394, 16
  %v1656 = vpop.permute.xlu0 %1655
  %1657 = vrot.lane.b32.xlu0 %v395, 16
  %v1658 = vpop.permute.xlu0 %1657
  %1659 = vrot.lane.b32.xlu0 %v396, 16
  %v1660 = vpop.permute.xlu0 %1659
  %1661 = vrot.lane.b32.xlu0 %v397, 16
  %v1662 = vpop.permute.xlu0 %1661
  %1663 = vrot.lane.b32.xlu0 %v398, 16
  %v1664 = vpop.permute.xlu0 %1663
  %1665 = vrot.lane.b32.xlu0 %v399, 16
  %v1666 = vpop.permute.xlu0 %1665
  %1667 = vrot.lane.b32.xlu0 %v400, 16
  %v1668 = vpop.permute.xlu0 %1667
  %1669 = vrot.lane.b32.xlu0 %v401, 16
  %v1670 = vpop.permute.xlu0 %1669
  %1671 = vrot.lane.b32.xlu0 %v402, 16
  %v1672 = vpop.permute.xlu0 %1671
  %1673 = vrot.lane.b32.xlu0 %v403, 16
  %v1674 = vpop.permute.xlu0 %1673
  %1675 = vrot.lane.b32.xlu0 %v404, 16
  %v1676 = vpop.permute.xlu0 %1675
  %1677 = vrot.lane.b32.xlu0 %v405, 16
  %v1678 = vpop.permute.xlu0 %1677
  %1679 = vrot.lane.b32.xlu0 %v406, 16
  %v1680 = vpop.permute.xlu0 %1679
  %1681 = vrot.lane.b32.xlu0 %v407, 16
  %v1682 = vpop.permute.xlu0 %1681
  %1683 = vrot.lane.b32.xlu0 %v408, 16
  %v1684 = vpop.permute.xlu0 %1683
  %1685 = vrot.lane.b32.xlu0 %v409, 16
  %v1686 = vpop.permute.xlu0 %1685
  %1755 = vrot.lane.b32.xlu0 %v723, 20
  %v1756 = vpop.permute.xlu0 %1755
  %1757 = vrot.lane.b32.xlu0 %v724, 20
  %v1758 = vpop.permute.xlu0 %1757
  %1759 = vrot.lane.b32.xlu0 %v725, 20
  %v1760 = vpop.permute.xlu0 %1759
  %1761 = vrot.lane.b32.xlu0 %v726, 20
  %v1762 = vpop.permute.xlu0 %1761
  %1763 = vrot.lane.b32.xlu0 %v727, 20
  %v1764 = vpop.permute.xlu0 %1763
  %1765 = vrot.lane.b32.xlu0 %v728, 20
  %v1766 = vpop.permute.xlu0 %1765
  %1767 = vrot.lane.b32.xlu0 %v729, 20
  %v1768 = vpop.permute.xlu0 %1767
  %1769 = vrot.lane.b32.xlu0 %v730, 20
  %v1770 = vpop.permute.xlu0 %1769
  %1771 = vrot.lane.b32.xlu0 %v731, 20
  %v1772 = vpop.permute.xlu0 %1771
  %1773 = vrot.lane.b32.xlu0 %v732, 20
  %v1774 = vpop.permute.xlu0 %1773
  %1775 = vrot.lane.b32.xlu0 %v733, 20
  %v1776 = vpop.permute.xlu0 %1775
  %1777 = vrot.lane.b32.xlu0 %v734, 20
  %v1778 = vpop.permute.xlu0 %1777
  %1779 = vrot.lane.b32.xlu0 %v735, 20
  %v1780 = vpop.permute.xlu0 %1779
  %1781 = vrot.lane.b32.xlu0 %v736, 20
  %v1782 = vpop.permute.xlu0 %1781
  %1783 = vrot.lane.b32.xlu0 %v737, 20
  %v1784 = vpop.permute.xlu0 %1783
  %1785 = vrot.lane.b32.xlu0 %v738, 20
  %v1786 = vpop.permute.xlu0 %1785
  %1787 = vrot.lane.b32.xlu0 %v739, 20
  %v1788 = vpop.permute.xlu0 %1787
  %1789 = vrot.lane.b32.xlu0 %v740, 20
  %v1790 = vpop.permute.xlu0 %1789
  %1791 = vrot.lane.b32.xlu0 %v741, 20
  %v1792 = vpop.permute.xlu0 %1791
  %1793 = vrot.lane.b32.xlu0 %v742, 20
  %v1794 = vpop.permute.xlu0 %1793
  %1795 = vrot.lane.b32.xlu0 %v743, 20
  %v1796 = vpop.permute.xlu0 %1795
  %1797 = vrot.lane.b32.xlu0 %v744, 20
  %v1798 = vpop.permute.xlu0 %1797
  %1799 = vrot.lane.b32.xlu0 %v745, 20
  %v1800 = vpop.permute.xlu0 %1799
  %1801 = vrot.lane.b32.xlu0 %v746, 20
  %v1802 = vpop.permute.xlu0 %1801
  %1803 = vrot.lane.b32.xlu0 %v747, 20
  %v1804 = vpop.permute.xlu0 %1803
  %1805 = vrot.lane.b32.xlu0 %v748, 20
  %v1806 = vpop.permute.xlu0 %1805
  %1807 = vrot.lane.b32.xlu0 %v749, 20
  %v1808 = vpop.permute.xlu0 %1807
  %1809 = vrot.lane.b32.xlu0 %v750, 20
  %v1810 = vpop.permute.xlu0 %1809
  %1811 = vrot.lane.b32.xlu0 %v751, 20
  %v1812 = vpop.permute.xlu0 %1811
  %1813 = vrot.lane.b32.xlu0 %v752, 20
  %v1814 = vpop.permute.xlu0 %1813
  %1815 = vrot.lane.b32.xlu0 %v803, 20
  %v1816 = vpop.permute.xlu0 %1815
  %1817 = vrot.lane.b32.xlu0 %v804, 20
  %v1818 = vpop.permute.xlu0 %1817
  %1819 = vrot.lane.b32.xlu0 %v753, 20
  %v1820 = vpop.permute.xlu0 %1819
  %1821 = vrot.lane.b32.xlu0 %v754, 20
  %v1822 = vpop.permute.xlu0 %1821
  %1823 = vrot.lane.b32.xlu0 %v755, 20
  %v1824 = vpop.permute.xlu0 %1823
  %1825 = vrot.lane.b32.xlu0 %v756, 20
  %v1826 = vpop.permute.xlu0 %1825
  %1827 = vrot.lane.b32.xlu0 %v757, 20
  %v1828 = vpop.permute.xlu0 %1827
  %1829 = vrot.lane.b32.xlu0 %v758, 20
  %v1830 = vpop.permute.xlu0 %1829
  %1831 = vrot.lane.b32.xlu0 %v759, 20
  %v1832 = vpop.permute.xlu0 %1831
  %1833 = vrot.lane.b32.xlu0 %v760, 20
  %v1834 = vpop.permute.xlu0 %1833
  %1835 = vrot.lane.b32.xlu0 %v761, 20
  %v1836 = vpop.permute.xlu0 %1835
  %1837 = vrot.lane.b32.xlu0 %v762, 20
  %v1838 = vpop.permute.xlu0 %1837
  %1839 = vrot.lane.b32.xlu0 %v763, 20
  %v1840 = vpop.permute.xlu0 %1839
  %1841 = vrot.lane.b32.xlu0 %v764, 20
  %v1842 = vpop.permute.xlu0 %1841
  %1843 = vrot.lane.b32.xlu0 %v765, 20
  %v1844 = vpop.permute.xlu0 %1843
  %1845 = vrot.lane.b32.xlu0 %v766, 20
  %v1846 = vpop.permute.xlu0 %1845
  %1847 = vrot.lane.b32.xlu0 %v767, 20
  %v1848 = vpop.permute.xlu0 %1847
  %1849 = vrot.lane.b32.xlu0 %v768, 20
  %v1850 = vpop.permute.xlu0 %1849
  %1851 = vrot.lane.b32.xlu0 %v769, 20
  %v1852 = vpop.permute.xlu0 %1851
  %1853 = vrot.lane.b32.xlu0 %v770, 20
  %v1854 = vpop.permute.xlu0 %1853
  %1855 = vrot.lane.b32.xlu0 %v771, 20
  %v1856 = vpop.permute.xlu0 %1855
  %1857 = vrot.lane.b32.xlu0 %v772, 20
  %v1858 = vpop.permute.xlu0 %1857
  %1859 = vrot.lane.b32.xlu0 %v773, 20
  %v1860 = vpop.permute.xlu0 %1859
  %1861 = vrot.lane.b32.xlu0 %v774, 20
  %v1862 = vpop.permute.xlu0 %1861
  %1863 = vrot.lane.b32.xlu0 %v775, 20
  %v1864 = vpop.permute.xlu0 %1863
  %1865 = vrot.lane.b32.xlu0 %v776, 20
  %v1866 = vpop.permute.xlu0 %1865
  %1867 = vrot.lane.b32.xlu0 %v777, 20
  %v1868 = vpop.permute.xlu0 %1867
  %1869 = vrot.lane.b32.xlu0 %v778, 20
  %v1870 = vpop.permute.xlu0 %1869
  %1871 = vrot.lane.b32.xlu0 %v779, 20
  %v1872 = vpop.permute.xlu0 %1871
  %1873 = vrot.lane.b32.xlu0 %v780, 20
  %v1874 = vpop.permute.xlu0 %1873
  %1875 = vrot.lane.b32.xlu0 %v781, 20
  %v1876 = vpop.permute.xlu0 %1875
  %1877 = vrot.lane.b32.xlu0 %v782, 20
  %v1878 = vpop.permute.xlu0 %1877
  %1879 = vrot.lane.b32.xlu0 %v805, 20
  %v1880 = vpop.permute.xlu0 %1879
  %1881 = vrot.lane.b32.xlu0 %v806, 20
  %v1882 = vpop.permute.xlu0 %1881
  %1949 = vrot.lane.b32.xlu0 %v540, 24
  %v1950 = vpop.permute.xlu0 %1949
  %1951 = vrot.lane.b32.xlu0 %v541, 24
  %v1952 = vpop.permute.xlu0 %1951
  %1953 = vrot.lane.b32.xlu0 %v542, 24
  %v1954 = vpop.permute.xlu0 %1953
  %1955 = vrot.lane.b32.xlu0 %v543, 24
  %v1956 = vpop.permute.xlu0 %1955
  %1957 = vrot.lane.b32.xlu0 %v544, 24
  %v1958 = vpop.permute.xlu0 %1957
  %1959 = vrot.lane.b32.xlu0 %v545, 24
  %v1960 = vpop.permute.xlu0 %1959
  %1961 = vrot.lane.b32.xlu0 %v546, 24
  %v1962 = vpop.permute.xlu0 %1961
  %1963 = vrot.lane.b32.xlu0 %v547, 24
  %v1964 = vpop.permute.xlu0 %1963
  %1965 = vrot.lane.b32.xlu0 %v548, 24
  %v1966 = vpop.permute.xlu0 %1965
  %1967 = vrot.lane.b32.xlu0 %v549, 24
  %v1968 = vpop.permute.xlu0 %1967
  %1969 = vrot.lane.b32.xlu0 %v550, 24
  %v1970 = vpop.permute.xlu0 %1969
  %1971 = vrot.lane.b32.xlu0 %v551, 24
  %v1972 = vpop.permute.xlu0 %1971
  %1973 = vrot.lane.b32.xlu0 %v552, 24
  %v1974 = vpop.permute.xlu0 %1973
  %1975 = vrot.lane.b32.xlu0 %v553, 24
  %v1976 = vpop.permute.xlu0 %1975
  %1977 = vrot.lane.b32.xlu0 %v554, 24
  %v1978 = vpop.permute.xlu0 %1977
  %1979 = vrot.lane.b32.xlu0 %v555, 24
  %v1980 = vpop.permute.xlu0 %1979
  %1981 = vrot.lane.b32.xlu0 %v556, 24
  %v1982 = vpop.permute.xlu0 %1981
  %1983 = vrot.lane.b32.xlu0 %v557, 24
  %v1984 = vpop.permute.xlu0 %1983
  %1985 = vrot.lane.b32.xlu0 %v558, 24
  %v1986 = vpop.permute.xlu0 %1985
  %1987 = vrot.lane.b32.xlu0 %v559, 24
  %v1988 = vpop.permute.xlu0 %1987
  %1989 = vrot.lane.b32.xlu0 %v560, 24
  %v1990 = vpop.permute.xlu0 %1989
  %1991 = vrot.lane.b32.xlu0 %v561, 24
  %v1992 = vpop.permute.xlu0 %1991
  %1993 = vrot.lane.b32.xlu0 %v562, 24
  %v1994 = vpop.permute.xlu0 %1993
  %1995 = vrot.lane.b32.xlu0 %v563, 24
  %v1996 = vpop.permute.xlu0 %1995
  %1997 = vrot.lane.b32.xlu0 %v564, 24
  %v1998 = vpop.permute.xlu0 %1997
  %1999 = vrot.lane.b32.xlu0 %v565, 24
  %v2000 = vpop.permute.xlu0 %1999
  %2001 = vrot.lane.b32.xlu0 %v566, 24
  %v2002 = vpop.permute.xlu0 %2001
  %2003 = vrot.lane.b32.xlu0 %v567, 24
  %v2004 = vpop.permute.xlu0 %2003
  %2005 = vrot.lane.b32.xlu0 %v791, 24
  %v2006 = vpop.permute.xlu0 %2005
  %2007 = vrot.lane.b32.xlu0 %v792, 24
  %v2008 = vpop.permute.xlu0 %2007
  %2009 = vrot.lane.b32.xlu0 %v536, 24
  %v2010 = vpop.permute.xlu0 %2009
  %2011 = vrot.lane.b32.xlu0 %v537, 24
  %v2012 = vpop.permute.xlu0 %2011
  %2013 = vrot.lane.b32.xlu0 %v570, 24
  %v2014 = vpop.permute.xlu0 %2013
  %2015 = vrot.lane.b32.xlu0 %v571, 24
  %v2016 = vpop.permute.xlu0 %2015
  %2017 = vrot.lane.b32.xlu0 %v572, 24
  %v2018 = vpop.permute.xlu0 %2017
  %2019 = vrot.lane.b32.xlu0 %v573, 24
  %v2020 = vpop.permute.xlu0 %2019
  %2021 = vrot.lane.b32.xlu0 %v574, 24
  %v2022 = vpop.permute.xlu0 %2021
  %2023 = vrot.lane.b32.xlu0 %v575, 24
  %v2024 = vpop.permute.xlu0 %2023
  %2025 = vrot.lane.b32.xlu0 %v576, 24
  %v2026 = vpop.permute.xlu0 %2025
  %2027 = vrot.lane.b32.xlu0 %v577, 24
  %v2028 = vpop.permute.xlu0 %2027
  %2029 = vrot.lane.b32.xlu0 %v578, 24
  %v2030 = vpop.permute.xlu0 %2029
  %2031 = vrot.lane.b32.xlu0 %v579, 24
  %v2032 = vpop.permute.xlu0 %2031
  %2033 = vrot.lane.b32.xlu0 %v580, 24
  %v2034 = vpop.permute.xlu0 %2033
  %2035 = vrot.lane.b32.xlu0 %v581, 24
  %v2036 = vpop.permute.xlu0 %2035
  %2037 = vrot.lane.b32.xlu0 %v582, 24
  %v2038 = vpop.permute.xlu0 %2037
  %2039 = vrot.lane.b32.xlu0 %v583, 24
  %v2040 = vpop.permute.xlu0 %2039
  %2041 = vrot.lane.b32.xlu0 %v584, 24
  %v2042 = vpop.permute.xlu0 %2041
  %2043 = vrot.lane.b32.xlu0 %v585, 24
  %v2044 = vpop.permute.xlu0 %2043
  %2045 = vrot.lane.b32.xlu0 %v586, 24
  %v2046 = vpop.permute.xlu0 %2045
  %2047 = vrot.lane.b32.xlu0 %v587, 24
  %v2048 = vpop.permute.xlu0 %2047
  %2049 = vrot.lane.b32.xlu0 %v588, 24
  %v2050 = vpop.permute.xlu0 %2049
  %2051 = vrot.lane.b32.xlu0 %v589, 24
  %v2052 = vpop.permute.xlu0 %2051
  %2053 = vrot.lane.b32.xlu0 %v590, 24
  %v2054 = vpop.permute.xlu0 %2053
  %2055 = vrot.lane.b32.xlu0 %v591, 24
  %v2056 = vpop.permute.xlu0 %2055
  %2057 = vrot.lane.b32.xlu0 %v592, 24
  %v2058 = vpop.permute.xlu0 %2057
  %2059 = vrot.lane.b32.xlu0 %v593, 24
  %v2060 = vpop.permute.xlu0 %2059
  %2061 = vrot.lane.b32.xlu0 %v594, 24
  %v2062 = vpop.permute.xlu0 %2061
  %2063 = vrot.lane.b32.xlu0 %v595, 24
  %v2064 = vpop.permute.xlu0 %2063
  %2065 = vrot.lane.b32.xlu0 %v596, 24
  %v2066 = vpop.permute.xlu0 %2065
  %2067 = vrot.lane.b32.xlu0 %v597, 24
  %v2068 = vpop.permute.xlu0 %2067
  %2069 = vrot.lane.b32.xlu0 %v793, 24
  %v2070 = vpop.permute.xlu0 %2069
  %2071 = vrot.lane.b32.xlu0 %v794, 24
  %v2072 = vpop.permute.xlu0 %2071
  %2135 = vrot.lane.b32.xlu0 %v348, 28
  %v2136 = vpop.permute.xlu0 %2135
  %2137 = vrot.lane.b32.xlu0 %v349, 28
  %v2138 = vpop.permute.xlu0 %2137
  %2139 = vrot.lane.b32.xlu0 %v350, 28
  %v2140 = vpop.permute.xlu0 %2139
  %2141 = vrot.lane.b32.xlu0 %v351, 28
  %v2142 = vpop.permute.xlu0 %2141
  %2143 = vrot.lane.b32.xlu0 %v352, 28
  %v2144 = vpop.permute.xlu0 %2143
  %2145 = vrot.lane.b32.xlu0 %v353, 28
  %v2146 = vpop.permute.xlu0 %2145
  %2147 = vrot.lane.b32.xlu0 %v354, 28
  %v2148 = vpop.permute.xlu0 %2147
  %2149 = vrot.lane.b32.xlu0 %v355, 28
  %v2150 = vpop.permute.xlu0 %2149
  %2151 = vrot.lane.b32.xlu0 %v356, 28
  %v2152 = vpop.permute.xlu0 %2151
  %2153 = vrot.lane.b32.xlu0 %v357, 28
  %v2154 = vpop.permute.xlu0 %2153
  %2155 = vrot.lane.b32.xlu0 %v358, 28
  %v2156 = vpop.permute.xlu0 %2155
  %2157 = vrot.lane.b32.xlu0 %v359, 28
  %v2158 = vpop.permute.xlu0 %2157
  %2159 = vrot.lane.b32.xlu0 %v360, 28
  %v2160 = vpop.permute.xlu0 %2159
  %2161 = vrot.lane.b32.xlu0 %v361, 28
  %v2162 = vpop.permute.xlu0 %2161
  %2163 = vrot.lane.b32.xlu0 %v362, 28
  %v2164 = vpop.permute.xlu0 %2163
  %2165 = vrot.lane.b32.xlu0 %v363, 28
  %v2166 = vpop.permute.xlu0 %2165
  %2167 = vrot.lane.b32.xlu0 %v364, 28
  %v2168 = vpop.permute.xlu0 %2167
  %2169 = vrot.lane.b32.xlu0 %v365, 28
  %v2170 = vpop.permute.xlu0 %2169
  %2171 = vrot.lane.b32.xlu0 %v366, 28
  %v2172 = vpop.permute.xlu0 %2171
  %2173 = vrot.lane.b32.xlu0 %v367, 28
  %v2174 = vpop.permute.xlu0 %2173
  %2175 = vrot.lane.b32.xlu0 %v368, 28
  %v2176 = vpop.permute.xlu0 %2175
  %2177 = vrot.lane.b32.xlu0 %v369, 28
  %v2178 = vpop.permute.xlu0 %2177
  %2179 = vrot.lane.b32.xlu0 %v370, 28
  %v2180 = vpop.permute.xlu0 %2179
  %2181 = vrot.lane.b32.xlu0 %v371, 28
  %v2182 = vpop.permute.xlu0 %2181
  %2183 = vrot.lane.b32.xlu0 %v372, 28
  %v2184 = vpop.permute.xlu0 %2183
  %2185 = vrot.lane.b32.xlu0 %v373, 28
  %v2186 = vpop.permute.xlu0 %2185
  %2187 = vrot.lane.b32.xlu0 %v374, 28
  %v2188 = vpop.permute.xlu0 %2187
  %2189 = vrot.lane.b32.xlu0 %v375, 28
  %v2190 = vpop.permute.xlu0 %2189
  %2191 = vrot.lane.b32.xlu0 %v376, 28
  %v2192 = vpop.permute.xlu0 %2191
  %2193 = vrot.lane.b32.xlu0 %v377, 28
  %v2194 = vpop.permute.xlu0 %2193
  %2195 = vrot.lane.b32.xlu0 0.0, 28
  %v2196 = vpop.permute.xlu0 %2195
  %2197 = vrot.lane.b32.xlu0 %v380, 28
  %v2198 = vpop.permute.xlu0 %2197
  %2199 = vrot.lane.b32.xlu0 %v381, 28
  %v2200 = vpop.permute.xlu0 %2199
  %2201 = vrot.lane.b32.xlu0 %v382, 28
  %v2202 = vpop.permute.xlu0 %2201
  %2203 = vrot.lane.b32.xlu0 %v383, 28
  %v2204 = vpop.permute.xlu0 %2203
  %2205 = vrot.lane.b32.xlu0 %v384, 28
  %v2206 = vpop.permute.xlu0 %2205
  %2207 = vrot.lane.b32.xlu0 %v385, 28
  %v2208 = vpop.permute.xlu0 %2207
  %2209 = vrot.lane.b32.xlu0 %v386, 28
  %v2210 = vpop.permute.xlu0 %2209
  %2211 = vrot.lane.b32.xlu0 %v387, 28
  %v2212 = vpop.permute.xlu0 %2211
  %2213 = vrot.lane.b32.xlu0 %v388, 28
  %v2214 = vpop.permute.xlu0 %2213
  %2215 = vrot.lane.b32.xlu0 %v389, 28
  %v2216 = vpop.permute.xlu0 %2215
  %2217 = vrot.lane.b32.xlu0 %v390, 28
  %v2218 = vpop.permute.xlu0 %2217
  %2219 = vrot.lane.b32.xlu0 %v391, 28
  %v2220 = vpop.permute.xlu0 %2219
  %2221 = vrot.lane.b32.xlu0 %v392, 28
  %v2222 = vpop.permute.xlu0 %2221
  %2223 = vrot.lane.b32.xlu0 %v393, 28
  %v2224 = vpop.permute.xlu0 %2223
  %2225 = vrot.lane.b32.xlu0 %v394, 28
  %v2226 = vpop.permute.xlu0 %2225
  %2227 = vrot.lane.b32.xlu0 %v395, 28
  %v2228 = vpop.permute.xlu0 %2227
  %2229 = vrot.lane.b32.xlu0 %v396, 28
  %v2230 = vpop.permute.xlu0 %2229
  %2231 = vrot.lane.b32.xlu0 %v397, 28
  %v2232 = vpop.permute.xlu0 %2231
  %2233 = vrot.lane.b32.xlu0 %v398, 28
  %v2234 = vpop.permute.xlu0 %2233
  %2235 = vrot.lane.b32.xlu0 %v399, 28
  %v2236 = vpop.permute.xlu0 %2235
  %2237 = vrot.lane.b32.xlu0 %v400, 28
  %v2238 = vpop.permute.xlu0 %2237
  %2239 = vrot.lane.b32.xlu0 %v401, 28
  %v2240 = vpop.permute.xlu0 %2239
  %2241 = vrot.lane.b32.xlu0 %v402, 28
  %v2242 = vpop.permute.xlu0 %2241
  %2243 = vrot.lane.b32.xlu0 %v403, 28
  %v2244 = vpop.permute.xlu0 %2243
  %2245 = vrot.lane.b32.xlu0 %v404, 28
  %v2246 = vpop.permute.xlu0 %2245
  %2247 = vrot.lane.b32.xlu0 %v405, 28
  %v2248 = vpop.permute.xlu0 %2247
  %2249 = vrot.lane.b32.xlu0 %v406, 28
  %v2250 = vpop.permute.xlu0 %2249
  %2251 = vrot.lane.b32.xlu0 %v407, 28
  %v2252 = vpop.permute.xlu0 %2251
  %2253 = vrot.lane.b32.xlu0 %v408, 28
  %v2254 = vpop.permute.xlu0 %2253
  %2255 = vrot.lane.b32.xlu0 %v409, 28
  %v2256 = vpop.permute.xlu0 %2255
  %2318 = vrot.lane.b32.xlu0 %v725, 32
  %v2319 = vpop.permute.xlu0 %2318
  %2320 = vrot.lane.b32.xlu0 %v726, 32
  %v2321 = vpop.permute.xlu0 %2320
  %2322 = vrot.lane.b32.xlu0 %v727, 32
  %v2323 = vpop.permute.xlu0 %2322
  %2324 = vrot.lane.b32.xlu0 %v728, 32
  %v2325 = vpop.permute.xlu0 %2324
  %2326 = vrot.lane.b32.xlu0 %v729, 32
  %v2327 = vpop.permute.xlu0 %2326
  %2328 = vrot.lane.b32.xlu0 %v730, 32
  %v2329 = vpop.permute.xlu0 %2328
  %2330 = vrot.lane.b32.xlu0 %v731, 32
  %v2331 = vpop.permute.xlu0 %2330
  %2332 = vrot.lane.b32.xlu0 %v732, 32
  %v2333 = vpop.permute.xlu0 %2332
  %2334 = vrot.lane.b32.xlu0 %v733, 32
  %v2335 = vpop.permute.xlu0 %2334
  %2336 = vrot.lane.b32.xlu0 %v734, 32
  %v2337 = vpop.permute.xlu0 %2336
  %2338 = vrot.lane.b32.xlu0 %v735, 32
  %v2339 = vpop.permute.xlu0 %2338
  %2340 = vrot.lane.b32.xlu0 %v736, 32
  %v2341 = vpop.permute.xlu0 %2340
  %2342 = vrot.lane.b32.xlu0 %v737, 32
  %v2343 = vpop.permute.xlu0 %2342
  %2344 = vrot.lane.b32.xlu0 %v738, 32
  %v2345 = vpop.permute.xlu0 %2344
  %2346 = vrot.lane.b32.xlu0 %v739, 32
  %v2347 = vpop.permute.xlu0 %2346
  %2348 = vrot.lane.b32.xlu0 %v740, 32
  %v2349 = vpop.permute.xlu0 %2348
  %2350 = vrot.lane.b32.xlu0 %v741, 32
  %v2351 = vpop.permute.xlu0 %2350
  %2352 = vrot.lane.b32.xlu0 %v742, 32
  %v2353 = vpop.permute.xlu0 %2352
  %2354 = vrot.lane.b32.xlu0 %v743, 32
  %v2355 = vpop.permute.xlu0 %2354
  %2356 = vrot.lane.b32.xlu0 %v744, 32
  %v2357 = vpop.permute.xlu0 %2356
  %2358 = vrot.lane.b32.xlu0 %v745, 32
  %v2359 = vpop.permute.xlu0 %2358
  %2360 = vrot.lane.b32.xlu0 %v746, 32
  %v2361 = vpop.permute.xlu0 %2360
  %2362 = vrot.lane.b32.xlu0 %v747, 32
  %v2363 = vpop.permute.xlu0 %2362
  %2364 = vrot.lane.b32.xlu0 %v748, 32
  %v2365 = vpop.permute.xlu0 %2364
  %2366 = vrot.lane.b32.xlu0 %v749, 32
  %v2367 = vpop.permute.xlu0 %2366
  %2368 = vrot.lane.b32.xlu0 %v750, 32
  %v2369 = vpop.permute.xlu0 %2368
  %2370 = vrot.lane.b32.xlu0 %v751, 32
  %v2371 = vpop.permute.xlu0 %2370
  %2372 = vrot.lane.b32.xlu0 %v752, 32
  %v2373 = vpop.permute.xlu0 %2372
  %2374 = vrot.lane.b32.xlu0 %v803, 32
  %v2375 = vpop.permute.xlu0 %2374
  %2376 = vrot.lane.b32.xlu0 %v804, 32
  %v2377 = vpop.permute.xlu0 %2376
  %2378 = vrot.lane.b32.xlu0 %v721, 32
  %v2379 = vpop.permute.xlu0 %2378
  %2380 = vrot.lane.b32.xlu0 %v722, 32
  %v2381 = vpop.permute.xlu0 %2380
  %2382 = vrot.lane.b32.xlu0 %v755, 32
  %v2383 = vpop.permute.xlu0 %2382
  %2384 = vrot.lane.b32.xlu0 %v756, 32
  %v2385 = vpop.permute.xlu0 %2384
  %2386 = vrot.lane.b32.xlu0 %v757, 32
  %v2387 = vpop.permute.xlu0 %2386
  %2388 = vrot.lane.b32.xlu0 %v758, 32
  %v2389 = vpop.permute.xlu0 %2388
  %2390 = vrot.lane.b32.xlu0 %v759, 32
  %v2391 = vpop.permute.xlu0 %2390
  %2392 = vrot.lane.b32.xlu0 %v760, 32
  %v2393 = vpop.permute.xlu0 %2392
  %2394 = vrot.lane.b32.xlu0 %v761, 32
  %v2395 = vpop.permute.xlu0 %2394
  %2396 = vrot.lane.b32.xlu0 %v762, 32
  %v2397 = vpop.permute.xlu0 %2396
  %2398 = vrot.lane.b32.xlu0 %v763, 32
  %v2399 = vpop.permute.xlu0 %2398
  %2400 = vrot.lane.b32.xlu0 %v764, 32
  %v2401 = vpop.permute.xlu0 %2400
  %2402 = vrot.lane.b32.xlu0 %v765, 32
  %v2403 = vpop.permute.xlu0 %2402
  %2404 = vrot.lane.b32.xlu0 %v766, 32
  %v2405 = vpop.permute.xlu0 %2404
  %2406 = vrot.lane.b32.xlu0 %v767, 32
  %v2407 = vpop.permute.xlu0 %2406
  %2408 = vrot.lane.b32.xlu0 %v768, 32
  %v2409 = vpop.permute.xlu0 %2408
  %2410 = vrot.lane.b32.xlu0 %v769, 32
  %v2411 = vpop.permute.xlu0 %2410
  %2412 = vrot.lane.b32.xlu0 %v770, 32
  %v2413 = vpop.permute.xlu0 %2412
  %2414 = vrot.lane.b32.xlu0 %v771, 32
  %v2415 = vpop.permute.xlu0 %2414
  %2416 = vrot.lane.b32.xlu0 %v772, 32
  %v2417 = vpop.permute.xlu0 %2416
  %2418 = vrot.lane.b32.xlu0 %v773, 32
  %v2419 = vpop.permute.xlu0 %2418
  %2420 = vrot.lane.b32.xlu0 %v774, 32
  %v2421 = vpop.permute.xlu0 %2420
  %2422 = vrot.lane.b32.xlu0 %v775, 32
  %v2423 = vpop.permute.xlu0 %2422
  %2424 = vrot.lane.b32.xlu0 %v776, 32
  %v2425 = vpop.permute.xlu0 %2424
  %2426 = vrot.lane.b32.xlu0 %v777, 32
  %v2427 = vpop.permute.xlu0 %2426
  %2428 = vrot.lane.b32.xlu0 %v778, 32
  %v2429 = vpop.permute.xlu0 %2428
  %2430 = vrot.lane.b32.xlu0 %v779, 32
  %v2431 = vpop.permute.xlu0 %2430
  %2432 = vrot.lane.b32.xlu0 %v780, 32
  %v2433 = vpop.permute.xlu0 %2432
  %2434 = vrot.lane.b32.xlu0 %v781, 32
  %v2435 = vpop.permute.xlu0 %2434
  %2436 = vrot.lane.b32.xlu0 %v782, 32
  %v2437 = vpop.permute.xlu0 %2436
  %2438 = vrot.lane.b32.xlu0 %v805, 32
  %v2439 = vpop.permute.xlu0 %2438
  %2440 = vrot.lane.b32.xlu0 %v806, 32
  %v2441 = vpop.permute.xlu0 %2440
  %vm2504 = vcmask 31744
  %v2505 = vsel %vm2504, %v536, %v869
  %v2506 = vsel %vm2504, %v537, %v869
  %v2507 = vsel %vm2504, %v538, %v871
  %v2508 = vsel %vm2504, %v539, %v873
  %v2509 = vsel %vm2504, %v540, %v875
  %v2510 = vsel %vm2504, %v541, %v877
  %v2511 = vsel %vm2504, %v542, %v879
  %v2512 = vsel %vm2504, %v543, %v881
  %v2513 = vsel %vm2504, %v544, %v883
  %v2514 = vsel %vm2504, %v545, %v885
  %v2515 = vsel %vm2504, %v546, %v887
  %v2516 = vsel %vm2504, %v547, %v889
  %v2517 = vsel %vm2504, %v548, %v891
  %v2518 = vsel %vm2504, %v549, %v893
  %v2519 = vsel %vm2504, %v550, %v895
  %v2520 = vsel %vm2504, %v551, %v897
  %v2521 = vsel %vm2504, %v552, %v899
  %v2522 = vsel %vm2504, %v553, %v901
  %v2523 = vsel %vm2504, %v554, %v903
  %v2524 = vsel %vm2504, %v555, %v905
  %v2525 = vsel %vm2504, %v556, %v907
  %v2526 = vsel %vm2504, %v557, %v909
  %v2527 = vsel %vm2504, %v558, %v911
  %v2528 = vsel %vm2504, %v559, %v913
  %v2529 = vsel %vm2504, %v560, %v915
  %v2530 = vsel %vm2504, %v561, %v917
  %v2531 = vsel %vm2504, %v562, %v919
  %v2532 = vsel %vm2504, %v563, %v921
  %v2533 = vsel %vm2504, %v564, %v923
  %v2534 = vsel %vm2504, %v565, %v925
  %v2535 = vsel %vm2504, %v566, %v927
  %v2536 = vsel %vm2504, %v567, %v929
  %v2537 = vsel %vm2504, %v568, %v931
  %v2538 = vsel %vm2504, %v569, %v933
  %v2539 = vsel %vm2504, %v570, %v935
  %v2540 = vsel %vm2504, %v571, %v937
  %v2541 = vsel %vm2504, %v572, %v939
  %v2542 = vsel %vm2504, %v573, %v941
  %v2543 = vsel %vm2504, %v574, %v943
  %v2544 = vsel %vm2504, %v575, %v945
  %v2545 = vsel %vm2504, %v576, %v947
  %v2546 = vsel %vm2504, %v577, %v949
  %v2547 = vsel %vm2504, %v578, %v951
  %v2548 = vsel %vm2504, %v579, %v953
  %v2549 = vsel %vm2504, %v580, %v955
  %v2550 = vsel %vm2504, %v581, %v957
  %v2551 = vsel %vm2504, %v582, %v959
  %v2552 = vsel %vm2504, %v583, %v961
  %v2553 = vsel %vm2504, %v584, %v963
  %v2554 = vsel %vm2504, %v585, %v965
  %v2555 = vsel %vm2504, %v586, %v967
  %v2556 = vsel %vm2504, %v587, %v969
  %v2557 = vsel %vm2504, %v588, %v971
  %v2558 = vsel %vm2504, %v589, %v973
  %v2559 = vsel %vm2504, %v590, %v975
  %v2560 = vsel %vm2504, %v591, %v977
  %v2561 = vsel %vm2504, %v592, %v979
  %v2562 = vsel %vm2504, %v593, %v981
  %v2563 = vsel %vm2504, %v594, %v983
  %v2564 = vsel %vm2504, %v595, %v985
  %v2565 = vsel %vm2504, %v596, %v987
  %v2566 = vsel %vm2504, %v597, %v989
  %vm2567 = vcmask 64512
  %v2568 = vsel %vm2567, %v2505, %v1114
  %v2569 = vsel %vm2567, %v2506, %v1116
  %v2570 = vsel %vm2567, %v2507, %v1118
  %v2571 = vsel %vm2567, %v2508, %v1120
  %v2572 = vsel %vm2567, %v2509, %v1122
  %v2573 = vsel %vm2567, %v2510, %v1124
  %v2574 = vsel %vm2567, %v2511, %v1126
  %v2575 = vsel %vm2567, %v2512, %v1128
  %v2576 = vsel %vm2567, %v2513, %v1130
  %v2577 = vsel %vm2567, %v2514, %v1132
  %v2578 = vsel %vm2567, %v2515, %v1134
  %v2579 = vsel %vm2567, %v2516, %v1136
  %v2580 = vsel %vm2567, %v2517, %v1138
  %v2581 = vsel %vm2567, %v2518, %v1140
  %v2582 = vsel %vm2567, %v2519, %v1142
  %v2583 = vsel %vm2567, %v2520, %v1144
  %v2584 = vsel %vm2567, %v2521, %v1146
  %v2585 = vsel %vm2567, %v2522, %v1148
  %v2586 = vsel %vm2567, %v2523, %v1150
  %v2587 = vsel %vm2567, %v2524, %v1152
  %v2588 = vsel %vm2567, %v2525, %v1154
  %v2589 = vsel %vm2567, %v2526, %v1156
  %v2590 = vsel %vm2567, %v2527, %v1158
  %v2591 = vsel %vm2567, %v2528, %v1160
  %v2592 = vsel %vm2567, %v2529, %v1162
  %v2593 = vsel %vm2567, %v2530, %v1164
  %v2594 = vsel %vm2567, %v2531, %v1166
  %v2595 = vsel %vm2567, %v2532, %v1168
  %v2596 = vsel %vm2567, %v2533, %v1170
  %v2597 = vsel %vm2567, %v2534, %v1172
  %v2598 = vsel %vm2567, %v2535, %v1174
  %v2599 = vsel %vm2567, %v2536, %v1176
  %v2600 = vsel %vm2567, %v2537, %v1178
  %v2601 = vsel %vm2567, %v2538, %v1180
  %v2602 = vsel %vm2567, %v2539, %v1182
  %v2603 = vsel %vm2567, %v2540, %v1184
  %v2604 = vsel %vm2567, %v2541, %v1186
  %v2605 = vsel %vm2567, %v2542, %v1188
  %v2606 = vsel %vm2567, %v2543, %v1190
  %v2607 = vsel %vm2567, %v2544, %v1192
  %v2608 = vsel %vm2567, %v2545, %v1194
  %v2609 = vsel %vm2567, %v2546, %v1196
  %v2610 = vsel %vm2567, %v2547, %v1198
  %v2611 = vsel %vm2567, %v2548, %v1200
  %v2612 = vsel %vm2567, %v2549, %v1202
  %v2613 = vsel %vm2567, %v2550, %v1204
  %v2614 = vsel %vm2567, %v2551, %v1206
  %v2615 = vsel %vm2567, %v2552, %v1208
  %v2616 = vsel %vm2567, %v2553, %v1210
  %v2617 = vsel %vm2567, %v2554, %v1212
  %v2618 = vsel %vm2567, %v2555, %v1214
  %v2619 = vsel %vm2567, %v2556, %v1216
  %v2620 = vsel %vm2567, %v2557, %v1218
  %v2621 = vsel %vm2567, %v2558, %v1220
  %v2622 = vsel %vm2567, %v2559, %v1222
  %v2623 = vsel %vm2567, %v2560, %v1224
  %v2624 = vsel %vm2567, %v2561, %v1226
  %v2625 = vsel %vm2567, %v2562, %v1228
  %v2626 = vsel %vm2567, %v2563, %v1230
  %v2627 = vsel %vm2567, %v2564, %v1232
  %v2628 = vsel %vm2567, %v2565, %v1234
  %v2629 = vsel %vm2567, %v2566, %v1236
  %vm2630 = vcmask 97280
  %v2631 = vsel %vm2630, %v2568, %v1364
  %v2632 = vsel %vm2630, %v2569, %v1366
  %v2633 = vsel %vm2630, %v2570, %v1368
  %v2634 = vsel %vm2630, %v2571, %v1370
  %v2635 = vsel %vm2630, %v2572, %v1372
  %v2636 = vsel %vm2630, %v2573, %v1374
  %v2637 = vsel %vm2630, %v2574, %v1376
  %v2638 = vsel %vm2630, %v2575, %v1378
  %v2639 = vsel %vm2630, %v2576, %v1380
  %v2640 = vsel %vm2630, %v2577, %v1382
  %v2641 = vsel %vm2630, %v2578, %v1384
  %v2642 = vsel %vm2630, %v2579, %v1386
  %v2643 = vsel %vm2630, %v2580, %v1388
  %v2644 = vsel %vm2630, %v2581, %v1390
  %v2645 = vsel %vm2630, %v2582, %v1392
  %v2646 = vsel %vm2630, %v2583, %v1394
  %v2647 = vsel %vm2630, %v2584, %v1396
  %v2648 = vsel %vm2630, %v2585, %v1398
  %v2649 = vsel %vm2630, %v2586, %v1400
  %v2650 = vsel %vm2630, %v2587, %v1402
  %v2651 = vsel %vm2630, %v2588, %v1404
  %v2652 = vsel %vm2630, %v2589, %v1406
  %v2653 = vsel %vm2630, %v2590, %v1408
  %v2654 = vsel %vm2630, %v2591, %v1410
  %v2655 = vsel %vm2630, %v2592, %v1412
  %v2656 = vsel %vm2630, %v2593, %v1414
  %v2657 = vsel %vm2630, %v2594, %v1416
  %v2658 = vsel %vm2630, %v2595, %v1418
  %v2659 = vsel %vm2630, %v2596, %v1420
  %v2660 = vsel %vm2630, %v2597, %v1422
  %v2661 = vsel %vm2630, %v2598, %v1424
  %v2662 = vsel %vm2630, %v2599, %v1426
  %v2663 = vsel %vm2630, %v2568, %v1428
  %v2664 = vsel %vm2630, %v2569, %v1430
  %v2665 = vsel %vm2630, %v2600, %v1432
  %v2666 = vsel %vm2630, %v2601, %v1434
  %v2667 = vsel %vm2630, %v2602, %v1436
  %v2668 = vsel %vm2630, %v2603, %v1438
  %v2669 = vsel %vm2630, %v2604, %v1440
  %v2670 = vsel %vm2630, %v2605, %v1442
  %v2671 = vsel %vm2630, %v2606, %v1444
  %v2672 = vsel %vm2630, %v2607, %v1446
  %v2673 = vsel %vm2630, %v2608, %v1448
  %v2674 = vsel %vm2630, %v2609, %v1450
  %v2675 = vsel %vm2630, %v2610, %v1452
  %v2676 = vsel %vm2630, %v2611, %v1454
  %v2677 = vsel %vm2630, %v2612, %v1456
  %v2678 = vsel %vm2630, %v2613, %v1458
  %v2679 = vsel %vm2630, %v2614, %v1460
  %v2680 = vsel %vm2630, %v2615, %v1462
  %v2681 = vsel %vm2630, %v2616, %v1464
  %v2682 = vsel %vm2630, %v2617, %v1466
  %v2683 = vsel %vm2630, %v2618, %v1468
  %v2684 = vsel %vm2630, %v2619, %v1470
  %v2685 = vsel %vm2630, %v2620, %v1472
  %v2686 = vsel %vm2630, %v2621, %v1474
  %v2687 = vsel %vm2630, %v2622, %v1476
  %v2688 = vsel %vm2630, %v2623, %v1478
  %v2689 = vsel %vm2630, %v2624, %v1480
  %v2690 = vsel %vm2630, %v2625, %v1482
  %v2691 = vsel %vm2630, %v2626, %v1484
  %v2692 = vsel %vm2630, %v2627, %v1486
  %v2693 = vsel %vm2630, %v2628, %v1488
  %v2694 = vsel %vm2630, %v2629, %v1490
  %vm2695 = vcmask 130048
  %v2696 = vsel %vm2695, %v2631, %v1560
  %v2697 = vsel %vm2695, %v2632, %v1562
  %v2698 = vsel %vm2695, %v2633, %v1564
  %v2699 = vsel %vm2695, %v2634, %v1566
  %v2700 = vsel %vm2695, %v2635, %v1568
  %v2701 = vsel %vm2695, %v2636, %v1570
  %v2702 = vsel %vm2695, %v2637, %v1572
  %v2703 = vsel %vm2695, %v2638, %v1574
  %v2704 = vsel %vm2695, %v2639, %v1576
  %v2705 = vsel %vm2695, %v2640, %v1578
  %v2706 = vsel %vm2695, %v2641, %v1580
  %v2707 = vsel %vm2695, %v2642, %v1582
  %v2708 = vsel %vm2695, %v2643, %v1584
  %v2709 = vsel %vm2695, %v2644, %v1586
  %v2710 = vsel %vm2695, %v2645, %v1588
  %v2711 = vsel %vm2695, %v2646, %v1590
  %v2712 = vsel %vm2695, %v2647, %v1592
  %v2713 = vsel %vm2695, %v2648, %v1594
  %v2714 = vsel %vm2695, %v2649, %v1596
  %v2715 = vsel %vm2695, %v2650, %v1598
  %v2716 = vsel %vm2695, %v2651, %v1600
  %v2717 = vsel %vm2695, %v2652, %v1602
  %v2718 = vsel %vm2695, %v2653, %v1604
  %v2719 = vsel %vm2695, %v2654, %v1606
  %v2720 = vsel %vm2695, %v2655, %v1608
  %v2721 = vsel %vm2695, %v2656, %v1610
  %v2722 = vsel %vm2695, %v2657, %v1612
  %v2723 = vsel %vm2695, %v2658, %v1614
  %v2724 = vsel %vm2695, %v2659, %v1616
  %v2725 = vsel %vm2695, %v2660, %v1618
  %v2726 = vsel %vm2695, %v2661, %v1620
  %v2727 = vsel %vm2695, %v2662, %v1622
  %v2728 = vsel %vm2695, %v2663, %v1624
  %v2729 = vsel %vm2695, %v2664, %v1626
  %v2730 = vsel %vm2695, %v2665, %v1628
  %v2731 = vsel %vm2695, %v2666, %v1630
  %v2732 = vsel %vm2695, %v2667, %v1632
  %v2733 = vsel %vm2695, %v2668, %v1634
  %v2734 = vsel %vm2695, %v2669, %v1636
  %v2735 = vsel %vm2695, %v2670, %v1638
  %v2736 = vsel %vm2695, %v2671, %v1640
  %v2737 = vsel %vm2695, %v2672, %v1642
  %v2738 = vsel %vm2695, %v2673, %v1644
  %v2739 = vsel %vm2695, %v2674, %v1646
  %v2740 = vsel %vm2695, %v2675, %v1648
  %v2741 = vsel %vm2695, %v2676, %v1650
  %v2742 = vsel %vm2695, %v2677, %v1652
  %v2743 = vsel %vm2695, %v2678, %v1654
  %v2744 = vsel %vm2695, %v2679, %v1656
  %v2745 = vsel %vm2695, %v2680, %v1658
  %v2746 = vsel %vm2695, %v2681, %v1660
  %v2747 = vsel %vm2695, %v2682, %v1662
  %v2748 = vsel %vm2695, %v2683, %v1664
  %v2749 = vsel %vm2695, %v2684, %v1666
  %v2750 = vsel %vm2695, %v2685, %v1668
  %v2751 = vsel %vm2695, %v2686, %v1670
  %v2752 = vsel %vm2695, %v2687, %v1672
  %v2753 = vsel %vm2695, %v2688, %v1674
  %v2754 = vsel %vm2695, %v2689, %v1676
  %v2755 = vsel %vm2695, %v2690, %v1678
  %v2756 = vsel %vm2695, %v2691, %v1680
  %v2757 = vsel %vm2695, %v2692, %v1682
  %v2758 = vsel %vm2695, %v2693, %v1684
  %v2759 = vsel %vm2695, %v2694, %v1686
  %vm2760 = vcmask 162816
  %v2761 = vsel %vm2760, %v2696, %v1756
  %v2762 = vsel %vm2760, %v2697, %v1758
  %v2763 = vsel %vm2760, %v2698, %v1760
  %v2764 = vsel %vm2760, %v2699, %v1762
  %v2765 = vsel %vm2760, %v2700, %v1764
  %v2766 = vsel %vm2760, %v2701, %v1766
  %v2767 = vsel %vm2760, %v2702, %v1768
  %v2768 = vsel %vm2760, %v2703, %v1770
  %v2769 = vsel %vm2760, %v2704, %v1772
  %v2770 = vsel %vm2760, %v2705, %v1774
  %v2771 = vsel %vm2760, %v2706, %v1776
  %v2772 = vsel %vm2760, %v2707, %v1778
  %v2773 = vsel %vm2760, %v2708, %v1780
  %v2774 = vsel %vm2760, %v2709, %v1782
  %v2775 = vsel %vm2760, %v2710, %v1784
  %v2776 = vsel %vm2760, %v2711, %v1786
  %v2777 = vsel %vm2760, %v2712, %v1788
  %v2778 = vsel %vm2760, %v2713, %v1790
  %v2779 = vsel %vm2760, %v2714, %v1792
  %v2780 = vsel %vm2760, %v2715, %v1794
  %v2781 = vsel %vm2760, %v2716, %v1796
  %v2782 = vsel %vm2760, %v2717, %v1798
  %v2783 = vsel %vm2760, %v2718, %v1800
  %v2784 = vsel %vm2760, %v2719, %v1802
  %v2785 = vsel %vm2760, %v2720, %v1804
  %v2786 = vsel %vm2760, %v2721, %v1806
  %v2787 = vsel %vm2760, %v2722, %v1808
  %v2788 = vsel %vm2760, %v2723, %v1810
  %v2789 = vsel %vm2760, %v2724, %v1812
  %v2790 = vsel %vm2760, %v2725, %v1814
  %v2791 = vsel %vm2760, %v2726, %v1816
  %v2792 = vsel %vm2760, %v2727, %v1818
  %v2793 = vsel %vm2760, %v2728, %v1820
  %v2794 = vsel %vm2760, %v2729, %v1822
  %v2795 = vsel %vm2760, %v2730, %v1824
  %v2796 = vsel %vm2760, %v2731, %v1826
  %v2797 = vsel %vm2760, %v2732, %v1828
  %v2798 = vsel %vm2760, %v2733, %v1830
  %v2799 = vsel %vm2760, %v2734, %v1832
  %v2800 = vsel %vm2760, %v2735, %v1834
  %v2801 = vsel %vm2760, %v2736, %v1836
  %v2802 = vsel %vm2760, %v2737, %v1838
  %v2803 = vsel %vm2760, %v2738, %v1840
  %v2804 = vsel %vm2760, %v2739, %v1842
  %v2805 = vsel %vm2760, %v2740, %v1844
  %v2806 = vsel %vm2760, %v2741, %v1846
  %v2807 = vsel %vm2760, %v2742, %v1848
  %v2808 = vsel %vm2760, %v2743, %v1850
  %v2809 = vsel %vm2760, %v2744, %v1852
  %v2810 = vsel %vm2760, %v2745, %v1854
  %v2811 = vsel %vm2760, %v2746, %v1856
  %v2812 = vsel %vm2760, %v2747, %v1858
  %v2813 = vsel %vm2760, %v2748, %v1860
  %v2814 = vsel %vm2760, %v2749, %v1862
  %v2815 = vsel %vm2760, %v2750, %v1864
  %v2816 = vsel %vm2760, %v2751, %v1866
  %v2817 = vsel %vm2760, %v2752, %v1868
  %v2818 = vsel %vm2760, %v2753, %v1870
  %v2819 = vsel %vm2760, %v2754, %v1872
  %v2820 = vsel %vm2760, %v2755, %v1874
  %v2821 = vsel %vm2760, %v2756, %v1876
  %v2822 = vsel %vm2760, %v2757, %v1878
  %v2823 = vsel %vm2760, %v2758, %v1880
  %v2824 = vsel %vm2760, %v2759, %v1882
  %vm2825 = vcmask 195584
  %v2826 = vsel %vm2825, %v2761, %v1950
  %v2827 = vsel %vm2825, %v2762, %v1952
  %v2828 = vsel %vm2825, %v2763, %v1954
  %v2829 = vsel %vm2825, %v2764, %v1956
  %v2830 = vsel %vm2825, %v2765, %v1958
  %v2831 = vsel %vm2825, %v2766, %v1960
  %v2832 = vsel %vm2825, %v2767, %v1962
  %v2833 = vsel %vm2825, %v2768, %v1964
  %v2834 = vsel %vm2825, %v2769, %v1966
  %v2835 = vsel %vm2825, %v2770, %v1968
  %v2836 = vsel %vm2825, %v2771, %v1970
  %v2837 = vsel %vm2825, %v2772, %v1972
  %v2838 = vsel %vm2825, %v2773, %v1974
  %v2839 = vsel %vm2825, %v2774, %v1976
  %v2840 = vsel %vm2825, %v2775, %v1978
  %v2841 = vsel %vm2825, %v2776, %v1980
  %v2842 = vsel %vm2825, %v2777, %v1982
  %v2843 = vsel %vm2825, %v2778, %v1984
  %v2844 = vsel %vm2825, %v2779, %v1986
  %v2845 = vsel %vm2825, %v2780, %v1988
  %v2846 = vsel %vm2825, %v2781, %v1990
  %v2847 = vsel %vm2825, %v2782, %v1992
  %v2848 = vsel %vm2825, %v2783, %v1994
  %v2849 = vsel %vm2825, %v2784, %v1996
  %v2850 = vsel %vm2825, %v2785, %v1998
  %v2851 = vsel %vm2825, %v2786, %v2000
  %v2852 = vsel %vm2825, %v2787, %v2002
  %v2853 = vsel %vm2825, %v2788, %v2004
  %v2854 = vsel %vm2825, %v2789, %v2006
  %v2855 = vsel %vm2825, %v2790, %v2008
  %v2856 = vsel %vm2825, %v2791, %v2010
  %v2857 = vsel %vm2825, %v2792, %v2012
  %v2858 = vsel %vm2825, %v2793, %v2014
  %v2859 = vsel %vm2825, %v2794, %v2016
  %v2860 = vsel %vm2825, %v2795, %v2018
  %v2861 = vsel %vm2825, %v2796, %v2020
  %v2862 = vsel %vm2825, %v2797, %v2022
  %v2863 = vsel %vm2825, %v2798, %v2024
  %v2864 = vsel %vm2825, %v2799, %v2026
  %v2865 = vsel %vm2825, %v2800, %v2028
  %v2866 = vsel %vm2825, %v2801, %v2030
  %v2867 = vsel %vm2825, %v2802, %v2032
  %v2868 = vsel %vm2825, %v2803, %v2034
  %v2869 = vsel %vm2825, %v2804, %v2036
  %v2870 = vsel %vm2825, %v2805, %v2038
  %v2871 = vsel %vm2825, %v2806, %v2040
  %v2872 = vsel %vm2825, %v2807, %v2042
  %v2873 = vsel %vm2825, %v2808, %v2044
  %v2874 = vsel %vm2825, %v2809, %v2046
  %v2875 = vsel %vm2825, %v2810, %v2048
  %v2876 = vsel %vm2825, %v2811, %v2050
  %v2877 = vsel %vm2825, %v2812, %v2052
  %v2878 = vsel %vm2825, %v2813, %v2054
  %v2879 = vsel %vm2825, %v2814, %v2056
  %v2880 = vsel %vm2825, %v2815, %v2058
  %v2881 = vsel %vm2825, %v2816, %v2060
  %v2882 = vsel %vm2825, %v2817, %v2062
  %v2883 = vsel %vm2825, %v2818, %v2064
  %v2884 = vsel %vm2825, %v2819, %v2066
  %v2885 = vsel %vm2825, %v2820, %v2068
  %v2886 = vsel %vm2825, %v2821, %v2070
  %v2887 = vsel %vm2825, %v2822, %v2072
  %v2888 = vsel %vm2825, %v2823, %v2010
  %v2889 = vsel %vm2825, %v2824, %v2012
  %vm2890 = vcmask 228352
  %v2891 = vsel %vm2890, %v2826, %v2136
  %v2892 = vsel %vm2890, %v2827, %v2138
  %v2893 = vsel %vm2890, %v2828, %v2140
  %v2894 = vsel %vm2890, %v2829, %v2142
  %v2895 = vsel %vm2890, %v2830, %v2144
  %v2896 = vsel %vm2890, %v2831, %v2146
  %v2897 = vsel %vm2890, %v2832, %v2148
  %v2898 = vsel %vm2890, %v2833, %v2150
  %v2899 = vsel %vm2890, %v2834, %v2152
  %v2900 = vsel %vm2890, %v2835, %v2154
  %v2901 = vsel %vm2890, %v2836, %v2156
  %v2902 = vsel %vm2890, %v2837, %v2158
  %v2903 = vsel %vm2890, %v2838, %v2160
  %v2904 = vsel %vm2890, %v2839, %v2162
  %v2905 = vsel %vm2890, %v2840, %v2164
  %v2906 = vsel %vm2890, %v2841, %v2166
  %v2907 = vsel %vm2890, %v2842, %v2168
  %v2908 = vsel %vm2890, %v2843, %v2170
  %v2909 = vsel %vm2890, %v2844, %v2172
  %v2910 = vsel %vm2890, %v2845, %v2174
  %v2911 = vsel %vm2890, %v2846, %v2176
  %v2912 = vsel %vm2890, %v2847, %v2178
  %v2913 = vsel %vm2890, %v2848, %v2180
  %v2914 = vsel %vm2890, %v2849, %v2182
  %v2915 = vsel %vm2890, %v2850, %v2184
  %v2916 = vsel %vm2890, %v2851, %v2186
  %v2917 = vsel %vm2890, %v2852, %v2188
  %v2918 = vsel %vm2890, %v2853, %v2190
  %v2919 = vsel %vm2890, %v2854, %v2192
  %v2920 = vsel %vm2890, %v2855, %v2194
  %v2921 = vsel %vm2890, %v2856, %v2196
  %v2922 = vsel %vm2890, %v2857, %v2196
  %v2923 = vsel %vm2890, %v2858, %v2198
  %v2924 = vsel %vm2890, %v2859, %v2200
  %v2925 = vsel %vm2890, %v2860, %v2202
  %v2926 = vsel %vm2890, %v2861, %v2204
  %v2927 = vsel %vm2890, %v2862, %v2206
  %v2928 = vsel %vm2890, %v2863, %v2208
  %v2929 = vsel %vm2890, %v2864, %v2210
  %v2930 = vsel %vm2890, %v2865, %v2212
  %v2931 = vsel %vm2890, %v2866, %v2214
  %v2932 = vsel %vm2890, %v2867, %v2216
  %v2933 = vsel %vm2890, %v2868, %v2218
  %v2934 = vsel %vm2890, %v2869, %v2220
  %v2935 = vsel %vm2890, %v2870, %v2222
  %v2936 = vsel %vm2890, %v2871, %v2224
  %v2937 = vsel %vm2890, %v2872, %v2226
  %v2938 = vsel %vm2890, %v2873, %v2228
  %v2939 = vsel %vm2890, %v2874, %v2230
  %v2940 = vsel %vm2890, %v2875, %v2232
  %v2941 = vsel %vm2890, %v2876, %v2234
  %v2942 = vsel %vm2890, %v2877, %v2236
  %v2943 = vsel %vm2890, %v2878, %v2238
  %v2944 = vsel %vm2890, %v2879, %v2240
  %v2945 = vsel %vm2890, %v2880, %v2242
  %v2946 = vsel %vm2890, %v2881, %v2244
  %v2947 = vsel %vm2890, %v2882, %v2246
  %v2948 = vsel %vm2890, %v2883, %v2248
  %v2949 = vsel %vm2890, %v2884, %v2250
  %v2950 = vsel %vm2890, %v2885, %v2252
  %v2951 = vsel %vm2890, %v2886, %v2254
  %v2952 = vsel %vm2890, %v2887, %v2256
  %v2953 = vsel %vm2890, %v2888, %v2196
  %v2954 = vsel %vm2890, %v2889, %v2196
  %vm2955 = vcmask 261120
  %v2956 = vsel %vm2955, %v2891, %v2319
  %v2957 = vsel %vm2955, %v2892, %v2321
  %v2958 = vsel %vm2955, %v2893, %v2323
  %v2959 = vsel %vm2955, %v2894, %v2325
  %v2960 = vsel %vm2955, %v2895, %v2327
  %v2961 = vsel %vm2955, %v2896, %v2329
  %v2962 = vsel %vm2955, %v2897, %v2331
  %v2963 = vsel %vm2955, %v2898, %v2333
  %v2964 = vsel %vm2955, %v2899, %v2335
  %v2965 = vsel %vm2955, %v2900, %v2337
  %v2966 = vsel %vm2955, %v2901, %v2339
  %v2967 = vsel %vm2955, %v2902, %v2341
  %v2968 = vsel %vm2955, %v2903, %v2343
  %v2969 = vsel %vm2955, %v2904, %v2345
  %v2970 = vsel %vm2955, %v2905, %v2347
  %v2971 = vsel %vm2955, %v2906, %v2349
  %v2972 = vsel %vm2955, %v2907, %v2351
  %v2973 = vsel %vm2955, %v2908, %v2353
  %v2974 = vsel %vm2955, %v2909, %v2355
  %v2975 = vsel %vm2955, %v2910, %v2357
  %v2976 = vsel %vm2955, %v2911, %v2359
  %v2977 = vsel %vm2955, %v2912, %v2361
  %v2978 = vsel %vm2955, %v2913, %v2363
  %v2979 = vsel %vm2955, %v2914, %v2365
  %v2980 = vsel %vm2955, %v2915, %v2367
  %v2981 = vsel %vm2955, %v2916, %v2369
  %v2982 = vsel %vm2955, %v2917, %v2371
  %v2983 = vsel %vm2955, %v2918, %v2373
  %v2984 = vsel %vm2955, %v2919, %v2375
  %v2985 = vsel %vm2955, %v2920, %v2377
  %v2986 = vsel %vm2955, %v2921, %v2379
  %v2987 = vsel %vm2955, %v2922, %v2381
  %v2988 = vsel %vm2955, %v2923, %v2383
  %v2989 = vsel %vm2955, %v2924, %v2385
  %v2990 = vsel %vm2955, %v2925, %v2387
  %v2991 = vsel %vm2955, %v2926, %v2389
  %v2992 = vsel %vm2955, %v2927, %v2391
  %v2993 = vsel %vm2955, %v2928, %v2393
  %v2994 = vsel %vm2955, %v2929, %v2395
  %v2995 = vsel %vm2955, %v2930, %v2397
  %v2996 = vsel %vm2955, %v2931, %v2399
  %v2997 = vsel %vm2955, %v2932, %v2401
  %v2998 = vsel %vm2955, %v2933, %v2403
  %v2999 = vsel %vm2955, %v2934, %v2405
  %v3000 = vsel %vm2955, %v2935, %v2407
  %v3001 = vsel %vm2955, %v2936, %v2409
  %v3002 = vsel %vm2955, %v2937, %v2411
  %v3003 = vsel %vm2955, %v2938, %v2413
  %v3004 = vsel %vm2955, %v2939, %v2415
  %v3005 = vsel %vm2955, %v2940, %v2417
  %v3006 = vsel %vm2955, %v2941, %v2419
  %v3007 = vsel %vm2955, %v2942, %v2421
  %v3008 = vsel %vm2955, %v2943, %v2423
  %v3009 = vsel %vm2955, %v2944, %v2425
  %v3010 = vsel %vm2955, %v2945, %v2427
  %v3011 = vsel %vm2955, %v2946, %v2429
  %v3012 = vsel %vm2955, %v2947, %v2431
  %v3013 = vsel %vm2955, %v2948, %v2433
  %v3014 = vsel %vm2955, %v2949, %v2435
  %v3015 = vsel %vm2955, %v2950, %v2437
  %v3016 = vsel %vm2955, %v2951, %v2439
  %v3017 = vsel %vm2955, %v2952, %v2441
  %v3018 = vsel %vm2955, %v2953, %v2379
  %v3019 = vsel %vm2955, %v2954, %v2381
  %v3020 = vpack.c.bf16 %v2957, %v2956
  %v3021 = vpack.c.bf16 %v2959, %v2958
  %v3022 = vpack.c.bf16 %v2961, %v2960
  %v3023 = vpack.c.bf16 %v2963, %v2962
  %v3024 = vpack.c.bf16 %v2965, %v2964
  %v3025 = vpack.c.bf16 %v2967, %v2966
  %v3026 = vpack.c.bf16 %v2969, %v2968
  %v3027 = vpack.c.bf16 %v2971, %v2970
  %v3028 = vpack.c.bf16 %v2973, %v2972
  %v3029 = vpack.c.bf16 %v2975, %v2974
  %v3030 = vpack.c.bf16 %v2977, %v2976
  %v3031 = vpack.c.bf16 %v2979, %v2978
  %v3032 = vpack.c.bf16 %v2981, %v2980
  %v3033 = vpack.c.bf16 %v2983, %v2982
  %v3034 = vpack.c.bf16 %v2985, %v2984
  %v3035 = vpack.c.bf16 %v2987, %v2986
  %v3036 = vpack.c.bf16 %v2989, %v2988
  %v3037 = vpack.c.bf16 %v2991, %v2990
  %v3038 = vpack.c.bf16 %v2993, %v2992
  %v3039 = vpack.c.bf16 %v2995, %v2994
  %v3040 = vpack.c.bf16 %v2997, %v2996
  %v3041 = vpack.c.bf16 %v2999, %v2998
  %v3042 = vpack.c.bf16 %v3001, %v3000
  %v3043 = vpack.c.bf16 %v3003, %v3002
  %v3044 = vpack.c.bf16 %v3005, %v3004
  %v3045 = vpack.c.bf16 %v3007, %v3006
  %v3046 = vpack.c.bf16 %v3009, %v3008
  %v3047 = vpack.c.bf16 %v3011, %v3010
  %v3048 = vpack.c.bf16 %v3013, %v3012
  %v3049 = vpack.c.bf16 %v3015, %v3014
  %v3050 = vpack.c.bf16 %v3017, %v3016
  %v3051 = vpack.c.bf16 %v3019, %v3018
  %v3052 = vld [vmem:[%s2] sm:$0xf]
  %v3053 = vld [vmem:[%s2 + $0x4] sm:$0xf]
  %v3054 = vld [vmem:[%s2 + $0x8] sm:$0xf]
  %v3055 = vld [vmem:[%s2 + $0xc] sm:$0xf]
  %v3056 = vld [vmem:[%s2 + $0x10] sm:$0x3]
  %v3057 = vlaneseq
  %v3058 = vshrl.u32 %v3057, 7
  %v3059 = vsub.s32 2, %v3058
  %v3060 = vrot.slane %v17, %v3059
  %v3066 = vunpack.c.l.b16 %v3052
  %v3067 = vunpack.c.l.b16 %v3053
  %v3068 = vunpack.c.l.b16 %v3054
  %v3069 = vunpack.c.l.b16 %v3055
  %v3070 = vunpack.c.l.b16 %v3056
  %v3071 = vpack.c.b16 %v3067, %v3066
  %v3072 = vpack.c.b16 %v3069, %v3068
  %v3073 = vpack.c.b16 %v3070, %v3070
  %vm3076 = vcmask 293888
  %v3078 = vsel %vm3076, %v3020, 0
  %v3081 = vsel %vm3076, %v3021, 0
  %v3084 = vsel %vm3076, %v3022, 0
  %v3087 = vsel %vm3076, %v3023, 0
  %v3090 = vsel %vm3076, %v3024, 0
  %v3093 = vsel %vm3076, %v3025, 0
  %v3096 = vsel %vm3076, %v3026, 0
  %v3099 = vsel %vm3076, %v3027, 0
  %v3102 = vsel %vm3076, %v3028, 0
  %v3105 = vsel %vm3076, %v3029, 0
  %v3108 = vsel %vm3076, %v3030, 0
  %v3111 = vsel %vm3076, %v3031, 0
  %v3114 = vsel %vm3076, %v3032, 0
  %v3117 = vsel %vm3076, %v3033, 0
  %v3120 = vsel %vm3076, %v3034, 0
  %v3123 = vsel %vm3076, %v3035, 0
  %v3126 = vsel %vm3076, %v3036, 0
  %v3129 = vsel %vm3076, %v3037, 0
  %v3132 = vsel %vm3076, %v3038, 0
  %v3135 = vsel %vm3076, %v3039, 0
  %v3138 = vsel %vm3076, %v3040, 0
  %v3141 = vsel %vm3076, %v3041, 0
  %v3144 = vsel %vm3076, %v3042, 0
  %v3147 = vsel %vm3076, %v3043, 0
  %v3150 = vsel %vm3076, %v3044, 0
  %v3153 = vsel %vm3076, %v3045, 0
  %v3156 = vsel %vm3076, %v3046, 0
  %v3159 = vsel %vm3076, %v3047, 0
  %v3162 = vsel %vm3076, %v3048, 0
  %v3165 = vsel %vm3076, %v3049, 0
  %v3168 = vsel %vm3076, %v3050, 0
  %v3171 = vsel %vm3076, %v3051, 0
  %vm3173 = vcmask 1041408
  %v3175 = vsel %vm3173, %v3073, 0
  %3177 = vmatprep.subr.bf16.mxu0 0
  %3178 = vmatpush1.bf16.msra.mxu0 0
  %3179 = vmatprep.subr.bf16.mxu0 0
  %3180 = vmatpush1.bf16.msra.mxu0 0
  %3181 = vmatprep.subr.bf16.mxu0 0
  %3182 = vmatpush1.bf16.msra.mxu0 0
  %3183 = vmatprep.subr.bf16.mxu0 0
  %3184 = vmatpush1.bf16.msra.mxu0 0
  %3185 = vmatprep.subr.bf16.mxu0 0
  %3186 = vmatpush1.bf16.msra.mxu0 0
  %3187 = vmatprep.subr.bf16.mxu0 0
  %3188 = vmatpush1.bf16.msra.mxu0 %v3175
  %3189 = vmatprep.subr.bf16.mxu0 0
  %3190 = vmatpush1.bf16.msra.mxu0 %v3072
  %3191 = vmatprep.subr.bf16.mxu0 0
  %3192 = vmatpush1.bf16.msra.mxu0 %v3071
  %3193 = vmatprep.subr.bf16.mxu0 0
  %3194 = vmatpush2.bf16.msra.mxu0 0
  %3195 = vmatprep.subr.bf16.mxu0 0
  %3196 = vmatpush2.bf16.msra.mxu0 0
  %3197 = vmatprep.subr.bf16.mxu0 0
  %3198 = vmatpush2.bf16.msra.mxu0 0
  %3199 = vmatprep.subr.bf16.mxu0 0
  %3200 = vmatpush2.bf16.msra.mxu0 0
  %3201 = vmatprep.subr.bf16.mxu0 0
  %3202 = vmatpush2.bf16.msra.mxu0 0
  %3203 = vmatprep.subr.bf16.mxu0 0
  %3204 = vmatpush2.bf16.msra.mxu0 0
  %3205 = vmatprep.subr.bf16.mxu0 0
  %3206 = vmatpush2.bf16.msra.mxu0 0
  %3207 = vmatprep.subr.bf16.mxu0 0
  %3208 = vmatpush2.bf16.msra.mxu0 0
  %3209 = vmatprep.mubr.bf16.mxu0 0
  %3210 = vmatmul.mubr.bf16.gmra.mxu0 %v3078
  %v3211 = vpop.f32.mrf.mxu0
  %v3212 = vadd.f32 %v3060, %v3211
  %v3213 = vpop.f32.mrf.mxu0
  %v3214 = vpop.f32.mrf.mxu0
  %v3215 = vadd.f32 %v3060, %v3214
  %v3216 = vpop.f32.mrf.mxu0
  %3217 = vmatprep.mubr.bf16.mxu0 0
  %3218 = vmatmul.mubr.bf16.gmra.mxu0 %v3081
  %v3219 = vpop.f32.mrf.mxu0
  %v3220 = vadd.f32 %v3060, %v3219
  %v3221 = vpop.f32.mrf.mxu0
  %v3222 = vpop.f32.mrf.mxu0
  %v3223 = vadd.f32 %v3060, %v3222
  %v3224 = vpop.f32.mrf.mxu0
  %3225 = vmatprep.mubr.bf16.mxu0 0
  %3226 = vmatmul.mubr.bf16.gmra.mxu0 %v3084
  %v3227 = vpop.f32.mrf.mxu0
  %v3228 = vadd.f32 %v3060, %v3227
  %v3229 = vpop.f32.mrf.mxu0
  %v3230 = vpop.f32.mrf.mxu0
  %v3231 = vadd.f32 %v3060, %v3230
  %v3232 = vpop.f32.mrf.mxu0
  %3233 = vmatprep.mubr.bf16.mxu0 0
  %3234 = vmatmul.mubr.bf16.gmra.mxu0 %v3087
  %v3235 = vpop.f32.mrf.mxu0
  %v3236 = vadd.f32 %v3060, %v3235
  %v3237 = vpop.f32.mrf.mxu0
  %v3238 = vpop.f32.mrf.mxu0
  %v3239 = vadd.f32 %v3060, %v3238
  %v3240 = vpop.f32.mrf.mxu0
  %3241 = vmatprep.mubr.bf16.mxu0 0
  %3242 = vmatmul.mubr.bf16.gmra.mxu0 %v3090
  %v3243 = vpop.f32.mrf.mxu0
  %v3244 = vadd.f32 %v3060, %v3243
  %v3245 = vpop.f32.mrf.mxu0
  %v3246 = vpop.f32.mrf.mxu0
  %v3247 = vadd.f32 %v3060, %v3246
  %v3248 = vpop.f32.mrf.mxu0
  %3249 = vmatprep.mubr.bf16.mxu0 0
  %3250 = vmatmul.mubr.bf16.gmra.mxu0 %v3093
  %v3251 = vpop.f32.mrf.mxu0
  %v3252 = vadd.f32 %v3060, %v3251
  %v3253 = vpop.f32.mrf.mxu0
  %v3254 = vpop.f32.mrf.mxu0
  %v3255 = vadd.f32 %v3060, %v3254
  %v3256 = vpop.f32.mrf.mxu0
  %3257 = vmatprep.mubr.bf16.mxu0 0
  %3258 = vmatmul.mubr.bf16.gmra.mxu0 %v3096
  %v3259 = vpop.f32.mrf.mxu0
  %v3260 = vadd.f32 %v3060, %v3259
  %v3261 = vpop.f32.mrf.mxu0
  %v3262 = vpop.f32.mrf.mxu0
  %v3263 = vadd.f32 %v3060, %v3262
  %v3264 = vpop.f32.mrf.mxu0
  %3265 = vmatprep.mubr.bf16.mxu0 0
  %3266 = vmatmul.mubr.bf16.gmra.mxu0 %v3099
  %v3267 = vpop.f32.mrf.mxu0
  %v3268 = vadd.f32 %v3060, %v3267
  %v3269 = vpop.f32.mrf.mxu0
  %v3270 = vpop.f32.mrf.mxu0
  %v3271 = vadd.f32 %v3060, %v3270
  %v3272 = vpop.f32.mrf.mxu0
  %3273 = vmatprep.mubr.bf16.mxu0 0
  %3274 = vmatmul.mubr.bf16.gmra.mxu0 %v3102
  %v3275 = vpop.f32.mrf.mxu0
  %v3276 = vadd.f32 %v3060, %v3275
  %v3277 = vpop.f32.mrf.mxu0
  %v3278 = vpop.f32.mrf.mxu0
  %v3279 = vadd.f32 %v3060, %v3278
  %v3280 = vpop.f32.mrf.mxu0
  %3281 = vmatprep.mubr.bf16.mxu0 0
  %3282 = vmatmul.mubr.bf16.gmra.mxu0 %v3105
  %v3283 = vpop.f32.mrf.mxu0
  %v3284 = vadd.f32 %v3060, %v3283
  %v3285 = vpop.f32.mrf.mxu0
  %v3286 = vpop.f32.mrf.mxu0
  %v3287 = vadd.f32 %v3060, %v3286
  %v3288 = vpop.f32.mrf.mxu0
  %3289 = vmatprep.mubr.bf16.mxu0 0
  %3290 = vmatmul.mubr.bf16.gmra.mxu0 %v3108
  %v3291 = vpop.f32.mrf.mxu0
  %v3292 = vadd.f32 %v3060, %v3291
  %v3293 = vpop.f32.mrf.mxu0
  %v3294 = vpop.f32.mrf.mxu0
  %v3295 = vadd.f32 %v3060, %v3294
  %v3296 = vpop.f32.mrf.mxu0
  %3297 = vmatprep.mubr.bf16.mxu0 0
  %3298 = vmatmul.mubr.bf16.gmra.mxu0 %v3111
  %v3299 = vpop.f32.mrf.mxu0
  %v3300 = vadd.f32 %v3060, %v3299
  %v3301 = vpop.f32.mrf.mxu0
  %v3302 = vpop.f32.mrf.mxu0
  %v3303 = vadd.f32 %v3060, %v3302
  %v3304 = vpop.f32.mrf.mxu0
  %3305 = vmatprep.mubr.bf16.mxu0 0
  %3306 = vmatmul.mubr.bf16.gmra.mxu0 %v3114
  %v3307 = vpop.f32.mrf.mxu0
  %v3308 = vadd.f32 %v3060, %v3307
  %v3309 = vpop.f32.mrf.mxu0
  %v3310 = vpop.f32.mrf.mxu0
  %v3311 = vadd.f32 %v3060, %v3310
  %v3312 = vpop.f32.mrf.mxu0
  %3313 = vmatprep.mubr.bf16.mxu0 0
  %3314 = vmatmul.mubr.bf16.gmra.mxu0 %v3117
  %v3315 = vpop.f32.mrf.mxu0
  %v3316 = vadd.f32 %v3060, %v3315
  %v3317 = vpop.f32.mrf.mxu0
  %v3318 = vpop.f32.mrf.mxu0
  %v3319 = vadd.f32 %v3060, %v3318
  %v3320 = vpop.f32.mrf.mxu0
  %3321 = vmatprep.mubr.bf16.mxu0 0
  %3322 = vmatmul.mubr.bf16.gmra.mxu0 %v3120
  %v3323 = vpop.f32.mrf.mxu0
  %v3324 = vadd.f32 %v3060, %v3323
  %v3325 = vpop.f32.mrf.mxu0
  %v3326 = vpop.f32.mrf.mxu0
  %v3327 = vadd.f32 %v3060, %v3326
  %v3328 = vpop.f32.mrf.mxu0
  %3329 = vmatprep.mubr.bf16.mxu0 0
  %3330 = vmatmul.mubr.bf16.gmra.mxu0 %v3123
  %v3331 = vpop.f32.mrf.mxu0
  %v3332 = vadd.f32 %v3060, %v3331
  %v3333 = vpop.f32.mrf.mxu0
  %v3334 = vpop.f32.mrf.mxu0
  %v3335 = vadd.f32 %v3060, %v3334
  %v3336 = vpop.f32.mrf.mxu0
  %3337 = vmatprep.mubr.bf16.mxu0 0
  %3338 = vmatmul.mubr.bf16.gmra.mxu0 %v3126
  %v3339 = vpop.f32.mrf.mxu0
  %v3340 = vadd.f32 %v3060, %v3339
  %v3341 = vpop.f32.mrf.mxu0
  %v3342 = vpop.f32.mrf.mxu0
  %v3343 = vadd.f32 %v3060, %v3342
  %v3344 = vpop.f32.mrf.mxu0
  %3345 = vmatprep.mubr.bf16.mxu0 0
  %3346 = vmatmul.mubr.bf16.gmra.mxu0 %v3129
  %v3347 = vpop.f32.mrf.mxu0
  %v3348 = vadd.f32 %v3060, %v3347
  %v3349 = vpop.f32.mrf.mxu0
  %v3350 = vpop.f32.mrf.mxu0
  %v3351 = vadd.f32 %v3060, %v3350
  %v3352 = vpop.f32.mrf.mxu0
  %3353 = vmatprep.mubr.bf16.mxu0 0
  %3354 = vmatmul.mubr.bf16.gmra.mxu0 %v3132
  %v3355 = vpop.f32.mrf.mxu0
  %v3356 = vadd.f32 %v3060, %v3355
  %v3357 = vpop.f32.mrf.mxu0
  %v3358 = vpop.f32.mrf.mxu0
  %v3359 = vadd.f32 %v3060, %v3358
  %v3360 = vpop.f32.mrf.mxu0
  %3361 = vmatprep.mubr.bf16.mxu0 0
  %3362 = vmatmul.mubr.bf16.gmra.mxu0 %v3135
  %v3363 = vpop.f32.mrf.mxu0
  %v3364 = vadd.f32 %v3060, %v3363
  %v3365 = vpop.f32.mrf.mxu0
  %v3366 = vpop.f32.mrf.mxu0
  %v3367 = vadd.f32 %v3060, %v3366
  %v3368 = vpop.f32.mrf.mxu0
  %3369 = vmatprep.mubr.bf16.mxu0 0
  %3370 = vmatmul.mubr.bf16.gmra.mxu0 %v3138
  %v3371 = vpop.f32.mrf.mxu0
  %v3372 = vadd.f32 %v3060, %v3371
  %v3373 = vpop.f32.mrf.mxu0
  %v3374 = vpop.f32.mrf.mxu0
  %v3375 = vadd.f32 %v3060, %v3374
  %v3376 = vpop.f32.mrf.mxu0
  %3377 = vmatprep.mubr.bf16.mxu0 0
  %3378 = vmatmul.mubr.bf16.gmra.mxu0 %v3141
  %v3379 = vpop.f32.mrf.mxu0
  %v3380 = vadd.f32 %v3060, %v3379
  %v3381 = vpop.f32.mrf.mxu0
  %v3382 = vpop.f32.mrf.mxu0
  %v3383 = vadd.f32 %v3060, %v3382
  %v3384 = vpop.f32.mrf.mxu0
  %3385 = vmatprep.mubr.bf16.mxu0 0
  %3386 = vmatmul.mubr.bf16.gmra.mxu0 %v3144
  %v3387 = vpop.f32.mrf.mxu0
  %v3388 = vadd.f32 %v3060, %v3387
  %v3389 = vpop.f32.mrf.mxu0
  %v3390 = vpop.f32.mrf.mxu0
  %v3391 = vadd.f32 %v3060, %v3390
  %v3392 = vpop.f32.mrf.mxu0
  %3393 = vmatprep.mubr.bf16.mxu0 0
  %3394 = vmatmul.mubr.bf16.gmra.mxu0 %v3147
  %v3395 = vpop.f32.mrf.mxu0
  %v3396 = vadd.f32 %v3060, %v3395
  %v3397 = vpop.f32.mrf.mxu0
  %v3398 = vpop.f32.mrf.mxu0
  %v3399 = vadd.f32 %v3060, %v3398
  %v3400 = vpop.f32.mrf.mxu0
  %3401 = vmatprep.mubr.bf16.mxu0 0
  %3402 = vmatmul.mubr.bf16.gmra.mxu0 %v3150
  %v3403 = vpop.f32.mrf.mxu0
  %v3404 = vadd.f32 %v3060, %v3403
  %v3405 = vpop.f32.mrf.mxu0
  %v3406 = vpop.f32.mrf.mxu0
  %v3407 = vadd.f32 %v3060, %v3406
  %v3408 = vpop.f32.mrf.mxu0
  %3409 = vmatprep.mubr.bf16.mxu0 0
  %3410 = vmatmul.mubr.bf16.gmra.mxu0 %v3153
  %v3411 = vpop.f32.mrf.mxu0
  %v3412 = vadd.f32 %v3060, %v3411
  %v3413 = vpop.f32.mrf.mxu0
  %v3414 = vpop.f32.mrf.mxu0
  %v3415 = vadd.f32 %v3060, %v3414
  %v3416 = vpop.f32.mrf.mxu0
  %3417 = vmatprep.mubr.bf16.mxu0 0
  %3418 = vmatmul.mubr.bf16.gmra.mxu0 %v3156
  %v3419 = vpop.f32.mrf.mxu0
  %v3420 = vadd.f32 %v3060, %v3419
  %v3421 = vpop.f32.mrf.mxu0
  %v3422 = vpop.f32.mrf.mxu0
  %v3423 = vadd.f32 %v3060, %v3422
  %v3424 = vpop.f32.mrf.mxu0
  %3425 = vmatprep.mubr.bf16.mxu0 0
  %3426 = vmatmul.mubr.bf16.gmra.mxu0 %v3159
  %v3427 = vpop.f32.mrf.mxu0
  %v3428 = vadd.f32 %v3060, %v3427
  %v3429 = vpop.f32.mrf.mxu0
  %v3430 = vpop.f32.mrf.mxu0
  %v3431 = vadd.f32 %v3060, %v3430
  %v3432 = vpop.f32.mrf.mxu0
  %3433 = vmatprep.mubr.bf16.mxu0 0
  %3434 = vmatmul.mubr.bf16.gmra.mxu0 %v3162
  %v3435 = vpop.f32.mrf.mxu0
  %v3436 = vadd.f32 %v3060, %v3435
  %v3437 = vpop.f32.mrf.mxu0
  %v3438 = vpop.f32.mrf.mxu0
  %v3439 = vadd.f32 %v3060, %v3438
  %v3440 = vpop.f32.mrf.mxu0
  %3441 = vmatprep.mubr.bf16.mxu0 0
  %3442 = vmatmul.mubr.bf16.gmra.mxu0 %v3165
  %v3443 = vpop.f32.mrf.mxu0
  %v3444 = vadd.f32 %v3060, %v3443
  %v3445 = vpop.f32.mrf.mxu0
  %v3446 = vpop.f32.mrf.mxu0
  %v3447 = vadd.f32 %v3060, %v3446
  %v3448 = vpop.f32.mrf.mxu0
  %3449 = vmatprep.mubr.bf16.mxu0 0
  %3450 = vmatmul.mubr.bf16.gmra.mxu0 %v3168
  %v3451 = vpop.f32.mrf.mxu0
  %v3452 = vadd.f32 %v3060, %v3451
  %v3453 = vpop.f32.mrf.mxu0
  %v3454 = vpop.f32.mrf.mxu0
  %v3455 = vadd.f32 %v3060, %v3454
  %v3456 = vpop.f32.mrf.mxu0
  %3457 = vmatprep.mubr.bf16.mxu0 0
  %3458 = vmatmul.mubr.bf16.gmra.mxu0 %v3171
  %v3459 = vpop.f32.mrf.mxu0
  %v3460 = vadd.f32 %v3060, %v3459
  %v3461 = vpop.f32.mrf.mxu0
  %v3462 = vpop.f32.mrf.mxu0
  %v3463 = vadd.f32 %v3060, %v3462
  %v3464 = vpop.f32.mrf.mxu0
  %3465 = vdwg.mxu0
  %v3466 = vsel %vm2504, %v3212, 0.0
  %v3467 = vsel %vm2504, %v3215, 0.0
  %v3468 = vadd.f32 %v3466, %v3467
  %v3469 = vsel %vm2504, %v3220, 0.0
  %v3470 = vadd.f32 %v3468, %v3469
  %v3471 = vsel %vm2504, %v3223, 0.0
  %v3472 = vadd.f32 %v3470, %v3471
  %v3473 = vsel %vm2504, %v3228, 0.0
  %v3474 = vadd.f32 %v3472, %v3473
  %v3475 = vsel %vm2504, %v3231, 0.0
  %v3476 = vadd.f32 %v3474, %v3475
  %v3477 = vsel %vm2504, %v3236, 0.0
  %v3478 = vadd.f32 %v3476, %v3477
  %v3479 = vsel %vm2504, %v3239, 0.0
  %v3480 = vadd.f32 %v3478, %v3479
  %v3481 = vsel %vm2504, %v3244, 0.0
  %v3482 = vadd.f32 %v3480, %v3481
  %v3483 = vsel %vm2504, %v3247, 0.0
  %v3484 = vadd.f32 %v3482, %v3483
  %v3485 = vsel %vm2504, %v3252, 0.0
  %v3486 = vadd.f32 %v3484, %v3485
  %v3487 = vsel %vm2504, %v3255, 0.0
  %v3488 = vadd.f32 %v3486, %v3487
  %v3489 = vsel %vm2504, %v3260, 0.0
  %v3490 = vadd.f32 %v3488, %v3489
  %v3491 = vsel %vm2504, %v3263, 0.0
  %v3492 = vadd.f32 %v3490, %v3491
  %v3493 = vsel %vm2504, %v3268, 0.0
  %v3494 = vadd.f32 %v3492, %v3493
  %v3495 = vsel %vm2504, %v3271, 0.0
  %v3496 = vadd.f32 %v3494, %v3495
  %v3497 = vsel %vm2504, %v3276, 0.0
  %v3498 = vadd.f32 %v3496, %v3497
  %v3499 = vsel %vm2504, %v3279, 0.0
  %v3500 = vadd.f32 %v3498, %v3499
  %v3501 = vsel %vm2504, %v3284, 0.0
  %v3502 = vadd.f32 %v3500, %v3501
  %v3503 = vsel %vm2504, %v3287, 0.0
  %v3504 = vadd.f32 %v3502, %v3503
  %v3505 = vsel %vm2504, %v3292, 0.0
  %v3506 = vadd.f32 %v3504, %v3505
  %v3507 = vsel %vm2504, %v3295, 0.0
  %v3508 = vadd.f32 %v3506, %v3507
  %v3509 = vsel %vm2504, %v3300, 0.0
  %v3510 = vadd.f32 %v3508, %v3509
  %v3511 = vsel %vm2504, %v3303, 0.0
  %v3512 = vadd.f32 %v3510, %v3511
  %v3513 = vsel %vm2504, %v3308, 0.0
  %v3514 = vadd.f32 %v3512, %v3513
  %v3515 = vsel %vm2504, %v3311, 0.0
  %v3516 = vadd.f32 %v3514, %v3515
  %v3517 = vsel %vm2504, %v3316, 0.0
  %v3518 = vadd.f32 %v3516, %v3517
  %v3519 = vsel %vm2504, %v3319, 0.0
  %v3520 = vadd.f32 %v3518, %v3519
  %v3521 = vsel %vm2504, %v3324, 0.0
  %v3522 = vadd.f32 %v3520, %v3521
  %v3523 = vsel %vm2504, %v3327, 0.0
  %v3524 = vadd.f32 %v3522, %v3523
  %v3525 = vsel %vm2504, %v3332, 0.0
  %v3526 = vadd.f32 %v3524, %v3525
  %v3527 = vsel %vm2504, %v3335, 0.0
  %v3528 = vadd.f32 %v3526, %v3527
  %v3529 = vsel %vm2504, %v3340, 0.0
  %v3530 = vadd.f32 %v3528, %v3529
  %v3531 = vsel %vm2504, %v3343, 0.0
  %v3532 = vadd.f32 %v3530, %v3531
  %v3533 = vsel %vm2504, %v3348, 0.0
  %v3534 = vadd.f32 %v3532, %v3533
  %v3535 = vsel %vm2504, %v3351, 0.0
  %v3536 = vadd.f32 %v3534, %v3535
  %v3537 = vsel %vm2504, %v3356, 0.0
  %v3538 = vadd.f32 %v3536, %v3537
  %v3539 = vsel %vm2504, %v3359, 0.0
  %v3540 = vadd.f32 %v3538, %v3539
  %v3541 = vsel %vm2504, %v3364, 0.0
  %v3542 = vadd.f32 %v3540, %v3541
  %v3543 = vsel %vm2504, %v3367, 0.0
  %v3544 = vadd.f32 %v3542, %v3543
  %v3545 = vsel %vm2504, %v3372, 0.0
  %v3546 = vadd.f32 %v3544, %v3545
  %v3547 = vsel %vm2504, %v3375, 0.0
  %v3548 = vadd.f32 %v3546, %v3547
  %v3549 = vsel %vm2504, %v3380, 0.0
  %v3550 = vadd.f32 %v3548, %v3549
  %v3551 = vsel %vm2504, %v3383, 0.0
  %v3552 = vadd.f32 %v3550, %v3551
  %v3553 = vsel %vm2504, %v3388, 0.0
  %v3554 = vadd.f32 %v3552, %v3553
  %v3555 = vsel %vm2504, %v3391, 0.0
  %v3556 = vadd.f32 %v3554, %v3555
  %v3557 = vsel %vm2504, %v3396, 0.0
  %v3558 = vadd.f32 %v3556, %v3557
  %v3559 = vsel %vm2504, %v3399, 0.0
  %v3560 = vadd.f32 %v3558, %v3559
  %v3561 = vsel %vm2504, %v3404, 0.0
  %v3562 = vadd.f32 %v3560, %v3561
  %v3563 = vsel %vm2504, %v3407, 0.0
  %v3564 = vadd.f32 %v3562, %v3563
  %v3565 = vsel %vm2504, %v3412, 0.0
  %v3566 = vadd.f32 %v3564, %v3565
  %v3567 = vsel %vm2504, %v3415, 0.0
  %v3568 = vadd.f32 %v3566, %v3567
  %v3569 = vsel %vm2504, %v3420, 0.0
  %v3570 = vadd.f32 %v3568, %v3569
  %v3571 = vsel %vm2504, %v3423, 0.0
  %v3572 = vadd.f32 %v3570, %v3571
  %v3573 = vsel %vm2504, %v3428, 0.0
  %v3574 = vadd.f32 %v3572, %v3573
  %v3575 = vsel %vm2504, %v3431, 0.0
  %v3576 = vadd.f32 %v3574, %v3575
  %v3577 = vsel %vm2504, %v3436, 0.0
  %v3578 = vadd.f32 %v3576, %v3577
  %v3579 = vsel %vm2504, %v3439, 0.0
  %v3580 = vadd.f32 %v3578, %v3579
  %v3581 = vsel %vm2504, %v3444, 0.0
  %v3582 = vadd.f32 %v3580, %v3581
  %v3583 = vsel %vm2504, %v3447, 0.0
  %v3584 = vadd.f32 %v3582, %v3583
  %v3585 = vsel %vm2504, %v3452, 0.0
  %v3586 = vadd.f32 %v3584, %v3585
  %v3587 = vsel %vm2504, %v3455, 0.0
  %v3588 = vadd.f32 %v3586, %v3587
  %v3589 = vsel %vm2504, %v3460, 0.0
  %v3590 = vadd.f32 %v3588, %v3589
  %v3591 = vsel %vm2504, %v3463, 0.0
  %v3592 = vadd.f32 %v3590, %v3591
  %v3593 = vrot.slane %v3592, 4
  %v3594 = vadd.f32 %v3592, %v3593
  %v3595 = vrot.slane %v3594, 2
  %v3596 = vadd.f32 %v3594, %v3595
  %v3597 = vrot.slane %v3596, 1
  %v3598 = vadd.f32 %v3596, %v3597
  %v3599 = vmul.f32 %v3212, %v3212
  %v3600 = vmul.f32 %v3215, %v3215
  %v3601 = vmul.f32 %v3220, %v3220
  %v3602 = vmul.f32 %v3223, %v3223
  %v3603 = vmul.f32 %v3228, %v3228
  %v3604 = vmul.f32 %v3231, %v3231
  %v3605 = vmul.f32 %v3236, %v3236
  %v3606 = vmul.f32 %v3239, %v3239
  %v3607 = vmul.f32 %v3244, %v3244
  %v3608 = vmul.f32 %v3247, %v3247
  %v3609 = vmul.f32 %v3252, %v3252
  %v3610 = vmul.f32 %v3255, %v3255
  %v3611 = vmul.f32 %v3260, %v3260
  %v3612 = vmul.f32 %v3263, %v3263
  %v3613 = vmul.f32 %v3268, %v3268
  %v3614 = vmul.f32 %v3271, %v3271
  %v3615 = vmul.f32 %v3276, %v3276
  %v3616 = vmul.f32 %v3279, %v3279
  %v3617 = vmul.f32 %v3284, %v3284
  %v3618 = vmul.f32 %v3287, %v3287
  %v3619 = vmul.f32 %v3292, %v3292
  %v3620 = vmul.f32 %v3295, %v3295
  %v3621 = vmul.f32 %v3300, %v3300
  %v3622 = vmul.f32 %v3303, %v3303
  %v3623 = vmul.f32 %v3308, %v3308
  %v3624 = vmul.f32 %v3311, %v3311
  %v3625 = vmul.f32 %v3316, %v3316
  %v3626 = vmul.f32 %v3319, %v3319
  %v3627 = vmul.f32 %v3324, %v3324
  %v3628 = vmul.f32 %v3327, %v3327
  %v3629 = vmul.f32 %v3332, %v3332
  %v3630 = vmul.f32 %v3335, %v3335
  %v3631 = vmul.f32 %v3340, %v3340
  %v3632 = vmul.f32 %v3343, %v3343
  %v3633 = vmul.f32 %v3348, %v3348
  %v3634 = vmul.f32 %v3351, %v3351
  %v3635 = vmul.f32 %v3356, %v3356
  %v3636 = vmul.f32 %v3359, %v3359
  %v3637 = vmul.f32 %v3364, %v3364
  %v3638 = vmul.f32 %v3367, %v3367
  %v3639 = vmul.f32 %v3372, %v3372
  %v3640 = vmul.f32 %v3375, %v3375
  %v3641 = vmul.f32 %v3380, %v3380
  %v3642 = vmul.f32 %v3383, %v3383
  %v3643 = vmul.f32 %v3388, %v3388
  %v3644 = vmul.f32 %v3391, %v3391
  %v3645 = vmul.f32 %v3396, %v3396
  %v3646 = vmul.f32 %v3399, %v3399
  %v3647 = vmul.f32 %v3404, %v3404
  %v3648 = vmul.f32 %v3407, %v3407
  %v3649 = vmul.f32 %v3412, %v3412
  %v3650 = vmul.f32 %v3415, %v3415
  %v3651 = vmul.f32 %v3420, %v3420
  %v3652 = vmul.f32 %v3423, %v3423
  %v3653 = vmul.f32 %v3428, %v3428
  %v3654 = vmul.f32 %v3431, %v3431
  %v3655 = vmul.f32 %v3436, %v3436
  %v3656 = vmul.f32 %v3439, %v3439
  %v3657 = vmul.f32 %v3444, %v3444
  %v3658 = vmul.f32 %v3447, %v3447
  %v3659 = vmul.f32 %v3452, %v3452
  %v3660 = vmul.f32 %v3455, %v3455
  %v3661 = vmul.f32 %v3460, %v3460
  %v3662 = vmul.f32 %v3463, %v3463
  %v3663 = vsel %vm2504, %v3599, 0.0
  %v3664 = vsel %vm2504, %v3600, 0.0
  %v3665 = vadd.f32 %v3663, %v3664
  %v3666 = vsel %vm2504, %v3601, 0.0
  %v3667 = vadd.f32 %v3665, %v3666
  %v3668 = vsel %vm2504, %v3602, 0.0
  %v3669 = vadd.f32 %v3667, %v3668
  %v3670 = vsel %vm2504, %v3603, 0.0
  %v3671 = vadd.f32 %v3669, %v3670
  %v3672 = vsel %vm2504, %v3604, 0.0
  %v3673 = vadd.f32 %v3671, %v3672
  %v3674 = vsel %vm2504, %v3605, 0.0
  %v3675 = vadd.f32 %v3673, %v3674
  %v3676 = vsel %vm2504, %v3606, 0.0
  %v3677 = vadd.f32 %v3675, %v3676
  %v3678 = vsel %vm2504, %v3607, 0.0
  %v3679 = vadd.f32 %v3677, %v3678
  %v3680 = vsel %vm2504, %v3608, 0.0
  %v3681 = vadd.f32 %v3679, %v3680
  %v3682 = vsel %vm2504, %v3609, 0.0
  %v3683 = vadd.f32 %v3681, %v3682
  %v3684 = vsel %vm2504, %v3610, 0.0
  %v3685 = vadd.f32 %v3683, %v3684
  %v3686 = vsel %vm2504, %v3611, 0.0
  %v3687 = vadd.f32 %v3685, %v3686
  %v3688 = vsel %vm2504, %v3612, 0.0
  %v3689 = vadd.f32 %v3687, %v3688
  %v3690 = vsel %vm2504, %v3613, 0.0
  %v3691 = vadd.f32 %v3689, %v3690
  %v3692 = vsel %vm2504, %v3614, 0.0
  %v3693 = vadd.f32 %v3691, %v3692
  %v3694 = vsel %vm2504, %v3615, 0.0
  %v3695 = vadd.f32 %v3693, %v3694
  %v3696 = vsel %vm2504, %v3616, 0.0
  %v3697 = vadd.f32 %v3695, %v3696
  %v3698 = vsel %vm2504, %v3617, 0.0
  %v3699 = vadd.f32 %v3697, %v3698
  %v3700 = vsel %vm2504, %v3618, 0.0
  %v3701 = vadd.f32 %v3699, %v3700
  %v3702 = vsel %vm2504, %v3619, 0.0
  %v3703 = vadd.f32 %v3701, %v3702
  %v3704 = vsel %vm2504, %v3620, 0.0
  %v3705 = vadd.f32 %v3703, %v3704
  %v3706 = vsel %vm2504, %v3621, 0.0
  %v3707 = vadd.f32 %v3705, %v3706
  %v3708 = vsel %vm2504, %v3622, 0.0
  %v3709 = vadd.f32 %v3707, %v3708
  %v3710 = vsel %vm2504, %v3623, 0.0
  %v3711 = vadd.f32 %v3709, %v3710
  %v3712 = vsel %vm2504, %v3624, 0.0
  %v3713 = vadd.f32 %v3711, %v3712
  %v3714 = vsel %vm2504, %v3625, 0.0
  %v3715 = vadd.f32 %v3713, %v3714
  %v3716 = vsel %vm2504, %v3626, 0.0
  %v3717 = vadd.f32 %v3715, %v3716
  %v3718 = vsel %vm2504, %v3627, 0.0
  %v3719 = vadd.f32 %v3717, %v3718
  %v3720 = vsel %vm2504, %v3628, 0.0
  %v3721 = vadd.f32 %v3719, %v3720
  %v3722 = vsel %vm2504, %v3629, 0.0
  %v3723 = vadd.f32 %v3721, %v3722
  %v3724 = vsel %vm2504, %v3630, 0.0
  %v3725 = vadd.f32 %v3723, %v3724
  %v3726 = vsel %vm2504, %v3631, 0.0
  %v3727 = vadd.f32 %v3725, %v3726
  %v3728 = vsel %vm2504, %v3632, 0.0
  %v3729 = vadd.f32 %v3727, %v3728
  %v3730 = vsel %vm2504, %v3633, 0.0
  %v3731 = vadd.f32 %v3729, %v3730
  %v3732 = vsel %vm2504, %v3634, 0.0
  %v3733 = vadd.f32 %v3731, %v3732
  %v3734 = vsel %vm2504, %v3635, 0.0
  %v3735 = vadd.f32 %v3733, %v3734
  %v3736 = vsel %vm2504, %v3636, 0.0
  %v3737 = vadd.f32 %v3735, %v3736
  %v3738 = vsel %vm2504, %v3637, 0.0
  %v3739 = vadd.f32 %v3737, %v3738
  %v3740 = vsel %vm2504, %v3638, 0.0
  %v3741 = vadd.f32 %v3739, %v3740
  %v3742 = vsel %vm2504, %v3639, 0.0
  %v3743 = vadd.f32 %v3741, %v3742
  %v3744 = vsel %vm2504, %v3640, 0.0
  %v3745 = vadd.f32 %v3743, %v3744
  %v3746 = vsel %vm2504, %v3641, 0.0
  %v3747 = vadd.f32 %v3745, %v3746
  %v3748 = vsel %vm2504, %v3642, 0.0
  %v3749 = vadd.f32 %v3747, %v3748
  %v3750 = vsel %vm2504, %v3643, 0.0
  %v3751 = vadd.f32 %v3749, %v3750
  %v3752 = vsel %vm2504, %v3644, 0.0
  %v3753 = vadd.f32 %v3751, %v3752
  %v3754 = vsel %vm2504, %v3645, 0.0
  %v3755 = vadd.f32 %v3753, %v3754
  %v3756 = vsel %vm2504, %v3646, 0.0
  %v3757 = vadd.f32 %v3755, %v3756
  %v3758 = vsel %vm2504, %v3647, 0.0
  %v3759 = vadd.f32 %v3757, %v3758
  %v3760 = vsel %vm2504, %v3648, 0.0
  %v3761 = vadd.f32 %v3759, %v3760
  %v3762 = vsel %vm2504, %v3649, 0.0
  %v3763 = vadd.f32 %v3761, %v3762
  %v3764 = vsel %vm2504, %v3650, 0.0
  %v3765 = vadd.f32 %v3763, %v3764
  %v3766 = vsel %vm2504, %v3651, 0.0
  %v3767 = vadd.f32 %v3765, %v3766
  %v3768 = vsel %vm2504, %v3652, 0.0
  %v3769 = vadd.f32 %v3767, %v3768
  %v3770 = vsel %vm2504, %v3653, 0.0
  %v3771 = vadd.f32 %v3769, %v3770
  %v3772 = vsel %vm2504, %v3654, 0.0
  %v3773 = vadd.f32 %v3771, %v3772
  %v3774 = vsel %vm2504, %v3655, 0.0
  %v3775 = vadd.f32 %v3773, %v3774
  %v3776 = vsel %vm2504, %v3656, 0.0
  %v3777 = vadd.f32 %v3775, %v3776
  %v3778 = vsel %vm2504, %v3657, 0.0
  %v3779 = vadd.f32 %v3777, %v3778
  %v3780 = vsel %vm2504, %v3658, 0.0
  %v3781 = vadd.f32 %v3779, %v3780
  %v3782 = vsel %vm2504, %v3659, 0.0
  %v3783 = vadd.f32 %v3781, %v3782
  %v3784 = vsel %vm2504, %v3660, 0.0
  %v3785 = vadd.f32 %v3783, %v3784
  %v3786 = vsel %vm2504, %v3661, 0.0
  %v3787 = vadd.f32 %v3785, %v3786
  %v3788 = vsel %vm2504, %v3662, 0.0
  %v3789 = vadd.f32 %v3787, %v3788
  %v3790 = vrot.slane %v3789, 4
  %v3791 = vadd.f32 %v3789, %v3790
  %v3792 = vrot.slane %v3791, 2
  %v3793 = vadd.f32 %v3791, %v3792
  %v3794 = vrot.slane %v3793, 1
  %v3795 = vadd.f32 %v3793, %v3794
  %vm3796 = vcmask 1040384
  %v3797 = vsel %vm3796, %v3598, %v3795
  %vm3798 = vcmask 25600
  %3799 = vst.msk [vmem:[%s4] sm:$0x3] %vm3798, %v3797
  %v3800 = vpack.c.bf16 %v3215, %v3212
  %v3801 = vpack.c.bf16 %v3223, %v3220
  %v3802 = vpack.c.bf16 %v3231, %v3228
  %v3803 = vpack.c.bf16 %v3239, %v3236
  %v3804 = vpack.c.bf16 %v3247, %v3244
  %v3805 = vpack.c.bf16 %v3255, %v3252
  %v3806 = vpack.c.bf16 %v3263, %v3260
  %v3807 = vpack.c.bf16 %v3271, %v3268
  %v3808 = vpack.c.bf16 %v3279, %v3276
  %v3809 = vpack.c.bf16 %v3287, %v3284
  %v3810 = vpack.c.bf16 %v3295, %v3292
  %v3811 = vpack.c.bf16 %v3303, %v3300
  %v3812 = vpack.c.bf16 %v3311, %v3308
  %v3813 = vpack.c.bf16 %v3319, %v3316
  %v3814 = vpack.c.bf16 %v3327, %v3324
  %v3815 = vpack.c.bf16 %v3335, %v3332
  %v3816 = vpack.c.bf16 %v3343, %v3340
  %v3817 = vpack.c.bf16 %v3351, %v3348
  %v3818 = vpack.c.bf16 %v3359, %v3356
  %v3819 = vpack.c.bf16 %v3367, %v3364
  %v3820 = vpack.c.bf16 %v3375, %v3372
  %v3821 = vpack.c.bf16 %v3383, %v3380
  %v3822 = vpack.c.bf16 %v3391, %v3388
  %v3823 = vpack.c.bf16 %v3399, %v3396
  %v3824 = vpack.c.bf16 %v3407, %v3404
  %v3825 = vpack.c.bf16 %v3415, %v3412
  %v3826 = vpack.c.bf16 %v3423, %v3420
  %v3827 = vpack.c.bf16 %v3431, %v3428
  %v3828 = vpack.c.bf16 %v3439, %v3436
  %v3829 = vpack.c.bf16 %v3447, %v3444
  %v3830 = vpack.c.bf16 %v3455, %v3452
  %v3831 = vpack.c.bf16 %v3463, %v3460
  %v3864 = vunpack.c.l.b16 %v3800
  %v3865 = vunpack.c.h.b16 %v3800
  %v3866 = vunpack.c.l.b16 %v3801
  %v3867 = vunpack.c.h.b16 %v3801
  %v3868 = vunpack.c.l.b16 %v3802
  %v3869 = vunpack.c.h.b16 %v3802
  %v3870 = vunpack.c.l.b16 %v3803
  %v3871 = vunpack.c.h.b16 %v3803
  %v3872 = vunpack.c.l.b16 %v3804
  %v3873 = vunpack.c.h.b16 %v3804
  %v3874 = vunpack.c.l.b16 %v3805
  %v3875 = vunpack.c.h.b16 %v3805
  %v3876 = vunpack.c.l.b16 %v3806
  %v3877 = vunpack.c.h.b16 %v3806
  %v3878 = vunpack.c.l.b16 %v3807
  %v3879 = vunpack.c.h.b16 %v3807
  %v3880 = vunpack.c.l.b16 %v3808
  %v3881 = vunpack.c.h.b16 %v3808
  %v3882 = vunpack.c.l.b16 %v3809
  %v3883 = vunpack.c.h.b16 %v3809
  %v3884 = vunpack.c.l.b16 %v3810
  %v3885 = vunpack.c.h.b16 %v3810
  %v3886 = vunpack.c.l.b16 %v3811
  %v3887 = vunpack.c.h.b16 %v3811
  %v3888 = vunpack.c.l.b16 %v3812
  %v3889 = vunpack.c.h.b16 %v3812
  %v3890 = vunpack.c.l.b16 %v3813
  %v3891 = vunpack.c.h.b16 %v3813
  %v3892 = vunpack.c.l.b16 %v3814
  %v3893 = vunpack.c.h.b16 %v3814
  %v3894 = vunpack.c.l.b16 %v3815
  %v3895 = vunpack.c.h.b16 %v3815
  %v3896 = vunpack.c.l.b16 %v3816
  %v3897 = vunpack.c.h.b16 %v3816
  %v3898 = vunpack.c.l.b16 %v3817
  %v3899 = vunpack.c.h.b16 %v3817
  %v3900 = vunpack.c.l.b16 %v3818
  %v3901 = vunpack.c.h.b16 %v3818
  %v3902 = vunpack.c.l.b16 %v3819
  %v3903 = vunpack.c.h.b16 %v3819
  %v3904 = vunpack.c.l.b16 %v3820
  %v3905 = vunpack.c.h.b16 %v3820
  %v3906 = vunpack.c.l.b16 %v3821
  %v3907 = vunpack.c.h.b16 %v3821
  %v3908 = vunpack.c.l.b16 %v3822
  %v3909 = vunpack.c.h.b16 %v3822
  %v3910 = vunpack.c.l.b16 %v3823
  %v3911 = vunpack.c.h.b16 %v3823
  %v3912 = vunpack.c.l.b16 %v3824
  %v3913 = vunpack.c.h.b16 %v3824
  %v3914 = vunpack.c.l.b16 %v3825
  %v3915 = vunpack.c.h.b16 %v3825
  %v3916 = vunpack.c.l.b16 %v3826
  %v3917 = vunpack.c.h.b16 %v3826
  %v3918 = vunpack.c.l.b16 %v3827
  %v3919 = vunpack.c.h.b16 %v3827
  %v3920 = vunpack.c.l.b16 %v3828
  %v3921 = vunpack.c.h.b16 %v3828
  %v3922 = vunpack.c.l.b16 %v3829
  %v3923 = vunpack.c.h.b16 %v3829
  %v3924 = vunpack.c.l.b16 %v3830
  %v3925 = vunpack.c.h.b16 %v3830
  %v3926 = vunpack.c.l.b16 %v3831
  %v3927 = vunpack.c.h.b16 %v3831
  %v3928 = vpack.c.b16 %v3864, %v3864
  %v3929 = vpack.c.b16 %v3865, %v3865
  %v3930 = vpack.c.b16 %v3866, %v3866
  %v3931 = vpack.c.b16 %v3867, %v3867
  %v3932 = vpack.c.b16 %v3868, %v3868
  %v3933 = vpack.c.b16 %v3869, %v3869
  %v3934 = vpack.c.b16 %v3870, %v3870
  %v3935 = vpack.c.b16 %v3871, %v3871
  %v3936 = vpack.c.b16 %v3872, %v3872
  %v3937 = vpack.c.b16 %v3873, %v3873
  %v3938 = vpack.c.b16 %v3874, %v3874
  %v3939 = vpack.c.b16 %v3875, %v3875
  %v3940 = vpack.c.b16 %v3876, %v3876
  %v3941 = vpack.c.b16 %v3877, %v3877
  %v3942 = vpack.c.b16 %v3878, %v3878
  %v3943 = vpack.c.b16 %v3879, %v3879
  %v3944 = vpack.c.b16 %v3880, %v3880
  %v3945 = vpack.c.b16 %v3881, %v3881
  %v3946 = vpack.c.b16 %v3882, %v3882
  %v3947 = vpack.c.b16 %v3883, %v3883
  %v3948 = vpack.c.b16 %v3884, %v3884
  %v3949 = vpack.c.b16 %v3885, %v3885
  %v3950 = vpack.c.b16 %v3886, %v3886
  %v3951 = vpack.c.b16 %v3887, %v3887
  %v3952 = vpack.c.b16 %v3888, %v3888
  %v3953 = vpack.c.b16 %v3889, %v3889
  %v3954 = vpack.c.b16 %v3890, %v3890
  %v3955 = vpack.c.b16 %v3891, %v3891
  %v3956 = vpack.c.b16 %v3892, %v3892
  %v3957 = vpack.c.b16 %v3893, %v3893
  %v3958 = vpack.c.b16 %v3894, %v3894
  %v3959 = vpack.c.b16 %v3895, %v3895
  %v3960 = vpack.c.b16 %v3896, %v3896
  %v3961 = vpack.c.b16 %v3897, %v3897
  %v3962 = vpack.c.b16 %v3898, %v3898
  %v3963 = vpack.c.b16 %v3899, %v3899
  %v3964 = vpack.c.b16 %v3900, %v3900
  %v3965 = vpack.c.b16 %v3901, %v3901
  %v3966 = vpack.c.b16 %v3902, %v3902
  %v3967 = vpack.c.b16 %v3903, %v3903
  %v3968 = vpack.c.b16 %v3904, %v3904
  %v3969 = vpack.c.b16 %v3905, %v3905
  %v3970 = vpack.c.b16 %v3906, %v3906
  %v3971 = vpack.c.b16 %v3907, %v3907
  %v3972 = vpack.c.b16 %v3908, %v3908
  %v3973 = vpack.c.b16 %v3909, %v3909
  %v3974 = vpack.c.b16 %v3910, %v3910
  %v3975 = vpack.c.b16 %v3911, %v3911
  %v3976 = vpack.c.b16 %v3912, %v3912
  %v3977 = vpack.c.b16 %v3913, %v3913
  %v3978 = vpack.c.b16 %v3914, %v3914
  %v3979 = vpack.c.b16 %v3915, %v3915
  %v3980 = vpack.c.b16 %v3916, %v3916
  %v3981 = vpack.c.b16 %v3917, %v3917
  %v3982 = vpack.c.b16 %v3918, %v3918
  %v3983 = vpack.c.b16 %v3919, %v3919
  %v3984 = vpack.c.b16 %v3920, %v3920
  %v3985 = vpack.c.b16 %v3921, %v3921
  %v3986 = vpack.c.b16 %v3922, %v3922
  %v3987 = vpack.c.b16 %v3923, %v3923
  %v3988 = vpack.c.b16 %v3924, %v3924
  %v3989 = vpack.c.b16 %v3925, %v3925
  %v3990 = vpack.c.b16 %v3926, %v3926
  %v3991 = vpack.c.b16 %v3927, %v3927
  %vm4056 = vcmask 27648
  %4057 = vst.msk [vmem:[%s3] sm:$0xf] %vm4056, %v3928
  %4058 = vst.msk [vmem:[%s3 + $0x4] sm:$0xf] %vm4056, %v3929
  %4059 = vst.msk [vmem:[%s3 + $0x8] sm:$0xf] %vm4056, %v3930
  %4060 = vst.msk [vmem:[%s3 + $0xc] sm:$0xf] %vm4056, %v3931
  %4061 = vst.msk [vmem:[%s3 + $0x10] sm:$0xf] %vm4056, %v3932
  %4062 = vst.msk [vmem:[%s3 + $0x14] sm:$0xf] %vm4056, %v3933
  %4063 = vst.msk [vmem:[%s3 + $0x18] sm:$0xf] %vm4056, %v3934
  %4064 = vst.msk [vmem:[%s3 + $0x1c] sm:$0xf] %vm4056, %v3935
  %4065 = vst.msk [vmem:[%s3 + $0x20] sm:$0xf] %vm4056, %v3936
  %4066 = vst.msk [vmem:[%s3 + $0x24] sm:$0xf] %vm4056, %v3937
  %4067 = vst.msk [vmem:[%s3 + $0x28] sm:$0xf] %vm4056, %v3938
  %4068 = vst.msk [vmem:[%s3 + $0x2c] sm:$0xf] %vm4056, %v3939
  %4069 = vst.msk [vmem:[%s3 + $0x30] sm:$0xf] %vm4056, %v3940
  %4070 = vst.msk [vmem:[%s3 + $0x34] sm:$0xf] %vm4056, %v3941
  %4071 = vst.msk [vmem:[%s3 + $0x38] sm:$0xf] %vm4056, %v3942
  %4072 = vst.msk [vmem:[%s3 + $0x3c] sm:$0xf] %vm4056, %v3943
  %4073 = vst.msk [vmem:[%s3 + $0x40] sm:$0xf] %vm4056, %v3944
  %4074 = vst.msk [vmem:[%s3 + $0x44] sm:$0xf] %vm4056, %v3945
  %4075 = vst.msk [vmem:[%s3 + $0x48] sm:$0xf] %vm4056, %v3946
  %4076 = vst.msk [vmem:[%s3 + $0x4c] sm:$0xf] %vm4056, %v3947
  %4077 = vst.msk [vmem:[%s3 + $0x50] sm:$0xf] %vm4056, %v3948
  %4078 = vst.msk [vmem:[%s3 + $0x54] sm:$0xf] %vm4056, %v3949
  %4079 = vst.msk [vmem:[%s3 + $0x58] sm:$0xf] %vm4056, %v3950
  %4080 = vst.msk [vmem:[%s3 + $0x5c] sm:$0xf] %vm4056, %v3951
  %4081 = vst.msk [vmem:[%s3 + $0x60] sm:$0xf] %vm4056, %v3952
  %4082 = vst.msk [vmem:[%s3 + $0x64] sm:$0xf] %vm4056, %v3953
  %4083 = vst.msk [vmem:[%s3 + $0x68] sm:$0xf] %vm4056, %v3954
  %4084 = vst.msk [vmem:[%s3 + $0x6c] sm:$0xf] %vm4056, %v3955
  %4085 = vst.msk [vmem:[%s3 + $0x70] sm:$0xf] %vm4056, %v3956
  %4086 = vst.msk [vmem:[%s3 + $0x74] sm:$0xf] %vm4056, %v3957
  %4087 = vst.msk [vmem:[%s3 + $0x78] sm:$0xf] %vm4056, %v3958
  %4088 = vst.msk [vmem:[%s3 + $0x7c] sm:$0xf] %vm4056, %v3959
  %4089 = vst.msk [vmem:[%s3 + $0x80] sm:$0xf] %vm4056, %v3960
  %4090 = vst.msk [vmem:[%s3 + $0x84] sm:$0xf] %vm4056, %v3961
  %4091 = vst.msk [vmem:[%s3 + $0x88] sm:$0xf] %vm4056, %v3962
  %4092 = vst.msk [vmem:[%s3 + $0x8c] sm:$0xf] %vm4056, %v3963
  %4093 = vst.msk [vmem:[%s3 + $0x90] sm:$0xf] %vm4056, %v3964
  %4094 = vst.msk [vmem:[%s3 + $0x94] sm:$0xf] %vm4056, %v3965
  %4095 = vst.msk [vmem:[%s3 + $0x98] sm:$0xf] %vm4056, %v3966
  %4096 = vst.msk [vmem:[%s3 + $0x9c] sm:$0xf] %vm4056, %v3967
  %4097 = vst.msk [vmem:[%s3 + $0xa0] sm:$0xf] %vm4056, %v3968
  %4098 = vst.msk [vmem:[%s3 + $0xa4] sm:$0xf] %vm4056, %v3969
  %4099 = vst.msk [vmem:[%s3 + $0xa8] sm:$0xf] %vm4056, %v3970
  %4100 = vst.msk [vmem:[%s3 + $0xac] sm:$0xf] %vm4056, %v3971
  %4101 = vst.msk [vmem:[%s3 + $0xb0] sm:$0xf] %vm4056, %v3972
  %4102 = vst.msk [vmem:[%s3 + $0xb4] sm:$0xf] %vm4056, %v3973
  %4103 = vst.msk [vmem:[%s3 + $0xb8] sm:$0xf] %vm4056, %v3974
  %4104 = vst.msk [vmem:[%s3 + $0xbc] sm:$0xf] %vm4056, %v3975
  %4105 = vst.msk [vmem:[%s3 + $0xc0] sm:$0xf] %vm4056, %v3976
  %4106 = vst.msk [vmem:[%s3 + $0xc4] sm:$0xf] %vm4056, %v3977
  %4107 = vst.msk [vmem:[%s3 + $0xc8] sm:$0xf] %vm4056, %v3978
  %4108 = vst.msk [vmem:[%s3 + $0xcc] sm:$0xf] %vm4056, %v3979
  %4109 = vst.msk [vmem:[%s3 + $0xd0] sm:$0xf] %vm4056, %v3980
  %4110 = vst.msk [vmem:[%s3 + $0xd4] sm:$0xf] %vm4056, %v3981
  %4111 = vst.msk [vmem:[%s3 + $0xd8] sm:$0xf] %vm4056, %v3982
  %4112 = vst.msk [vmem:[%s3 + $0xdc] sm:$0xf] %vm4056, %v3983
  %4113 = vst.msk [vmem:[%s3 + $0xe0] sm:$0xf] %vm4056, %v3984
  %4114 = vst.msk [vmem:[%s3 + $0xe4] sm:$0xf] %vm4056, %v3985
  %4115 = vst.msk [vmem:[%s3 + $0xe8] sm:$0xf] %vm4056, %v3986
  %4116 = vst.msk [vmem:[%s3 + $0xec] sm:$0xf] %vm4056, %v3987
  %4117 = vst.msk [vmem:[%s3 + $0xf0] sm:$0xf] %vm4056, %v3988
  %4118 = vst.msk [vmem:[%s3 + $0xf4] sm:$0xf] %vm4056, %v3989
  %4119 = vst.msk [vmem:[%s3 + $0xf8] sm:$0xf] %vm4056, %v3990
  %4120 = vst.msk [vmem:[%s3 + $0xfc] sm:$0xf] %vm4056, %v3991
  // Predicated region
  $region14: #{res_block1.2} parent=0 // pred_check
    _
  $region15: #{res_block1.2} parent=0 // pred_check_branch
    %4122 = sbr.rel (0) target = $region17
  $region16: #{res_block1.2} parent=0 // pred_region
    _
  $region17: #{res_block1.2} parent=0 // pred_fallthru
    _
  // Predicated region
  $region18: #{res_block1.2} parent=0 // pred_check
    _
  $region19: #{res_block1.2} parent=0 // pred_check_branch
    %4124 = sbr.rel (0) target = $region21
  $region20: #{res_block1.2} parent=0 // pred_region
    _
  $region21: #{res_block1.2} parent=0 // pred_fallthru
    _
  // Predicated region
  $region22: #{res_block1.2} parent=0 // pred_check
    _
  $region23: #{res_block1.2} parent=0 // pred_check_branch
    %4126 = sbr.rel (0) target = $region25
  $region24: #{res_block1.2} parent=0 // pred_region
    _
  $region25: #{res_block1.2} parent=0 // pred_fallthru
    _
  // Predicated region
  $region26: #{res_block1.2} parent=0 // pred_check
    _
  $region27: #{res_block1.2} parent=0 // pred_check_branch
    %4128 = sbr.rel (0) target = $region29
  $region28: #{res_block1.2} parent=0 // pred_region
    _
  $region29: #{res_block1.2} parent=0 // pred_fallthru
    _

// kernel: res_block1.3
$region0: #{res_block1.3}
  #allocation0 [shape = 'u32[]', space=smem, size = 0x4, offset = 0x4, fixed_abs, tag = 'smem constant byte address 0x4 - core index']
  #allocation1 [shape = 'u32[144,128]{1,0:T(1,128)}', space=vmem, size = 0x12000, scoped, tag = 'internal scratch']
  #allocation2 [shape = 'f32[2,8,16,8]{3,2,1,0:T(8,128)}', space=vmem, size = 0x20000, scoped, tag = 'scratch operand']
  %s0 = inlined_call_operand.vmem [shape: bf16[2,16,16,4], index: 0, kind: input, shape index: {}]
  %s1 = inlined_call_operand.vmem [shape: f32[2,64,4], index: 1, kind: input, shape index: {}]
  %s2 = inlined_call_operand.vmem [shape: f32[2,4], index: 2, kind: input, shape index: {}]
  %s3 = inlined_call_operand.vmem [shape: bf16[36,8], index: 3, kind: input, shape index: {}]
  %s4 = inlined_call_operand.vmem [shape: bf16[4,8], index: 4, kind: input, shape index: {}]
  %s5 = inlined_call_operand.vmem [shape: f32[2,8], index: 5, kind: input, shape index: {}]
  %s6 = inlined_call_operand.vmem [shape: f32[2,8,8,8], index: 6, kind: output, shape index: {}]
  %s7 = sld [smem:[#allocation0]]
  $region34: #{res_block1.3} parent=0
    _
  %s9 = ssub.s32 1, %s7
  %s10 = scalar_select 0, %s9, %s7
  // Predicated region
  $region2: #{res_block1.3} parent=0 // pred_check
    _
  $region3: #{res_block1.3} parent=0 // pred_check_branch
    %12 = sbr.rel (0) target = $region5
  $region4: #{res_block1.3} parent=0 // pred_region
    _
  $region5: #{res_block1.3} parent=0 // pred_fallthru
    _
  // Predicated region
  $region6: #{res_block1.3} parent=0 // pred_check
    _
  $region7: #{res_block1.3} parent=0 // pred_check_branch
    %14 = sbr.rel (0) target = $region9
  $region8: #{res_block1.3} parent=0 // pred_region
    _
  $region9: #{res_block1.3} parent=0 // pred_fallthru
    _
  // Predicated region
  $region10: #{res_block1.3} parent=0 // pred_check
    _
  $region11: #{res_block1.3} parent=0 // pred_check_branch
    %16 = sbr.rel (0) target = $region13
  $region12: #{res_block1.3} parent=0 // pred_region
    _
  $region13: #{res_block1.3} parent=0 // pred_fallthru
    _
  // Predicated region
  $region14: #{res_block1.3} parent=0 // pred_check
    _
  $region15: #{res_block1.3} parent=0 // pred_check_branch
    %18 = sbr.rel (0) target = $region17
  $region16: #{res_block1.3} parent=0 // pred_region
    _
  $region17: #{res_block1.3} parent=0 // pred_fallthru
    _
  // Predicated region
  $region18: #{res_block1.3} parent=0 // pred_check
    _
  $region19: #{res_block1.3} parent=0 // pred_check_branch
    %20 = sbr.rel (0) target = $region21
  $region20: #{res_block1.3} parent=0 // pred_region
    _
  $region21: #{res_block1.3} parent=0 // pred_fallthru
    _
  // Predicated region
  $region22: #{res_block1.3} parent=0 // pred_check
    _
  $region23: #{res_block1.3} parent=0 // pred_check_branch
    %22 = sbr.rel (0) target = $region25
  $region24: #{res_block1.3} parent=0 // pred_region
    _
  $region25: #{res_block1.3} parent=0 // pred_fallthru
    _
  %v24 = vld [vmem:[%s2] sm:$0x3]
  %v25 = vld [vmem:[%s5] sm:$0x3]
  %v26 = vld [vmem:[%s0] sm:$0xf]
  %v27 = vld [vmem:[%s0 + $0x4] sm:$0xf]
  %v28 = vld [vmem:[%s0 + $0x8] sm:$0xf]
  %v29 = vld [vmem:[%s0 + $0xc] sm:$0xf]
  %v30 = vld [vmem:[%s0 + $0x10] sm:$0xf]
  %v31 = vld [vmem:[%s0 + $0x14] sm:$0xf]
  %v32 = vld [vmem:[%s0 + $0x18] sm:$0xf]
  %v33 = vld [vmem:[%s0 + $0x1c] sm:$0xf]
  %v34 = vld [vmem:[%s0 + $0x20] sm:$0xf]
  %v35 = vld [vmem:[%s0 + $0x24] sm:$0xf]
  %v36 = vld [vmem:[%s0 + $0x28] sm:$0xf]
  %v37 = vld [vmem:[%s0 + $0x2c] sm:$0xf]
  %v38 = vld [vmem:[%s0 + $0x30] sm:$0xf]
  %v39 = vld [vmem:[%s0 + $0x34] sm:$0xf]
  %v40 = vld [vmem:[%s0 + $0x38] sm:$0xf]
  %v41 = vld [vmem:[%s0 + $0x3c] sm:$0xf]
  %v42 = vld [vmem:[%s0 + $0x40] sm:$0xf]
  %v43 = vld [vmem:[%s0 + $0x44] sm:$0xf]
  %v44 = vld [vmem:[%s0 + $0x48] sm:$0xf]
  %v45 = vld [vmem:[%s0 + $0x4c] sm:$0xf]
  %v46 = vld [vmem:[%s0 + $0x50] sm:$0xf]
  %v47 = vld [vmem:[%s0 + $0x54] sm:$0xf]
  %v48 = vld [vmem:[%s0 + $0x58] sm:$0xf]
  %v49 = vld [vmem:[%s0 + $0x5c] sm:$0xf]
  %v50 = vld [vmem:[%s0 + $0x60] sm:$0xf]
  %v51 = vld [vmem:[%s0 + $0x64] sm:$0xf]
  %v52 = vld [vmem:[%s0 + $0x68] sm:$0xf]
  %v53 = vld [vmem:[%s0 + $0x6c] sm:$0xf]
  %v54 = vld [vmem:[%s0 + $0x70] sm:$0xf]
  %v55 = vld [vmem:[%s0 + $0x74] sm:$0xf]
  %v56 = vld [vmem:[%s0 + $0x78] sm:$0xf]
  %v57 = vld [vmem:[%s0 + $0x7c] sm:$0xf]
  %v58 = vld [vmem:[%s0 + $0x80] sm:$0xf]
  %v59 = vld [vmem:[%s0 + $0x84] sm:$0xf]
  %v60 = vld [vmem:[%s0 + $0x88] sm:$0xf]
  %v61 = vld [vmem:[%s0 + $0x8c] sm:$0xf]
  %v62 = vld [vmem:[%s0 + $0x90] sm:$0xf]
  %v63 = vld [vmem:[%s0 + $0x94] sm:$0xf]
  %v64 = vld [vmem:[%s0 + $0x98] sm:$0xf]
  %v65 = vld [vmem:[%s0 + $0x9c] sm:$0xf]
  %v66 = vld [vmem:[%s0 + $0xa0] sm:$0xf]
  %v67 = vld [vmem:[%s0 + $0xa4] sm:$0xf]
  %v68 = vld [vmem:[%s0 + $0xa8] sm:$0xf]
  %v69 = vld [vmem:[%s0 + $0xac] sm:$0xf]
  %v70 = vld [vmem:[%s0 + $0xb0] sm:$0xf]
  %v71 = vld [vmem:[%s0 + $0xb4] sm:$0xf]
  %v72 = vld [vmem:[%s0 + $0xb8] sm:$0xf]
  %v73 = vld [vmem:[%s0 + $0xbc] sm:$0xf]
  %v74 = vld [vmem:[%s0 + $0xc0] sm:$0xf]
  %v75 = vld [vmem:[%s0 + $0xc4] sm:$0xf]
  %v76 = vld [vmem:[%s0 + $0xc8] sm:$0xf]
  %v77 = vld [vmem:[%s0 + $0xcc] sm:$0xf]
  %v78 = vld [vmem:[%s0 + $0xd0] sm:$0xf]
  %v79 = vld [vmem:[%s0 + $0xd4] sm:$0xf]
  %v80 = vld [vmem:[%s0 + $0xd8] sm:$0xf]
  %v81 = vld [vmem:[%s0 + $0xdc] sm:$0xf]
  %v82 = vld [vmem:[%s0 + $0xe0] sm:$0xf]
  %v83 = vld [vmem:[%s0 + $0xe4] sm:$0xf]
  %v84 = vld [vmem:[%s0 + $0xe8] sm:$0xf]
  %v85 = vld [vmem:[%s0 + $0xec] sm:$0xf]
  %v86 = vld [vmem:[%s0 + $0xf0] sm:$0xf]
  %v87 = vld [vmem:[%s0 + $0xf4] sm:$0xf]
  %v88 = vld [vmem:[%s0 + $0xf8] sm:$0xf]
  %v89 = vld [vmem:[%s0 + $0xfc] sm:$0xf]
  %v90 = vunpack.c.l.bf16 %v26
  %v91 = vunpack.c.l.bf16 %v27
  %v92 = vunpack.c.l.bf16 %v28
  %v93 = vunpack.c.l.bf16 %v29
  %v94 = vunpack.c.l.bf16 %v30
  %v95 = vunpack.c.l.bf16 %v31
  %v96 = vunpack.c.l.bf16 %v32
  %v97 = vunpack.c.l.bf16 %v33
  %v98 = vunpack.c.l.bf16 %v34
  %v99 = vunpack.c.l.bf16 %v35
  %v100 = vunpack.c.l.bf16 %v36
  %v101 = vunpack.c.l.bf16 %v37
  %v102 = vunpack.c.l.bf16 %v38
  %v103 = vunpack.c.l.bf16 %v39
  %v104 = vunpack.c.l.bf16 %v40
  %v105 = vunpack.c.l.bf16 %v41
  %v106 = vunpack.c.l.bf16 %v42
  %v107 = vunpack.c.l.bf16 %v43
  %v108 = vunpack.c.l.bf16 %v44
  %v109 = vunpack.c.l.bf16 %v45
  %v110 = vunpack.c.l.bf16 %v46
  %v111 = vunpack.c.l.bf16 %v47
  %v112 = vunpack.c.l.bf16 %v48
  %v113 = vunpack.c.l.bf16 %v49
  %v114 = vunpack.c.l.bf16 %v50
  %v115 = vunpack.c.l.bf16 %v51
  %v116 = vunpack.c.l.bf16 %v52
  %v117 = vunpack.c.l.bf16 %v53
  %v118 = vunpack.c.l.bf16 %v54
  %v119 = vunpack.c.l.bf16 %v55
  %v120 = vunpack.c.l.bf16 %v56
  %v121 = vunpack.c.l.bf16 %v57
  %v122 = vunpack.c.l.bf16 %v58
  %v123 = vunpack.c.l.bf16 %v59
  %v124 = vunpack.c.l.bf16 %v60
  %v125 = vunpack.c.l.bf16 %v61
  %v126 = vunpack.c.l.bf16 %v62
  %v127 = vunpack.c.l.bf16 %v63
  %v128 = vunpack.c.l.bf16 %v64
  %v129 = vunpack.c.l.bf16 %v65
  %v130 = vunpack.c.l.bf16 %v66
  %v131 = vunpack.c.l.bf16 %v67
  %v132 = vunpack.c.l.bf16 %v68
  %v133 = vunpack.c.l.bf16 %v69
  %v134 = vunpack.c.l.bf16 %v70
  %v135 = vunpack.c.l.bf16 %v71
  %v136 = vunpack.c.l.bf16 %v72
  %v137 = vunpack.c.l.bf16 %v73
  %v138 = vunpack.c.l.bf16 %v74
  %v139 = vunpack.c.l.bf16 %v75
  %v140 = vunpack.c.l.bf16 %v76
  %v141 = vunpack.c.l.bf16 %v77
  %v142 = vunpack.c.l.bf16 %v78
  %v143 = vunpack.c.l.bf16 %v79
  %v144 = vunpack.c.l.bf16 %v80
  %v145 = vunpack.c.l.bf16 %v81
  %v146 = vunpack.c.l.bf16 %v82
  %v147 = vunpack.c.l.bf16 %v83
  %v148 = vunpack.c.l.bf16 %v84
  %v149 = vunpack.c.l.bf16 %v85
  %v150 = vunpack.c.l.bf16 %v86
  %v151 = vunpack.c.l.bf16 %v87
  %v152 = vunpack.c.l.bf16 %v88
  %v153 = vunpack.c.l.bf16 %v89
  %v154 = vlaneseq
  %v155 = vshrl.u32 %v154, 7
  %v156 = vsub.s32 0, %v155
  %v157 = vrot.slane %v24, %v156
  %v158 = vmul.f32 %v90, %v157
  %v159 = vmul.f32 %v91, %v157
  %v160 = vmul.f32 %v92, %v157
  %v161 = vmul.f32 %v93, %v157
  %v162 = vmul.f32 %v94, %v157
  %v163 = vmul.f32 %v95, %v157
  %v164 = vmul.f32 %v96, %v157
  %v165 = vmul.f32 %v97, %v157
  %v166 = vmul.f32 %v98, %v157
  %v167 = vmul.f32 %v99, %v157
  %v168 = vmul.f32 %v100, %v157
  %v169 = vmul.f32 %v101, %v157
  %v170 = vmul.f32 %v102, %v157
  %v171 = vmul.f32 %v103, %v157
  %v172 = vmul.f32 %v104, %v157
  %v173 = vmul.f32 %v105, %v157
  %v174 = vmul.f32 %v106, %v157
  %v175 = vmul.f32 %v107, %v157
  %v176 = vmul.f32 %v108, %v157
  %v177 = vmul.f32 %v109, %v157
  %v178 = vmul.f32 %v110, %v157
  %v179 = vmul.f32 %v111, %v157
  %v180 = vmul.f32 %v112, %v157
  %v181 = vmul.f32 %v113, %v157
  %v182 = vmul.f32 %v114, %v157
  %v183 = vmul.f32 %v115, %v157
  %v184 = vmul.f32 %v116, %v157
  %v185 = vmul.f32 %v117, %v157
  %v186 = vmul.f32 %v118, %v157
  %v187 = vmul.f32 %v119, %v157
  %v188 = vmul.f32 %v120, %v157
  %v189 = vmul.f32 %v121, %v157
  %v190 = vmul.f32 %v122, %v157
  %v191 = vmul.f32 %v123, %v157
  %v192 = vmul.f32 %v124, %v157
  %v193 = vmul.f32 %v125, %v157
  %v194 = vmul.f32 %v126, %v157
  %v195 = vmul.f32 %v127, %v157
  %v196 = vmul.f32 %v128, %v157
  %v197 = vmul.f32 %v129, %v157
  %v198 = vmul.f32 %v130, %v157
  %v199 = vmul.f32 %v131, %v157
  %v200 = vmul.f32 %v132, %v157
  %v201 = vmul.f32 %v133, %v157
  %v202 = vmul.f32 %v134, %v157
  %v203 = vmul.f32 %v135, %v157
  %v204 = vmul.f32 %v136, %v157
  %v205 = vmul.f32 %v137, %v157
  %v206 = vmul.f32 %v138, %v157
  %v207 = vmul.f32 %v139, %v157
  %v208 = vmul.f32 %v140, %v157
  %v209 = vmul.f32 %v141, %v157
  %v210 = vmul.f32 %v142, %v157
  %v211 = vmul.f32 %v143, %v157
  %v212 = vmul.f32 %v144, %v157
  %v213 = vmul.f32 %v145, %v157
  %v214 = vmul.f32 %v146, %v157
  %v215 = vmul.f32 %v147, %v157
  %v216 = vmul.f32 %v148, %v157
  %v217 = vmul.f32 %v149, %v157
  %v218 = vmul.f32 %v150, %v157
  %v219 = vmul.f32 %v151, %v157
  %v220 = vmul.f32 %v152, %v157
  %v221 = vmul.f32 %v153, %v157
  %v222 = vlaneseq
  %v223 = vshrl.u32 %v222, 7
  %v224 = vsub.s32 1, %v223
  %v225 = vrot.slane %v24, %v224
  %v226 = vadd.f32 %v158, %v225
  %v227 = vadd.f32 %v159, %v225
  %v228 = vadd.f32 %v160, %v225
  %v229 = vadd.f32 %v161, %v225
  %v230 = vadd.f32 %v162, %v225
  %v231 = vadd.f32 %v163, %v225
  %v232 = vadd.f32 %v164, %v225
  %v233 = vadd.f32 %v165, %v225
  %v234 = vadd.f32 %v166, %v225
  %v235 = vadd.f32 %v167, %v225
  %v236 = vadd.f32 %v168, %v225
  %v237 = vadd.f32 %v169, %v225
  %v238 = vadd.f32 %v170, %v225
  %v239 = vadd.f32 %v171, %v225
  %v240 = vadd.f32 %v172, %v225
  %v241 = vadd.f32 %v173, %v225
  %v242 = vadd.f32 %v174, %v225
  %v243 = vadd.f32 %v175, %v225
  %v244 = vadd.f32 %v176, %v225
  %v245 = vadd.f32 %v177, %v225
  %v246 = vadd.f32 %v178, %v225
  %v247 = vadd.f32 %v179, %v225
  %v248 = vadd.f32 %v180, %v225
  %v249 = vadd.f32 %v181, %v225
  %v250 = vadd.f32 %v182, %v225
  %v251 = vadd.f32 %v183, %v225
  %v252 = vadd.f32 %v184, %v225
  %v253 = vadd.f32 %v185, %v225
  %v254 = vadd.f32 %v186, %v225
  %v255 = vadd.f32 %v187, %v225
  %v256 = vadd.f32 %v188, %v225
  %v257 = vadd.f32 %v189, %v225
  %v258 = vadd.f32 %v190, %v225
  %v259 = vadd.f32 %v191, %v225
  %v260 = vadd.f32 %v192, %v225
  %v261 = vadd.f32 %v193, %v225
  %v262 = vadd.f32 %v194, %v225
  %v263 = vadd.f32 %v195, %v225
  %v264 = vadd.f32 %v196, %v225
  %v265 = vadd.f32 %v197, %v225
  %v266 = vadd.f32 %v198, %v225
  %v267 = vadd.f32 %v199, %v225
  %v268 = vadd.f32 %v200, %v225
  %v269 = vadd.f32 %v201, %v225
  %v270 = vadd.f32 %v202, %v225
  %v271 = vadd.f32 %v203, %v225
  %v272 = vadd.f32 %v204, %v225
  %v273 = vadd.f32 %v205, %v225
  %v274 = vadd.f32 %v206, %v225
  %v275 = vadd.f32 %v207, %v225
  %v276 = vadd.f32 %v208, %v225
  %v277 = vadd.f32 %v209, %v225
  %v278 = vadd.f32 %v210, %v225
  %v279 = vadd.f32 %v211, %v225
  %v280 = vadd.f32 %v212, %v225
  %v281 = vadd.f32 %v213, %v225
  %v282 = vadd.f32 %v214, %v225
  %v283 = vadd.f32 %v215, %v225
  %v284 = vadd.f32 %v216, %v225
  %v285 = vadd.f32 %v217, %v225
  %v286 = vadd.f32 %v218, %v225
  %v287 = vadd.f32 %v219, %v225
  %v288 = vadd.f32 %v220, %v225
  %v289 = vadd.f32 %v221, %v225
  %vm290 = vcmp.ge.f32.partialorder %v226, 0.0
  %vm291 = vcmp.ge.f32.partialorder %v227, 0.0
  %vm292 = vcmp.ge.f32.partialorder %v228, 0.0
  %vm293 = vcmp.ge.f32.partialorder %v229, 0.0
  %vm294 = vcmp.ge.f32.partialorder %v230, 0.0
  %vm295 = vcmp.ge.f32.partialorder %v231, 0.0
  %vm296 = vcmp.ge.f32.partialorder %v232, 0.0
  %vm297 = vcmp.ge.f32.partialorder %v233, 0.0
  %vm298 = vcmp.ge.f32.partialorder %v234, 0.0
  %vm299 = vcmp.ge.f32.partialorder %v235, 0.0
  %vm300 = vcmp.ge.f32.partialorder %v236, 0.0
  %vm301 = vcmp.ge.f32.partialorder %v237, 0.0
  %vm302 = vcmp.ge.f32.partialorder %v238, 0.0
  %vm303 = vcmp.ge.f32.partialorder %v239, 0.0
  %vm304 = vcmp.ge.f32.partialorder %v240, 0.0
  %vm305 = vcmp.ge.f32.partialorder %v241, 0.0
  %vm306 = vcmp.ge.f32.partialorder %v242, 0.0
  %vm307 = vcmp.ge.f32.partialorder %v243, 0.0
  %vm308 = vcmp.ge.f32.partialorder %v244, 0.0
  %vm309 = vcmp.ge.f32.partialorder %v245, 0.0
  %vm310 = vcmp.ge.f32.partialorder %v246, 0.0
  %vm311 = vcmp.ge.f32.partialorder %v247, 0.0
  %vm312 = vcmp.ge.f32.partialorder %v248, 0.0
  %vm313 = vcmp.ge.f32.partialorder %v249, 0.0
  %vm314 = vcmp.ge.f32.partialorder %v250, 0.0
  %vm315 = vcmp.ge.f32.partialorder %v251, 0.0
  %vm316 = vcmp.ge.f32.partialorder %v252, 0.0
  %vm317 = vcmp.ge.f32.partialorder %v253, 0.0
  %vm318 = vcmp.ge.f32.partialorder %v254, 0.0
  %vm319 = vcmp.ge.f32.partialorder %v255, 0.0
  %vm320 = vcmp.ge.f32.partialorder %v256, 0.0
  %vm321 = vcmp.ge.f32.partialorder %v257, 0.0
  %vm322 = vcmp.ge.f32.partialorder %v258, 0.0
  %vm323 = vcmp.ge.f32.partialorder %v259, 0.0
  %vm324 = vcmp.ge.f32.partialorder %v260, 0.0
  %vm325 = vcmp.ge.f32.partialorder %v261, 0.0
  %vm326 = vcmp.ge.f32.partialorder %v262, 0.0
  %vm327 = vcmp.ge.f32.partialorder %v263, 0.0
  %vm328 = vcmp.ge.f32.partialorder %v264, 0.0
  %vm329 = vcmp.ge.f32.partialorder %v265, 0.0
  %vm330 = vcmp.ge.f32.partialorder %v266, 0.0
  %vm331 = vcmp.ge.f32.partialorder %v267, 0.0
  %vm332 = vcmp.ge.f32.partialorder %v268, 0.0
  %vm333 = vcmp.ge.f32.partialorder %v269, 0.0
  %vm334 = vcmp.ge.f32.partialorder %v270, 0.0
  %vm335 = vcmp.ge.f32.partialorder %v271, 0.0
  %vm336 = vcmp.ge.f32.partialorder %v272, 0.0
  %vm337 = vcmp.ge.f32.partialorder %v273, 0.0
  %vm338 = vcmp.ge.f32.partialorder %v274, 0.0
  %vm339 = vcmp.ge.f32.partialorder %v275, 0.0
  %vm340 = vcmp.ge.f32.partialorder %v276, 0.0
  %vm341 = vcmp.ge.f32.partialorder %v277, 0.0
  %vm342 = vcmp.ge.f32.partialorder %v278, 0.0
  %vm343 = vcmp.ge.f32.partialorder %v279, 0.0
  %vm344 = vcmp.ge.f32.partialorder %v280, 0.0
  %vm345 = vcmp.ge.f32.partialorder %v281, 0.0
  %vm346 = vcmp.ge.f32.partialorder %v282, 0.0
  %vm347 = vcmp.ge.f32.partialorder %v283, 0.0
  %vm348 = vcmp.ge.f32.partialorder %v284, 0.0
  %vm349 = vcmp.ge.f32.partialorder %v285, 0.0
  %vm350 = vcmp.ge.f32.partialorder %v286, 0.0
  %vm351 = vcmp.ge.f32.partialorder %v287, 0.0
  %vm352 = vcmp.ge.f32.partialorder %v288, 0.0
  %vm353 = vcmp.ge.f32.partialorder %v289, 0.0
  %v354 = vmul.f32 %v226, 0.2
  %v355 = vmul.f32 %v227, 0.2
  %v356 = vmul.f32 %v228, 0.2
  %v357 = vmul.f32 %v229, 0.2
  %v358 = vmul.f32 %v230, 0.2
  %v359 = vmul.f32 %v231, 0.2
  %v360 = vmul.f32 %v232, 0.2
  %v361 = vmul.f32 %v233, 0.2
  %v362 = vmul.f32 %v234, 0.2
  %v363 = vmul.f32 %v235, 0.2
  %v364 = vmul.f32 %v236, 0.2
  %v365 = vmul.f32 %v237, 0.2
  %v366 = vmul.f32 %v238, 0.2
  %v367 = vmul.f32 %v239, 0.2
  %v368 = vmul.f32 %v240, 0.2
  %v369 = vmul.f32 %v241, 0.2
  %v370 = vmul.f32 %v242, 0.2
  %v371 = vmul.f32 %v243, 0.2
  %v372 = vmul.f32 %v244, 0.2
  %v373 = vmul.f32 %v245, 0.2
  %v374 = vmul.f32 %v246, 0.2
  %v375 = vmul.f32 %v247, 0.2
  %v376 = vmul.f32 %v248, 0.2
  %v377 = vmul.f32 %v249, 0.2
  %v378 = vmul.f32 %v250, 0.2
  %v379 = vmul.f32 %v251, 0.2
  %v380 = vmul.f32 %v252, 0.2
  %v381 = vmul.f32 %v253, 0.2
  %v382 = vmul.f32 %v254, 0.2
  %v383 = vmul.f32 %v255, 0.2
  %v384 = vmul.f32 %v256, 0.2
  %v385 = vmul.f32 %v257, 0.2
  %v386 = vmul.f32 %v258, 0.2
  %v387 = vmul.f32 %v259, 0.2
  %v388 = vmul.f32 %v260, 0.2
  %v389 = vmul.f32 %v261, 0.2
  %v390 = vmul.f32 %v262, 0.2
  %v391 = vmul.f32 %v263, 0.2
  %v392 = vmul.f32 %v264, 0.2
  %v393 = vmul.f32 %v265, 0.2
  %v394 = vmul.f32 %v266, 0.2
  %v395 = vmul.f32 %v267, 0.2
  %v396 = vmul.f32 %v268, 0.2
  %v397 = vmul.f32 %v269, 0.2
  %v398 = vmul.f32 %v270, 0.2
  %v399 = vmul.f32 %v271, 0.2
  %v400 = vmul.f32 %v272, 0.2
  %v401 = vmul.f32 %v273, 0.2
  %v402 = vmul.f32 %v274, 0.2
  %v403 = vmul.f32 %v275, 0.2
  %v404 = vmul.f32 %v276, 0.2
  %v405 = vmul.f32 %v277, 0.2
  %v406 = vmul.f32 %v278, 0.2
  %v407 = vmul.f32 %v279, 0.2
  %v408 = vmul.f32 %v280, 0.2
  %v409 = vmul.f32 %v281, 0.2
  %v410 = vmul.f32 %v282, 0.2
  %v411 = vmul.f32 %v283, 0.2
  %v412 = vmul.f32 %v284, 0.2
  %v413 = vmul.f32 %v285, 0.2
  %v414 = vmul.f32 %v286, 0.2
  %v415 = vmul.f32 %v287, 0.2
  %v416 = vmul.f32 %v288, 0.2
  %v417 = vmul.f32 %v289, 0.2
  %v418 = vsel %vm290, %v226, %v354
  %v419 = vsel %vm291, %v227, %v355
  %v420 = vsel %vm292, %v228, %v356
  %v421 = vsel %vm293, %v229, %v357
  %v422 = vsel %vm294, %v230, %v358
  %v423 = vsel %vm295, %v231, %v359
  %v424 = vsel %vm296, %v232, %v360
  %v425 = vsel %vm297, %v233, %v361
  %v426 = vsel %vm298, %v234, %v362
  %v427 = vsel %vm299, %v235, %v363
  %v428 = vsel %vm300, %v236, %v364
  %v429 = vsel %vm301, %v237, %v365
  %v430 = vsel %vm302, %v238, %v366
  %v431 = vsel %vm303, %v239, %v367
  %v432 = vsel %vm304, %v240, %v368
  %v433 = vsel %vm305, %v241, %v369
  %v434 = vsel %vm306, %v242, %v370
  %v435 = vsel %vm307, %v243, %v371
  %v436 = vsel %vm308, %v244, %v372
  %v437 = vsel %vm309, %v245, %v373
  %v438 = vsel %vm310, %v246, %v374
  %v439 = vsel %vm311, %v247, %v375
  %v440 = vsel %vm312, %v248, %v376
  %v441 = vsel %vm313, %v249, %v377
  %v442 = vsel %vm314, %v250, %v378
  %v443 = vsel %vm315, %v251, %v379
  %v444 = vsel %vm316, %v252, %v380
  %v445 = vsel %vm317, %v253, %v381
  %v446 = vsel %vm318, %v254, %v382
  %v447 = vsel %vm319, %v255, %v383
  %v448 = vsel %vm320, %v256, %v384
  %v449 = vsel %vm321, %v257, %v385
  %v450 = vsel %vm322, %v258, %v386
  %v451 = vsel %vm323, %v259, %v387
  %v452 = vsel %vm324, %v260, %v388
  %v453 = vsel %vm325, %v261, %v389
  %v454 = vsel %vm326, %v262, %v390
  %v455 = vsel %vm327, %v263, %v391
  %v456 = vsel %vm328, %v264, %v392
  %v457 = vsel %vm329, %v265, %v393
  %v458 = vsel %vm330, %v266, %v394
  %v459 = vsel %vm331, %v267, %v395
  %v460 = vsel %vm332, %v268, %v396
  %v461 = vsel %vm333, %v269, %v397
  %v462 = vsel %vm334, %v270, %v398
  %v463 = vsel %vm335, %v271, %v399
  %v464 = vsel %vm336, %v272, %v400
  %v465 = vsel %vm337, %v273, %v401
  %v466 = vsel %vm338, %v274, %v402
  %v467 = vsel %vm339, %v275, %v403
  %v468 = vsel %vm340, %v276, %v404
  %v469 = vsel %vm341, %v277, %v405
  %v470 = vsel %vm342, %v278, %v406
  %v471 = vsel %vm343, %v279, %v407
  %v472 = vsel %vm344, %v280, %v408
  %v473 = vsel %vm345, %v281, %v409
  %v474 = vsel %vm346, %v282, %v410
  %v475 = vsel %vm347, %v283, %v411
  %v476 = vsel %vm348, %v284, %v412
  %v477 = vsel %vm349, %v285, %v413
  %v478 = vsel %vm350, %v286, %v414
  %v479 = vsel %vm351, %v287, %v415
  %v480 = vsel %vm352, %v288, %v416
  %v481 = vsel %vm353, %v289, %v417
  %v482 = vlaneseq
  %v483 = vshrl.u32 %v482, 7
  %v484 = vadd.s32 %v483, 8
  %vm485 = vcmp.eq.s32.totalorder %v483, 0
  %vm486 = vcmp.eq.s32.totalorder %v484, 0
  %v487 = vrot.slane %v418, 7
  %v488 = vrot.slane %v420, 7
  %v489 = vrot.slane %v422, 7
  %v490 = vrot.slane %v424, 7
  %v491 = vrot.slane %v426, 7
  %v492 = vrot.slane %v428, 7
  %v493 = vrot.slane %v430, 7
  %v494 = vrot.slane %v432, 7
  %v495 = vrot.slane %v434, 7
  %v496 = vrot.slane %v436, 7
  %v497 = vrot.slane %v438, 7
  %v498 = vrot.slane %v440, 7
  %v499 = vrot.slane %v442, 7
  %v500 = vrot.slane %v444, 7
  %v501 = vrot.slane %v446, 7
  %v502 = vrot.slane %v450, 7
  %v503 = vrot.slane %v452, 7
  %v504 = vrot.slane %v454, 7
  %v505 = vrot.slane %v456, 7
  %v506 = vrot.slane %v458, 7
  %v507 = vrot.slane %v460, 7
  %v508 = vrot.slane %v462, 7
  %v509 = vrot.slane %v464, 7
  %v510 = vrot.slane %v466, 7
  %v511 = vrot.slane %v468, 7
  %v512 = vrot.slane %v470, 7
  %v513 = vrot.slane %v472, 7
  %v514 = vrot.slane %v474, 7
  %v515 = vrot.slane %v476, 7
  %v516 = vrot.slane %v478, 7
  %v517 = vrot.slane %v419, 7
  %v518 = vrot.slane %v421, 7
  %v519 = vrot.slane %v423, 7
  %v520 = vrot.slane %v425, 7
  %v521 = vrot.slane %v427, 7
  %v522 = vrot.slane %v429, 7
  %v523 = vrot.slane %v431, 7
  %v524 = vrot.slane %v433, 7
  %v525 = vrot.slane %v435, 7
  %v526 = vrot.slane %v437, 7
  %v527 = vrot.slane %v439, 7
  %v528 = vrot.slane %v441, 7
  %v529 = vrot.slane %v443, 7
  %v530 = vrot.slane %v445, 7
  %v531 = vrot.slane %v447, 7
  %v532 = vrot.slane %v451, 7
  %v533 = vrot.slane %v453, 7
  %v534 = vrot.slane %v455, 7
  %v535 = vrot.slane %v457, 7
  %v536 = vrot.slane %v459, 7
  %v537 = vrot.slane %v461, 7
  %v538 = vrot.slane %v463, 7
  %v539 = vrot.slane %v465, 7
  %v540 = vrot.slane %v467, 7
  %v541 = vrot.slane %v469, 7
  %v542 = vrot.slane %v471, 7
  %v543 = vrot.slane %v473, 7
  %v544 = vrot.slane %v475, 7
  %v545 = vrot.slane %v477, 7
  %v546 = vrot.slane %v479, 7
  %vm547 = vcmp.lt.s32.totalorder %v483, 1
  %v548 = vsel %vm547, %v487, %v517
  %v549 = vsel %vm547, %v488, %v518
  %v550 = vsel %vm547, %v489, %v519
  %v551 = vsel %vm547, %v490, %v520
  %v552 = vsel %vm547, %v491, %v521
  %v553 = vsel %vm547, %v492, %v522
  %v554 = vsel %vm547, %v493, %v523
  %v555 = vsel %vm547, %v494, %v524
  %v556 = vsel %vm547, %v495, %v525
  %v557 = vsel %vm547, %v496, %v526
  %v558 = vsel %vm547, %v497, %v527
  %v559 = vsel %vm547, %v498, %v528
  %v560 = vsel %vm547, %v499, %v529
  %v561 = vsel %vm547, %v500, %v530
  %v562 = vsel %vm547, %v501, %v531
  %v563 = vsel %vm547, %v502, %v532
  %v564 = vsel %vm547, %v503, %v533
  %v565 = vsel %vm547, %v504, %v534
  %v566 = vsel %vm547, %v505, %v535
  %v567 = vsel %vm547, %v506, %v536
  %v568 = vsel %vm547, %v507, %v537
  %v569 = vsel %vm547, %v508, %v538
  %v570 = vsel %vm547, %v509, %v539
  %v571 = vsel %vm547, %v510, %v540
  %v572 = vsel %vm547, %v511, %v541
  %v573 = vsel %vm547, %v512, %v542
  %v574 = vsel %vm547, %v513, %v543
  %v575 = vsel %vm547, %v514, %v544
  %v576 = vsel %vm547, %v515, %v545
  %v577 = vsel %vm547, %v516, %v546
  %v578 = vsel %vm547, %v517, %v487
  %v579 = vsel %vm547, %v518, %v488
  %v580 = vsel %vm547, %v519, %v489
  %v581 = vsel %vm547, %v520, %v490
  %v582 = vsel %vm547, %v521, %v491
  %v583 = vsel %vm547, %v522, %v492
  %v584 = vsel %vm547, %v523, %v493
  %v585 = vsel %vm547, %v524, %v494
  %v586 = vsel %vm547, %v525, %v495
  %v587 = vsel %vm547, %v526, %v496
  %v588 = vsel %vm547, %v527, %v497
  %v589 = vsel %vm547, %v528, %v498
  %v590 = vsel %vm547, %v529, %v499
  %v591 = vsel %vm547, %v530, %v500
  %v592 = vsel %vm547, %v531, %v501
  %v593 = vsel %vm547, %v532, %v502
  %v594 = vsel %vm547, %v533, %v503
  %v595 = vsel %vm547, %v534, %v504
  %v596 = vsel %vm547, %v535, %v505
  %v597 = vsel %vm547, %v536, %v506
  %v598 = vsel %vm547, %v537, %v507
  %v599 = vsel %vm547, %v538, %v508
  %v600 = vsel %vm547, %v539, %v509
  %v601 = vsel %vm547, %v540, %v510
  %v602 = vsel %vm547, %v541, %v511
  %v603 = vsel %vm547, %v542, %v512
  %v604 = vsel %vm547, %v543, %v513
  %v605 = vsel %vm547, %v544, %v514
  %v606 = vsel %vm547, %v545, %v515
  %v607 = vsel %vm547, %v546, %v516
  %v608 = vsel %vm485, 0.0, 0.0
  %v609 = vsel %vm486, 0.0, 0.0
  %v610 = vsel %vm485, 0.0, %v578
  %v611 = vsel %vm486, 0.0, %v548
  %v612 = vsel %vm485, 0.0, %v579
  %v613 = vsel %vm486, 0.0, %v549
  %v614 = vsel %vm485, 0.0, %v580
  %v615 = vsel %vm486, 0.0, %v550
  %v616 = vsel %vm485, 0.0, %v581
  %v617 = vsel %vm486, 0.0, %v551
  %v618 = vsel %vm485, 0.0, %v582
  %v619 = vsel %vm486, 0.0, %v552
  %v620 = vsel %vm485, 0.0, %v583
  %v621 = vsel %vm486, 0.0, %v553
  %v622 = vsel %vm485, 0.0, %v584
  %v623 = vsel %vm486, 0.0, %v554
  %v624 = vsel %vm485, 0.0, %v585
  %v625 = vsel %vm486, 0.0, %v555
  %v626 = vsel %vm485, 0.0, %v586
  %v627 = vsel %vm486, 0.0, %v556
  %v628 = vsel %vm485, 0.0, %v587
  %v629 = vsel %vm486, 0.0, %v557
  %v630 = vsel %vm485, 0.0, %v588
  %v631 = vsel %vm486, 0.0, %v558
  %v632 = vsel %vm485, 0.0, %v589
  %v633 = vsel %vm486, 0.0, %v559
  %v634 = vsel %vm485, 0.0, %v590
  %v635 = vsel %vm486, 0.0, %v560
  %v636 = vsel %vm485, 0.0, %v591
  %v637 = vsel %vm486, 0.0, %v561
  %v638 = vsel %vm485, 0.0, %v592
  %v639 = vsel %vm486, 0.0, %v562
  %v640 = vsel %vm485, 0.0, %v593
  %v641 = vsel %vm486, 0.0, %v563
  %v642 = vsel %vm485, 0.0, %v594
  %v643 = vsel %vm486, 0.0, %v564
  %v644 = vsel %vm485, 0.0, %v595
  %v645 = vsel %vm486, 0.0, %v565
  %v646 = vsel %vm485, 0.0, %v596
  %v647 = vsel %vm486, 0.0, %v566
  %v648 = vsel %vm485, 0.0, %v597
  %v649 = vsel %vm486, 0.0, %v567
  %v650 = vsel %vm485, 0.0, %v598
  %v651 = vsel %vm486, 0.0, %v568
  %v652 = vsel %vm485, 0.0, %v599
  %v653 = vsel %vm486, 0.0, %v569
  %v654 = vsel %vm485, 0.0, %v600
  %v655 = vsel %vm486, 0.0, %v570
  %v656 = vsel %vm485, 0.0, %v601
  %v657 = vsel %vm486, 0.0, %v571
  %v658 = vsel %vm485, 0.0, %v602
  %v659 = vsel %vm486, 0.0, %v572
  %v660 = vsel %vm485, 0.0, %v603
  %v661 = vsel %vm486, 0.0, %v573
  %v662 = vsel %vm485, 0.0, %v604
  %v663 = vsel %vm486, 0.0, %v574
  %v664 = vsel %vm485, 0.0, %v605
  %v665 = vsel %vm486, 0.0, %v575
  %v666 = vsel %vm485, 0.0, %v606
  %v667 = vsel %vm486, 0.0, %v576
  %v668 = vsel %vm485, 0.0, %v607
  %v669 = vsel %vm486, 0.0, %v577
  %vm670 = vcmp.eq.s32.totalorder %v483, 15
  %vm671 = vcmp.eq.s32.totalorder %v484, 15
  %v672 = vrot.slane %v418, 1
  %v673 = vrot.slane %v420, 1
  %v674 = vrot.slane %v422, 1
  %v675 = vrot.slane %v424, 1
  %v676 = vrot.slane %v426, 1
  %v677 = vrot.slane %v428, 1
  %v678 = vrot.slane %v430, 1
  %v679 = vrot.slane %v432, 1
  %v680 = vrot.slane %v434, 1
  %v681 = vrot.slane %v436, 1
  %v682 = vrot.slane %v438, 1
  %v683 = vrot.slane %v440, 1
  %v684 = vrot.slane %v442, 1
  %v685 = vrot.slane %v444, 1
  %v686 = vrot.slane %v446, 1
  %v687 = vrot.slane %v450, 1
  %v688 = vrot.slane %v452, 1
  %v689 = vrot.slane %v454, 1
  %v690 = vrot.slane %v456, 1
  %v691 = vrot.slane %v458, 1
  %v692 = vrot.slane %v460, 1
  %v693 = vrot.slane %v462, 1
  %v694 = vrot.slane %v464, 1
  %v695 = vrot.slane %v466, 1
  %v696 = vrot.slane %v468, 1
  %v697 = vrot.slane %v470, 1
  %v698 = vrot.slane %v472, 1
  %v699 = vrot.slane %v474, 1
  %v700 = vrot.slane %v476, 1
  %v701 = vrot.slane %v478, 1
  %v702 = vrot.slane %v419, 1
  %v703 = vrot.slane %v421, 1
  %v704 = vrot.slane %v423, 1
  %v705 = vrot.slane %v425, 1
  %v706 = vrot.slane %v427, 1
  %v707 = vrot.slane %v429, 1
  %v708 = vrot.slane %v431, 1
  %v709 = vrot.slane %v433, 1
  %v710 = vrot.slane %v435, 1
  %v711 = vrot.slane %v437, 1
  %v712 = vrot.slane %v439, 1
  %v713 = vrot.slane %v441, 1
  %v714 = vrot.slane %v443, 1
  %v715 = vrot.slane %v445, 1
  %v716 = vrot.slane %v447, 1
  %v717 = vrot.slane %v451, 1
  %v718 = vrot.slane %v453, 1
  %v719 = vrot.slane %v455, 1
  %v720 = vrot.slane %v457, 1
  %v721 = vrot.slane %v459, 1
  %v722 = vrot.slane %v461, 1
  %v723 = vrot.slane %v463, 1
  %v724 = vrot.slane %v465, 1
  %v725 = vrot.slane %v467, 1
  %v726 = vrot.slane %v469, 1
  %v727 = vrot.slane %v471, 1
  %v728 = vrot.slane %v473, 1
  %v729 = vrot.slane %v475, 1
  %v730 = vrot.slane %v477, 1
  %v731 = vrot.slane %v479, 1
  %vm732 = vcmp.lt.s32.totalorder %v483, 7
  %v733 = vsel %vm732, %v672, %v702
  %v734 = vsel %vm732, %v673, %v703
  %v735 = vsel %vm732, %v674, %v704
  %v736 = vsel %vm732, %v675, %v705
  %v737 = vsel %vm732, %v676, %v706
  %v738 = vsel %vm732, %v677, %v707
  %v739 = vsel %vm732, %v678, %v708
  %v740 = vsel %vm732, %v679, %v709
  %v741 = vsel %vm732, %v680, %v710
  %v742 = vsel %vm732, %v681, %v711
  %v743 = vsel %vm732, %v682, %v712
  %v744 = vsel %vm732, %v683, %v713
  %v745 = vsel %vm732, %v684, %v714
  %v746 = vsel %vm732, %v685, %v715
  %v747 = vsel %vm732, %v686, %v716
  %v748 = vsel %vm732, %v687, %v717
  %v749 = vsel %vm732, %v688, %v718
  %v750 = vsel %vm732, %v689, %v719
  %v751 = vsel %vm732, %v690, %v720
  %v752 = vsel %vm732, %v691, %v721
  %v753 = vsel %vm732, %v692, %v722
  %v754 = vsel %vm732, %v693, %v723
  %v755 = vsel %vm732, %v694, %v724
  %v756 = vsel %vm732, %v695, %v725
  %v757 = vsel %vm732, %v696, %v726
  %v758 = vsel %vm732, %v697, %v727
  %v759 = vsel %vm732, %v698, %v728
  %v760 = vsel %vm732, %v699, %v729
  %v761 = vsel %vm732, %v700, %v730
  %v762 = vsel %vm732, %v701, %v731
  %v763 = vsel %vm732, %v702, %v672
  %v764 = vsel %vm732, %v703, %v673
  %v765 = vsel %vm732, %v704, %v674
  %v766 = vsel %vm732, %v705, %v675
  %v767 = vsel %vm732, %v706, %v676
  %v768 = vsel %vm732, %v707, %v677
  %v769 = vsel %vm732, %v708, %v678
  %v770 = vsel %vm732, %v709, %v679
  %v771 = vsel %vm732, %v710, %v680
  %v772 = vsel %vm732, %v711, %v681
  %v773 = vsel %vm732, %v712, %v682
  %v774 = vsel %vm732, %v713, %v683
  %v775 = vsel %vm732, %v714, %v684
  %v776 = vsel %vm732, %v715, %v685
  %v777 = vsel %vm732, %v716, %v686
  %v778 = vsel %vm732, %v717, %v687
  %v779 = vsel %vm732, %v718, %v688
  %v780 = vsel %vm732, %v719, %v689
  %v781 = vsel %vm732, %v720, %v690
  %v782 = vsel %vm732, %v721, %v691
  %v783 = vsel %vm732, %v722, %v692
  %v784 = vsel %vm732, %v723, %v693
  %v785 = vsel %vm732, %v724, %v694
  %v786 = vsel %vm732, %v725, %v695
  %v787 = vsel %vm732, %v726, %v696
  %v788 = vsel %vm732, %v727, %v697
  %v789 = vsel %vm732, %v728, %v698
  %v790 = vsel %vm732, %v729, %v699
  %v791 = vsel %vm732, %v730, %v700
  %v792 = vsel %vm732, %v731, %v701
  %v793 = vsel %vm670, 0.0, 0.0
  %v794 = vsel %vm671, 0.0, 0.0
  %v795 = vsel %vm670, 0.0, %v733
  %v796 = vsel %vm671, 0.0, %v763
  %v797 = vsel %vm670, 0.0, %v734
  %v798 = vsel %vm671, 0.0, %v764
  %v799 = vsel %vm670, 0.0, %v735
  %v800 = vsel %vm671, 0.0, %v765
  %v801 = vsel %vm670, 0.0, %v736
  %v802 = vsel %vm671, 0.0, %v766
  %v803 = vsel %vm670, 0.0, %v737
  %v804 = vsel %vm671, 0.0, %v767
  %v805 = vsel %vm670, 0.0, %v738
  %v806 = vsel %vm671, 0.0, %v768
  %v807 = vsel %vm670, 0.0, %v739
  %v808 = vsel %vm671, 0.0, %v769
  %v809 = vsel %vm670, 0.0, %v740
  %v810 = vsel %vm671, 0.0, %v770
  %v811 = vsel %vm670, 0.0, %v741
  %v812 = vsel %vm671, 0.0, %v771
  %v813 = vsel %vm670, 0.0, %v742
  %v814 = vsel %vm671, 0.0, %v772
  %v815 = vsel %vm670, 0.0, %v743
  %v816 = vsel %vm671, 0.0, %v773
  %v817 = vsel %vm670, 0.0, %v744
  %v818 = vsel %vm671, 0.0, %v774
  %v819 = vsel %vm670, 0.0, %v745
  %v820 = vsel %vm671, 0.0, %v775
  %v821 = vsel %vm670, 0.0, %v746
  %v822 = vsel %vm671, 0.0, %v776
  %v823 = vsel %vm670, 0.0, %v747
  %v824 = vsel %vm671, 0.0, %v777
  %v825 = vsel %vm670, 0.0, %v748
  %v826 = vsel %vm671, 0.0, %v778
  %v827 = vsel %vm670, 0.0, %v749
  %v828 = vsel %vm671, 0.0, %v779
  %v829 = vsel %vm670, 0.0, %v750
  %v830 = vsel %vm671, 0.0, %v780
  %v831 = vsel %vm670, 0.0, %v751
  %v832 = vsel %vm671, 0.0, %v781
  %v833 = vsel %vm670, 0.0, %v752
  %v834 = vsel %vm671, 0.0, %v782
  %v835 = vsel %vm670, 0.0, %v753
  %v836 = vsel %vm671, 0.0, %v783
  %v837 = vsel %vm670, 0.0, %v754
  %v838 = vsel %vm671, 0.0, %v784
  %v839 = vsel %vm670, 0.0, %v755
  %v840 = vsel %vm671, 0.0, %v785
  %v841 = vsel %vm670, 0.0, %v756
  %v842 = vsel %vm671, 0.0, %v786
  %v843 = vsel %vm670, 0.0, %v757
  %v844 = vsel %vm671, 0.0, %v787
  %v845 = vsel %vm670, 0.0, %v758
  %v846 = vsel %vm671, 0.0, %v788
  %v847 = vsel %vm670, 0.0, %v759
  %v848 = vsel %vm671, 0.0, %v789
  %v849 = vsel %vm670, 0.0, %v760
  %v850 = vsel %vm671, 0.0, %v790
  %v851 = vsel %vm670, 0.0, %v761
  %v852 = vsel %vm671, 0.0, %v791
  %v853 = vsel %vm670, 0.0, %v762
  %v854 = vsel %vm671, 0.0, %v792
  %v855 = vrot.slane %v448, 7
  %v856 = vrot.slane %v480, 7
  %v857 = vrot.slane %v449, 7
  %v858 = vrot.slane %v481, 7
  %v859 = vsel %vm547, %v855, %v857
  %v860 = vsel %vm547, %v856, %v858
  %v861 = vsel %vm547, %v857, %v855
  %v862 = vsel %vm547, %v858, %v856
  %v863 = vsel %vm485, 0.0, %v861
  %v864 = vsel %vm486, 0.0, %v859
  %v865 = vsel %vm485, 0.0, %v862
  %v866 = vsel %vm486, 0.0, %v860
  %v867 = vrot.slane %v448, 1
  %v868 = vrot.slane %v480, 1
  %v869 = vrot.slane %v449, 1
  %v870 = vrot.slane %v481, 1
  %v871 = vsel %vm732, %v867, %v869
  %v872 = vsel %vm732, %v868, %v870
  %v873 = vsel %vm732, %v869, %v867
  %v874 = vsel %vm732, %v870, %v868
  %v875 = vsel %vm670, 0.0, %v871
  %v876 = vsel %vm671, 0.0, %v873
  %v877 = vsel %vm670, 0.0, %v872
  %v878 = vsel %vm671, 0.0, %v874
  %940 = vrot.lane.b32.xlu0 0.0, 4
  %v941 = vpop.permute.xlu0 %940
  %942 = vrot.lane.b32.xlu0 %v418, 4
  %v943 = vpop.permute.xlu0 %942
  %944 = vrot.lane.b32.xlu0 %v419, 4
  %v945 = vpop.permute.xlu0 %944
  %946 = vrot.lane.b32.xlu0 %v420, 4
  %v947 = vpop.permute.xlu0 %946
  %948 = vrot.lane.b32.xlu0 %v421, 4
  %v949 = vpop.permute.xlu0 %948
  %950 = vrot.lane.b32.xlu0 %v422, 4
  %v951 = vpop.permute.xlu0 %950
  %952 = vrot.lane.b32.xlu0 %v423, 4
  %v953 = vpop.permute.xlu0 %952
  %954 = vrot.lane.b32.xlu0 %v424, 4
  %v955 = vpop.permute.xlu0 %954
  %956 = vrot.lane.b32.xlu0 %v425, 4
  %v957 = vpop.permute.xlu0 %956
  %958 = vrot.lane.b32.xlu0 %v426, 4
  %v959 = vpop.permute.xlu0 %958
  %960 = vrot.lane.b32.xlu0 %v427, 4
  %v961 = vpop.permute.xlu0 %960
  %962 = vrot.lane.b32.xlu0 %v428, 4
  %v963 = vpop.permute.xlu0 %962
  %964 = vrot.lane.b32.xlu0 %v429, 4
  %v965 = vpop.permute.xlu0 %964
  %966 = vrot.lane.b32.xlu0 %v430, 4
  %v967 = vpop.permute.xlu0 %966
  %968 = vrot.lane.b32.xlu0 %v431, 4
  %v969 = vpop.permute.xlu0 %968
  %970 = vrot.lane.b32.xlu0 %v432, 4
  %v971 = vpop.permute.xlu0 %970
  %972 = vrot.lane.b32.xlu0 %v433, 4
  %v973 = vpop.permute.xlu0 %972
  %974 = vrot.lane.b32.xlu0 %v434, 4
  %v975 = vpop.permute.xlu0 %974
  %976 = vrot.lane.b32.xlu0 %v435, 4
  %v977 = vpop.permute.xlu0 %976
  %978 = vrot.lane.b32.xlu0 %v436, 4
  %v979 = vpop.permute.xlu0 %978
  %980 = vrot.lane.b32.xlu0 %v437, 4
  %v981 = vpop.permute.xlu0 %980
  %982 = vrot.lane.b32.xlu0 %v438, 4
  %v983 = vpop.permute.xlu0 %982
  %984 = vrot.lane.b32.xlu0 %v439, 4
  %v985 = vpop.permute.xlu0 %984
  %986 = vrot.lane.b32.xlu0 %v440, 4
  %v987 = vpop.permute.xlu0 %986
  %988 = vrot.lane.b32.xlu0 %v441, 4
  %v989 = vpop.permute.xlu0 %988
  %990 = vrot.lane.b32.xlu0 %v442, 4
  %v991 = vpop.permute.xlu0 %990
  %992 = vrot.lane.b32.xlu0 %v443, 4
  %v993 = vpop.permute.xlu0 %992
  %994 = vrot.lane.b32.xlu0 %v444, 4
  %v995 = vpop.permute.xlu0 %994
  %996 = vrot.lane.b32.xlu0 %v445, 4
  %v997 = vpop.permute.xlu0 %996
  %998 = vrot.lane.b32.xlu0 %v446, 4
  %v999 = vpop.permute.xlu0 %998
  %1000 = vrot.lane.b32.xlu0 %v447, 4
  %v1001 = vpop.permute.xlu0 %1000
  %1002 = vrot.lane.b32.xlu0 %v450, 4
  %v1003 = vpop.permute.xlu0 %1002
  %1004 = vrot.lane.b32.xlu0 %v451, 4
  %v1005 = vpop.permute.xlu0 %1004
  %1006 = vrot.lane.b32.xlu0 %v452, 4
  %v1007 = vpop.permute.xlu0 %1006
  %1008 = vrot.lane.b32.xlu0 %v453, 4
  %v1009 = vpop.permute.xlu0 %1008
  %1010 = vrot.lane.b32.xlu0 %v454, 4
  %v1011 = vpop.permute.xlu0 %1010
  %1012 = vrot.lane.b32.xlu0 %v455, 4
  %v1013 = vpop.permute.xlu0 %1012
  %1014 = vrot.lane.b32.xlu0 %v456, 4
  %v1015 = vpop.permute.xlu0 %1014
  %1016 = vrot.lane.b32.xlu0 %v457, 4
  %v1017 = vpop.permute.xlu0 %1016
  %1018 = vrot.lane.b32.xlu0 %v458, 4
  %v1019 = vpop.permute.xlu0 %1018
  %1020 = vrot.lane.b32.xlu0 %v459, 4
  %v1021 = vpop.permute.xlu0 %1020
  %1022 = vrot.lane.b32.xlu0 %v460, 4
  %v1023 = vpop.permute.xlu0 %1022
  %1024 = vrot.lane.b32.xlu0 %v461, 4
  %v1025 = vpop.permute.xlu0 %1024
  %1026 = vrot.lane.b32.xlu0 %v462, 4
  %v1027 = vpop.permute.xlu0 %1026
  %1028 = vrot.lane.b32.xlu0 %v463, 4
  %v1029 = vpop.permute.xlu0 %1028
  %1030 = vrot.lane.b32.xlu0 %v464, 4
  %v1031 = vpop.permute.xlu0 %1030
  %1032 = vrot.lane.b32.xlu0 %v465, 4
  %v1033 = vpop.permute.xlu0 %1032
  %1034 = vrot.lane.b32.xlu0 %v466, 4
  %v1035 = vpop.permute.xlu0 %1034
  %1036 = vrot.lane.b32.xlu0 %v467, 4
  %v1037 = vpop.permute.xlu0 %1036
  %1038 = vrot.lane.b32.xlu0 %v468, 4
  %v1039 = vpop.permute.xlu0 %1038
  %1040 = vrot.lane.b32.xlu0 %v469, 4
  %v1041 = vpop.permute.xlu0 %1040
  %1042 = vrot.lane.b32.xlu0 %v470, 4
  %v1043 = vpop.permute.xlu0 %1042
  %1044 = vrot.lane.b32.xlu0 %v471, 4
  %v1045 = vpop.permute.xlu0 %1044
  %1046 = vrot.lane.b32.xlu0 %v472, 4
  %v1047 = vpop.permute.xlu0 %1046
  %1048 = vrot.lane.b32.xlu0 %v473, 4
  %v1049 = vpop.permute.xlu0 %1048
  %1050 = vrot.lane.b32.xlu0 %v474, 4
  %v1051 = vpop.permute.xlu0 %1050
  %1052 = vrot.lane.b32.xlu0 %v475, 4
  %v1053 = vpop.permute.xlu0 %1052
  %1054 = vrot.lane.b32.xlu0 %v476, 4
  %v1055 = vpop.permute.xlu0 %1054
  %1056 = vrot.lane.b32.xlu0 %v477, 4
  %v1057 = vpop.permute.xlu0 %1056
  %1058 = vrot.lane.b32.xlu0 %v478, 4
  %v1059 = vpop.permute.xlu0 %1058
  %1060 = vrot.lane.b32.xlu0 %v479, 4
  %v1061 = vpop.permute.xlu0 %1060
  %1185 = vrot.lane.b32.xlu0 %v793, 8
  %v1186 = vpop.permute.xlu0 %1185
  %1187 = vrot.lane.b32.xlu0 %v794, 8
  %v1188 = vpop.permute.xlu0 %1187
  %1189 = vrot.lane.b32.xlu0 %v795, 8
  %v1190 = vpop.permute.xlu0 %1189
  %1191 = vrot.lane.b32.xlu0 %v796, 8
  %v1192 = vpop.permute.xlu0 %1191
  %1193 = vrot.lane.b32.xlu0 %v797, 8
  %v1194 = vpop.permute.xlu0 %1193
  %1195 = vrot.lane.b32.xlu0 %v798, 8
  %v1196 = vpop.permute.xlu0 %1195
  %1197 = vrot.lane.b32.xlu0 %v799, 8
  %v1198 = vpop.permute.xlu0 %1197
  %1199 = vrot.lane.b32.xlu0 %v800, 8
  %v1200 = vpop.permute.xlu0 %1199
  %1201 = vrot.lane.b32.xlu0 %v801, 8
  %v1202 = vpop.permute.xlu0 %1201
  %1203 = vrot.lane.b32.xlu0 %v802, 8
  %v1204 = vpop.permute.xlu0 %1203
  %1205 = vrot.lane.b32.xlu0 %v803, 8
  %v1206 = vpop.permute.xlu0 %1205
  %1207 = vrot.lane.b32.xlu0 %v804, 8
  %v1208 = vpop.permute.xlu0 %1207
  %1209 = vrot.lane.b32.xlu0 %v805, 8
  %v1210 = vpop.permute.xlu0 %1209
  %1211 = vrot.lane.b32.xlu0 %v806, 8
  %v1212 = vpop.permute.xlu0 %1211
  %1213 = vrot.lane.b32.xlu0 %v807, 8
  %v1214 = vpop.permute.xlu0 %1213
  %1215 = vrot.lane.b32.xlu0 %v808, 8
  %v1216 = vpop.permute.xlu0 %1215
  %1217 = vrot.lane.b32.xlu0 %v809, 8
  %v1218 = vpop.permute.xlu0 %1217
  %1219 = vrot.lane.b32.xlu0 %v810, 8
  %v1220 = vpop.permute.xlu0 %1219
  %1221 = vrot.lane.b32.xlu0 %v811, 8
  %v1222 = vpop.permute.xlu0 %1221
  %1223 = vrot.lane.b32.xlu0 %v812, 8
  %v1224 = vpop.permute.xlu0 %1223
  %1225 = vrot.lane.b32.xlu0 %v813, 8
  %v1226 = vpop.permute.xlu0 %1225
  %1227 = vrot.lane.b32.xlu0 %v814, 8
  %v1228 = vpop.permute.xlu0 %1227
  %1229 = vrot.lane.b32.xlu0 %v815, 8
  %v1230 = vpop.permute.xlu0 %1229
  %1231 = vrot.lane.b32.xlu0 %v816, 8
  %v1232 = vpop.permute.xlu0 %1231
  %1233 = vrot.lane.b32.xlu0 %v817, 8
  %v1234 = vpop.permute.xlu0 %1233
  %1235 = vrot.lane.b32.xlu0 %v818, 8
  %v1236 = vpop.permute.xlu0 %1235
  %1237 = vrot.lane.b32.xlu0 %v819, 8
  %v1238 = vpop.permute.xlu0 %1237
  %1239 = vrot.lane.b32.xlu0 %v820, 8
  %v1240 = vpop.permute.xlu0 %1239
  %1241 = vrot.lane.b32.xlu0 %v821, 8
  %v1242 = vpop.permute.xlu0 %1241
  %1243 = vrot.lane.b32.xlu0 %v822, 8
  %v1244 = vpop.permute.xlu0 %1243
  %1245 = vrot.lane.b32.xlu0 %v823, 8
  %v1246 = vpop.permute.xlu0 %1245
  %1247 = vrot.lane.b32.xlu0 %v824, 8
  %v1248 = vpop.permute.xlu0 %1247
  %1249 = vrot.lane.b32.xlu0 %v825, 8
  %v1250 = vpop.permute.xlu0 %1249
  %1251 = vrot.lane.b32.xlu0 %v826, 8
  %v1252 = vpop.permute.xlu0 %1251
  %1253 = vrot.lane.b32.xlu0 %v827, 8
  %v1254 = vpop.permute.xlu0 %1253
  %1255 = vrot.lane.b32.xlu0 %v828, 8
  %v1256 = vpop.permute.xlu0 %1255
  %1257 = vrot.lane.b32.xlu0 %v829, 8
  %v1258 = vpop.permute.xlu0 %1257
  %1259 = vrot.lane.b32.xlu0 %v830, 8
  %v1260 = vpop.permute.xlu0 %1259
  %1261 = vrot.lane.b32.xlu0 %v831, 8
  %v1262 = vpop.permute.xlu0 %1261
  %1263 = vrot.lane.b32.xlu0 %v832, 8
  %v1264 = vpop.permute.xlu0 %1263
  %1265 = vrot.lane.b32.xlu0 %v833, 8
  %v1266 = vpop.permute.xlu0 %1265
  %1267 = vrot.lane.b32.xlu0 %v834, 8
  %v1268 = vpop.permute.xlu0 %1267
  %1269 = vrot.lane.b32.xlu0 %v835, 8
  %v1270 = vpop.permute.xlu0 %1269
  %1271 = vrot.lane.b32.xlu0 %v836, 8
  %v1272 = vpop.permute.xlu0 %1271
  %1273 = vrot.lane.b32.xlu0 %v837, 8
  %v1274 = vpop.permute.xlu0 %1273
  %1275 = vrot.lane.b32.xlu0 %v838, 8
  %v1276 = vpop.permute.xlu0 %1275
  %1277 = vrot.lane.b32.xlu0 %v839, 8
  %v1278 = vpop.permute.xlu0 %1277
  %1279 = vrot.lane.b32.xlu0 %v840, 8
  %v1280 = vpop.permute.xlu0 %1279
  %1281 = vrot.lane.b32.xlu0 %v841, 8
  %v1282 = vpop.permute.xlu0 %1281
  %1283 = vrot.lane.b32.xlu0 %v842, 8
  %v1284 = vpop.permute.xlu0 %1283
  %1285 = vrot.lane.b32.xlu0 %v843, 8
  %v1286 = vpop.permute.xlu0 %1285
  %1287 = vrot.lane.b32.xlu0 %v844, 8
  %v1288 = vpop.permute.xlu0 %1287
  %1289 = vrot.lane.b32.xlu0 %v845, 8
  %v1290 = vpop.permute.xlu0 %1289
  %1291 = vrot.lane.b32.xlu0 %v846, 8
  %v1292 = vpop.permute.xlu0 %1291
  %1293 = vrot.lane.b32.xlu0 %v847, 8
  %v1294 = vpop.permute.xlu0 %1293
  %1295 = vrot.lane.b32.xlu0 %v848, 8
  %v1296 = vpop.permute.xlu0 %1295
  %1297 = vrot.lane.b32.xlu0 %v849, 8
  %v1298 = vpop.permute.xlu0 %1297
  %1299 = vrot.lane.b32.xlu0 %v850, 8
  %v1300 = vpop.permute.xlu0 %1299
  %1301 = vrot.lane.b32.xlu0 %v851, 8
  %v1302 = vpop.permute.xlu0 %1301
  %1303 = vrot.lane.b32.xlu0 %v852, 8
  %v1304 = vpop.permute.xlu0 %1303
  %1305 = vrot.lane.b32.xlu0 %v853, 8
  %v1306 = vpop.permute.xlu0 %1305
  %1307 = vrot.lane.b32.xlu0 %v854, 8
  %v1308 = vpop.permute.xlu0 %1307
  %1435 = vrot.lane.b32.xlu0 %v610, 12
  %v1436 = vpop.permute.xlu0 %1435
  %1437 = vrot.lane.b32.xlu0 %v611, 12
  %v1438 = vpop.permute.xlu0 %1437
  %1439 = vrot.lane.b32.xlu0 %v612, 12
  %v1440 = vpop.permute.xlu0 %1439
  %1441 = vrot.lane.b32.xlu0 %v613, 12
  %v1442 = vpop.permute.xlu0 %1441
  %1443 = vrot.lane.b32.xlu0 %v614, 12
  %v1444 = vpop.permute.xlu0 %1443
  %1445 = vrot.lane.b32.xlu0 %v615, 12
  %v1446 = vpop.permute.xlu0 %1445
  %1447 = vrot.lane.b32.xlu0 %v616, 12
  %v1448 = vpop.permute.xlu0 %1447
  %1449 = vrot.lane.b32.xlu0 %v617, 12
  %v1450 = vpop.permute.xlu0 %1449
  %1451 = vrot.lane.b32.xlu0 %v618, 12
  %v1452 = vpop.permute.xlu0 %1451
  %1453 = vrot.lane.b32.xlu0 %v619, 12
  %v1454 = vpop.permute.xlu0 %1453
  %1455 = vrot.lane.b32.xlu0 %v620, 12
  %v1456 = vpop.permute.xlu0 %1455
  %1457 = vrot.lane.b32.xlu0 %v621, 12
  %v1458 = vpop.permute.xlu0 %1457
  %1459 = vrot.lane.b32.xlu0 %v622, 12
  %v1460 = vpop.permute.xlu0 %1459
  %1461 = vrot.lane.b32.xlu0 %v623, 12
  %v1462 = vpop.permute.xlu0 %1461
  %1463 = vrot.lane.b32.xlu0 %v624, 12
  %v1464 = vpop.permute.xlu0 %1463
  %1465 = vrot.lane.b32.xlu0 %v625, 12
  %v1466 = vpop.permute.xlu0 %1465
  %1467 = vrot.lane.b32.xlu0 %v626, 12
  %v1468 = vpop.permute.xlu0 %1467
  %1469 = vrot.lane.b32.xlu0 %v627, 12
  %v1470 = vpop.permute.xlu0 %1469
  %1471 = vrot.lane.b32.xlu0 %v628, 12
  %v1472 = vpop.permute.xlu0 %1471
  %1473 = vrot.lane.b32.xlu0 %v629, 12
  %v1474 = vpop.permute.xlu0 %1473
  %1475 = vrot.lane.b32.xlu0 %v630, 12
  %v1476 = vpop.permute.xlu0 %1475
  %1477 = vrot.lane.b32.xlu0 %v631, 12
  %v1478 = vpop.permute.xlu0 %1477
  %1479 = vrot.lane.b32.xlu0 %v632, 12
  %v1480 = vpop.permute.xlu0 %1479
  %1481 = vrot.lane.b32.xlu0 %v633, 12
  %v1482 = vpop.permute.xlu0 %1481
  %1483 = vrot.lane.b32.xlu0 %v634, 12
  %v1484 = vpop.permute.xlu0 %1483
  %1485 = vrot.lane.b32.xlu0 %v635, 12
  %v1486 = vpop.permute.xlu0 %1485
  %1487 = vrot.lane.b32.xlu0 %v636, 12
  %v1488 = vpop.permute.xlu0 %1487
  %1489 = vrot.lane.b32.xlu0 %v637, 12
  %v1490 = vpop.permute.xlu0 %1489
  %1491 = vrot.lane.b32.xlu0 %v638, 12
  %v1492 = vpop.permute.xlu0 %1491
  %1493 = vrot.lane.b32.xlu0 %v639, 12
  %v1494 = vpop.permute.xlu0 %1493
  %1495 = vrot.lane.b32.xlu0 %v863, 12
  %v1496 = vpop.permute.xlu0 %1495
  %1497 = vrot.lane.b32.xlu0 %v864, 12
  %v1498 = vpop.permute.xlu0 %1497
  %1499 = vrot.lane.b32.xlu0 %v640, 12
  %v1500 = vpop.permute.xlu0 %1499
  %1501 = vrot.lane.b32.xlu0 %v641, 12
  %v1502 = vpop.permute.xlu0 %1501
  %1503 = vrot.lane.b32.xlu0 %v642, 12
  %v1504 = vpop.permute.xlu0 %1503
  %1505 = vrot.lane.b32.xlu0 %v643, 12
  %v1506 = vpop.permute.xlu0 %1505
  %1507 = vrot.lane.b32.xlu0 %v644, 12
  %v1508 = vpop.permute.xlu0 %1507
  %1509 = vrot.lane.b32.xlu0 %v645, 12
  %v1510 = vpop.permute.xlu0 %1509
  %1511 = vrot.lane.b32.xlu0 %v646, 12
  %v1512 = vpop.permute.xlu0 %1511
  %1513 = vrot.lane.b32.xlu0 %v647, 12
  %v1514 = vpop.permute.xlu0 %1513
  %1515 = vrot.lane.b32.xlu0 %v648, 12
  %v1516 = vpop.permute.xlu0 %1515
  %1517 = vrot.lane.b32.xlu0 %v649, 12
  %v1518 = vpop.permute.xlu0 %1517
  %1519 = vrot.lane.b32.xlu0 %v650, 12
  %v1520 = vpop.permute.xlu0 %1519
  %1521 = vrot.lane.b32.xlu0 %v651, 12
  %v1522 = vpop.permute.xlu0 %1521
  %1523 = vrot.lane.b32.xlu0 %v652, 12
  %v1524 = vpop.permute.xlu0 %1523
  %1525 = vrot.lane.b32.xlu0 %v653, 12
  %v1526 = vpop.permute.xlu0 %1525
  %1527 = vrot.lane.b32.xlu0 %v654, 12
  %v1528 = vpop.permute.xlu0 %1527
  %1529 = vrot.lane.b32.xlu0 %v655, 12
  %v1530 = vpop.permute.xlu0 %1529
  %1531 = vrot.lane.b32.xlu0 %v656, 12
  %v1532 = vpop.permute.xlu0 %1531
  %1533 = vrot.lane.b32.xlu0 %v657, 12
  %v1534 = vpop.permute.xlu0 %1533
  %1535 = vrot.lane.b32.xlu0 %v658, 12
  %v1536 = vpop.permute.xlu0 %1535
  %1537 = vrot.lane.b32.xlu0 %v659, 12
  %v1538 = vpop.permute.xlu0 %1537
  %1539 = vrot.lane.b32.xlu0 %v660, 12
  %v1540 = vpop.permute.xlu0 %1539
  %1541 = vrot.lane.b32.xlu0 %v661, 12
  %v1542 = vpop.permute.xlu0 %1541
  %1543 = vrot.lane.b32.xlu0 %v662, 12
  %v1544 = vpop.permute.xlu0 %1543
  %1545 = vrot.lane.b32.xlu0 %v663, 12
  %v1546 = vpop.permute.xlu0 %1545
  %1547 = vrot.lane.b32.xlu0 %v664, 12
  %v1548 = vpop.permute.xlu0 %1547
  %1549 = vrot.lane.b32.xlu0 %v665, 12
  %v1550 = vpop.permute.xlu0 %1549
  %1551 = vrot.lane.b32.xlu0 %v666, 12
  %v1552 = vpop.permute.xlu0 %1551
  %1553 = vrot.lane.b32.xlu0 %v667, 12
  %v1554 = vpop.permute.xlu0 %1553
  %1555 = vrot.lane.b32.xlu0 %v668, 12
  %v1556 = vpop.permute.xlu0 %1555
  %1557 = vrot.lane.b32.xlu0 %v669, 12
  %v1558 = vpop.permute.xlu0 %1557
  %1559 = vrot.lane.b32.xlu0 %v865, 12
  %v1560 = vpop.permute.xlu0 %1559
  %1561 = vrot.lane.b32.xlu0 %v866, 12
  %v1562 = vpop.permute.xlu0 %1561
  %1631 = vrot.lane.b32.xlu0 %v418, 16
  %v1632 = vpop.permute.xlu0 %1631
  %1633 = vrot.lane.b32.xlu0 %v419, 16
  %v1634 = vpop.permute.xlu0 %1633
  %1635 = vrot.lane.b32.xlu0 %v420, 16
  %v1636 = vpop.permute.xlu0 %1635
  %1637 = vrot.lane.b32.xlu0 %v421, 16
  %v1638 = vpop.permute.xlu0 %1637
  %1639 = vrot.lane.b32.xlu0 %v422, 16
  %v1640 = vpop.permute.xlu0 %1639
  %1641 = vrot.lane.b32.xlu0 %v423, 16
  %v1642 = vpop.permute.xlu0 %1641
  %1643 = vrot.lane.b32.xlu0 %v424, 16
  %v1644 = vpop.permute.xlu0 %1643
  %1645 = vrot.lane.b32.xlu0 %v425, 16
  %v1646 = vpop.permute.xlu0 %1645
  %1647 = vrot.lane.b32.xlu0 %v426, 16
  %v1648 = vpop.permute.xlu0 %1647
  %1649 = vrot.lane.b32.xlu0 %v427, 16
  %v1650 = vpop.permute.xlu0 %1649
  %1651 = vrot.lane.b32.xlu0 %v428, 16
  %v1652 = vpop.permute.xlu0 %1651
  %1653 = vrot.lane.b32.xlu0 %v429, 16
  %v1654 = vpop.permute.xlu0 %1653
  %1655 = vrot.lane.b32.xlu0 %v430, 16
  %v1656 = vpop.permute.xlu0 %1655
  %1657 = vrot.lane.b32.xlu0 %v431, 16
  %v1658 = vpop.permute.xlu0 %1657
  %1659 = vrot.lane.b32.xlu0 %v432, 16
  %v1660 = vpop.permute.xlu0 %1659
  %1661 = vrot.lane.b32.xlu0 %v433, 16
  %v1662 = vpop.permute.xlu0 %1661
  %1663 = vrot.lane.b32.xlu0 %v434, 16
  %v1664 = vpop.permute.xlu0 %1663
  %1665 = vrot.lane.b32.xlu0 %v435, 16
  %v1666 = vpop.permute.xlu0 %1665
  %1667 = vrot.lane.b32.xlu0 %v436, 16
  %v1668 = vpop.permute.xlu0 %1667
  %1669 = vrot.lane.b32.xlu0 %v437, 16
  %v1670 = vpop.permute.xlu0 %1669
  %1671 = vrot.lane.b32.xlu0 %v438, 16
  %v1672 = vpop.permute.xlu0 %1671
  %1673 = vrot.lane.b32.xlu0 %v439, 16
  %v1674 = vpop.permute.xlu0 %1673
  %1675 = vrot.lane.b32.xlu0 %v440, 16
  %v1676 = vpop.permute.xlu0 %1675
  %1677 = vrot.lane.b32.xlu0 %v441, 16
  %v1678 = vpop.permute.xlu0 %1677
  %1679 = vrot.lane.b32.xlu0 %v442, 16
  %v1680 = vpop.permute.xlu0 %1679
  %1681 = vrot.lane.b32.xlu0 %v443, 16
  %v1682 = vpop.permute.xlu0 %1681
  %1683 = vrot.lane.b32.xlu0 %v444, 16
  %v1684 = vpop.permute.xlu0 %1683
  %1685 = vrot.lane.b32.xlu0 %v445, 16
  %v1686 = vpop.permute.xlu0 %1685
  %1687 = vrot.lane.b32.xlu0 %v446, 16
  %v1688 = vpop.permute.xlu0 %1687
  %1689 = vrot.lane.b32.xlu0 %v447, 16
  %v1690 = vpop.permute.xlu0 %1689
  %1691 = vrot.lane.b32.xlu0 %v448, 16
  %v1692 = vpop.permute.xlu0 %1691
  %1693 = vrot.lane.b32.xlu0 %v449, 16
  %v1694 = vpop.permute.xlu0 %1693
  %1695 = vrot.lane.b32.xlu0 %v450, 16
  %v1696 = vpop.permute.xlu0 %1695
  %1697 = vrot.lane.b32.xlu0 %v451, 16
  %v1698 = vpop.permute.xlu0 %1697
  %1699 = vrot.lane.b32.xlu0 %v452, 16
  %v1700 = vpop.permute.xlu0 %1699
  %1701 = vrot.lane.b32.xlu0 %v453, 16
  %v1702 = vpop.permute.xlu0 %1701
  %1703 = vrot.lane.b32.xlu0 %v454, 16
  %v1704 = vpop.permute.xlu0 %1703
  %1705 = vrot.lane.b32.xlu0 %v455, 16
  %v1706 = vpop.permute.xlu0 %1705
  %1707 = vrot.lane.b32.xlu0 %v456, 16
  %v1708 = vpop.permute.xlu0 %1707
  %1709 = vrot.lane.b32.xlu0 %v457, 16
  %v1710 = vpop.permute.xlu0 %1709
  %1711 = vrot.lane.b32.xlu0 %v458, 16
  %v1712 = vpop.permute.xlu0 %1711
  %1713 = vrot.lane.b32.xlu0 %v459, 16
  %v1714 = vpop.permute.xlu0 %1713
  %1715 = vrot.lane.b32.xlu0 %v460, 16
  %v1716 = vpop.permute.xlu0 %1715
  %1717 = vrot.lane.b32.xlu0 %v461, 16
  %v1718 = vpop.permute.xlu0 %1717
  %1719 = vrot.lane.b32.xlu0 %v462, 16
  %v1720 = vpop.permute.xlu0 %1719
  %1721 = vrot.lane.b32.xlu0 %v463, 16
  %v1722 = vpop.permute.xlu0 %1721
  %1723 = vrot.lane.b32.xlu0 %v464, 16
  %v1724 = vpop.permute.xlu0 %1723
  %1725 = vrot.lane.b32.xlu0 %v465, 16
  %v1726 = vpop.permute.xlu0 %1725
  %1727 = vrot.lane.b32.xlu0 %v466, 16
  %v1728 = vpop.permute.xlu0 %1727
  %1729 = vrot.lane.b32.xlu0 %v467, 16
  %v1730 = vpop.permute.xlu0 %1729
  %1731 = vrot.lane.b32.xlu0 %v468, 16
  %v1732 = vpop.permute.xlu0 %1731
  %1733 = vrot.lane.b32.xlu0 %v469, 16
  %v1734 = vpop.permute.xlu0 %1733
  %1735 = vrot.lane.b32.xlu0 %v470, 16
  %v1736 = vpop.permute.xlu0 %1735
  %1737 = vrot.lane.b32.xlu0 %v471, 16
  %v1738 = vpop.permute.xlu0 %1737
  %1739 = vrot.lane.b32.xlu0 %v472, 16
  %v1740 = vpop.permute.xlu0 %1739
  %1741 = vrot.lane.b32.xlu0 %v473, 16
  %v1742 = vpop.permute.xlu0 %1741
  %1743 = vrot.lane.b32.xlu0 %v474, 16
  %v1744 = vpop.permute.xlu0 %1743
  %1745 = vrot.lane.b32.xlu0 %v475, 16
  %v1746 = vpop.permute.xlu0 %1745
  %1747 = vrot.lane.b32.xlu0 %v476, 16
  %v1748 = vpop.permute.xlu0 %1747
  %1749 = vrot.lane.b32.xlu0 %v477, 16
  %v1750 = vpop.permute.xlu0 %1749
  %1751 = vrot.lane.b32.xlu0 %v478, 16
  %v1752 = vpop.permute.xlu0 %1751
  %1753 = vrot.lane.b32.xlu0 %v479, 16
  %v1754 = vpop.permute.xlu0 %1753
  %1755 = vrot.lane.b32.xlu0 %v480, 16
  %v1756 = vpop.permute.xlu0 %1755
  %1757 = vrot.lane.b32.xlu0 %v481, 16
  %v1758 = vpop.permute.xlu0 %1757
  %1827 = vrot.lane.b32.xlu0 %v795, 20
  %v1828 = vpop.permute.xlu0 %1827
  %1829 = vrot.lane.b32.xlu0 %v796, 20
  %v1830 = vpop.permute.xlu0 %1829
  %1831 = vrot.lane.b32.xlu0 %v797, 20
  %v1832 = vpop.permute.xlu0 %1831
  %1833 = vrot.lane.b32.xlu0 %v798, 20
  %v1834 = vpop.permute.xlu0 %1833
  %1835 = vrot.lane.b32.xlu0 %v799, 20
  %v1836 = vpop.permute.xlu0 %1835
  %1837 = vrot.lane.b32.xlu0 %v800, 20
  %v1838 = vpop.permute.xlu0 %1837
  %1839 = vrot.lane.b32.xlu0 %v801, 20
  %v1840 = vpop.permute.xlu0 %1839
  %1841 = vrot.lane.b32.xlu0 %v802, 20
  %v1842 = vpop.permute.xlu0 %1841
  %1843 = vrot.lane.b32.xlu0 %v803, 20
  %v1844 = vpop.permute.xlu0 %1843
  %1845 = vrot.lane.b32.xlu0 %v804, 20
  %v1846 = vpop.permute.xlu0 %1845
  %1847 = vrot.lane.b32.xlu0 %v805, 20
  %v1848 = vpop.permute.xlu0 %1847
  %1849 = vrot.lane.b32.xlu0 %v806, 20
  %v1850 = vpop.permute.xlu0 %1849
  %1851 = vrot.lane.b32.xlu0 %v807, 20
  %v1852 = vpop.permute.xlu0 %1851
  %1853 = vrot.lane.b32.xlu0 %v808, 20
  %v1854 = vpop.permute.xlu0 %1853
  %1855 = vrot.lane.b32.xlu0 %v809, 20
  %v1856 = vpop.permute.xlu0 %1855
  %1857 = vrot.lane.b32.xlu0 %v810, 20
  %v1858 = vpop.permute.xlu0 %1857
  %1859 = vrot.lane.b32.xlu0 %v811, 20
  %v1860 = vpop.permute.xlu0 %1859
  %1861 = vrot.lane.b32.xlu0 %v812, 20
  %v1862 = vpop.permute.xlu0 %1861
  %1863 = vrot.lane.b32.xlu0 %v813, 20
  %v1864 = vpop.permute.xlu0 %1863
  %1865 = vrot.lane.b32.xlu0 %v814, 20
  %v1866 = vpop.permute.xlu0 %1865
  %1867 = vrot.lane.b32.xlu0 %v815, 20
  %v1868 = vpop.permute.xlu0 %1867
  %1869 = vrot.lane.b32.xlu0 %v816, 20
  %v1870 = vpop.permute.xlu0 %1869
  %1871 = vrot.lane.b32.xlu0 %v817, 20
  %v1872 = vpop.permute.xlu0 %1871
  %1873 = vrot.lane.b32.xlu0 %v818, 20
  %v1874 = vpop.permute.xlu0 %1873
  %1875 = vrot.lane.b32.xlu0 %v819, 20
  %v1876 = vpop.permute.xlu0 %1875
  %1877 = vrot.lane.b32.xlu0 %v820, 20
  %v1878 = vpop.permute.xlu0 %1877
  %1879 = vrot.lane.b32.xlu0 %v821, 20
  %v1880 = vpop.permute.xlu0 %1879
  %1881 = vrot.lane.b32.xlu0 %v822, 20
  %v1882 = vpop.permute.xlu0 %1881
  %1883 = vrot.lane.b32.xlu0 %v823, 20
  %v1884 = vpop.permute.xlu0 %1883
  %1885 = vrot.lane.b32.xlu0 %v824, 20
  %v1886 = vpop.permute.xlu0 %1885
  %1887 = vrot.lane.b32.xlu0 %v875, 20
  %v1888 = vpop.permute.xlu0 %1887
  %1889 = vrot.lane.b32.xlu0 %v876, 20
  %v1890 = vpop.permute.xlu0 %1889
  %1891 = vrot.lane.b32.xlu0 %v825, 20
  %v1892 = vpop.permute.xlu0 %1891
  %1893 = vrot.lane.b32.xlu0 %v826, 20
  %v1894 = vpop.permute.xlu0 %1893
  %1895 = vrot.lane.b32.xlu0 %v827, 20
  %v1896 = vpop.permute.xlu0 %1895
  %1897 = vrot.lane.b32.xlu0 %v828, 20
  %v1898 = vpop.permute.xlu0 %1897
  %1899 = vrot.lane.b32.xlu0 %v829, 20
  %v1900 = vpop.permute.xlu0 %1899
  %1901 = vrot.lane.b32.xlu0 %v830, 20
  %v1902 = vpop.permute.xlu0 %1901
  %1903 = vrot.lane.b32.xlu0 %v831, 20
  %v1904 = vpop.permute.xlu0 %1903
  %1905 = vrot.lane.b32.xlu0 %v832, 20
  %v1906 = vpop.permute.xlu0 %1905
  %1907 = vrot.lane.b32.xlu0 %v833, 20
  %v1908 = vpop.permute.xlu0 %1907
  %1909 = vrot.lane.b32.xlu0 %v834, 20
  %v1910 = vpop.permute.xlu0 %1909
  %1911 = vrot.lane.b32.xlu0 %v835, 20
  %v1912 = vpop.permute.xlu0 %1911
  %1913 = vrot.lane.b32.xlu0 %v836, 20
  %v1914 = vpop.permute.xlu0 %1913
  %1915 = vrot.lane.b32.xlu0 %v837, 20
  %v1916 = vpop.permute.xlu0 %1915
  %1917 = vrot.lane.b32.xlu0 %v838, 20
  %v1918 = vpop.permute.xlu0 %1917
  %1919 = vrot.lane.b32.xlu0 %v839, 20
  %v1920 = vpop.permute.xlu0 %1919
  %1921 = vrot.lane.b32.xlu0 %v840, 20
  %v1922 = vpop.permute.xlu0 %1921
  %1923 = vrot.lane.b32.xlu0 %v841, 20
  %v1924 = vpop.permute.xlu0 %1923
  %1925 = vrot.lane.b32.xlu0 %v842, 20
  %v1926 = vpop.permute.xlu0 %1925
  %1927 = vrot.lane.b32.xlu0 %v843, 20
  %v1928 = vpop.permute.xlu0 %1927
  %1929 = vrot.lane.b32.xlu0 %v844, 20
  %v1930 = vpop.permute.xlu0 %1929
  %1931 = vrot.lane.b32.xlu0 %v845, 20
  %v1932 = vpop.permute.xlu0 %1931
  %1933 = vrot.lane.b32.xlu0 %v846, 20
  %v1934 = vpop.permute.xlu0 %1933
  %1935 = vrot.lane.b32.xlu0 %v847, 20
  %v1936 = vpop.permute.xlu0 %1935
  %1937 = vrot.lane.b32.xlu0 %v848, 20
  %v1938 = vpop.permute.xlu0 %1937
  %1939 = vrot.lane.b32.xlu0 %v849, 20
  %v1940 = vpop.permute.xlu0 %1939
  %1941 = vrot.lane.b32.xlu0 %v850, 20
  %v1942 = vpop.permute.xlu0 %1941
  %1943 = vrot.lane.b32.xlu0 %v851, 20
  %v1944 = vpop.permute.xlu0 %1943
  %1945 = vrot.lane.b32.xlu0 %v852, 20
  %v1946 = vpop.permute.xlu0 %1945
  %1947 = vrot.lane.b32.xlu0 %v853, 20
  %v1948 = vpop.permute.xlu0 %1947
  %1949 = vrot.lane.b32.xlu0 %v854, 20
  %v1950 = vpop.permute.xlu0 %1949
  %1951 = vrot.lane.b32.xlu0 %v877, 20
  %v1952 = vpop.permute.xlu0 %1951
  %1953 = vrot.lane.b32.xlu0 %v878, 20
  %v1954 = vpop.permute.xlu0 %1953
  %2021 = vrot.lane.b32.xlu0 %v612, 24
  %v2022 = vpop.permute.xlu0 %2021
  %2023 = vrot.lane.b32.xlu0 %v613, 24
  %v2024 = vpop.permute.xlu0 %2023
  %2025 = vrot.lane.b32.xlu0 %v614, 24
  %v2026 = vpop.permute.xlu0 %2025
  %2027 = vrot.lane.b32.xlu0 %v615, 24
  %v2028 = vpop.permute.xlu0 %2027
  %2029 = vrot.lane.b32.xlu0 %v616, 24
  %v2030 = vpop.permute.xlu0 %2029
  %2031 = vrot.lane.b32.xlu0 %v617, 24
  %v2032 = vpop.permute.xlu0 %2031
  %2033 = vrot.lane.b32.xlu0 %v618, 24
  %v2034 = vpop.permute.xlu0 %2033
  %2035 = vrot.lane.b32.xlu0 %v619, 24
  %v2036 = vpop.permute.xlu0 %2035
  %2037 = vrot.lane.b32.xlu0 %v620, 24
  %v2038 = vpop.permute.xlu0 %2037
  %2039 = vrot.lane.b32.xlu0 %v621, 24
  %v2040 = vpop.permute.xlu0 %2039
  %2041 = vrot.lane.b32.xlu0 %v622, 24
  %v2042 = vpop.permute.xlu0 %2041
  %2043 = vrot.lane.b32.xlu0 %v623, 24
  %v2044 = vpop.permute.xlu0 %2043
  %2045 = vrot.lane.b32.xlu0 %v624, 24
  %v2046 = vpop.permute.xlu0 %2045
  %2047 = vrot.lane.b32.xlu0 %v625, 24
  %v2048 = vpop.permute.xlu0 %2047
  %2049 = vrot.lane.b32.xlu0 %v626, 24
  %v2050 = vpop.permute.xlu0 %2049
  %2051 = vrot.lane.b32.xlu0 %v627, 24
  %v2052 = vpop.permute.xlu0 %2051
  %2053 = vrot.lane.b32.xlu0 %v628, 24
  %v2054 = vpop.permute.xlu0 %2053
  %2055 = vrot.lane.b32.xlu0 %v629, 24
  %v2056 = vpop.permute.xlu0 %2055
  %2057 = vrot.lane.b32.xlu0 %v630, 24
  %v2058 = vpop.permute.xlu0 %2057
  %2059 = vrot.lane.b32.xlu0 %v631, 24
  %v2060 = vpop.permute.xlu0 %2059
  %2061 = vrot.lane.b32.xlu0 %v632, 24
  %v2062 = vpop.permute.xlu0 %2061
  %2063 = vrot.lane.b32.xlu0 %v633, 24
  %v2064 = vpop.permute.xlu0 %2063
  %2065 = vrot.lane.b32.xlu0 %v634, 24
  %v2066 = vpop.permute.xlu0 %2065
  %2067 = vrot.lane.b32.xlu0 %v635, 24
  %v2068 = vpop.permute.xlu0 %2067
  %2069 = vrot.lane.b32.xlu0 %v636, 24
  %v2070 = vpop.permute.xlu0 %2069
  %2071 = vrot.lane.b32.xlu0 %v637, 24
  %v2072 = vpop.permute.xlu0 %2071
  %2073 = vrot.lane.b32.xlu0 %v638, 24
  %v2074 = vpop.permute.xlu0 %2073
  %2075 = vrot.lane.b32.xlu0 %v639, 24
  %v2076 = vpop.permute.xlu0 %2075
  %2077 = vrot.lane.b32.xlu0 %v863, 24
  %v2078 = vpop.permute.xlu0 %2077
  %2079 = vrot.lane.b32.xlu0 %v864, 24
  %v2080 = vpop.permute.xlu0 %2079
  %2081 = vrot.lane.b32.xlu0 %v608, 24
  %v2082 = vpop.permute.xlu0 %2081
  %2083 = vrot.lane.b32.xlu0 %v609, 24
  %v2084 = vpop.permute.xlu0 %2083
  %2085 = vrot.lane.b32.xlu0 %v642, 24
  %v2086 = vpop.permute.xlu0 %2085
  %2087 = vrot.lane.b32.xlu0 %v643, 24
  %v2088 = vpop.permute.xlu0 %2087
  %2089 = vrot.lane.b32.xlu0 %v644, 24
  %v2090 = vpop.permute.xlu0 %2089
  %2091 = vrot.lane.b32.xlu0 %v645, 24
  %v2092 = vpop.permute.xlu0 %2091
  %2093 = vrot.lane.b32.xlu0 %v646, 24
  %v2094 = vpop.permute.xlu0 %2093
  %2095 = vrot.lane.b32.xlu0 %v647, 24
  %v2096 = vpop.permute.xlu0 %2095
  %2097 = vrot.lane.b32.xlu0 %v648, 24
  %v2098 = vpop.permute.xlu0 %2097
  %2099 = vrot.lane.b32.xlu0 %v649, 24
  %v2100 = vpop.permute.xlu0 %2099
  %2101 = vrot.lane.b32.xlu0 %v650, 24
  %v2102 = vpop.permute.xlu0 %2101
  %2103 = vrot.lane.b32.xlu0 %v651, 24
  %v2104 = vpop.permute.xlu0 %2103
  %2105 = vrot.lane.b32.xlu0 %v652, 24
  %v2106 = vpop.permute.xlu0 %2105
  %2107 = vrot.lane.b32.xlu0 %v653, 24
  %v2108 = vpop.permute.xlu0 %2107
  %2109 = vrot.lane.b32.xlu0 %v654, 24
  %v2110 = vpop.permute.xlu0 %2109
  %2111 = vrot.lane.b32.xlu0 %v655, 24
  %v2112 = vpop.permute.xlu0 %2111
  %2113 = vrot.lane.b32.xlu0 %v656, 24
  %v2114 = vpop.permute.xlu0 %2113
  %2115 = vrot.lane.b32.xlu0 %v657, 24
  %v2116 = vpop.permute.xlu0 %2115
  %2117 = vrot.lane.b32.xlu0 %v658, 24
  %v2118 = vpop.permute.xlu0 %2117
  %2119 = vrot.lane.b32.xlu0 %v659, 24
  %v2120 = vpop.permute.xlu0 %2119
  %2121 = vrot.lane.b32.xlu0 %v660, 24
  %v2122 = vpop.permute.xlu0 %2121
  %2123 = vrot.lane.b32.xlu0 %v661, 24
  %v2124 = vpop.permute.xlu0 %2123
  %2125 = vrot.lane.b32.xlu0 %v662, 24
  %v2126 = vpop.permute.xlu0 %2125
  %2127 = vrot.lane.b32.xlu0 %v663, 24
  %v2128 = vpop.permute.xlu0 %2127
  %2129 = vrot.lane.b32.xlu0 %v664, 24
  %v2130 = vpop.permute.xlu0 %2129
  %2131 = vrot.lane.b32.xlu0 %v665, 24
  %v2132 = vpop.permute.xlu0 %2131
  %2133 = vrot.lane.b32.xlu0 %v666, 24
  %v2134 = vpop.permute.xlu0 %2133
  %2135 = vrot.lane.b32.xlu0 %v667, 24
  %v2136 = vpop.permute.xlu0 %2135
  %2137 = vrot.lane.b32.xlu0 %v668, 24
  %v2138 = vpop.permute.xlu0 %2137
  %2139 = vrot.lane.b32.xlu0 %v669, 24
  %v2140 = vpop.permute.xlu0 %2139
  %2141 = vrot.lane.b32.xlu0 %v865, 24
  %v2142 = vpop.permute.xlu0 %2141
  %2143 = vrot.lane.b32.xlu0 %v866, 24
  %v2144 = vpop.permute.xlu0 %2143
  %2207 = vrot.lane.b32.xlu0 %v420, 28
  %v2208 = vpop.permute.xlu0 %2207
  %2209 = vrot.lane.b32.xlu0 %v421, 28
  %v2210 = vpop.permute.xlu0 %2209
  %2211 = vrot.lane.b32.xlu0 %v422, 28
  %v2212 = vpop.permute.xlu0 %2211
  %2213 = vrot.lane.b32.xlu0 %v423, 28
  %v2214 = vpop.permute.xlu0 %2213
  %2215 = vrot.lane.b32.xlu0 %v424, 28
  %v2216 = vpop.permute.xlu0 %2215
  %2217 = vrot.lane.b32.xlu0 %v425, 28
  %v2218 = vpop.permute.xlu0 %2217
  %2219 = vrot.lane.b32.xlu0 %v426, 28
  %v2220 = vpop.permute.xlu0 %2219
  %2221 = vrot.lane.b32.xlu0 %v427, 28
  %v2222 = vpop.permute.xlu0 %2221
  %2223 = vrot.lane.b32.xlu0 %v428, 28
  %v2224 = vpop.permute.xlu0 %2223
  %2225 = vrot.lane.b32.xlu0 %v429, 28
  %v2226 = vpop.permute.xlu0 %2225
  %2227 = vrot.lane.b32.xlu0 %v430, 28
  %v2228 = vpop.permute.xlu0 %2227
  %2229 = vrot.lane.b32.xlu0 %v431, 28
  %v2230 = vpop.permute.xlu0 %2229
  %2231 = vrot.lane.b32.xlu0 %v432, 28
  %v2232 = vpop.permute.xlu0 %2231
  %2233 = vrot.lane.b32.xlu0 %v433, 28
  %v2234 = vpop.permute.xlu0 %2233
  %2235 = vrot.lane.b32.xlu0 %v434, 28
  %v2236 = vpop.permute.xlu0 %2235
  %2237 = vrot.lane.b32.xlu0 %v435, 28
  %v2238 = vpop.permute.xlu0 %2237
  %2239 = vrot.lane.b32.xlu0 %v436, 28
  %v2240 = vpop.permute.xlu0 %2239
  %2241 = vrot.lane.b32.xlu0 %v437, 28
  %v2242 = vpop.permute.xlu0 %2241
  %2243 = vrot.lane.b32.xlu0 %v438, 28
  %v2244 = vpop.permute.xlu0 %2243
  %2245 = vrot.lane.b32.xlu0 %v439, 28
  %v2246 = vpop.permute.xlu0 %2245
  %2247 = vrot.lane.b32.xlu0 %v440, 28
  %v2248 = vpop.permute.xlu0 %2247
  %2249 = vrot.lane.b32.xlu0 %v441, 28
  %v2250 = vpop.permute.xlu0 %2249
  %2251 = vrot.lane.b32.xlu0 %v442, 28
  %v2252 = vpop.permute.xlu0 %2251
  %2253 = vrot.lane.b32.xlu0 %v443, 28
  %v2254 = vpop.permute.xlu0 %2253
  %2255 = vrot.lane.b32.xlu0 %v444, 28
  %v2256 = vpop.permute.xlu0 %2255
  %2257 = vrot.lane.b32.xlu0 %v445, 28
  %v2258 = vpop.permute.xlu0 %2257
  %2259 = vrot.lane.b32.xlu0 %v446, 28
  %v2260 = vpop.permute.xlu0 %2259
  %2261 = vrot.lane.b32.xlu0 %v447, 28
  %v2262 = vpop.permute.xlu0 %2261
  %2263 = vrot.lane.b32.xlu0 %v448, 28
  %v2264 = vpop.permute.xlu0 %2263
  %2265 = vrot.lane.b32.xlu0 %v449, 28
  %v2266 = vpop.permute.xlu0 %2265
  %2267 = vrot.lane.b32.xlu0 0.0, 28
  %v2268 = vpop.permute.xlu0 %2267
  %2269 = vrot.lane.b32.xlu0 %v452, 28
  %v2270 = vpop.permute.xlu0 %2269
  %2271 = vrot.lane.b32.xlu0 %v453, 28
  %v2272 = vpop.permute.xlu0 %2271
  %2273 = vrot.lane.b32.xlu0 %v454, 28
  %v2274 = vpop.permute.xlu0 %2273
  %2275 = vrot.lane.b32.xlu0 %v455, 28
  %v2276 = vpop.permute.xlu0 %2275
  %2277 = vrot.lane.b32.xlu0 %v456, 28
  %v2278 = vpop.permute.xlu0 %2277
  %2279 = vrot.lane.b32.xlu0 %v457, 28
  %v2280 = vpop.permute.xlu0 %2279
  %2281 = vrot.lane.b32.xlu0 %v458, 28
  %v2282 = vpop.permute.xlu0 %2281
  %2283 = vrot.lane.b32.xlu0 %v459, 28
  %v2284 = vpop.permute.xlu0 %2283
  %2285 = vrot.lane.b32.xlu0 %v460, 28
  %v2286 = vpop.permute.xlu0 %2285
  %2287 = vrot.lane.b32.xlu0 %v461, 28
  %v2288 = vpop.permute.xlu0 %2287
  %2289 = vrot.lane.b32.xlu0 %v462, 28
  %v2290 = vpop.permute.xlu0 %2289
  %2291 = vrot.lane.b32.xlu0 %v463, 28
  %v2292 = vpop.permute.xlu0 %2291
  %2293 = vrot.lane.b32.xlu0 %v464, 28
  %v2294 = vpop.permute.xlu0 %2293
  %2295 = vrot.lane.b32.xlu0 %v465, 28
  %v2296 = vpop.permute.xlu0 %2295
  %2297 = vrot.lane.b32.xlu0 %v466, 28
  %v2298 = vpop.permute.xlu0 %2297
  %2299 = vrot.lane.b32.xlu0 %v467, 28
  %v2300 = vpop.permute.xlu0 %2299
  %2301 = vrot.lane.b32.xlu0 %v468, 28
  %v2302 = vpop.permute.xlu0 %2301
  %2303 = vrot.lane.b32.xlu0 %v469, 28
  %v2304 = vpop.permute.xlu0 %2303
  %2305 = vrot.lane.b32.xlu0 %v470, 28
  %v2306 = vpop.permute.xlu0 %2305
  %2307 = vrot.lane.b32.xlu0 %v471, 28
  %v2308 = vpop.permute.xlu0 %2307
  %2309 = vrot.lane.b32.xlu0 %v472, 28
  %v2310 = vpop.permute.xlu0 %2309
  %2311 = vrot.lane.b32.xlu0 %v473, 28
  %v2312 = vpop.permute.xlu0 %2311
  %2313 = vrot.lane.b32.xlu0 %v474, 28
  %v2314 = vpop.permute.xlu0 %2313
  %2315 = vrot.lane.b32.xlu0 %v475, 28
  %v2316 = vpop.permute.xlu0 %2315
  %2317 = vrot.lane.b32.xlu0 %v476, 28
  %v2318 = vpop.permute.xlu0 %2317
  %2319 = vrot.lane.b32.xlu0 %v477, 28
  %v2320 = vpop.permute.xlu0 %2319
  %2321 = vrot.lane.b32.xlu0 %v478, 28
  %v2322 = vpop.permute.xlu0 %2321
  %2323 = vrot.lane.b32.xlu0 %v479, 28
  %v2324 = vpop.permute.xlu0 %2323
  %2325 = vrot.lane.b32.xlu0 %v480, 28
  %v2326 = vpop.permute.xlu0 %2325
  %2327 = vrot.lane.b32.xlu0 %v481, 28
  %v2328 = vpop.permute.xlu0 %2327
  %2390 = vrot.lane.b32.xlu0 %v797, 32
  %v2391 = vpop.permute.xlu0 %2390
  %2392 = vrot.lane.b32.xlu0 %v798, 32
  %v2393 = vpop.permute.xlu0 %2392
  %2394 = vrot.lane.b32.xlu0 %v799, 32
  %v2395 = vpop.permute.xlu0 %2394
  %2396 = vrot.lane.b32.xlu0 %v800, 32
  %v2397 = vpop.permute.xlu0 %2396
  %2398 = vrot.lane.b32.xlu0 %v801, 32
  %v2399 = vpop.permute.xlu0 %2398
  %2400 = vrot.lane.b32.xlu0 %v802, 32
  %v2401 = vpop.permute.xlu0 %2400
  %2402 = vrot.lane.b32.xlu0 %v803, 32
  %v2403 = vpop.permute.xlu0 %2402
  %2404 = vrot.lane.b32.xlu0 %v804, 32
  %v2405 = vpop.permute.xlu0 %2404
  %2406 = vrot.lane.b32.xlu0 %v805, 32
  %v2407 = vpop.permute.xlu0 %2406
  %2408 = vrot.lane.b32.xlu0 %v806, 32
  %v2409 = vpop.permute.xlu0 %2408
  %2410 = vrot.lane.b32.xlu0 %v807, 32
  %v2411 = vpop.permute.xlu0 %2410
  %2412 = vrot.lane.b32.xlu0 %v808, 32
  %v2413 = vpop.permute.xlu0 %2412
  %2414 = vrot.lane.b32.xlu0 %v809, 32
  %v2415 = vpop.permute.xlu0 %2414
  %2416 = vrot.lane.b32.xlu0 %v810, 32
  %v2417 = vpop.permute.xlu0 %2416
  %2418 = vrot.lane.b32.xlu0 %v811, 32
  %v2419 = vpop.permute.xlu0 %2418
  %2420 = vrot.lane.b32.xlu0 %v812, 32
  %v2421 = vpop.permute.xlu0 %2420
  %2422 = vrot.lane.b32.xlu0 %v813, 32
  %v2423 = vpop.permute.xlu0 %2422
  %2424 = vrot.lane.b32.xlu0 %v814, 32
  %v2425 = vpop.permute.xlu0 %2424
  %2426 = vrot.lane.b32.xlu0 %v815, 32
  %v2427 = vpop.permute.xlu0 %2426
  %2428 = vrot.lane.b32.xlu0 %v816, 32
  %v2429 = vpop.permute.xlu0 %2428
  %2430 = vrot.lane.b32.xlu0 %v817, 32
  %v2431 = vpop.permute.xlu0 %2430
  %2432 = vrot.lane.b32.xlu0 %v818, 32
  %v2433 = vpop.permute.xlu0 %2432
  %2434 = vrot.lane.b32.xlu0 %v819, 32
  %v2435 = vpop.permute.xlu0 %2434
  %2436 = vrot.lane.b32.xlu0 %v820, 32
  %v2437 = vpop.permute.xlu0 %2436
  %2438 = vrot.lane.b32.xlu0 %v821, 32
  %v2439 = vpop.permute.xlu0 %2438
  %2440 = vrot.lane.b32.xlu0 %v822, 32
  %v2441 = vpop.permute.xlu0 %2440
  %2442 = vrot.lane.b32.xlu0 %v823, 32
  %v2443 = vpop.permute.xlu0 %2442
  %2444 = vrot.lane.b32.xlu0 %v824, 32
  %v2445 = vpop.permute.xlu0 %2444
  %2446 = vrot.lane.b32.xlu0 %v875, 32
  %v2447 = vpop.permute.xlu0 %2446
  %2448 = vrot.lane.b32.xlu0 %v876, 32
  %v2449 = vpop.permute.xlu0 %2448
  %2450 = vrot.lane.b32.xlu0 %v793, 32
  %v2451 = vpop.permute.xlu0 %2450
  %2452 = vrot.lane.b32.xlu0 %v794, 32
  %v2453 = vpop.permute.xlu0 %2452
  %2454 = vrot.lane.b32.xlu0 %v827, 32
  %v2455 = vpop.permute.xlu0 %2454
  %2456 = vrot.lane.b32.xlu0 %v828, 32
  %v2457 = vpop.permute.xlu0 %2456
  %2458 = vrot.lane.b32.xlu0 %v829, 32
  %v2459 = vpop.permute.xlu0 %2458
  %2460 = vrot.lane.b32.xlu0 %v830, 32
  %v2461 = vpop.permute.xlu0 %2460
  %2462 = vrot.lane.b32.xlu0 %v831, 32
  %v2463 = vpop.permute.xlu0 %2462
  %2464 = vrot.lane.b32.xlu0 %v832, 32
  %v2465 = vpop.permute.xlu0 %2464
  %2466 = vrot.lane.b32.xlu0 %v833, 32
  %v2467 = vpop.permute.xlu0 %2466
  %2468 = vrot.lane.b32.xlu0 %v834, 32
  %v2469 = vpop.permute.xlu0 %2468
  %2470 = vrot.lane.b32.xlu0 %v835, 32
  %v2471 = vpop.permute.xlu0 %2470
  %2472 = vrot.lane.b32.xlu0 %v836, 32
  %v2473 = vpop.permute.xlu0 %2472
  %2474 = vrot.lane.b32.xlu0 %v837, 32
  %v2475 = vpop.permute.xlu0 %2474
  %2476 = vrot.lane.b32.xlu0 %v838, 32
  %v2477 = vpop.permute.xlu0 %2476
  %2478 = vrot.lane.b32.xlu0 %v839, 32
  %v2479 = vpop.permute.xlu0 %2478
  %2480 = vrot.lane.b32.xlu0 %v840, 32
  %v2481 = vpop.permute.xlu0 %2480
  %2482 = vrot.lane.b32.xlu0 %v841, 32
  %v2483 = vpop.permute.xlu0 %2482
  %2484 = vrot.lane.b32.xlu0 %v842, 32
  %v2485 = vpop.permute.xlu0 %2484
  %2486 = vrot.lane.b32.xlu0 %v843, 32
  %v2487 = vpop.permute.xlu0 %2486
  %2488 = vrot.lane.b32.xlu0 %v844, 32
  %v2489 = vpop.permute.xlu0 %2488
  %2490 = vrot.lane.b32.xlu0 %v845, 32
  %v2491 = vpop.permute.xlu0 %2490
  %2492 = vrot.lane.b32.xlu0 %v846, 32
  %v2493 = vpop.permute.xlu0 %2492
  %2494 = vrot.lane.b32.xlu0 %v847, 32
  %v2495 = vpop.permute.xlu0 %2494
  %2496 = vrot.lane.b32.xlu0 %v848, 32
  %v2497 = vpop.permute.xlu0 %2496
  %2498 = vrot.lane.b32.xlu0 %v849, 32
  %v2499 = vpop.permute.xlu0 %2498
  %2500 = vrot.lane.b32.xlu0 %v850, 32
  %v2501 = vpop.permute.xlu0 %2500
  %2502 = vrot.lane.b32.xlu0 %v851, 32
  %v2503 = vpop.permute.xlu0 %2502
  %2504 = vrot.lane.b32.xlu0 %v852, 32
  %v2505 = vpop.permute.xlu0 %2504
  %2506 = vrot.lane.b32.xlu0 %v853, 32
  %v2507 = vpop.permute.xlu0 %2506
  %2508 = vrot.lane.b32.xlu0 %v854, 32
  %v2509 = vpop.permute.xlu0 %2508
  %2510 = vrot.lane.b32.xlu0 %v877, 32
  %v2511 = vpop.permute.xlu0 %2510
  %2512 = vrot.lane.b32.xlu0 %v878, 32
  %v2513 = vpop.permute.xlu0 %2512
  %vm2576 = vcmask 31744
  %v2577 = vsel %vm2576, %v608, %v941
  %v2578 = vsel %vm2576, %v609, %v941
  %v2579 = vsel %vm2576, %v610, %v943
  %v2580 = vsel %vm2576, %v611, %v945
  %v2581 = vsel %vm2576, %v612, %v947
  %v2582 = vsel %vm2576, %v613, %v949
  %v2583 = vsel %vm2576, %v614, %v951
  %v2584 = vsel %vm2576, %v615, %v953
  %v2585 = vsel %vm2576, %v616, %v955
  %v2586 = vsel %vm2576, %v617, %v957
  %v2587 = vsel %vm2576, %v618, %v959
  %v2588 = vsel %vm2576, %v619, %v961
  %v2589 = vsel %vm2576, %v620, %v963
  %v2590 = vsel %vm2576, %v621, %v965
  %v2591 = vsel %vm2576, %v622, %v967
  %v2592 = vsel %vm2576, %v623, %v969
  %v2593 = vsel %vm2576, %v624, %v971
  %v2594 = vsel %vm2576, %v625, %v973
  %v2595 = vsel %vm2576, %v626, %v975
  %v2596 = vsel %vm2576, %v627, %v977
  %v2597 = vsel %vm2576, %v628, %v979
  %v2598 = vsel %vm2576, %v629, %v981
  %v2599 = vsel %vm2576, %v630, %v983
  %v2600 = vsel %vm2576, %v631, %v985
  %v2601 = vsel %vm2576, %v632, %v987
  %v2602 = vsel %vm2576, %v633, %v989
  %v2603 = vsel %vm2576, %v634, %v991
  %v2604 = vsel %vm2576, %v635, %v993
  %v2605 = vsel %vm2576, %v636, %v995
  %v2606 = vsel %vm2576, %v637, %v997
  %v2607 = vsel %vm2576, %v638, %v999
  %v2608 = vsel %vm2576, %v639, %v1001
  %v2609 = vsel %vm2576, %v640, %v1003
  %v2610 = vsel %vm2576, %v641, %v1005
  %v2611 = vsel %vm2576, %v642, %v1007
  %v2612 = vsel %vm2576, %v643, %v1009
  %v2613 = vsel %vm2576, %v644, %v1011
  %v2614 = vsel %vm2576, %v645, %v1013
  %v2615 = vsel %vm2576, %v646, %v1015
  %v2616 = vsel %vm2576, %v647, %v1017
  %v2617 = vsel %vm2576, %v648, %v1019
  %v2618 = vsel %vm2576, %v649, %v1021
  %v2619 = vsel %vm2576, %v650, %v1023
  %v2620 = vsel %vm2576, %v651, %v1025
  %v2621 = vsel %vm2576, %v652, %v1027
  %v2622 = vsel %vm2576, %v653, %v1029
  %v2623 = vsel %vm2576, %v654, %v1031
  %v2624 = vsel %vm2576, %v655, %v1033
  %v2625 = vsel %vm2576, %v656, %v1035
  %v2626 = vsel %vm2576, %v657, %v1037
  %v2627 = vsel %vm2576, %v658, %v1039
  %v2628 = vsel %vm2576, %v659, %v1041
  %v2629 = vsel %vm2576, %v660, %v1043
  %v2630 = vsel %vm2576, %v661, %v1045
  %v2631 = vsel %vm2576, %v662, %v1047
  %v2632 = vsel %vm2576, %v663, %v1049
  %v2633 = vsel %vm2576, %v664, %v1051
  %v2634 = vsel %vm2576, %v665, %v1053
  %v2635 = vsel %vm2576, %v666, %v1055
  %v2636 = vsel %vm2576, %v667, %v1057
  %v2637 = vsel %vm2576, %v668, %v1059
  %v2638 = vsel %vm2576, %v669, %v1061
  %vm2639 = vcmask 64512
  %v2640 = vsel %vm2639, %v2577, %v1186
  %v2641 = vsel %vm2639, %v2578, %v1188
  %v2642 = vsel %vm2639, %v2579, %v1190
  %v2643 = vsel %vm2639, %v2580, %v1192
  %v2644 = vsel %vm2639, %v2581, %v1194
  %v2645 = vsel %vm2639, %v2582, %v1196
  %v2646 = vsel %vm2639, %v2583, %v1198
  %v2647 = vsel %vm2639, %v2584, %v1200
  %v2648 = vsel %vm2639, %v2585, %v1202
  %v2649 = vsel %vm2639, %v2586, %v1204
  %v2650 = vsel %vm2639, %v2587, %v1206
  %v2651 = vsel %vm2639, %v2588, %v1208
  %v2652 = vsel %vm2639, %v2589, %v1210
  %v2653 = vsel %vm2639, %v2590, %v1212
  %v2654 = vsel %vm2639, %v2591, %v1214
  %v2655 = vsel %vm2639, %v2592, %v1216
  %v2656 = vsel %vm2639, %v2593, %v1218
  %v2657 = vsel %vm2639, %v2594, %v1220
  %v2658 = vsel %vm2639, %v2595, %v1222
  %v2659 = vsel %vm2639, %v2596, %v1224
  %v2660 = vsel %vm2639, %v2597, %v1226
  %v2661 = vsel %vm2639, %v2598, %v1228
  %v2662 = vsel %vm2639, %v2599, %v1230
  %v2663 = vsel %vm2639, %v2600, %v1232
  %v2664 = vsel %vm2639, %v2601, %v1234
  %v2665 = vsel %vm2639, %v2602, %v1236
  %v2666 = vsel %vm2639, %v2603, %v1238
  %v2667 = vsel %vm2639, %v2604, %v1240
  %v2668 = vsel %vm2639, %v2605, %v1242
  %v2669 = vsel %vm2639, %v2606, %v1244
  %v2670 = vsel %vm2639, %v2607, %v1246
  %v2671 = vsel %vm2639, %v2608, %v1248
  %v2672 = vsel %vm2639, %v2609, %v1250
  %v2673 = vsel %vm2639, %v2610, %v1252
  %v2674 = vsel %vm2639, %v2611, %v1254
  %v2675 = vsel %vm2639, %v2612, %v1256
  %v2676 = vsel %vm2639, %v2613, %v1258
  %v2677 = vsel %vm2639, %v2614, %v1260
  %v2678 = vsel %vm2639, %v2615, %v1262
  %v2679 = vsel %vm2639, %v2616, %v1264
  %v2680 = vsel %vm2639, %v2617, %v1266
  %v2681 = vsel %vm2639, %v2618, %v1268
  %v2682 = vsel %vm2639, %v2619, %v1270
  %v2683 = vsel %vm2639, %v2620, %v1272
  %v2684 = vsel %vm2639, %v2621, %v1274
  %v2685 = vsel %vm2639, %v2622, %v1276
  %v2686 = vsel %vm2639, %v2623, %v1278
  %v2687 = vsel %vm2639, %v2624, %v1280
  %v2688 = vsel %vm2639, %v2625, %v1282
  %v2689 = vsel %vm2639, %v2626, %v1284
  %v2690 = vsel %vm2639, %v2627, %v1286
  %v2691 = vsel %vm2639, %v2628, %v1288
  %v2692 = vsel %vm2639, %v2629, %v1290
  %v2693 = vsel %vm2639, %v2630, %v1292
  %v2694 = vsel %vm2639, %v2631, %v1294
  %v2695 = vsel %vm2639, %v2632, %v1296
  %v2696 = vsel %vm2639, %v2633, %v1298
  %v2697 = vsel %vm2639, %v2634, %v1300
  %v2698 = vsel %vm2639, %v2635, %v1302
  %v2699 = vsel %vm2639, %v2636, %v1304
  %v2700 = vsel %vm2639, %v2637, %v1306
  %v2701 = vsel %vm2639, %v2638, %v1308
  %vm2702 = vcmask 97280
  %v2703 = vsel %vm2702, %v2640, %v1436
  %v2704 = vsel %vm2702, %v2641, %v1438
  %v2705 = vsel %vm2702, %v2642, %v1440
  %v2706 = vsel %vm2702, %v2643, %v1442
  %v2707 = vsel %vm2702, %v2644, %v1444
  %v2708 = vsel %vm2702, %v2645, %v1446
  %v2709 = vsel %vm2702, %v2646, %v1448
  %v2710 = vsel %vm2702, %v2647, %v1450
  %v2711 = vsel %vm2702, %v2648, %v1452
  %v2712 = vsel %vm2702, %v2649, %v1454
  %v2713 = vsel %vm2702, %v2650, %v1456
  %v2714 = vsel %vm2702, %v2651, %v1458
  %v2715 = vsel %vm2702, %v2652, %v1460
  %v2716 = vsel %vm2702, %v2653, %v1462
  %v2717 = vsel %vm2702, %v2654, %v1464
  %v2718 = vsel %vm2702, %v2655, %v1466
  %v2719 = vsel %vm2702, %v2656, %v1468
  %v2720 = vsel %vm2702, %v2657, %v1470
  %v2721 = vsel %vm2702, %v2658, %v1472
  %v2722 = vsel %vm2702, %v2659, %v1474
  %v2723 = vsel %vm2702, %v2660, %v1476
  %v2724 = vsel %vm2702, %v2661, %v1478
  %v2725 = vsel %vm2702, %v2662, %v1480
  %v2726 = vsel %vm2702, %v2663, %v1482
  %v2727 = vsel %vm2702, %v2664, %v1484
  %v2728 = vsel %vm2702, %v2665, %v1486
  %v2729 = vsel %vm2702, %v2666, %v1488
  %v2730 = vsel %vm2702, %v2667, %v1490
  %v2731 = vsel %vm2702, %v2668, %v1492
  %v2732 = vsel %vm2702, %v2669, %v1494
  %v2733 = vsel %vm2702, %v2670, %v1496
  %v2734 = vsel %vm2702, %v2671, %v1498
  %v2735 = vsel %vm2702, %v2640, %v1500
  %v2736 = vsel %vm2702, %v2641, %v1502
  %v2737 = vsel %vm2702, %v2672, %v1504
  %v2738 = vsel %vm2702, %v2673, %v1506
  %v2739 = vsel %vm2702, %v2674, %v1508
  %v2740 = vsel %vm2702, %v2675, %v1510
  %v2741 = vsel %vm2702, %v2676, %v1512
  %v2742 = vsel %vm2702, %v2677, %v1514
  %v2743 = vsel %vm2702, %v2678, %v1516
  %v2744 = vsel %vm2702, %v2679, %v1518
  %v2745 = vsel %vm2702, %v2680, %v1520
  %v2746 = vsel %vm2702, %v2681, %v1522
  %v2747 = vsel %vm2702, %v2682, %v1524
  %v2748 = vsel %vm2702, %v2683, %v1526
  %v2749 = vsel %vm2702, %v2684, %v1528
  %v2750 = vsel %vm2702, %v2685, %v1530
  %v2751 = vsel %vm2702, %v2686, %v1532
  %v2752 = vsel %vm2702, %v2687, %v1534
  %v2753 = vsel %vm2702, %v2688, %v1536
  %v2754 = vsel %vm2702, %v2689, %v1538
  %v2755 = vsel %vm2702, %v2690, %v1540
  %v2756 = vsel %vm2702, %v2691, %v1542
  %v2757 = vsel %vm2702, %v2692, %v1544
  %v2758 = vsel %vm2702, %v2693, %v1546
  %v2759 = vsel %vm2702, %v2694, %v1548
  %v2760 = vsel %vm2702, %v2695, %v1550
  %v2761 = vsel %vm2702, %v2696, %v1552
  %v2762 = vsel %vm2702, %v2697, %v1554
  %v2763 = vsel %vm2702, %v2698, %v1556
  %v2764 = vsel %vm2702, %v2699, %v1558
  %v2765 = vsel %vm2702, %v2700, %v1560
  %v2766 = vsel %vm2702, %v2701, %v1562
  %vm2767 = vcmask 130048
  %v2768 = vsel %vm2767, %v2703, %v1632
  %v2769 = vsel %vm2767, %v2704, %v1634
  %v2770 = vsel %vm2767, %v2705, %v1636
  %v2771 = vsel %vm2767, %v2706, %v1638
  %v2772 = vsel %vm2767, %v2707, %v1640
  %v2773 = vsel %vm2767, %v2708, %v1642
  %v2774 = vsel %vm2767, %v2709, %v1644
  %v2775 = vsel %vm2767, %v2710, %v1646
  %v2776 = vsel %vm2767, %v2711, %v1648
  %v2777 = vsel %vm2767, %v2712, %v1650
  %v2778 = vsel %vm2767, %v2713, %v1652
  %v2779 = vsel %vm2767, %v2714, %v1654
  %v2780 = vsel %vm2767, %v2715, %v1656
  %v2781 = vsel %vm2767, %v2716, %v1658
  %v2782 = vsel %vm2767, %v2717, %v1660
  %v2783 = vsel %vm2767, %v2718, %v1662
  %v2784 = vsel %vm2767, %v2719, %v1664
  %v2785 = vsel %vm2767, %v2720, %v1666
  %v2786 = vsel %vm2767, %v2721, %v1668
  %v2787 = vsel %vm2767, %v2722, %v1670
  %v2788 = vsel %vm2767, %v2723, %v1672
  %v2789 = vsel %vm2767, %v2724, %v1674
  %v2790 = vsel %vm2767, %v2725, %v1676
  %v2791 = vsel %vm2767, %v2726, %v1678
  %v2792 = vsel %vm2767, %v2727, %v1680
  %v2793 = vsel %vm2767, %v2728, %v1682
  %v2794 = vsel %vm2767, %v2729, %v1684
  %v2795 = vsel %vm2767, %v2730, %v1686
  %v2796 = vsel %vm2767, %v2731, %v1688
  %v2797 = vsel %vm2767, %v2732, %v1690
  %v2798 = vsel %vm2767, %v2733, %v1692
  %v2799 = vsel %vm2767, %v2734, %v1694
  %v2800 = vsel %vm2767, %v2735, %v1696
  %v2801 = vsel %vm2767, %v2736, %v1698
  %v2802 = vsel %vm2767, %v2737, %v1700
  %v2803 = vsel %vm2767, %v2738, %v1702
  %v2804 = vsel %vm2767, %v2739, %v1704
  %v2805 = vsel %vm2767, %v2740, %v1706
  %v2806 = vsel %vm2767, %v2741, %v1708
  %v2807 = vsel %vm2767, %v2742, %v1710
  %v2808 = vsel %vm2767, %v2743, %v1712
  %v2809 = vsel %vm2767, %v2744, %v1714
  %v2810 = vsel %vm2767, %v2745, %v1716
  %v2811 = vsel %vm2767, %v2746, %v1718
  %v2812 = vsel %vm2767, %v2747, %v1720
  %v2813 = vsel %vm2767, %v2748, %v1722
  %v2814 = vsel %vm2767, %v2749, %v1724
  %v2815 = vsel %vm2767, %v2750, %v1726
  %v2816 = vsel %vm2767, %v2751, %v1728
  %v2817 = vsel %vm2767, %v2752, %v1730
  %v2818 = vsel %vm2767, %v2753, %v1732
  %v2819 = vsel %vm2767, %v2754, %v1734
  %v2820 = vsel %vm2767, %v2755, %v1736
  %v2821 = vsel %vm2767, %v2756, %v1738
  %v2822 = vsel %vm2767, %v2757, %v1740
  %v2823 = vsel %vm2767, %v2758, %v1742
  %v2824 = vsel %vm2767, %v2759, %v1744
  %v2825 = vsel %vm2767, %v2760, %v1746
  %v2826 = vsel %vm2767, %v2761, %v1748
  %v2827 = vsel %vm2767, %v2762, %v1750
  %v2828 = vsel %vm2767, %v2763, %v1752
  %v2829 = vsel %vm2767, %v2764, %v1754
  %v2830 = vsel %vm2767, %v2765, %v1756
  %v2831 = vsel %vm2767, %v2766, %v1758
  %vm2832 = vcmask 162816
  %v2833 = vsel %vm2832, %v2768, %v1828
  %v2834 = vsel %vm2832, %v2769, %v1830
  %v2835 = vsel %vm2832, %v2770, %v1832
  %v2836 = vsel %vm2832, %v2771, %v1834
  %v2837 = vsel %vm2832, %v2772, %v1836
  %v2838 = vsel %vm2832, %v2773, %v1838
  %v2839 = vsel %vm2832, %v2774, %v1840
  %v2840 = vsel %vm2832, %v2775, %v1842
  %v2841 = vsel %vm2832, %v2776, %v1844
  %v2842 = vsel %vm2832, %v2777, %v1846
  %v2843 = vsel %vm2832, %v2778, %v1848
  %v2844 = vsel %vm2832, %v2779, %v1850
  %v2845 = vsel %vm2832, %v2780, %v1852
  %v2846 = vsel %vm2832, %v2781, %v1854
  %v2847 = vsel %vm2832, %v2782, %v1856
  %v2848 = vsel %vm2832, %v2783, %v1858
  %v2849 = vsel %vm2832, %v2784, %v1860
  %v2850 = vsel %vm2832, %v2785, %v1862
  %v2851 = vsel %vm2832, %v2786, %v1864
  %v2852 = vsel %vm2832, %v2787, %v1866
  %v2853 = vsel %vm2832, %v2788, %v1868
  %v2854 = vsel %vm2832, %v2789, %v1870
  %v2855 = vsel %vm2832, %v2790, %v1872
  %v2856 = vsel %vm2832, %v2791, %v1874
  %v2857 = vsel %vm2832, %v2792, %v1876
  %v2858 = vsel %vm2832, %v2793, %v1878
  %v2859 = vsel %vm2832, %v2794, %v1880
  %v2860 = vsel %vm2832, %v2795, %v1882
  %v2861 = vsel %vm2832, %v2796, %v1884
  %v2862 = vsel %vm2832, %v2797, %v1886
  %v2863 = vsel %vm2832, %v2798, %v1888
  %v2864 = vsel %vm2832, %v2799, %v1890
  %v2865 = vsel %vm2832, %v2800, %v1892
  %v2866 = vsel %vm2832, %v2801, %v1894
  %v2867 = vsel %vm2832, %v2802, %v1896
  %v2868 = vsel %vm2832, %v2803, %v1898
  %v2869 = vsel %vm2832, %v2804, %v1900
  %v2870 = vsel %vm2832, %v2805, %v1902
  %v2871 = vsel %vm2832, %v2806, %v1904
  %v2872 = vsel %vm2832, %v2807, %v1906
  %v2873 = vsel %vm2832, %v2808, %v1908
  %v2874 = vsel %vm2832, %v2809, %v1910
  %v2875 = vsel %vm2832, %v2810, %v1912
  %v2876 = vsel %vm2832, %v2811, %v1914
  %v2877 = vsel %vm2832, %v2812, %v1916
  %v2878 = vsel %vm2832, %v2813, %v1918
  %v2879 = vsel %vm2832, %v2814, %v1920
  %v2880 = vsel %vm2832, %v2815, %v1922
  %v2881 = vsel %vm2832, %v2816, %v1924
  %v2882 = vsel %vm2832, %v2817, %v1926
  %v2883 = vsel %vm2832, %v2818, %v1928
  %v2884 = vsel %vm2832, %v2819, %v1930
  %v2885 = vsel %vm2832, %v2820, %v1932
  %v2886 = vsel %vm2832, %v2821, %v1934
  %v2887 = vsel %vm2832, %v2822, %v1936
  %v2888 = vsel %vm2832, %v2823, %v1938
  %v2889 = vsel %vm2832, %v2824, %v1940
  %v2890 = vsel %vm2832, %v2825, %v1942
  %v2891 = vsel %vm2832, %v2826, %v1944
  %v2892 = vsel %vm2832, %v2827, %v1946
  %v2893 = vsel %vm2832, %v2828, %v1948
  %v2894 = vsel %vm2832, %v2829, %v1950
  %v2895 = vsel %vm2832, %v2830, %v1952
  %v2896 = vsel %vm2832, %v2831, %v1954
  %vm2897 = vcmask 195584
  %v2898 = vsel %vm2897, %v2833, %v2022
  %v2899 = vsel %vm2897, %v2834, %v2024
  %v2900 = vsel %vm2897, %v2835, %v2026
  %v2901 = vsel %vm2897, %v2836, %v2028
  %v2902 = vsel %vm2897, %v2837, %v2030
  %v2903 = vsel %vm2897, %v2838, %v2032
  %v2904 = vsel %vm2897, %v2839, %v2034
  %v2905 = vsel %vm2897, %v2840, %v2036
  %v2906 = vsel %vm2897, %v2841, %v2038
  %v2907 = vsel %vm2897, %v2842, %v2040
  %v2908 = vsel %vm2897, %v2843, %v2042
  %v2909 = vsel %vm2897, %v2844, %v2044
  %v2910 = vsel %vm2897, %v2845, %v2046
  %v2911 = vsel %vm2897, %v2846, %v2048
  %v2912 = vsel %vm2897, %v2847, %v2050
  %v2913 = vsel %vm2897, %v2848, %v2052
  %v2914 = vsel %vm2897, %v2849, %v2054
  %v2915 = vsel %vm2897, %v2850, %v2056
  %v2916 = vsel %vm2897, %v2851, %v2058
  %v2917 = vsel %vm2897, %v2852, %v2060
  %v2918 = vsel %vm2897, %v2853, %v2062
  %v2919 = vsel %vm2897, %v2854, %v2064
  %v2920 = vsel %vm2897, %v2855, %v2066
  %v2921 = vsel %vm2897, %v2856, %v2068
  %v2922 = vsel %vm2897, %v2857, %v2070
  %v2923 = vsel %vm2897, %v2858, %v2072
  %v2924 = vsel %vm2897, %v2859, %v2074
  %v2925 = vsel %vm2897, %v2860, %v2076
  %v2926 = vsel %vm2897, %v2861, %v2078
  %v2927 = vsel %vm2897, %v2862, %v2080
  %v2928 = vsel %vm2897, %v2863, %v2082
  %v2929 = vsel %vm2897, %v2864, %v2084
  %v2930 = vsel %vm2897, %v2865, %v2086
  %v2931 = vsel %vm2897, %v2866, %v2088
  %v2932 = vsel %vm2897, %v2867, %v2090
  %v2933 = vsel %vm2897, %v2868, %v2092
  %v2934 = vsel %vm2897, %v2869, %v2094
  %v2935 = vsel %vm2897, %v2870, %v2096
  %v2936 = vsel %vm2897, %v2871, %v2098
  %v2937 = vsel %vm2897, %v2872, %v2100
  %v2938 = vsel %vm2897, %v2873, %v2102
  %v2939 = vsel %vm2897, %v2874, %v2104
  %v2940 = vsel %vm2897, %v2875, %v2106
  %v2941 = vsel %vm2897, %v2876, %v2108
  %v2942 = vsel %vm2897, %v2877, %v2110
  %v2943 = vsel %vm2897, %v2878, %v2112
  %v2944 = vsel %vm2897, %v2879, %v2114
  %v2945 = vsel %vm2897, %v2880, %v2116
  %v2946 = vsel %vm2897, %v2881, %v2118
  %v2947 = vsel %vm2897, %v2882, %v2120
  %v2948 = vsel %vm2897, %v2883, %v2122
  %v2949 = vsel %vm2897, %v2884, %v2124
  %v2950 = vsel %vm2897, %v2885, %v2126
  %v2951 = vsel %vm2897, %v2886, %v2128
  %v2952 = vsel %vm2897, %v2887, %v2130
  %v2953 = vsel %vm2897, %v2888, %v2132
  %v2954 = vsel %vm2897, %v2889, %v2134
  %v2955 = vsel %vm2897, %v2890, %v2136
  %v2956 = vsel %vm2897, %v2891, %v2138
  %v2957 = vsel %vm2897, %v2892, %v2140
  %v2958 = vsel %vm2897, %v2893, %v2142
  %v2959 = vsel %vm2897, %v2894, %v2144
  %v2960 = vsel %vm2897, %v2895, %v2082
  %v2961 = vsel %vm2897, %v2896, %v2084
  %vm2962 = vcmask 228352
  %v2963 = vsel %vm2962, %v2898, %v2208
  %v2964 = vsel %vm2962, %v2899, %v2210
  %v2965 = vsel %vm2962, %v2900, %v2212
  %v2966 = vsel %vm2962, %v2901, %v2214
  %v2967 = vsel %vm2962, %v2902, %v2216
  %v2968 = vsel %vm2962, %v2903, %v2218
  %v2969 = vsel %vm2962, %v2904, %v2220
  %v2970 = vsel %vm2962, %v2905, %v2222
  %v2971 = vsel %vm2962, %v2906, %v2224
  %v2972 = vsel %vm2962, %v2907, %v2226
  %v2973 = vsel %vm2962, %v2908, %v2228
  %v2974 = vsel %vm2962, %v2909, %v2230
  %v2975 = vsel %vm2962, %v2910, %v2232
  %v2976 = vsel %vm2962, %v2911, %v2234
  %v2977 = vsel %vm2962, %v2912, %v2236
  %v2978 = vsel %vm2962, %v2913, %v2238
  %v2979 = vsel %vm2962, %v2914, %v2240
  %v2980 = vsel %vm2962, %v2915, %v2242
  %v2981 = vsel %vm2962, %v2916, %v2244
  %v2982 = vsel %vm2962, %v2917, %v2246
  %v2983 = vsel %vm2962, %v2918, %v2248
  %v2984 = vsel %vm2962, %v2919, %v2250
  %v2985 = vsel %vm2962, %v2920, %v2252
  %v2986 = vsel %vm2962, %v2921, %v2254
  %v2987 = vsel %vm2962, %v2922, %v2256
  %v2988 = vsel %vm2962, %v2923, %v2258
  %v2989 = vsel %vm2962, %v2924, %v2260
  %v2990 = vsel %vm2962, %v2925, %v2262
  %v2991 = vsel %vm2962, %v2926, %v2264
  %v2992 = vsel %vm2962, %v2927, %v2266
  %v2993 = vsel %vm2962, %v2928, %v2268
  %v2994 = vsel %vm2962, %v2929, %v2268
  %v2995 = vsel %vm2962, %v2930, %v2270
  %v2996 = vsel %vm2962, %v2931, %v2272
  %v2997 = vsel %vm2962, %v2932, %v2274
  %v2998 = vsel %vm2962, %v2933, %v2276
  %v2999 = vsel %vm2962, %v2934, %v2278
  %v3000 = vsel %vm2962, %v2935, %v2280
  %v3001 = vsel %vm2962, %v2936, %v2282
  %v3002 = vsel %vm2962, %v2937, %v2284
  %v3003 = vsel %vm2962, %v2938, %v2286
  %v3004 = vsel %vm2962, %v2939, %v2288
  %v3005 = vsel %vm2962, %v2940, %v2290
  %v3006 = vsel %vm2962, %v2941, %v2292
  %v3007 = vsel %vm2962, %v2942, %v2294
  %v3008 = vsel %vm2962, %v2943, %v2296
  %v3009 = vsel %vm2962, %v2944, %v2298
  %v3010 = vsel %vm2962, %v2945, %v2300
  %v3011 = vsel %vm2962, %v2946, %v2302
  %v3012 = vsel %vm2962, %v2947, %v2304
  %v3013 = vsel %vm2962, %v2948, %v2306
  %v3014 = vsel %vm2962, %v2949, %v2308
  %v3015 = vsel %vm2962, %v2950, %v2310
  %v3016 = vsel %vm2962, %v2951, %v2312
  %v3017 = vsel %vm2962, %v2952, %v2314
  %v3018 = vsel %vm2962, %v2953, %v2316
  %v3019 = vsel %vm2962, %v2954, %v2318
  %v3020 = vsel %vm2962, %v2955, %v2320
  %v3021 = vsel %vm2962, %v2956, %v2322
  %v3022 = vsel %vm2962, %v2957, %v2324
  %v3023 = vsel %vm2962, %v2958, %v2326
  %v3024 = vsel %vm2962, %v2959, %v2328
  %v3025 = vsel %vm2962, %v2960, %v2268
  %v3026 = vsel %vm2962, %v2961, %v2268
  %vm3027 = vcmask 261120
  %v3028 = vsel %vm3027, %v2963, %v2391
  %v3029 = vsel %vm3027, %v2964, %v2393
  %v3030 = vsel %vm3027, %v2965, %v2395
  %v3031 = vsel %vm3027, %v2966, %v2397
  %v3032 = vsel %vm3027, %v2967, %v2399
  %v3033 = vsel %vm3027, %v2968, %v2401
  %v3034 = vsel %vm3027, %v2969, %v2403
  %v3035 = vsel %vm3027, %v2970, %v2405
  %v3036 = vsel %vm3027, %v2971, %v2407
  %v3037 = vsel %vm3027, %v2972, %v2409
  %v3038 = vsel %vm3027, %v2973, %v2411
  %v3039 = vsel %vm3027, %v2974, %v2413
  %v3040 = vsel %vm3027, %v2975, %v2415
  %v3041 = vsel %vm3027, %v2976, %v2417
  %v3042 = vsel %vm3027, %v2977, %v2419
  %v3043 = vsel %vm3027, %v2978, %v2421
  %v3044 = vsel %vm3027, %v2979, %v2423
  %v3045 = vsel %vm3027, %v2980, %v2425
  %v3046 = vsel %vm3027, %v2981, %v2427
  %v3047 = vsel %vm3027, %v2982, %v2429
  %v3048 = vsel %vm3027, %v2983, %v2431
  %v3049 = vsel %vm3027, %v2984, %v2433
  %v3050 = vsel %vm3027, %v2985, %v2435
  %v3051 = vsel %vm3027, %v2986, %v2437
  %v3052 = vsel %vm3027, %v2987, %v2439
  %v3053 = vsel %vm3027, %v2988, %v2441
  %v3054 = vsel %vm3027, %v2989, %v2443
  %v3055 = vsel %vm3027, %v2990, %v2445
  %v3056 = vsel %vm3027, %v2991, %v2447
  %v3057 = vsel %vm3027, %v2992, %v2449
  %v3058 = vsel %vm3027, %v2993, %v2451
  %v3059 = vsel %vm3027, %v2994, %v2453
  %v3060 = vsel %vm3027, %v2995, %v2455
  %v3061 = vsel %vm3027, %v2996, %v2457
  %v3062 = vsel %vm3027, %v2997, %v2459
  %v3063 = vsel %vm3027, %v2998, %v2461
  %v3064 = vsel %vm3027, %v2999, %v2463
  %v3065 = vsel %vm3027, %v3000, %v2465
  %v3066 = vsel %vm3027, %v3001, %v2467
  %v3067 = vsel %vm3027, %v3002, %v2469
  %v3068 = vsel %vm3027, %v3003, %v2471
  %v3069 = vsel %vm3027, %v3004, %v2473
  %v3070 = vsel %vm3027, %v3005, %v2475
  %v3071 = vsel %vm3027, %v3006, %v2477
  %v3072 = vsel %vm3027, %v3007, %v2479
  %v3073 = vsel %vm3027, %v3008, %v2481
  %v3074 = vsel %vm3027, %v3009, %v2483
  %v3075 = vsel %vm3027, %v3010, %v2485
  %v3076 = vsel %vm3027, %v3011, %v2487
  %v3077 = vsel %vm3027, %v3012, %v2489
  %v3078 = vsel %vm3027, %v3013, %v2491
  %v3079 = vsel %vm3027, %v3014, %v2493
  %v3080 = vsel %vm3027, %v3015, %v2495
  %v3081 = vsel %vm3027, %v3016, %v2497
  %v3082 = vsel %vm3027, %v3017, %v2499
  %v3083 = vsel %vm3027, %v3018, %v2501
  %v3084 = vsel %vm3027, %v3019, %v2503
  %v3085 = vsel %vm3027, %v3020, %v2505
  %v3086 = vsel %vm3027, %v3021, %v2507
  %v3087 = vsel %vm3027, %v3022, %v2509
  %v3088 = vsel %vm3027, %v3023, %v2511
  %v3089 = vsel %vm3027, %v3024, %v2513
  %v3090 = vsel %vm3027, %v3025, %v2451
  %v3091 = vsel %vm3027, %v3026, %v2453
  %v3092 = vpack.c.bf16 %v3029, %v3028
  %v3093 = vpack.c.bf16 %v3031, %v3030
  %v3094 = vpack.c.bf16 %v3033, %v3032
  %v3095 = vpack.c.bf16 %v3035, %v3034
  %v3096 = vpack.c.bf16 %v3037, %v3036
  %v3097 = vpack.c.bf16 %v3039, %v3038
  %v3098 = vpack.c.bf16 %v3041, %v3040
  %v3099 = vpack.c.bf16 %v3043, %v3042
  %v3100 = vpack.c.bf16 %v3045, %v3044
  %v3101 = vpack.c.bf16 %v3047, %v3046
  %v3102 = vpack.c.bf16 %v3049, %v3048
  %v3103 = vpack.c.bf16 %v3051, %v3050
  %v3104 = vpack.c.bf16 %v3053, %v3052
  %v3105 = vpack.c.bf16 %v3055, %v3054
  %v3106 = vpack.c.bf16 %v3057, %v3056
  %v3107 = vpack.c.bf16 %v3059, %v3058
  %v3108 = vpack.c.bf16 %v3061, %v3060
  %v3109 = vpack.c.bf16 %v3063, %v3062
  %v3110 = vpack.c.bf16 %v3065, %v3064
  %v3111 = vpack.c.bf16 %v3067, %v3066
  %v3112 = vpack.c.bf16 %v3069, %v3068
  %v3113 = vpack.c.bf16 %v3071, %v3070
  %v3114 = vpack.c.bf16 %v3073, %v3072
  %v3115 = vpack.c.bf16 %v3075, %v3074
  %v3116 = vpack.c.bf16 %v3077, %v3076
  %v3117 = vpack.c.bf16 %v3079, %v3078
  %v3118 = vpack.c.bf16 %v3081, %v3080
  %v3119 = vpack.c.bf16 %v3083, %v3082
  %v3120 = vpack.c.bf16 %v3085, %v3084
  %v3121 = vpack.c.bf16 %v3087, %v3086
  %v3122 = vpack.c.bf16 %v3089, %v3088
  %v3123 = vpack.c.bf16 %v3091, %v3090
  %v3124 = vld [vmem:[%s3] sm:$0xf]
  %v3125 = vld [vmem:[%s3 + $0x4] sm:$0xf]
  %v3126 = vld [vmem:[%s3 + $0x8] sm:$0xf]
  %v3127 = vld [vmem:[%s3 + $0xc] sm:$0xf]
  %v3128 = vld [vmem:[%s3 + $0x10] sm:$0x3]
  %v3129 = vlaneseq
  %v3130 = vshrl.u32 %v3129, 7
  %v3131 = vsub.s32 0, %v3130
  %v3132 = vrot.slane %v25, %v3131
  %v3138 = vunpack.c.l.b16 %v3124
  %v3139 = vunpack.c.l.b16 %v3125
  %v3140 = vunpack.c.l.b16 %v3126
  %v3141 = vunpack.c.l.b16 %v3127
  %v3142 = vunpack.c.l.b16 %v3128
  %v3143 = vpack.c.b16 %v3139, %v3138
  %v3144 = vpack.c.b16 %v3141, %v3140
  %v3145 = vpack.c.b16 %v3142, %v3142
  %vm3148 = vcmask 293888
  %v3150 = vsel %vm3148, %v3092, 0
  %v3153 = vsel %vm3148, %v3093, 0
  %v3156 = vsel %vm3148, %v3094, 0
  %v3159 = vsel %vm3148, %v3095, 0
  %v3162 = vsel %vm3148, %v3096, 0
  %v3165 = vsel %vm3148, %v3097, 0
  %v3168 = vsel %vm3148, %v3098, 0
  %v3171 = vsel %vm3148, %v3099, 0
  %v3174 = vsel %vm3148, %v3100, 0
  %v3177 = vsel %vm3148, %v3101, 0
  %v3180 = vsel %vm3148, %v3102, 0
  %v3183 = vsel %vm3148, %v3103, 0
  %v3186 = vsel %vm3148, %v3104, 0
  %v3189 = vsel %vm3148, %v3105, 0
  %v3192 = vsel %vm3148, %v3106, 0
  %v3195 = vsel %vm3148, %v3107, 0
  %v3198 = vsel %vm3148, %v3108, 0
  %v3201 = vsel %vm3148, %v3109, 0
  %v3204 = vsel %vm3148, %v3110, 0
  %v3207 = vsel %vm3148, %v3111, 0
  %v3210 = vsel %vm3148, %v3112, 0
  %v3213 = vsel %vm3148, %v3113, 0
  %v3216 = vsel %vm3148, %v3114, 0
  %v3219 = vsel %vm3148, %v3115, 0
  %v3222 = vsel %vm3148, %v3116, 0
  %v3225 = vsel %vm3148, %v3117, 0
  %v3228 = vsel %vm3148, %v3118, 0
  %v3231 = vsel %vm3148, %v3119, 0
  %v3234 = vsel %vm3148, %v3120, 0
  %v3237 = vsel %vm3148, %v3121, 0
  %v3240 = vsel %vm3148, %v3122, 0
  %v3243 = vsel %vm3148, %v3123, 0
  %vm3245 = vcmask 1041408
  %v3247 = vsel %vm3245, %v3145, 0
  %3249 = vmatprep.subr.bf16.mxu0 0
  %3250 = vmatpush1.bf16.msra.mxu0 0
  %3251 = vmatprep.subr.bf16.mxu0 0
  %3252 = vmatpush1.bf16.msra.mxu0 0
  %3253 = vmatprep.subr.bf16.mxu0 0
  %3254 = vmatpush1.bf16.msra.mxu0 0
  %3255 = vmatprep.subr.bf16.mxu0 0
  %3256 = vmatpush1.bf16.msra.mxu0 0
  %3257 = vmatprep.subr.bf16.mxu0 0
  %3258 = vmatpush1.bf16.msra.mxu0 0
  %3259 = vmatprep.subr.bf16.mxu0 0
  %3260 = vmatpush1.bf16.msra.mxu0 %v3247
  %3261 = vmatprep.subr.bf16.mxu0 0
  %3262 = vmatpush1.bf16.msra.mxu0 %v3144
  %3263 = vmatprep.subr.bf16.mxu0 0
  %3264 = vmatpush1.bf16.msra.mxu0 %v3143
  %3265 = vmatprep.subr.bf16.mxu0 0
  %3266 = vmatpush2.bf16.msra.mxu0 0
  %3267 = vmatprep.subr.bf16.mxu0 0
  %3268 = vmatpush2.bf16.msra.mxu0 0
  %3269 = vmatprep.subr.bf16.mxu0 0
  %3270 = vmatpush2.bf16.msra.mxu0 0
  %3271 = vmatprep.subr.bf16.mxu0 0
  %3272 = vmatpush2.bf16.msra.mxu0 0
  %3273 = vmatprep.subr.bf16.mxu0 0
  %3274 = vmatpush2.bf16.msra.mxu0 0
  %3275 = vmatprep.subr.bf16.mxu0 0
  %3276 = vmatpush2.bf16.msra.mxu0 0
  %3277 = vmatprep.subr.bf16.mxu0 0
  %3278 = vmatpush2.bf16.msra.mxu0 0
  %3279 = vmatprep.subr.bf16.mxu0 0
  %3280 = vmatpush2.bf16.msra.mxu0 0
  %3281 = vmatprep.mubr.bf16.mxu0 0
  %3282 = vmatmul.mubr.bf16.gmra.mxu0 %v3150
  %v3283 = vpop.f32.mrf.mxu0
  %v3284 = vadd.f32 %v3132, %v3283
  %v3285 = vpop.f32.mrf.mxu0
  %v3286 = vpop.f32.mrf.mxu0
  %v3287 = vadd.f32 %v3132, %v3286
  %v3288 = vpop.f32.mrf.mxu0
  %3289 = vmatprep.mubr.bf16.mxu0 0
  %3290 = vmatmul.mubr.bf16.gmra.mxu0 %v3153
  %v3291 = vpop.f32.mrf.mxu0
  %v3292 = vadd.f32 %v3132, %v3291
  %v3293 = vpop.f32.mrf.mxu0
  %v3294 = vpop.f32.mrf.mxu0
  %v3295 = vadd.f32 %v3132, %v3294
  %v3296 = vpop.f32.mrf.mxu0
  %3297 = vmatprep.mubr.bf16.mxu0 0
  %3298 = vmatmul.mubr.bf16.gmra.mxu0 %v3156
  %v3299 = vpop.f32.mrf.mxu0
  %v3300 = vadd.f32 %v3132, %v3299
  %v3301 = vpop.f32.mrf.mxu0
  %v3302 = vpop.f32.mrf.mxu0
  %v3303 = vadd.f32 %v3132, %v3302
  %v3304 = vpop.f32.mrf.mxu0
  %3305 = vmatprep.mubr.bf16.mxu0 0
  %3306 = vmatmul.mubr.bf16.gmra.mxu0 %v3159
  %v3307 = vpop.f32.mrf.mxu0
  %v3308 = vadd.f32 %v3132, %v3307
  %v3309 = vpop.f32.mrf.mxu0
  %v3310 = vpop.f32.mrf.mxu0
  %v3311 = vadd.f32 %v3132, %v3310
  %v3312 = vpop.f32.mrf.mxu0
  %3313 = vmatprep.mubr.bf16.mxu0 0
  %3314 = vmatmul.mubr.bf16.gmra.mxu0 %v3162
  %v3315 = vpop.f32.mrf.mxu0
  %v3316 = vadd.f32 %v3132, %v3315
  %v3317 = vpop.f32.mrf.mxu0
  %v3318 = vpop.f32.mrf.mxu0
  %v3319 = vadd.f32 %v3132, %v3318
  %v3320 = vpop.f32.mrf.mxu0
  %3321 = vmatprep.mubr.bf16.mxu0 0
  %3322 = vmatmul.mubr.bf16.gmra.mxu0 %v3165
  %v3323 = vpop.f32.mrf.mxu0
  %v3324 = vadd.f32 %v3132, %v3323
  %v3325 = vpop.f32.mrf.mxu0
  %v3326 = vpop.f32.mrf.mxu0
  %v3327 = vadd.f32 %v3132, %v3326
  %v3328 = vpop.f32.mrf.mxu0
  %3329 = vmatprep.mubr.bf16.mxu0 0
  %3330 = vmatmul.mubr.bf16.gmra.mxu0 %v3168
  %v3331 = vpop.f32.mrf.mxu0
  %v3332 = vadd.f32 %v3132, %v3331
  %v3333 = vpop.f32.mrf.mxu0
  %v3334 = vpop.f32.mrf.mxu0
  %v3335 = vadd.f32 %v3132, %v3334
  %v3336 = vpop.f32.mrf.mxu0
  %3337 = vmatprep.mubr.bf16.mxu0 0
  %3338 = vmatmul.mubr.bf16.gmra.mxu0 %v3171
  %v3339 = vpop.f32.mrf.mxu0
  %v3340 = vadd.f32 %v3132, %v3339
  %v3341 = vpop.f32.mrf.mxu0
  %v3342 = vpop.f32.mrf.mxu0
  %v3343 = vadd.f32 %v3132, %v3342
  %v3344 = vpop.f32.mrf.mxu0
  %3345 = vmatprep.mubr.bf16.mxu0 0
  %3346 = vmatmul.mubr.bf16.gmra.mxu0 %v3174
  %v3347 = vpop.f32.mrf.mxu0
  %v3348 = vadd.f32 %v3132, %v3347
  %v3349 = vpop.f32.mrf.mxu0
  %v3350 = vpop.f32.mrf.mxu0
  %v3351 = vadd.f32 %v3132, %v3350
  %v3352 = vpop.f32.mrf.mxu0
  %3353 = vmatprep.mubr.bf16.mxu0 0
  %3354 = vmatmul.mubr.bf16.gmra.mxu0 %v3177
  %v3355 = vpop.f32.mrf.mxu0
  %v3356 = vadd.f32 %v3132, %v3355
  %v3357 = vpop.f32.mrf.mxu0
  %v3358 = vpop.f32.mrf.mxu0
  %v3359 = vadd.f32 %v3132, %v3358
  %v3360 = vpop.f32.mrf.mxu0
  %3361 = vmatprep.mubr.bf16.mxu0 0
  %3362 = vmatmul.mubr.bf16.gmra.mxu0 %v3180
  %v3363 = vpop.f32.mrf.mxu0
  %v3364 = vadd.f32 %v3132, %v3363
  %v3365 = vpop.f32.mrf.mxu0
  %v3366 = vpop.f32.mrf.mxu0
  %v3367 = vadd.f32 %v3132, %v3366
  %v3368 = vpop.f32.mrf.mxu0
  %3369 = vmatprep.mubr.bf16.mxu0 0
  %3370 = vmatmul.mubr.bf16.gmra.mxu0 %v3183
  %v3371 = vpop.f32.mrf.mxu0
  %v3372 = vadd.f32 %v3132, %v3371
  %v3373 = vpop.f32.mrf.mxu0
  %v3374 = vpop.f32.mrf.mxu0
  %v3375 = vadd.f32 %v3132, %v3374
  %v3376 = vpop.f32.mrf.mxu0
  %3377 = vmatprep.mubr.bf16.mxu0 0
  %3378 = vmatmul.mubr.bf16.gmra.mxu0 %v3186
  %v3379 = vpop.f32.mrf.mxu0
  %v3380 = vadd.f32 %v3132, %v3379
  %v3381 = vpop.f32.mrf.mxu0
  %v3382 = vpop.f32.mrf.mxu0
  %v3383 = vadd.f32 %v3132, %v3382
  %v3384 = vpop.f32.mrf.mxu0
  %3385 = vmatprep.mubr.bf16.mxu0 0
  %3386 = vmatmul.mubr.bf16.gmra.mxu0 %v3189
  %v3387 = vpop.f32.mrf.mxu0
  %v3388 = vadd.f32 %v3132, %v3387
  %v3389 = vpop.f32.mrf.mxu0
  %v3390 = vpop.f32.mrf.mxu0
  %v3391 = vadd.f32 %v3132, %v3390
  %v3392 = vpop.f32.mrf.mxu0
  %3393 = vmatprep.mubr.bf16.mxu0 0
  %3394 = vmatmul.mubr.bf16.gmra.mxu0 %v3192
  %v3395 = vpop.f32.mrf.mxu0
  %v3396 = vadd.f32 %v3132, %v3395
  %v3397 = vpop.f32.mrf.mxu0
  %v3398 = vpop.f32.mrf.mxu0
  %v3399 = vadd.f32 %v3132, %v3398
  %v3400 = vpop.f32.mrf.mxu0
  %3401 = vmatprep.mubr.bf16.mxu0 0
  %3402 = vmatmul.mubr.bf16.gmra.mxu0 %v3195
  %v3403 = vpop.f32.mrf.mxu0
  %v3404 = vadd.f32 %v3132, %v3403
  %v3405 = vpop.f32.mrf.mxu0
  %v3406 = vpop.f32.mrf.mxu0
  %v3407 = vadd.f32 %v3132, %v3406
  %v3408 = vpop.f32.mrf.mxu0
  %3409 = vmatprep.mubr.bf16.mxu0 0
  %3410 = vmatmul.mubr.bf16.gmra.mxu0 %v3198
  %v3411 = vpop.f32.mrf.mxu0
  %v3412 = vadd.f32 %v3132, %v3411
  %v3413 = vpop.f32.mrf.mxu0
  %v3414 = vpop.f32.mrf.mxu0
  %v3415 = vadd.f32 %v3132, %v3414
  %v3416 = vpop.f32.mrf.mxu0
  %3417 = vmatprep.mubr.bf16.mxu0 0
  %3418 = vmatmul.mubr.bf16.gmra.mxu0 %v3201
  %v3419 = vpop.f32.mrf.mxu0
  %v3420 = vadd.f32 %v3132, %v3419
  %v3421 = vpop.f32.mrf.mxu0
  %v3422 = vpop.f32.mrf.mxu0
  %v3423 = vadd.f32 %v3132, %v3422
  %v3424 = vpop.f32.mrf.mxu0
  %3425 = vmatprep.mubr.bf16.mxu0 0
  %3426 = vmatmul.mubr.bf16.gmra.mxu0 %v3204
  %v3427 = vpop.f32.mrf.mxu0
  %v3428 = vadd.f32 %v3132, %v3427
  %v3429 = vpop.f32.mrf.mxu0
  %v3430 = vpop.f32.mrf.mxu0
  %v3431 = vadd.f32 %v3132, %v3430
  %v3432 = vpop.f32.mrf.mxu0
  %3433 = vmatprep.mubr.bf16.mxu0 0
  %3434 = vmatmul.mubr.bf16.gmra.mxu0 %v3207
  %v3435 = vpop.f32.mrf.mxu0
  %v3436 = vadd.f32 %v3132, %v3435
  %v3437 = vpop.f32.mrf.mxu0
  %v3438 = vpop.f32.mrf.mxu0
  %v3439 = vadd.f32 %v3132, %v3438
  %v3440 = vpop.f32.mrf.mxu0
  %3441 = vmatprep.mubr.bf16.mxu0 0
  %3442 = vmatmul.mubr.bf16.gmra.mxu0 %v3210
  %v3443 = vpop.f32.mrf.mxu0
  %v3444 = vadd.f32 %v3132, %v3443
  %v3445 = vpop.f32.mrf.mxu0
  %v3446 = vpop.f32.mrf.mxu0
  %v3447 = vadd.f32 %v3132, %v3446
  %v3448 = vpop.f32.mrf.mxu0
  %3449 = vmatprep.mubr.bf16.mxu0 0
  %3450 = vmatmul.mubr.bf16.gmra.mxu0 %v3213
  %v3451 = vpop.f32.mrf.mxu0
  %v3452 = vadd.f32 %v3132, %v3451
  %v3453 = vpop.f32.mrf.mxu0
  %v3454 = vpop.f32.mrf.mxu0
  %v3455 = vadd.f32 %v3132, %v3454
  %v3456 = vpop.f32.mrf.mxu0
  %3457 = vmatprep.mubr.bf16.mxu0 0
  %3458 = vmatmul.mubr.bf16.gmra.mxu0 %v3216
  %v3459 = vpop.f32.mrf.mxu0
  %v3460 = vadd.f32 %v3132, %v3459
  %v3461 = vpop.f32.mrf.mxu0
  %v3462 = vpop.f32.mrf.mxu0
  %v3463 = vadd.f32 %v3132, %v3462
  %v3464 = vpop.f32.mrf.mxu0
  %3465 = vmatprep.mubr.bf16.mxu0 0
  %3466 = vmatmul.mubr.bf16.gmra.mxu0 %v3219
  %v3467 = vpop.f32.mrf.mxu0
  %v3468 = vadd.f32 %v3132, %v3467
  %v3469 = vpop.f32.mrf.mxu0
  %v3470 = vpop.f32.mrf.mxu0
  %v3471 = vadd.f32 %v3132, %v3470
  %v3472 = vpop.f32.mrf.mxu0
  %3473 = vmatprep.mubr.bf16.mxu0 0
  %3474 = vmatmul.mubr.bf16.gmra.mxu0 %v3222
  %v3475 = vpop.f32.mrf.mxu0
  %v3476 = vadd.f32 %v3132, %v3475
  %v3477 = vpop.f32.mrf.mxu0
  %v3478 = vpop.f32.mrf.mxu0
  %v3479 = vadd.f32 %v3132, %v3478
  %v3480 = vpop.f32.mrf.mxu0
  %3481 = vmatprep.mubr.bf16.mxu0 0
  %3482 = vmatmul.mubr.bf16.gmra.mxu0 %v3225
  %v3483 = vpop.f32.mrf.mxu0
  %v3484 = vadd.f32 %v3132, %v3483
  %v3485 = vpop.f32.mrf.mxu0
  %v3486 = vpop.f32.mrf.mxu0
  %v3487 = vadd.f32 %v3132, %v3486
  %v3488 = vpop.f32.mrf.mxu0
  %3489 = vmatprep.mubr.bf16.mxu0 0
  %3490 = vmatmul.mubr.bf16.gmra.mxu0 %v3228
  %v3491 = vpop.f32.mrf.mxu0
  %v3492 = vadd.f32 %v3132, %v3491
  %v3493 = vpop.f32.mrf.mxu0
  %v3494 = vpop.f32.mrf.mxu0
  %v3495 = vadd.f32 %v3132, %v3494
  %v3496 = vpop.f32.mrf.mxu0
  %3497 = vmatprep.mubr.bf16.mxu0 0
  %3498 = vmatmul.mubr.bf16.gmra.mxu0 %v3231
  %v3499 = vpop.f32.mrf.mxu0
  %v3500 = vadd.f32 %v3132, %v3499
  %v3501 = vpop.f32.mrf.mxu0
  %v3502 = vpop.f32.mrf.mxu0
  %v3503 = vadd.f32 %v3132, %v3502
  %v3504 = vpop.f32.mrf.mxu0
  %3505 = vmatprep.mubr.bf16.mxu0 0
  %3506 = vmatmul.mubr.bf16.gmra.mxu0 %v3234
  %v3507 = vpop.f32.mrf.mxu0
  %v3508 = vadd.f32 %v3132, %v3507
  %v3509 = vpop.f32.mrf.mxu0
  %v3510 = vpop.f32.mrf.mxu0
  %v3511 = vadd.f32 %v3132, %v3510
  %v3512 = vpop.f32.mrf.mxu0
  %3513 = vmatprep.mubr.bf16.mxu0 0
  %3514 = vmatmul.mubr.bf16.gmra.mxu0 %v3237
  %v3515 = vpop.f32.mrf.mxu0
  %v3516 = vadd.f32 %v3132, %v3515
  %v3517 = vpop.f32.mrf.mxu0
  %v3518 = vpop.f32.mrf.mxu0
  %v3519 = vadd.f32 %v3132, %v3518
  %v3520 = vpop.f32.mrf.mxu0
  %3521 = vmatprep.mubr.bf16.mxu0 0
  %3522 = vmatmul.mubr.bf16.gmra.mxu0 %v3240
  %v3523 = vpop.f32.mrf.mxu0
  %v3524 = vadd.f32 %v3132, %v3523
  %v3525 = vpop.f32.mrf.mxu0
  %v3526 = vpop.f32.mrf.mxu0
  %v3527 = vadd.f32 %v3132, %v3526
  %v3528 = vpop.f32.mrf.mxu0
  %3529 = vmatprep.mubr.bf16.mxu0 0
  %3530 = vmatmul.mubr.bf16.gmra.mxu0 %v3243
  %v3531 = vpop.f32.mrf.mxu0
  %v3532 = vadd.f32 %v3132, %v3531
  %v3533 = vpop.f32.mrf.mxu0
  %v3534 = vpop.f32.mrf.mxu0
  %v3535 = vadd.f32 %v3132, %v3534
  %v3536 = vpop.f32.mrf.mxu0
  %3537 = vdwg.mxu0
  %v3538 = vadd.f32 %v3284, %v3292
  %v3539 = vadd.f32 %v3287, %v3295
  %v3540 = vadd.f32 %v3300, %v3308
  %v3541 = vadd.f32 %v3303, %v3311
  %v3542 = vadd.f32 %v3316, %v3324
  %v3543 = vadd.f32 %v3319, %v3327
  %v3544 = vadd.f32 %v3332, %v3340
  %v3545 = vadd.f32 %v3335, %v3343
  %v3546 = vadd.f32 %v3348, %v3356
  %v3547 = vadd.f32 %v3351, %v3359
  %v3548 = vadd.f32 %v3364, %v3372
  %v3549 = vadd.f32 %v3367, %v3375
  %v3550 = vadd.f32 %v3380, %v3388
  %v3551 = vadd.f32 %v3383, %v3391
  %v3552 = vadd.f32 %v3396, %v3404
  %v3553 = vadd.f32 %v3399, %v3407
  %v3554 = vadd.f32 %v3412, %v3420
  %v3555 = vadd.f32 %v3415, %v3423
  %v3556 = vadd.f32 %v3428, %v3436
  %v3557 = vadd.f32 %v3431, %v3439
  %v3558 = vadd.f32 %v3444, %v3452
  %v3559 = vadd.f32 %v3447, %v3455
  %v3560 = vadd.f32 %v3460, %v3468
  %v3561 = vadd.f32 %v3463, %v3471
  %v3562 = vadd.f32 %v3476, %v3484
  %v3563 = vadd.f32 %v3479, %v3487
  %v3564 = vadd.f32 %v3492, %v3500
  %v3565 = vadd.f32 %v3495, %v3503
  %v3566 = vadd.f32 %v3508, %v3516
  %v3567 = vadd.f32 %v3511, %v3519
  %v3568 = vadd.f32 %v3524, %v3532
  %v3569 = vadd.f32 %v3527, %v3535
  %3570 = vst.msk [vmem:[#allocation2] sm:$0xff] %vm2639, %v3538
  %3571 = vst.msk [vmem:[#allocation2 + $0x8] sm:$0xff] %vm2639, %v3539
  %3572 = vst.msk [vmem:[#allocation2 + $0x10] sm:$0xff] %vm2639, %v3540
  %3573 = vst.msk [vmem:[#allocation2 + $0x18] sm:$0xff] %vm2639, %v3541
  %3574 = vst.msk [vmem:[#allocation2 + $0x20] sm:$0xff] %vm2639, %v3542
  %3575 = vst.msk [vmem:[#allocation2 + $0x28] sm:$0xff] %vm2639, %v3543
  %3576 = vst.msk [vmem:[#allocation2 + $0x30] sm:$0xff] %vm2639, %v3544
  %3577 = vst.msk [vmem:[#allocation2 + $0x38] sm:$0xff] %vm2639, %v3545
  %3578 = vst.msk [vmem:[#allocation2 + $0x40] sm:$0xff] %vm2639, %v3546
  %3579 = vst.msk [vmem:[#allocation2 + $0x48] sm:$0xff] %vm2639, %v3547
  %3580 = vst.msk [vmem:[#allocation2 + $0x50] sm:$0xff] %vm2639, %v3548
  %3581 = vst.msk [vmem:[#allocation2 + $0x58] sm:$0xff] %vm2639, %v3549
  %3582 = vst.msk [vmem:[#allocation2 + $0x60] sm:$0xff] %vm2639, %v3550
  %3583 = vst.msk [vmem:[#allocation2 + $0x68] sm:$0xff] %vm2639, %v3551
  %3584 = vst.msk [vmem:[#allocation2 + $0x70] sm:$0xff] %vm2639, %v3552
  %3585 = vst.msk [vmem:[#allocation2 + $0x78] sm:$0xff] %vm2639, %v3553
  %3586 = vst.msk [vmem:[#allocation2 + $0x80] sm:$0xff] %vm2639, %v3554
  %3587 = vst.msk [vmem:[#allocation2 + $0x88] sm:$0xff] %vm2639, %v3555
  %3588 = vst.msk [vmem:[#allocation2 + $0x90] sm:$0xff] %vm2639, %v3556
  %3589 = vst.msk [vmem:[#allocation2 + $0x98] sm:$0xff] %vm2639, %v3557
  %3590 = vst.msk [vmem:[#allocation2 + $0xa0] sm:$0xff] %vm2639, %v3558
  %3591 = vst.msk [vmem:[#allocation2 + $0xa8] sm:$0xff] %vm2639, %v3559
  %3592 = vst.msk [vmem:[#allocation2 + $0xb0] sm:$0xff] %vm2639, %v3560
  %3593 = vst.msk [vmem:[#allocation2 + $0xb8] sm:$0xff] %vm2639, %v3561
  %3594 = vst.msk [vmem:[#allocation2 + $0xc0] sm:$0xff] %vm2639, %v3562
  %3595 = vst.msk [vmem:[#allocation2 + $0xc8] sm:$0xff] %vm2639, %v3563
  %3596 = vst.msk [vmem:[#allocation2 + $0xd0] sm:$0xff] %vm2639, %v3564
  %3597 = vst.msk [vmem:[#allocation2 + $0xd8] sm:$0xff] %vm2639, %v3565
  %3598 = vst.msk [vmem:[#allocation2 + $0xe0] sm:$0xff] %vm2639, %v3566
  %3599 = vst.msk [vmem:[#allocation2 + $0xe8] sm:$0xff] %vm2639, %v3567
  %3600 = vst.msk [vmem:[#allocation2 + $0xf0] sm:$0xff] %vm2639, %v3568
  %3601 = vst.msk [vmem:[#allocation2 + $0xf8] sm:$0xff] %vm2639, %v3569
  %v3602 = vld [vmem:[#allocation2] ss:$2 sm:$0xff]
  %s3603 = scalar_lea.vmem [#allocation2], 16
  %v3604 = vld [vmem:[%s3603] ss:$2 sm:$0xff]
  %s3605 = scalar_lea.vmem [#allocation2], 32
  %v3606 = vld [vmem:[%s3605] ss:$2 sm:$0xff]
  %s3607 = scalar_lea.vmem [#allocation2], 48
  %v3608 = vld [vmem:[%s3607] ss:$2 sm:$0xff]
  %s3609 = scalar_lea.vmem [#allocation2], 64
  %v3610 = vld [vmem:[%s3609] ss:$2 sm:$0xff]
  %s3611 = scalar_lea.vmem [#allocation2], 80
  %v3612 = vld [vmem:[%s3611] ss:$2 sm:$0xff]
  %s3613 = scalar_lea.vmem [#allocation2], 96
  %v3614 = vld [vmem:[%s3613] ss:$2 sm:$0xff]
  %s3615 = scalar_lea.vmem [#allocation2], 112
  %v3616 = vld [vmem:[%s3615] ss:$2 sm:$0xff]
  %s3617 = scalar_lea.vmem [#allocation2], 128
  %v3618 = vld [vmem:[%s3617] ss:$2 sm:$0xff]
  %s3619 = scalar_lea.vmem [#allocation2], 144
  %v3620 = vld [vmem:[%s3619] ss:$2 sm:$0xff]
  %s3621 = scalar_lea.vmem [#allocation2], 160
  %v3622 = vld [vmem:[%s3621] ss:$2 sm:$0xff]
  %s3623 = scalar_lea.vmem [#allocation2], 176
  %v3624 = vld [vmem:[%s3623] ss:$2 sm:$0xff]
  %s3625 = scalar_lea.vmem [#allocation2], 192
  %v3626 = vld [vmem:[%s3625] ss:$2 sm:$0xff]
  %s3627 = scalar_lea.vmem [#allocation2], 208
  %v3628 = vld [vmem:[%s3627] ss:$2 sm:$0xff]
  %s3629 = scalar_lea.vmem [#allocation2], 224
  %v3630 = vld [vmem:[%s3629] ss:$2 sm:$0xff]
  %s3631 = scalar_lea.vmem [#allocation2], 240
  %v3632 = vld [vmem:[%s3631] ss:$2 sm:$0xff]
  %s3633 = scalar_lea.vmem [#allocation2], 1
  %v3634 = vld [vmem:[%s3633] ss:$2 sm:$0xff]
  %s3635 = scalar_lea.vmem [#allocation2], 17
  %v3636 = vld [vmem:[%s3635] ss:$2 sm:$0xff]
  %s3637 = scalar_lea.vmem [#allocation2], 33
  %v3638 = vld [vmem:[%s3637] ss:$2 sm:$0xff]
  %s3639 = scalar_lea.vmem [#allocation2], 49
  %v3640 = vld [vmem:[%s3639] ss:$2 sm:$0xff]
  %s3641 = scalar_lea.vmem [#allocation2], 65
  %v3642 = vld [vmem:[%s3641] ss:$2 sm:$0xff]
  %s3643 = scalar_lea.vmem [#allocation2], 81
  %v3644 = vld [vmem:[%s3643] ss:$2 sm:$0xff]
  %s3645 = scalar_lea.vmem [#allocation2], 97
  %v3646 = vld [vmem:[%s3645] ss:$2 sm:$0xff]
  %s3647 = scalar_lea.vmem [#allocation2], 113
  %v3648 = vld [vmem:[%s3647] ss:$2 sm:$0xff]
  %s3649 = scalar_lea.vmem [#allocation2], 129
  %v3650 = vld [vmem:[%s3649] ss:$2 sm:$0xff]
  %s3651 = scalar_lea.vmem [#allocation2], 145
  %v3652 = vld [vmem:[%s3651] ss:$2 sm:$0xff]
  %s3653 = scalar_lea.vmem [#allocation2], 161
  %v3654 = vld [vmem:[%s3653] ss:$2 sm:$0xff]
  %s3655 = scalar_lea.vmem [#allocation2], 177
  %v3656 = vld [vmem:[%s3655] ss:$2 sm:$0xff]
  %s3657 = scalar_lea.vmem [#allocation2], 193
  %v3658 = vld [vmem:[%s3657] ss:$2 sm:$0xff]
  %s3659 = scalar_lea.vmem [#allocation2], 209
  %v3660 = vld [vmem:[%s3659] ss:$2 sm:$0xff]
  %s3661 = scalar_lea.vmem [#allocation2], 225
  %v3662 = vld [vmem:[%s3661] ss:$2 sm:$0xff]
  %s3663 = scalar_lea.vmem [#allocation2], 241
  %v3664 = vld [vmem:[%s3663] ss:$2 sm:$0xff]
  %v3665 = vadd.f32 %v3602, %v3634
  %v3666 = vadd.f32 %v3604, %v3636
  %v3667 = vadd.f32 %v3606, %v3638
  %v3668 = vadd.f32 %v3608, %v3640
  %v3669 = vadd.f32 %v3610, %v3642
  %v3670 = vadd.f32 %v3612, %v3644
  %v3671 = vadd.f32 %v3614, %v3646
  %v3672 = vadd.f32 %v3616, %v3648
  %v3673 = vadd.f32 %v3618, %v3650
  %v3674 = vadd.f32 %v3620, %v3652
  %v3675 = vadd.f32 %v3622, %v3654
  %v3676 = vadd.f32 %v3624, %v3656
  %v3677 = vadd.f32 %v3626, %v3658
  %v3678 = vadd.f32 %v3628, %v3660
  %v3679 = vadd.f32 %v3630, %v3662
  %v3680 = vadd.f32 %v3632, %v3664
  %v3681 = vmul.f32 %v3665, 0.25
  %v3682 = vmul.f32 %v3666, 0.25
  %v3683 = vmul.f32 %v3667, 0.25
  %v3684 = vmul.f32 %v3668, 0.25
  %v3685 = vmul.f32 %v3669, 0.25
  %v3686 = vmul.f32 %v3670, 0.25
  %v3687 = vmul.f32 %v3671, 0.25
  %v3688 = vmul.f32 %v3672, 0.25
  %v3689 = vmul.f32 %v3673, 0.25
  %v3690 = vmul.f32 %v3674, 0.25
  %v3691 = vmul.f32 %v3675, 0.25
  %v3692 = vmul.f32 %v3676, 0.25
  %v3693 = vmul.f32 %v3677, 0.25
  %v3694 = vmul.f32 %v3678, 0.25
  %v3695 = vmul.f32 %v3679, 0.25
  %v3696 = vmul.f32 %v3680, 0.25
  %v3697 = vld [vmem:[%s1] sm:$0xff]
  %v3698 = vld [vmem:[%s1 + $0x8] sm:$0xff]
  %v3699 = vld [vmem:[%s1 + $0x10] sm:$0xff]
  %v3700 = vld [vmem:[%s1 + $0x18] sm:$0xff]
  %v3701 = vld [vmem:[%s1 + $0x20] sm:$0xff]
  %v3702 = vld [vmem:[%s1 + $0x28] sm:$0xff]
  %v3703 = vld [vmem:[%s1 + $0x30] sm:$0xff]
  %v3704 = vld [vmem:[%s1 + $0x38] sm:$0xff]
  %v3705 = vld [vmem:[%s1 + $0x40] sm:$0xff]
  %v3706 = vld [vmem:[%s1 + $0x48] sm:$0xff]
  %v3707 = vld [vmem:[%s1 + $0x50] sm:$0xff]
  %v3708 = vld [vmem:[%s1 + $0x58] sm:$0xff]
  %v3709 = vld [vmem:[%s1 + $0x60] sm:$0xff]
  %v3710 = vld [vmem:[%s1 + $0x68] sm:$0xff]
  %v3711 = vld [vmem:[%s1 + $0x70] sm:$0xff]
  %v3712 = vld [vmem:[%s1 + $0x78] sm:$0xff]
  %v3713 = vpack.c.bf16 %v3698, %v3697
  %v3714 = vpack.c.bf16 %v3700, %v3699
  %v3715 = vpack.c.bf16 %v3702, %v3701
  %v3716 = vpack.c.bf16 %v3704, %v3703
  %v3717 = vpack.c.bf16 %v3706, %v3705
  %v3718 = vpack.c.bf16 %v3708, %v3707
  %v3719 = vpack.c.bf16 %v3710, %v3709
  %v3720 = vpack.c.bf16 %v3712, %v3711
  %v3721 = vld [vmem:[%s4] sm:$0x3]
  %v3722 = vlaneseq
  %v3723 = vshrl.u32 %v3722, 7
  %v3724 = vsub.s32 1, %v3723
  %v3725 = vrot.slane %v25, %v3724
  %v3727 = vsel %vm2576, %v3713, 0
  %v3730 = vsel %vm2576, %v3714, 0
  %v3733 = vsel %vm2576, %v3715, 0
  %v3736 = vsel %vm2576, %v3716, 0
  %v3739 = vsel %vm2576, %v3717, 0
  %v3742 = vsel %vm2576, %v3718, 0
  %v3745 = vsel %vm2576, %v3719, 0
  %v3748 = vsel %vm2576, %v3720, 0
  %v3751 = vsel %vm3245, %v3721, 0
  %3753 = vmatprep.subr.bf16.mxu0 0
  %3754 = vmatpush1.bf16.msra.mxu0 0
  %3755 = vmatprep.subr.bf16.mxu0 0
  %3756 = vmatpush1.bf16.msra.mxu0 0
  %3757 = vmatprep.subr.bf16.mxu0 0
  %3758 = vmatpush1.bf16.msra.mxu0 0
  %3759 = vmatprep.subr.bf16.mxu0 0
  %3760 = vmatpush1.bf16.msra.mxu0 0
  %3761 = vmatprep.subr.bf16.mxu0 0
  %3762 = vmatpush1.bf16.msra.mxu0 0
  %3763 = vmatprep.subr.bf16.mxu0 0
  %3764 = vmatpush1.bf16.msra.mxu0 0
  %3765 = vmatprep.subr.bf16.mxu0 0
  %3766 = vmatpush1.bf16.msra.mxu0 0
  %3767 = vmatprep.subr.bf16.mxu0 0
  %3768 = vmatpush1.bf16.msra.mxu0 %v3751
  %3769 = vmatprep.subr.bf16.mxu0 0
  %3770 = vmatpush2.bf16.msra.mxu0 0
  %3771 = vmatprep.subr.bf16.mxu0 0
  %3772 = vmatpush2.bf16.msra.mxu0 0
  %3773 = vmatprep.subr.bf16.mxu0 0
  %3774 = vmatpush2.bf16.msra.mxu0 0
  %3775 = vmatprep.subr.bf16.mxu0 0
  %3776 = vmatpush2.bf16.msra.mxu0 0
  %3777 = vmatprep.subr.bf16.mxu0 0
  %3778 = vmatpush2.bf16.msra.mxu0 0
  %3779 = vmatprep.subr.bf16.mxu0 0
  %3780 = vmatpush2.bf16.msra.mxu0 0
  %3781 = vmatprep.subr.bf16.mxu0 0
  %3782 = vmatpush2.bf16.msra.mxu0 0
  %3783 = vmatprep.subr.bf16.mxu0 0
  %3784 = vmatpush2.bf16.msra.mxu0 0
  %3785 = vmatprep.mubr.bf16.mxu0 0
  %3786 = vmatmul.mubr.bf16.gmra.mxu0 %v3727
  %v3787 = vpop.f32.mrf.mxu0
  %v3788 = vadd.f32 %v3725, %v3787
  %v3789 = vpop.f32.mrf.mxu0
  %v3790 = vpop.f32.mrf.mxu0
  %v3791 = vadd.f32 %v3725, %v3790
  %v3792 = vpop.f32.mrf.mxu0
  %3793 = vmatprep.mubr.bf16.mxu0 0
  %3794 = vmatmul.mubr.bf16.gmra.mxu0 %v3730
  %v3795 = vpop.f32.mrf.mxu0
  %v3796 = vadd.f32 %v3725, %v3795
  %v3797 = vpop.f32.mrf.mxu0
  %v3798 = vpop.f32.mrf.mxu0
  %v3799 = vadd.f32 %v3725, %v3798
  %v3800 = vpop.f32.mrf.mxu0
  %3801 = vmatprep.mubr.bf16.mxu0 0
  %3802 = vmatmul.mubr.bf16.gmra.mxu0 %v3733
  %v3803 = vpop.f32.mrf.mxu0
  %v3804 = vadd.f32 %v3725, %v3803
  %v3805 = vpop.f32.mrf.mxu0
  %v3806 = vpop.f32.mrf.mxu0
  %v3807 = vadd.f32 %v3725, %v3806
  %v3808 = vpop.f32.mrf.mxu0
  %3809 = vmatprep.mubr.bf16.mxu0 0
  %3810 = vmatmul.mubr.bf16.gmra.mxu0 %v3736
  %v3811 = vpop.f32.mrf.mxu0
  %v3812 = vadd.f32 %v3725, %v3811
  %v3813 = vpop.f32.mrf.mxu0
  %v3814 = vpop.f32.mrf.mxu0
  %v3815 = vadd.f32 %v3725, %v3814
  %v3816 = vpop.f32.mrf.mxu0
  %3817 = vmatprep.mubr.bf16.mxu0 0
  %3818 = vmatmul.mubr.bf16.gmra.mxu0 %v3739
  %v3819 = vpop.f32.mrf.mxu0
  %v3820 = vadd.f32 %v3725, %v3819
  %v3821 = vpop.f32.mrf.mxu0
  %v3822 = vpop.f32.mrf.mxu0
  %v3823 = vadd.f32 %v3725, %v3822
  %v3824 = vpop.f32.mrf.mxu0
  %3825 = vmatprep.mubr.bf16.mxu0 0
  %3826 = vmatmul.mubr.bf16.gmra.mxu0 %v3742
  %v3827 = vpop.f32.mrf.mxu0
  %v3828 = vadd.f32 %v3725, %v3827
  %v3829 = vpop.f32.mrf.mxu0
  %v3830 = vpop.f32.mrf.mxu0
  %v3831 = vadd.f32 %v3725, %v3830
  %v3832 = vpop.f32.mrf.mxu0
  %3833 = vmatprep.mubr.bf16.mxu0 0
  %3834 = vmatmul.mubr.bf16.gmra.mxu0 %v3745
  %v3835 = vpop.f32.mrf.mxu0
  %v3836 = vadd.f32 %v3725, %v3835
  %v3837 = vpop.f32.mrf.mxu0
  %v3838 = vpop.f32.mrf.mxu0
  %v3839 = vadd.f32 %v3725, %v3838
  %v3840 = vpop.f32.mrf.mxu0
  %3841 = vmatprep.mubr.bf16.mxu0 0
  %3842 = vmatmul.mubr.bf16.gmra.mxu0 %v3748
  %v3843 = vpop.f32.mrf.mxu0
  %v3844 = vadd.f32 %v3725, %v3843
  %v3845 = vpop.f32.mrf.mxu0
  %v3846 = vpop.f32.mrf.mxu0
  %v3847 = vadd.f32 %v3725, %v3846
  %v3848 = vpop.f32.mrf.mxu0
  %3849 = vdwg.mxu0
  %v3850 = vadd.f32 %v3681, %v3788
  %v3851 = vadd.f32 %v3682, %v3791
  %v3852 = vadd.f32 %v3683, %v3796
  %v3853 = vadd.f32 %v3684, %v3799
  %v3854 = vadd.f32 %v3685, %v3804
  %v3855 = vadd.f32 %v3686, %v3807
  %v3856 = vadd.f32 %v3687, %v3812
  %v3857 = vadd.f32 %v3688, %v3815
  %v3858 = vadd.f32 %v3689, %v3820
  %v3859 = vadd.f32 %v3690, %v3823
  %v3860 = vadd.f32 %v3691, %v3828
  %v3861 = vadd.f32 %v3692, %v3831
  %v3862 = vadd.f32 %v3693, %v3836
  %v3863 = vadd.f32 %v3694, %v3839
  %v3864 = vadd.f32 %v3695, %v3844
  %v3865 = vadd.f32 %v3696, %v3847
  %3866 = vst.msk [vmem:[%s6] sm:$0xff] %vm2639, %v3850
  %3867 = vst.msk [vmem:[%s6 + $0x8] sm:$0xff] %vm2639, %v3851
  %3868 = vst.msk [vmem:[%s6 + $0x10] sm:$0xff] %vm2639, %v3852
  %3869 = vst.msk [vmem:[%s6 + $0x18] sm:$0xff] %vm2639, %v3853
  %3870 = vst.msk [vmem:[%s6 + $0x20] sm:$0xff] %vm2639, %v3854
  %3871 = vst.msk [vmem:[%s6 + $0x28] sm:$0xff] %vm2639, %v3855
  %3872 = vst.msk [vmem:[%s6 + $0x30] sm:$0xff] %vm2639, %v3856
  %3873 = vst.msk [vmem:[%s6 + $0x38] sm:$0xff] %vm2639, %v3857
  %3874 = vst.msk [vmem:[%s6 + $0x40] sm:$0xff] %vm2639, %v3858
  %3875 = vst.msk [vmem:[%s6 + $0x48] sm:$0xff] %vm2639, %v3859
  %3876 = vst.msk [vmem:[%s6 + $0x50] sm:$0xff] %vm2639, %v3860
  %3877 = vst.msk [vmem:[%s6 + $0x58] sm:$0xff] %vm2639, %v3861
  %3878 = vst.msk [vmem:[%s6 + $0x60] sm:$0xff] %vm2639, %v3862
  %3879 = vst.msk [vmem:[%s6 + $0x68] sm:$0xff] %vm2639, %v3863
  %3880 = vst.msk [vmem:[%s6 + $0x70] sm:$0xff] %vm2639, %v3864
  %3881 = vst.msk [vmem:[%s6 + $0x78] sm:$0xff] %vm2639, %v3865
  // Predicated region
  $region26: #{res_block1.3} parent=0 // pred_check
    _
  $region27: #{res_block1.3} parent=0 // pred_check_branch
    %3883 = sbr.rel (0) target = $region29
  $region28: #{res_block1.3} parent=0 // pred_region
    _
  $region29: #{res_block1.3} parent=0 // pred_fallthru
    _
  // Predicated region
  $region30: #{res_block1.3} parent=0 // pred_check
    _
  $region31: #{res_block1.3} parent=0 // pred_check_branch
    %3885 = sbr.rel (0) target = $region33
  $region32: #{res_block1.3} parent=0 // pred_region
    _
  $region33: #{res_block1.3} parent=0 // pred_fallthru
    _

</llo_original>
